<compile_context>
chip_gen: v7x
topology: tpu7x:2x2x1
jax: 0.10.0
libtpu: 0.0.40
codegen_flags: <defaults>
</compile_context>

<pallas_src>
import jax
import jax.numpy as jnp
from jax.experimental import pallas as pl
from jax.experimental.pallas import tpu as pltpu

# ----------------------------- small config ---------------------------------
B = 2                      # batch
IMG = 32                   # image H = W   (module uses 384; small here)
PATCH = 16                 # patch size    (same as module)
C_IN = 3                   # image channels
N_PATCH = (IMG // PATCH) ** 2          # 4
L_IMG = N_PATCH + 1                    # +CLS -> 5
L_TXT = 8                  # text sequence length
D = 64                     # hidden size   (module: 768)
H = 4                      # attention heads (module: 12)
DH = D // H                # head dim
MLP = 4 * D                # mlp_ratio = 4
VIT_DEPTH = 2              # module: 12
BERT_LAYERS = 2            # module: 12
VOCAB = 100
MAX_POS = 32
TYPE_VOCAB = 2
LN_EPS_VIT = 1e-6
LN_EPS_BERT = 1e-12

MXU_DTYPE = jnp.bfloat16   # MXU input dtype (f32 accumulation)
_SQRT1_2 = 0.7071067811865476

# ----------------------------- in-kernel helpers -----------------------------
_DN_PROJ = (((2,), (1,)), ((0,), (0,)))   # (H,L,A) x (H,A,K) -> (H,L,K)
_DN_QK   = (((2,), (2,)), ((0,), (0,)))   # (H,Lq,DH) x (H,Lk,DH) -> (H,Lq,Lk)


def _bmm(a, b, dims):
    """Head-batched matmul: bf16 MXU inputs, f32 accumulation."""
    return jax.lax.dot_general(a.astype(MXU_DTYPE), b.astype(MXU_DTYPE), dims,
                               preferred_element_type=jnp.float32)


def _mm(a, b):
    """2-D matmul: bf16 MXU inputs, f32 accumulation."""
    return jnp.dot(a.astype(MXU_DTYPE), b.astype(MXU_DTYPE),
                   preferred_element_type=jnp.float32)


def _ln(x, g, b, eps):
    """LayerNorm over the last dim (biased variance, like torch), f32 math."""
    mu = jnp.mean(x, axis=-1, keepdims=True)
    xc = x - mu
    var = jnp.mean(xc * xc, axis=-1, keepdims=True)
    return xc * jax.lax.rsqrt(var + eps) * g + b


def _erf_approx(z):
    # Abramowitz & Stegun 7.1.26 polynomial erf, |error| < 1.5e-7 (f32-level).
    t = 1.0 / (1.0 + 0.3275911 * jnp.abs(z))
    poly = ((((1.061405429 * t - 1.453152027) * t + 1.421413741) * t
             - 0.284496736) * t + 0.254829592) * t
    y = 1.0 - poly * jnp.exp(-z * z)
    return jnp.where(z >= 0.0, y, -y)


def _gelu_exact(x):
    # TODO(synk): exact erf-based GELU realized with a <1.5e-7 polynomial erf,
    # since lax.erf lowering inside Mosaic is not guaranteed.
    return x * 0.5 * (1.0 + _erf_approx(x * _SQRT1_2))


def _mha_heads(xq, xkv, wq, bq, wk, bk, wv, bv, wo, bo, scale, bias=None):
    """All-heads attention + output projection, heads on the leading batch axis.
      xq: (Lq, D), xkv: (Lk, D); wq/wk/wv: (H, D, DH); bq/bk/bv: (H, 1, DH);
      wo: (H, DH, D); bo: (1, D); bias broadcastable to (H, Lq, Lk) or None.
    Returns (Lq, D).
    """
    Hh = wq.shape[0]
    xq_b = jnp.broadcast_to(xq, (Hh,) + xq.shape)     # (H, Lq, D)
    xkv_b = jnp.broadcast_to(xkv, (Hh,) + xkv.shape)  # (H, Lk, D)
    q = _bmm(xq_b, wq, _DN_PROJ) + bq                 # (H, Lq, DH)
    k = _bmm(xkv_b, wk, _DN_PROJ) + bk                # (H, Lk, DH)
    v = _bmm(xkv_b, wv, _DN_PROJ) + bv                # (H, Lk, DH)
    s = _bmm(q, k, _DN_QK) * scale                    # (H, Lq, Lk), f32
    if bias is not None:
        s = s + bias
    m = jnp.max(s, axis=-1, keepdims=True)
    p = jnp.exp(s - m)
    p = p * pl.reciprocal(jnp.sum(p, axis=-1, keepdims=True), approx=True)
    ctx = _bmm(p, v, _DN_PROJ)                        # (H, Lq, DH)
    out = _bmm(ctx, wo, _DN_PROJ)                     # (H, Lq, D)
    return jnp.sum(out, axis=0) + bo                  # (Lq, D)


# ----------------------------- Pallas kernels --------------------------------
def _vit_stack_kernel(x_ref,
                      n1g, n1b, wq, bq, wk, bk, wv, bv, wo, bo,
                      n2g, n2b, w1, b1, w2, b2, fng, fnb,
                      o_ref, acc):
    """One grid step = one pre-norm ViT block for one batch element.
    grid = (batch, depth); the activation is carried in `acc` (VMEM scratch)
    across the depth axis; the final encoder LN is fused into the last step."""
    l = pl.program_id(1)

    @pl.when(l == 0)
    def _():
        acc[...] = x_ref[0].astype(jnp.float32)

    x = acc[...]                                               # (L, D)
    h = _ln(x, n1g[0], n1b[0], LN_EPS_VIT)
    x = x + _mha_heads(h, h, wq[0], bq[0], wk[0], bk[0], wv[0], bv[0],
                       wo[0], bo[0], scale=DH ** -0.5)
    h = _ln(x, n2g[0], n2b[0], LN_EPS_VIT)
    h = _gelu_exact(_mm(h, w1[0]) + b1[0])
    x = x + (_mm(h, w2[0]) + b2[0])
    acc[...] = x

    @pl.when(l == pl.num_programs(1) - 1)
    def _():
        o_ref[0] = _ln(x, fng[...], fnb[...], LN_EPS_VIT).astype(o_ref.dtype)


def _bert_stack_kernel(x_ref, mask_ref, img_ref, eg, eb,
                       sa_wq, sa_bq, sa_wk, sa_bk, sa_wv, sa_bv, sa_wo, sa_bo,
                       sa_lng, sa_lnb,
                       ca_wq, ca_bq, ca_wk, ca_bk, ca_wv, ca_bv, ca_wo, ca_bo,
                       ca_lng, ca_lnb,
                       i_w, i_b, ow, ob, o_lng, o_lnb,
                       o_ref, acc):
    """One grid step = one full BERT layer (self-attn + cross-attn + MLP, each
    post-LN) for one batch element.  grid = (batch, num_layers); embedding LN
    is fused into the first step; image tokens stay resident in VMEM."""
    l = pl.program_id(1)

    @pl.when(l == 0)
    def _():
        acc[...] = _ln(x_ref[0], eg[...], eb[...], LN_EPS_BERT)

    x = acc[...]                                               # (Lt, D)
    bias = (1.0 - mask_ref[...]) * -10000.0                    # (1, 1, Lt)

    # self-attention sublayer
    a = _mha_heads(x, x, sa_wq[0], sa_bq[0], sa_wk[0], sa_bk[0],
                   sa_wv[0], sa_bv[0], sa_wo[0], sa_bo[0],
                   scale=DH ** -0.5, bias=bias)
    x = _ln(x + a, sa_lng[0], sa_lnb[0], LN_EPS_BERT)

    # cross-attention sublayer (image_atts == 1 -> no bias tensor)
    kv = img_ref[0]                                            # (Li, D)
    a = _mha_heads(x, kv, ca_wq[0], ca_bq[0], ca_wk[0], ca_bk[0],
                   ca_wv[0], ca_bv[0], ca_wo[0], ca_bo[0], scale=DH ** -0.5)
    x = _ln(x + a, ca_lng[0], ca_lnb[0], LN_EPS_BERT)

    # MLP sublayer
    h = _gelu_exact(_mm(x, i_w[0]) + i_b[0])
    h = _mm(h, ow[0]) + ob[0]
    x = _ln(x + h, o_lng[0], o_lnb[0], LN_EPS_BERT)

    acc[...] = x

    @pl.when(l == pl.num_programs(1) - 1)
    def _():
        o_ref[0] = x.astype(o_ref.dtype)


def _dense_kernel(x_ref, w_ref, b_ref, o_ref):
    o_ref[...] = (_mm(x_ref[...], w_ref[...]) + b_ref[...]).astype(o_ref.dtype)


# ----------------------------- pallas_call wrappers ---------------------------
def _const_spec(arr):
    """Full array as one block, constant across the (b, l) grid."""
    nd = arr.ndim
    return pl.BlockSpec(arr.shape, lambda b, l, _n=nd: (0,) * _n)


def _stacked_spec(arr):
    """Per-layer stacked weight: block is one layer's slice, indexed by l."""
    nd = arr.ndim
    return pl.BlockSpec((1,) + arr.shape[1:],
                        lambda b, l, _n=nd: (l,) + (0,) * (_n - 1))


_PARALLEL_ARB = pltpu.CompilerParams(
    dimension_semantics=("parallel", "arbitrary"))


def vit_stack(x, params):
    B_, L, _ = x.shape
    vp = params["vit"]
    names = ("n1_g", "n1_b", "wq", "bq", "wk", "bk", "wv", "bv", "wo", "bo",
             "n2_g", "n2_b", "fc1_w", "fc1_b", "fc2_w", "fc2_b")
    ws = [vp[n] for n in names]
    return pl.pallas_call(
        _vit_stack_kernel,
        out_shape=jax.ShapeDtypeStruct((B_, L, D), jnp.float32),
        grid=(B_, VIT_DEPTH),
        in_specs=[pl.BlockSpec((1, L, D), lambda b, l: (b, 0, 0))]
                 + [_stacked_spec(w) for w in ws]
                 + [_const_spec(params["vit_n_g"]),
                    _const_spec(params["vit_n_b"])],
        out_specs=pl.BlockSpec((1, L, D), lambda b, l: (b, 0, 0)),
        scratch_shapes=[pltpu.VMEM((L, D), jnp.float32)],
        compiler_params=_PARALLEL_ARB,
    )(x, *ws, params["vit_n_g"], params["vit_n_b"])


def bert_stack(emb, mask_b, image_embeds, params):
    B_, Lt, _ = emb.shape
    Li = image_embeds.shape[1]
    bp = params["bert"]
    names = ("sa_wq", "sa_bq", "sa_wk", "sa_bk", "sa_wv", "sa_bv",
             "sa_wo", "sa_bo", "sa_ln_g", "sa_ln_b",
             "ca_wq", "ca_bq", "ca_wk", "ca_bk", "ca_wv", "ca_bv",
             "ca_wo", "ca_bo", "ca_ln_g", "ca_ln_b",
             "i_w", "i_b", "o_w", "o_b", "o_ln_g", "o_ln_b")
    ws = [bp[n] for n in names]
    return pl.pallas_call(
        _bert_stack_kernel,
        out_shape=jax.ShapeDtypeStruct((B_, Lt, D), jnp.float32),
        grid=(B_, BERT_LAYERS),
        in_specs=[pl.BlockSpec((1, Lt, D), lambda b, l: (b, 0, 0)),
                  pl.BlockSpec((1, 1, Lt), lambda b, l: (b, 0, 0)),
                  pl.BlockSpec((1, Li, D), lambda b, l: (b, 0, 0)),
                  _const_spec(params["emb_ln_g"]),
                  _const_spec(params["emb_ln_b"])]
                 + [_stacked_spec(w) for w in ws],
        out_specs=pl.BlockSpec((1, Lt, D), lambda b, l: (b, 0, 0)),
        scratch_shapes=[pltpu.VMEM((Lt, D), jnp.float32)],
        compiler_params=_PARALLEL_ARB,
    )(emb, mask_b, image_embeds, params["emb_ln_g"], params["emb_ln_b"], *ws)


def dense(x, w, b):
    M, K = x.shape
    N = w.shape[1]
    return pl.pallas_call(
        _dense_kernel,
        out_shape=jax.ShapeDtypeStruct((M, N), x.dtype),
        grid=(1,),
        in_specs=[pl.BlockSpec((M, K), lambda i: (0, 0)),
                  pl.BlockSpec((K, N), lambda i: (0, 0)),
                  pl.BlockSpec((1, N), lambda i: (0, 0))],
        out_specs=pl.BlockSpec((M, N), lambda i: (0, 0)),
    )(x, w, b)


# ----------------------------- forward passes ---------------------------------
def vit_forward(params, image):
    B_, C, Him, Wim = image.shape
    nH, nW = Him // PATCH, Wim // PATCH
    # patch-embed conv (kernel == stride == patch) == matmul on unfolded
    # patches; row layout (C, ph, pw) matches a flattened PyTorch conv weight.
    patches = image.reshape(B_, C, nH, PATCH, nW, PATCH)
    patches = patches.transpose(0, 2, 4, 1, 3, 5).reshape(
        B_ * nH * nW, C * PATCH * PATCH)
    x = dense(patches, params["patch_w"], params["patch_b"]).reshape(
        B_, nH * nW, D)
    cls = jnp.broadcast_to(params["cls_token"], (B_, 1, D))
    x = jnp.concatenate([cls, x], axis=1) + params["pos_embed"]   # (B, L_IMG, D)
    # whole ViT block stack + final LayerNorm fused in a single pallas_call
    return vit_stack(x, params)


def bert_embeddings_sum(params, input_ids):
    # word + position + token_type embeddings (gathers stay in plain JAX);
    # the embedding LayerNorm is fused into the first BERT-stack grid step.
    B_, L = input_ids.shape
    we = params["word_emb"][input_ids]
    pe = params["pos_emb"][jnp.arange(L)][None, :, :]
    te = params["type_emb"][0][None, None, :]                  # token_type_ids = 0
    return we + pe + te


def vl_transformer_itm_forward(params, image, input_ids, attention_mask):
    image_embeds = vit_forward(params, image)                  # (B, L_IMG, D)
    emb = bert_embeddings_sum(params, input_ids)               # (B, L_TXT, D)
    # raw (B, 1, Lt) mask; (1 - mask) * -1e4 is built inside the kernel.
    mask_b = attention_mask.astype(jnp.float32)[:, None, :]
    x = bert_stack(emb, mask_b, image_embeds, params)          # (B, L_TXT, D)
    vl_embeddings = x[:, 0, :]                                 # CLS token (B, D)
    # ITM head kept in plain JAX (tiny (B,D)@(D,2); a Pallas call would be
    # pure launch overhead with a 2-lane masked store).
    return vl_embeddings @ params["itm_w"] + params["itm_b"]


# ----------------------------- parameters -------------------------------------
def init_params(key):
    keys = iter(jax.random.split(key, 64))
    nrm = lambda shape: (0.02 * jax.random.normal(next(keys), shape)).astype(jnp.float32)
    zeros = lambda shape: jnp.zeros(shape, jnp.float32)
    ones = lambda shape: jnp.ones(shape, jnp.float32)

    def mha_stack(n, prefix=""):
        # Per-head layout: w?[l, h] is the (D, DH) slice of the corresponding
        # PyTorch Linear weight for head h of layer l (transposed to in x out);
        # wo[l, h] is rows [h*DH:(h+1)*DH] of the output projection (transposed).
        return {
            prefix + "wq": nrm((n, H, D, DH)), prefix + "bq": zeros((n, H, 1, DH)),
            prefix + "wk": nrm((n, H, D, DH)), prefix + "bk": zeros((n, H, 1, DH)),
            prefix + "wv": nrm((n, H, D, DH)), prefix + "bv": zeros((n, H, 1, DH)),
            prefix + "wo": nrm((n, H, DH, D)), prefix + "bo": zeros((n, 1, D)),
        }

    p = {
        "patch_w": nrm((C_IN * PATCH * PATCH, D)), "patch_b": zeros((1, D)),
        "cls_token": nrm((1, 1, D)), "pos_embed": nrm((1, L_IMG, D)),
        "vit_n_g": ones((1, D)), "vit_n_b": zeros((1, D)),
        "word_emb": nrm((VOCAB, D)), "pos_emb": nrm((MAX_POS, D)),
        "type_emb": nrm((TYPE_VOCAB, D)),
        "emb_ln_g": ones((1, D)), "emb_ln_b": zeros((1, D)),
        "itm_w": nrm((D, 2)), "itm_b": zeros((2,)),
    }
    p["vit"] = dict(
        n1_g=ones((VIT_DEPTH, 1, D)), n1_b=zeros((VIT_DEPTH, 1, D)),
        **mha_stack(VIT_DEPTH),
        n2_g=ones((VIT_DEPTH, 1, D)), n2_b=zeros((VIT_DEPTH, 1, D)),
        fc1_w=nrm((VIT_DEPTH, D, MLP)), fc1_b=zeros((VIT_DEPTH, 1, MLP)),
        fc2_w=nrm((VIT_DEPTH, MLP, D)), fc2_b=zeros((VIT_DEPTH, 1, D)),
    )
    p["bert"] = dict(
        **mha_stack(BERT_LAYERS, "sa_"),
        sa_ln_g=ones((BERT_LAYERS, 1, D)), sa_ln_b=zeros((BERT_LAYERS, 1, D)),
        **mha_stack(BERT_LAYERS, "ca_"),
        ca_ln_g=ones((BERT_LAYERS, 1, D)), ca_ln_b=zeros((BERT_LAYERS, 1, D)),
        i_w=nrm((BERT_LAYERS, D, MLP)), i_b=zeros((BERT_LAYERS, 1, MLP)),
        o_w=nrm((BERT_LAYERS, MLP, D)), o_b=zeros((BERT_LAYERS, 1, D)),
        o_ln_g=ones((BERT_LAYERS, 1, D)), o_ln_b=zeros((BERT_LAYERS, 1, D)),
    )
    return p


# ----------------------------- main --------------------------------------------
if __name__ == "__main__":
    root = jax.random.PRNGKey(0)
    kp, kimg, ktxt = jax.random.split(root, 3)

    params = init_params(kp)
    image = jax.random.normal(kimg, (B, C_IN, IMG, IMG), dtype=jnp.float32)
    input_ids = jax.random.randint(ktxt, (B, L_TXT), 0, VOCAB, dtype=jnp.int32)
    attention_mask = jnp.array([[1] * L_TXT,
                                [1] * (L_TXT - 2) + [0, 0]], dtype=jnp.int32)

    fwd = jax.jit(vl_transformer_itm_forward)
    out = fwd(params, image, input_ids, attention_mask)
    out = jax.block_until_ready(out)
    assert out.shape == (B, 2) and out.dtype == jnp.float32
    print("KERNEL_OK")
</pallas_src>

<mosaic_0001>
module attributes {stable_mosaic.version = 11 : i64} {
  func.func @_dense_kernel(%arg0: i32, %arg1: memref<8x768xf32, #tpu.memory_space<vmem>>, %arg2: memref<768x64xf32, #tpu.memory_space<vmem>>, %arg3: memref<1x64xf32, #tpu.memory_space<vmem>>, %arg4: memref<8x64xf32, #tpu.memory_space<vmem>>) attributes {dimension_semantics = [#tpu.dimension_semantics<arbitrary>], iteration_bounds = array<i64: 1>, scalar_prefetch = 0 : i64, scratch_operands = 0 : i64, tpu.core_type = #tpu.core_type<tc>, window_params = [{pipeline_mode = #tpu.pipeline_mode<synchronous>, transform_indices = @transform_0, window_bounds = array<i64: 8, 768>}, {pipeline_mode = #tpu.pipeline_mode<synchronous>, transform_indices = @transform_1, window_bounds = array<i64: 768, 64>}, {pipeline_mode = #tpu.pipeline_mode<synchronous>, transform_indices = @transform_2, window_bounds = array<i64: 1, 64>}, {pipeline_mode = #tpu.pipeline_mode<synchronous>, transform_indices = @transform_3, window_bounds = array<i64: 8, 64>}]} {
    %c0 = arith.constant 0 : index
    %c0_0 = arith.constant 0 : index
    %0 = vector.load %arg1[%c0, %c0_0] : memref<8x768xf32, #tpu.memory_space<vmem>>, vector<8x768xf32>
    %c0_1 = arith.constant 0 : index
    %c0_2 = arith.constant 0 : index
    %1 = vector.load %arg2[%c0_1, %c0_2] : memref<768x64xf32, #tpu.memory_space<vmem>>, vector<768x64xf32>
    %2 = arith.truncf %0 : vector<8x768xf32> to vector<8x768xbf16>
    %3 = arith.truncf %1 : vector<768x64xf32> to vector<768x64xbf16>
    %cst = arith.constant dense<0.000000e+00> : vector<8x64xf32>
    %4 = tpu.matmul %2, %3, %cst {dimension_numbers = #tpu.dot_dimension_numbers<[1], [0], [0], [1], [0, 0, 1, 1], [], []>} : vector<8x768xbf16>, vector<768x64xbf16>, vector<8x64xf32> -> vector<8x64xf32>
    %c0_3 = arith.constant 0 : index
    %c0_4 = arith.constant 0 : index
    %5 = vector.load %arg3[%c0_3, %c0_4] : memref<1x64xf32, #tpu.memory_space<vmem>>, vector<1x64xf32>
    %6 = vector.broadcast %5 : vector<1x64xf32> to vector<8x64xf32>
    %7 = arith.addf %4, %6 : vector<8x64xf32>
    %c0_5 = arith.constant 0 : index
    %c0_6 = arith.constant 0 : index
    %8 = vector.load %arg4[%c0_5, %c0_6] : memref<8x64xf32, #tpu.memory_space<vmem>>, vector<8x64xf32>
    tpu.vector_store %arg4[%c0_5, %c0_6], %7 {strides = array<i32>} : memref<8x64xf32, #tpu.memory_space<vmem>>, vector<8x64xf32>,
    return
  }
  func.func @transform_0(%arg0: i32) -> (i32, i32) {
    %c0_i32 = arith.constant 0 : i32
    %c0_i32_0 = arith.constant 0 : i32
    %c0_i32_1 = arith.constant 0 : i32
    return %c0_i32, %c0_i32_0 : i32, i32
  }
  func.func @transform_1(%arg0: i32) -> (i32, i32) {
    %c0_i32 = arith.constant 0 : i32
    %c0_i32_0 = arith.constant 0 : i32
    %c0_i32_1 = arith.constant 0 : i32
    return %c0_i32, %c0_i32_0 : i32, i32
  }
  func.func @transform_2(%arg0: i32) -> (i32, i32) {
    %c0_i32 = arith.constant 0 : i32
    %c0_i32_0 = arith.constant 0 : i32
    %c0_i32_1 = arith.constant 0 : i32
    return %c0_i32, %c0_i32_0 : i32, i32
  }
  func.func @transform_3(%arg0: i32) -> (i32, i32) {
    %c0_i32 = arith.constant 0 : i32
    %c0_i32_0 = arith.constant 0 : i32
    %c0_i32_1 = arith.constant 0 : i32
    return %c0_i32, %c0_i32_0 : i32, i32
  }
}

module attributes {stable_mosaic.version = 11 : i64} {
  func.func @_vit_stack_kernel(%arg0: i32, %arg1: i32, %arg2: memref<1x5x64xf32, #tpu.memory_space<vmem>>, %arg3: memref<1x1x64xf32, #tpu.memory_space<vmem>>, %arg4: memref<1x1x64xf32, #tpu.memory_space<vmem>>, %arg5: memref<1x4x64x16xf32, #tpu.memory_space<vmem>>, %arg6: memref<1x4x1x16xf32, #tpu.memory_space<vmem>>, %arg7: memref<1x4x64x16xf32, #tpu.memory_space<vmem>>, %arg8: memref<1x4x1x16xf32, #tpu.memory_space<vmem>>, %arg9: memref<1x4x64x16xf32, #tpu.memory_space<vmem>>, %arg10: memref<1x4x1x16xf32, #tpu.memory_space<vmem>>, %arg11: memref<1x4x16x64xf32, #tpu.memory_space<vmem>>, %arg12: memref<1x1x64xf32, #tpu.memory_space<vmem>>, %arg13: memref<1x1x64xf32, #tpu.memory_space<vmem>>, %arg14: memref<1x1x64xf32, #tpu.memory_space<vmem>>, %arg15: memref<1x64x256xf32, #tpu.memory_space<vmem>>, %arg16: memref<1x1x256xf32, #tpu.memory_space<vmem>>, %arg17: memref<1x256x64xf32, #tpu.memory_space<vmem>>, %arg18: memref<1x1x64xf32, #tpu.memory_space<vmem>>, %arg19: memref<1x64xf32, #tpu.memory_space<vmem>>, %arg20: memref<1x64xf32, #tpu.memory_space<vmem>>, %arg21: memref<1x5x64xf32, #tpu.memory_space<vmem>>, %arg22: memref<5x64xf32, #tpu.memory_space<vmem>>) attributes {dimension_semantics = [#tpu.dimension_semantics<parallel>, #tpu.dimension_semantics<arbitrary>], iteration_bounds = array<i64: 2, 2>, scalar_prefetch = 0 : i64, scratch_operands = 1 : i64, tpu.core_type = #tpu.core_type<tc>, window_params = [{transform_indices = @transform_0, window_bounds = array<i64: 1, 5, 64>}, {transform_indices = @transform_1, window_bounds = array<i64: 1, 1, 64>}, {transform_indices = @transform_2, window_bounds = array<i64: 1, 1, 64>}, {transform_indices = @transform_3, window_bounds = array<i64: 1, 4, 64, 16>}, {transform_indices = @transform_4, window_bounds = array<i64: 1, 4, 1, 16>}, {transform_indices = @transform_5, window_bounds = array<i64: 1, 4, 64, 16>}, {transform_indices = @transform_6, window_bounds = array<i64: 1, 4, 1, 16>}, {transform_indices = @transform_7, window_bounds = array<i64: 1, 4, 64, 16>}, {transform_indices = @transform_8, window_bounds = array<i64: 1, 4, 1, 16>}, {transform_indices = @transform_9, window_bounds = array<i64: 1, 4, 16, 64>}, {transform_indices = @transform_10, window_bounds = array<i64: 1, 1, 64>}, {transform_indices = @transform_11, window_bounds = array<i64: 1, 1, 64>}, {transform_indices = @transform_12, window_bounds = array<i64: 1, 1, 64>}, {transform_indices = @transform_13, window_bounds = array<i64: 1, 64, 256>}, {transform_indices = @transform_14, window_bounds = array<i64: 1, 1, 256>}, {transform_indices = @transform_15, window_bounds = array<i64: 1, 256, 64>}, {transform_indices = @transform_16, window_bounds = array<i64: 1, 1, 64>}, {pipeline_mode = #tpu.pipeline_mode<synchronous>, transform_indices = @transform_17, window_bounds = array<i64: 1, 64>}, {pipeline_mode = #tpu.pipeline_mode<synchronous>, transform_indices = @transform_18, window_bounds = array<i64: 1, 64>}, {transform_indices = @transform_19, window_bounds = array<i64: 1, 5, 64>}]} {
    %c0_i32 = arith.constant 0 : i32
    %0 = arith.cmpi eq, %arg1, %c0_i32 : i32
    %1 = arith.extui %0 : i1 to i32
    %c0_i32_0 = arith.constant 0 : i32
    %2 = arith.cmpi ne, %1, %c0_i32_0 : i32
    scf.if %2 {
      %c0_96 = arith.constant 0 : index
      %c0_97 = arith.constant 0 : index
      %c0_98 = arith.constant 0 : index
      %175 = vector.load %arg2[%c0_96, %c0_97, %c0_98] : memref<1x5x64xf32, #tpu.memory_space<vmem>>, vector<1x5x64xf32>
      %176 = vector.shape_cast %175 : vector<1x5x64xf32> to vector<5x64xf32>
      %c0_99 = arith.constant 0 : index
      %c0_100 = arith.constant 0 : index
      %177 = vector.load %arg22[%c0_99, %c0_100] : memref<5x64xf32, #tpu.memory_space<vmem>>, vector<5x64xf32>
      tpu.vector_store %arg22[%c0_99, %c0_100], %176 {strides = array<i32>} : memref<5x64xf32, #tpu.memory_space<vmem>>, vector<5x64xf32>,
    } else {
    }
    %c0 = arith.constant 0 : index
    %c0_1 = arith.constant 0 : index
    %3 = vector.load %arg22[%c0, %c0_1] : memref<5x64xf32, #tpu.memory_space<vmem>>, vector<5x64xf32>
    %c0_2 = arith.constant 0 : index
    %c0_3 = arith.constant 0 : index
    %c0_4 = arith.constant 0 : index
    %4 = vector.load %arg3[%c0_2, %c0_3, %c0_4] : memref<1x1x64xf32, #tpu.memory_space<vmem>>, vector<1x1x64xf32>
    %5 = vector.shape_cast %4 : vector<1x1x64xf32> to vector<1x64xf32>
    %c0_5 = arith.constant 0 : index
    %c0_6 = arith.constant 0 : index
    %c0_7 = arith.constant 0 : index
    %6 = vector.load %arg4[%c0_5, %c0_6, %c0_7] : memref<1x1x64xf32, #tpu.memory_space<vmem>>, vector<1x1x64xf32>
    %7 = vector.shape_cast %6 : vector<1x1x64xf32> to vector<1x64xf32>
    %cst = arith.constant dense<0.000000e+00> : vector<5xf32>
    %8 = vector.multi_reduction <add>, %3, %cst [1] : vector<5x64xf32> to vector<5xf32>
    %9 = vector.shape_cast %8 : vector<5xf32> to vector<5x1xf32>
    %cst_8 = arith.constant 6.400000e+01 : f32
    %10 = vector.broadcast %cst_8 : f32 to vector<5x1xf32>
    %11 = arith.divf %9, %10 : vector<5x1xf32>
    %12 = vector.broadcast %11 : vector<5x1xf32> to vector<5x64xf32>
    %13 = arith.subf %3, %12 : vector<5x64xf32>
    %14 = arith.mulf %13, %13 : vector<5x64xf32>
    %cst_9 = arith.constant dense<0.000000e+00> : vector<5xf32>
    %15 = vector.multi_reduction <add>, %14, %cst_9 [1] : vector<5x64xf32> to vector<5xf32>
    %16 = vector.shape_cast %15 : vector<5xf32> to vector<5x1xf32>
    %cst_10 = arith.constant 6.400000e+01 : f32
    %17 = vector.broadcast %cst_10 : f32 to vector<5x1xf32>
    %18 = arith.divf %16, %17 : vector<5x1xf32>
    %cst_11 = arith.constant 9.99999997E-7 : f32
    %19 = vector.broadcast %cst_11 : f32 to vector<5x1xf32>
    %20 = arith.addf %18, %19 : vector<5x1xf32>
    %21 = math.rsqrt %20 : vector<5x1xf32>
    %22 = vector.broadcast %21 : vector<5x1xf32> to vector<5x64xf32>
    %23 = arith.mulf %13, %22 : vector<5x64xf32>
    %24 = vector.broadcast %5 : vector<1x64xf32> to vector<5x64xf32>
    %25 = arith.mulf %23, %24 : vector<5x64xf32>
    %26 = vector.broadcast %7 : vector<1x64xf32> to vector<5x64xf32>
    %27 = arith.addf %25, %26 : vector<5x64xf32>
    %c0_12 = arith.constant 0 : index
    %c0_13 = arith.constant 0 : index
    %c0_14 = arith.constant 0 : index
    %c0_15 = arith.constant 0 : index
    %28 = vector.load %arg5[%c0_12, %c0_13, %c0_14, %c0_15] : memref<1x4x64x16xf32, #tpu.memory_space<vmem>>, vector<1x4x64x16xf32>
    %29 = vector.shape_cast %28 : vector<1x4x64x16xf32> to vector<4x64x16xf32>
    %c0_16 = arith.constant 0 : index
    %c0_17 = arith.constant 0 : index
    %c0_18 = arith.constant 0 : index
    %c0_19 = arith.constant 0 : index
    %30 = vector.load %arg6[%c0_16, %c0_17, %c0_18, %c0_19] : memref<1x4x1x16xf32, #tpu.memory_space<vmem>>, vector<1x4x1x16xf32>
    %31 = vector.shape_cast %30 : vector<1x4x1x16xf32> to vector<4x1x16xf32>
    %c0_20 = arith.constant 0 : index
    %c0_21 = arith.constant 0 : index
    %c0_22 = arith.constant 0 : index
    %c0_23 = arith.constant 0 : index
    %32 = vector.load %arg7[%c0_20, %c0_21, %c0_22, %c0_23] : memref<1x4x64x16xf32, #tpu.memory_space<vmem>>, vector<1x4x64x16xf32>
    %33 = vector.shape_cast %32 : vector<1x4x64x16xf32> to vector<4x64x16xf32>
    %c0_24 = arith.constant 0 : index
    %c0_25 = arith.constant 0 : index
    %c0_26 = arith.constant 0 : index
    %c0_27 = arith.constant 0 : index
    %34 = vector.load %arg8[%c0_24, %c0_25, %c0_26, %c0_27] : memref<1x4x1x16xf32, #tpu.memory_space<vmem>>, vector<1x4x1x16xf32>
    %35 = vector.shape_cast %34 : vector<1x4x1x16xf32> to vector<4x1x16xf32>
    %c0_28 = arith.constant 0 : index
    %c0_29 = arith.constant 0 : index
    %c0_30 = arith.constant 0 : index
    %c0_31 = arith.constant 0 : index
    %36 = vector.load %arg9[%c0_28, %c0_29, %c0_30, %c0_31] : memref<1x4x64x16xf32, #tpu.memory_space<vmem>>, vector<1x4x64x16xf32>
    %37 = vector.shape_cast %36 : vector<1x4x64x16xf32> to vector<4x64x16xf32>
    %c0_32 = arith.constant 0 : index
    %c0_33 = arith.constant 0 : index
    %c0_34 = arith.constant 0 : index
    %c0_35 = arith.constant 0 : index
    %38 = vector.load %arg10[%c0_32, %c0_33, %c0_34, %c0_35] : memref<1x4x1x16xf32, #tpu.memory_space<vmem>>, vector<1x4x1x16xf32>
    %39 = vector.shape_cast %38 : vector<1x4x1x16xf32> to vector<4x1x16xf32>
    %c0_36 = arith.constant 0 : index
    %c0_37 = arith.constant 0 : index
    %c0_38 = arith.constant 0 : index
    %c0_39 = arith.constant 0 : index
    %40 = vector.load %arg11[%c0_36, %c0_37, %c0_38, %c0_39] : memref<1x4x16x64xf32, #tpu.memory_space<vmem>>, vector<1x4x16x64xf32>
    %41 = vector.shape_cast %40 : vector<1x4x16x64xf32> to vector<4x16x64xf32>
    %c0_40 = arith.constant 0 : index
    %c0_41 = arith.constant 0 : index
    %c0_42 = arith.constant 0 : index
    %42 = vector.load %arg12[%c0_40, %c0_41, %c0_42] : memref<1x1x64xf32, #tpu.memory_space<vmem>>, vector<1x1x64xf32>
    %43 = vector.shape_cast %42 : vector<1x1x64xf32> to vector<1x64xf32>
    %44 = vector.shape_cast %27 : vector<5x64xf32> to vector<1x5x64xf32>
    %45 = vector.broadcast %44 : vector<1x5x64xf32> to vector<4x5x64xf32>
    %46 = vector.shape_cast %27 : vector<5x64xf32> to vector<1x5x64xf32>
    %47 = vector.broadcast %46 : vector<1x5x64xf32> to vector<4x5x64xf32>
    %48 = arith.truncf %45 : vector<4x5x64xf32> to vector<4x5x64xbf16>
    %49 = arith.truncf %29 : vector<4x64x16xf32> to vector<4x64x16xbf16>
    %cst_43 = arith.constant dense<0.000000e+00> : vector<4x5x16xf32>
    %50 = tpu.matmul %48, %49, %cst_43 {dimension_numbers = #tpu.dot_dimension_numbers<[2], [1], [1], [2], [0, 0, 0, 1, 1, 2], [0], [0]>} : vector<4x5x64xbf16>, vector<4x64x16xbf16>, vector<4x5x16xf32> -> vector<4x5x16xf32>
    %51 = vector.broadcast %31 : vector<4x1x16xf32> to vector<4x5x16xf32>
    %52 = arith.addf %50, %51 : vector<4x5x16xf32>
    %53 = arith.truncf %47 : vector<4x5x64xf32> to vector<4x5x64xbf16>
    %54 = arith.truncf %33 : vector<4x64x16xf32> to vector<4x64x16xbf16>
    %cst_44 = arith.constant dense<0.000000e+00> : vector<4x5x16xf32>
    %55 = tpu.matmul %53, %54, %cst_44 {dimension_numbers = #tpu.dot_dimension_numbers<[2], [1], [1], [2], [0, 0, 0, 1, 1, 2], [0], [0]>} : vector<4x5x64xbf16>, vector<4x64x16xbf16>, vector<4x5x16xf32> -> vector<4x5x16xf32>
    %56 = vector.broadcast %35 : vector<4x1x16xf32> to vector<4x5x16xf32>
    %57 = arith.addf %55, %56 : vector<4x5x16xf32>
    %58 = arith.truncf %47 : vector<4x5x64xf32> to vector<4x5x64xbf16>
    %59 = arith.truncf %37 : vector<4x64x16xf32> to vector<4x64x16xbf16>
    %cst_45 = arith.constant dense<0.000000e+00> : vector<4x5x16xf32>
    %60 = tpu.matmul %58, %59, %cst_45 {dimension_numbers = #tpu.dot_dimension_numbers<[2], [1], [1], [2], [0, 0, 0, 1, 1, 2], [0], [0]>} : vector<4x5x64xbf16>, vector<4x64x16xbf16>, vector<4x5x16xf32> -> vector<4x5x16xf32>
    %61 = vector.broadcast %39 : vector<4x1x16xf32> to vector<4x5x16xf32>
    %62 = arith.addf %60, %61 : vector<4x5x16xf32>
    %63 = arith.truncf %52 : vector<4x5x16xf32> to vector<4x5x16xbf16>
    %64 = arith.truncf %57 : vector<4x5x16xf32> to vector<4x5x16xbf16>
    %cst_46 = arith.constant dense<0.000000e+00> : vector<4x5x5xf32>
    %65 = tpu.matmul %63, %64, %cst_46 {dimension_numbers = #tpu.dot_dimension_numbers<[2], [2], [1], [1], [0, 0, 0, 1, 1, 1], [0], [0]>} : vector<4x5x16xbf16>, vector<4x5x16xbf16>, vector<4x5x5xf32> -> vector<4x5x5xf32>
    %cst_47 = arith.constant 2.500000e-01 : f32
    %66 = vector.broadcast %cst_47 : f32 to vector<4x5x5xf32>
    %67 = arith.mulf %65, %66 : vector<4x5x5xf32>
    %cst_48 = arith.constant dense<0xFF800000> : vector<4x5xf32>
    %68 = vector.multi_reduction <maximumf>, %67, %cst_48 [2] : vector<4x5x5xf32> to vector<4x5xf32>
    %69 = vector.shape_cast %68 : vector<4x5xf32> to vector<4x5x1xf32>
    %70 = vector.broadcast %69 : vector<4x5x1xf32> to vector<4x5x5xf32>
    %71 = arith.subf %67, %70 : vector<4x5x5xf32>
    %72 = math.exp %71 : vector<4x5x5xf32>
    %cst_49 = arith.constant dense<0.000000e+00> : vector<4x5xf32>
    %73 = vector.multi_reduction <add>, %72, %cst_49 [2] : vector<4x5x5xf32> to vector<4x5xf32>
    %74 = vector.shape_cast %73 : vector<4x5xf32> to vector<4x5x1xf32>
    %75 = tpu.reciprocal %74 {approx = true} : vector<4x5x1xf32> -> vector<4x5x1xf32>
    %76 = vector.broadcast %75 : vector<4x5x1xf32> to vector<4x5x5xf32>
    %77 = arith.mulf %72, %76 : vector<4x5x5xf32>
    %78 = arith.truncf %77 : vector<4x5x5xf32> to vector<4x5x5xbf16>
    %79 = arith.truncf %62 : vector<4x5x16xf32> to vector<4x5x16xbf16>
    %cst_50 = arith.constant dense<0.000000e+00> : vector<4x5x16xf32>
    %80 = tpu.matmul %78, %79, %cst_50 {dimension_numbers = #tpu.dot_dimension_numbers<[2], [1], [1], [2], [0, 0, 0, 1, 1, 2], [0], [0]>} : vector<4x5x5xbf16>, vector<4x5x16xbf16>, vector<4x5x16xf32> -> vector<4x5x16xf32>
    %81 = arith.truncf %80 : vector<4x5x16xf32> to vector<4x5x16xbf16>
    %82 = arith.truncf %41 : vector<4x16x64xf32> to vector<4x16x64xbf16>
    %cst_51 = arith.constant dense<0.000000e+00> : vector<4x5x64xf32>
    %83 = tpu.matmul %81, %82, %cst_51 {dimension_numbers = #tpu.dot_dimension_numbers<[2], [1], [1], [2], [0, 0, 0, 1, 1, 2], [0], [0]>} : vector<4x5x16xbf16>, vector<4x16x64xbf16>, vector<4x5x64xf32> -> vector<4x5x64xf32>
    %cst_52 = arith.constant dense<0.000000e+00> : vector<5x64xf32>
    %84 = vector.multi_reduction <add>, %83, %cst_52 [0] : vector<4x5x64xf32> to vector<5x64xf32>
    %85 = vector.broadcast %43 : vector<1x64xf32> to vector<5x64xf32>
    %86 = arith.addf %84, %85 : vector<5x64xf32>
    %87 = arith.addf %3, %86 : vector<5x64xf32>
    %c0_53 = arith.constant 0 : index
    %c0_54 = arith.constant 0 : index
    %c0_55 = arith.constant 0 : index
    %88 = vector.load %arg13[%c0_53, %c0_54, %c0_55] : memref<1x1x64xf32, #tpu.memory_space<vmem>>, vector<1x1x64xf32>
    %89 = vector.shape_cast %88 : vector<1x1x64xf32> to vector<1x64xf32>
    %c0_56 = arith.constant 0 : index
    %c0_57 = arith.constant 0 : index
    %c0_58 = arith.constant 0 : index
    %90 = vector.load %arg14[%c0_56, %c0_57, %c0_58] : memref<1x1x64xf32, #tpu.memory_space<vmem>>, vector<1x1x64xf32>
    %91 = vector.shape_cast %90 : vector<1x1x64xf32> to vector<1x64xf32>
    %cst_59 = arith.constant dense<0.000000e+00> : vector<5xf32>
    %92 = vector.multi_reduction <add>, %87, %cst_59 [1] : vector<5x64xf32> to vector<5xf32>
    %93 = vector.shape_cast %92 : vector<5xf32> to vector<5x1xf32>
    %cst_60 = arith.constant 6.400000e+01 : f32
    %94 = vector.broadcast %cst_60 : f32 to vector<5x1xf32>
    %95 = arith.divf %93, %94 : vector<5x1xf32>
    %96 = vector.broadcast %95 : vector<5x1xf32> to vector<5x64xf32>
    %97 = arith.subf %87, %96 : vector<5x64xf32>
    %98 = arith.mulf %97, %97 : vector<5x64xf32>
    %cst_61 = arith.constant dense<0.000000e+00> : vector<5xf32>
    %99 = vector.multi_reduction <add>, %98, %cst_61 [1] : vector<5x64xf32> to vector<5xf32>
    %100 = vector.shape_cast %99 : vector<5xf32> to vector<5x1xf32>
    %cst_62 = arith.constant 6.400000e+01 : f32
    %101 = vector.broadcast %cst_62 : f32 to vector<5x1xf32>
    %102 = arith.divf %100, %101 : vector<5x1xf32>
    %cst_63 = arith.constant 9.99999997E-7 : f32
    %103 = vector.broadcast %cst_63 : f32 to vector<5x1xf32>
    %104 = arith.addf %102, %103 : vector<5x1xf32>
    %105 = math.rsqrt %104 : vector<5x1xf32>
    %106 = vector.broadcast %105 : vector<5x1xf32> to vector<5x64xf32>
    %107 = arith.mulf %97, %106 : vector<5x64xf32>
    %108 = vector.broadcast %89 : vector<1x64xf32> to vector<5x64xf32>
    %109 = arith.mulf %107, %108 : vector<5x64xf32>
    %110 = vector.broadcast %91 : vector<1x64xf32> to vector<5x64xf32>
    %111 = arith.addf %109, %110 : vector<5x64xf32>
    %c0_64 = arith.constant 0 : index
    %c0_65 = arith.constant 0 : index
    %c0_66 = arith.constant 0 : index
    %112 = vector.load %arg15[%c0_64, %c0_65, %c0_66] : memref<1x64x256xf32, #tpu.memory_space<vmem>>, vector<1x64x256xf32>
    %113 = vector.shape_cast %112 : vector<1x64x256xf32> to vector<64x256xf32>
    %114 = arith.truncf %111 : vector<5x64xf32> to vector<5x64xbf16>
    %115 = arith.truncf %113 : vector<64x256xf32> to vector<64x256xbf16>
    %cst_67 = arith.constant dense<0.000000e+00> : vector<5x256xf32>
    %116 = tpu.matmul %114, %115, %cst_67 {dimension_numbers = #tpu.dot_dimension_numbers<[1], [0], [0], [1], [0, 0, 1, 1], [], []>} : vector<5x64xbf16>, vector<64x256xbf16>, vector<5x256xf32> -> vector<5x256xf32>
    %c0_68 = arith.constant 0 : index
    %c0_69 = arith.constant 0 : index
    %c0_70 = arith.constant 0 : index
    %117 = vector.load %arg16[%c0_68, %c0_69, %c0_70] : memref<1x1x256xf32, #tpu.memory_space<vmem>>, vector<1x1x256xf32>
    %118 = vector.shape_cast %117 : vector<1x1x256xf32> to vector<1x256xf32>
    %119 = vector.broadcast %118 : vector<1x256xf32> to vector<5x256xf32>
    %120 = arith.addf %116, %119 : vector<5x256xf32>
    %cst_71 = arith.constant 5.000000e-01 : f32
    %121 = vector.broadcast %cst_71 : f32 to vector<5x256xf32>
    %122 = arith.mulf %120, %121 : vector<5x256xf32>
    %cst_72 = arith.constant 0.707106769 : f32
    %123 = vector.broadcast %cst_72 : f32 to vector<5x256xf32>
    %124 = arith.mulf %120, %123 : vector<5x256xf32>
    %125 = math.absf %124 : vector<5x256xf32>
    %cst_73 = arith.constant 0.327591091 : f32
    %126 = vector.broadcast %cst_73 : f32 to vector<5x256xf32>
    %127 = arith.mulf %126, %125 : vector<5x256xf32>
    %cst_74 = arith.constant 1.000000e+00 : f32
    %128 = vector.broadcast %cst_74 : f32 to vector<5x256xf32>
    %129 = arith.addf %128, %127 : vector<5x256xf32>
    %cst_75 = arith.constant 1.000000e+00 : f32
    %130 = vector.broadcast %cst_75 : f32 to vector<5x256xf32>
    %131 = arith.divf %130, %129 : vector<5x256xf32>
    %cst_76 = arith.constant 1.06140542 : f32
    %132 = vector.broadcast %cst_76 : f32 to vector<5x256xf32>
    %133 = arith.mulf %132, %131 : vector<5x256xf32>
    %cst_77 = arith.constant 1.45315206 : f32
    %134 = vector.broadcast %cst_77 : f32 to vector<5x256xf32>
    %135 = arith.subf %133, %134 : vector<5x256xf32>
    %136 = arith.mulf %135, %131 : vector<5x256xf32>
    %cst_78 = arith.constant 1.42141378 : f32
    %137 = vector.broadcast %cst_78 : f32 to vector<5x256xf32>
    %138 = arith.addf %136, %137 : vector<5x256xf32>
    %139 = arith.mulf %138, %131 : vector<5x256xf32>
    %cst_79 = arith.constant 0.284496725 : f32
    %140 = vector.broadcast %cst_79 : f32 to vector<5x256xf32>
    %141 = arith.subf %139, %140 : vector<5x256xf32>
    %142 = arith.mulf %141, %131 : vector<5x256xf32>
    %cst_80 = arith.constant 0.254829586 : f32
    %143 = vector.broadcast %cst_80 : f32 to vector<5x256xf32>
    %144 = arith.addf %142, %143 : vector<5x256xf32>
    %145 = arith.mulf %144, %131 : vector<5x256xf32>
    %cst_81 = arith.constant 0.000000e+00 : f32
    %146 = vector.broadcast %cst_81 : f32 to vector<5x256xf32>
    %147 = arith.subf %146, %124 : vector<5x256xf32>
    %148 = arith.mulf %147, %124 : vector<5x256xf32>
    %149 = math.exp %148 : vector<5x256xf32>
    %150 = arith.mulf %145, %149 : vector<5x256xf32>
    %cst_82 = arith.constant 1.000000e+00 : f32
    %151 = vector.broadcast %cst_82 : f32 to vector<5x256xf32>
    %152 = arith.subf %151, %150 : vector<5x256xf32>
    %cst_83 = arith.constant 0.000000e+00 : f32
    %153 = vector.broadcast %cst_83 : f32 to vector<5x256xf32>
    %154 = arith.cmpf oge, %124, %153 : vector<5x256xf32>
    %cst_84 = arith.constant 0.000000e+00 : f32
    %155 = vector.broadcast %cst_84 : f32 to vector<5x256xf32>
    %156 = arith.subf %155, %152 : vector<5x256xf32>
    %157 = arith.select %154, %152, %156 : vector<5x256xi1>, vector<5x256xf32>
    %cst_85 = arith.constant 1.000000e+00 : f32
    %158 = vector.broadcast %cst_85 : f32 to vector<5x256xf32>
    %159 = arith.addf %158, %157 : vector<5x256xf32>
    %160 = arith.mulf %122, %159 : vector<5x256xf32>
    %c0_86 = arith.constant 0 : index
    %c0_87 = arith.constant 0 : index
    %c0_88 = arith.constant 0 : index
    %161 = vector.load %arg17[%c0_86, %c0_87, %c0_88] : memref<1x256x64xf32, #tpu.memory_space<vmem>>, vector<1x256x64xf32>
    %162 = vector.shape_cast %161 : vector<1x256x64xf32> to vector<256x64xf32>
    %163 = arith.truncf %160 : vector<5x256xf32> to vector<5x256xbf16>
    %164 = arith.truncf %162 : vector<256x64xf32> to vector<256x64xbf16>
    %cst_89 = arith.constant dense<0.000000e+00> : vector<5x64xf32>
    %165 = tpu.matmul %163, %164, %cst_89 {dimension_numbers = #tpu.dot_dimension_numbers<[1], [0], [0], [1], [0, 0, 1, 1], [], []>} : vector<5x256xbf16>, vector<256x64xbf16>, vector<5x64xf32> -> vector<5x64xf32>
    %c0_90 = arith.constant 0 : index
    %c0_91 = arith.constant 0 : index
    %c0_92 = arith.constant 0 : index
    %166 = vector.load %arg18[%c0_90, %c0_91, %c0_92] : memref<1x1x64xf32, #tpu.memory_space<vmem>>, vector<1x1x64xf32>
    %167 = vector.shape_cast %166 : vector<1x1x64xf32> to vector<1x64xf32>
    %168 = vector.broadcast %167 : vector<1x64xf32> to vector<5x64xf32>
    %169 = arith.addf %165, %168 : vector<5x64xf32>
    %170 = arith.addf %87, %169 : vector<5x64xf32>
    %c0_93 = arith.constant 0 : index
    %c0_94 = arith.constant 0 : index
    %171 = vector.load %arg22[%c0_93, %c0_94] : memref<5x64xf32, #tpu.memory_space<vmem>>, vector<5x64xf32>
    tpu.vector_store %arg22[%c0_93, %c0_94], %170 {strides = array<i32>} : memref<5x64xf32, #tpu.memory_space<vmem>>, vector<5x64xf32>,
    %c1_i32 = arith.constant 1 : i32
    %172 = arith.cmpi eq, %arg1, %c1_i32 : i32
    %173 = arith.extui %172 : i1 to i32
    %c0_i32_95 = arith.constant 0 : i32
    %174 = arith.cmpi ne, %173, %c0_i32_95 : i32
    scf.if %174 {
      %c0_96 = arith.constant 0 : index
      %c0_97 = arith.constant 0 : index
      %175 = vector.load %arg19[%c0_96, %c0_97] : memref<1x64xf32, #tpu.memory_space<vmem>>, vector<1x64xf32>
      %c0_98 = arith.constant 0 : index
      %c0_99 = arith.constant 0 : index
      %176 = vector.load %arg20[%c0_98, %c0_99] : memref<1x64xf32, #tpu.memory_space<vmem>>, vector<1x64xf32>
      %cst_100 = arith.constant dense<0.000000e+00> : vector<5xf32>
      %177 = vector.multi_reduction <add>, %170, %cst_100 [1] : vector<5x64xf32> to vector<5xf32>
      %178 = vector.shape_cast %177 : vector<5xf32> to vector<5x1xf32>
      %cst_101 = arith.constant 6.400000e+01 : f32
      %179 = vector.broadcast %cst_101 : f32 to vector<5x1xf32>
      %180 = arith.divf %178, %179 : vector<5x1xf32>
      %181 = vector.broadcast %180 : vector<5x1xf32> to vector<5x64xf32>
      %182 = arith.subf %170, %181 : vector<5x64xf32>
      %183 = arith.mulf %182, %182 : vector<5x64xf32>
      %cst_102 = arith.constant dense<0.000000e+00> : vector<5xf32>
      %184 = vector.multi_reduction <add>, %183, %cst_102 [1] : vector<5x64xf32> to vector<5xf32>
      %185 = vector.shape_cast %184 : vector<5xf32> to vector<5x1xf32>
      %cst_103 = arith.constant 6.400000e+01 : f32
      %186 = vector.broadcast %cst_103 : f32 to vector<5x1xf32>
      %187 = arith.divf %185, %186 : vector<5x1xf32>
      %cst_104 = arith.constant 9.99999997E-7 : f32
      %188 = vector.broadcast %cst_104 : f32 to vector<5x1xf32>
      %189 = arith.addf %187, %188 : vector<5x1xf32>
      %190 = math.rsqrt %189 : vector<5x1xf32>
      %191 = vector.broadcast %190 : vector<5x1xf32> to vector<5x64xf32>
      %192 = arith.mulf %182, %191 : vector<5x64xf32>
      %193 = vector.broadcast %175 : vector<1x64xf32> to vector<5x64xf32>
      %194 = arith.mulf %192, %193 : vector<5x64xf32>
      %195 = vector.broadcast %176 : vector<1x64xf32> to vector<5x64xf32>
      %196 = arith.addf %194, %195 : vector<5x64xf32>
      %c0_105 = arith.constant 0 : index
      %c0_106 = arith.constant 0 : index
      %c0_107 = arith.constant 0 : index
      %197 = vector.load %arg21[%c0_105, %c0_106, %c0_107] : memref<1x5x64xf32, #tpu.memory_space<vmem>>, vector<1x5x64xf32>
      %198 = vector.shape_cast %197 : vector<1x5x64xf32> to vector<5x64xf32>
      %199 = vector.shape_cast %196 : vector<5x64xf32> to vector<1x5x64xf32>
      tpu.vector_store %arg21[%c0_105, %c0_106, %c0_107], %199 {strides = array<i32>} : memref<1x5x64xf32, #tpu.memory_space<vmem>>, vector<1x5x64xf32>,
    } else {
    }
    return
  }
  func.func @transform_0(%arg0: i32, %arg1: i32) -> (i32, i32, i32) {
    %c0_i32 = arith.constant 0 : i32
    %c0_i32_0 = arith.constant 0 : i32
    %c0_i32_1 = arith.constant 0 : i32
    return %arg0, %c0_i32, %c0_i32_0 : i32, i32, i32
  }
  func.func @transform_1(%arg0: i32, %arg1: i32) -> (i32, i32, i32) {
    %c0_i32 = arith.constant 0 : i32
    %c0_i32_0 = arith.constant 0 : i32
    %c0_i32_1 = arith.constant 0 : i32
    return %arg1, %c0_i32, %c0_i32_0 : i32, i32, i32
  }
  func.func @transform_2(%arg0: i32, %arg1: i32) -> (i32, i32, i32) {
    %c0_i32 = arith.constant 0 : i32
    %c0_i32_0 = arith.constant 0 : i32
    %c0_i32_1 = arith.constant 0 : i32
    return %arg1, %c0_i32, %c0_i32_0 : i32, i32, i32
  }
  func.func @transform_3(%arg0: i32, %arg1: i32) -> (i32, i32, i32, i32) {
    %c0_i32 = arith.constant 0 : i32
    %c0_i32_0 = arith.constant 0 : i32
    %c0_i32_1 = arith.constant 0 : i32
    %c0_i32_2 = arith.constant 0 : i32
    return %arg1, %c0_i32, %c0_i32_0, %c0_i32_1 : i32, i32, i32, i32
  }
  func.func @transform_4(%arg0: i32, %arg1: i32) -> (i32, i32, i32, i32) {
    %c0_i32 = arith.constant 0 : i32
    %c0_i32_0 = arith.constant 0 : i32
    %c0_i32_1 = arith.constant 0 : i32
    %c0_i32_2 = arith.constant 0 : i32
    return %arg1, %c0_i32, %c0_i32_0, %c0_i32_1 : i32, i32, i32, i32
  }
  func.func @transform_5(%arg0: i32, %arg1: i32) -> (i32, i32, i32, i32) {
    %c0_i32 = arith.constant 0 : i32
    %c0_i32_0 = arith.constant 0 : i32
    %c0_i32_1 = arith.constant 0 : i32
    %c0_i32_2 = arith.constant 0 : i32
    return %arg1, %c0_i32, %c0_i32_0, %c0_i32_1 : i32, i32, i32, i32
  }
  func.func @transform_6(%arg0: i32, %arg1: i32) -> (i32, i32, i32, i32) {
    %c0_i32 = arith.constant 0 : i32
    %c0_i32_0 = arith.constant 0 : i32
    %c0_i32_1 = arith.constant 0 : i32
    %c0_i32_2 = arith.constant 0 : i32
    return %arg1, %c0_i32, %c0_i32_0, %c0_i32_1 : i32, i32, i32, i32
  }
  func.func @transform_7(%arg0: i32, %arg1: i32) -> (i32, i32, i32, i32) {
    %c0_i32 = arith.constant 0 : i32
    %c0_i32_0 = arith.constant 0 : i32
    %c0_i32_1 = arith.constant 0 : i32
    %c0_i32_2 = arith.constant 0 : i32
    return %arg1, %c0_i32, %c0_i32_0, %c0_i32_1 : i32, i32, i32, i32
  }
  func.func @transform_8(%arg0: i32, %arg1: i32) -> (i32, i32, i32, i32) {
    %c0_i32 = arith.constant 0 : i32
    %c0_i32_0 = arith.constant 0 : i32
    %c0_i32_1 = arith.constant 0 : i32
    %c0_i32_2 = arith.constant 0 : i32
    return %arg1, %c0_i32, %c0_i32_0, %c0_i32_1 : i32, i32, i32, i32
  }
  func.func @transform_9(%arg0: i32, %arg1: i32) -> (i32, i32, i32, i32) {
    %c0_i32 = arith.constant 0 : i32
    %c0_i32_0 = arith.constant 0 : i32
    %c0_i32_1 = arith.constant 0 : i32
    %c0_i32_2 = arith.constant 0 : i32
    return %arg1, %c0_i32, %c0_i32_0, %c0_i32_1 : i32, i32, i32, i32
  }
  func.func @transform_10(%arg0: i32, %arg1: i32) -> (i32, i32, i32) {
    %c0_i32 = arith.constant 0 : i32
    %c0_i32_0 = arith.constant 0 : i32
    %c0_i32_1 = arith.constant 0 : i32
    return %arg1, %c0_i32, %c0_i32_0 : i32, i32, i32
  }
  func.func @transform_11(%arg0: i32, %arg1: i32) -> (i32, i32, i32) {
    %c0_i32 = arith.constant 0 : i32
    %c0_i32_0 = arith.constant 0 : i32
    %c0_i32_1 = arith.constant 0 : i32
    return %arg1, %c0_i32, %c0_i32_0 : i32, i32, i32
  }
  func.func @transform_12(%arg0: i32, %arg1: i32) -> (i32, i32, i32) {
    %c0_i32 = arith.constant 0 : i32
    %c0_i32_0 = arith.constant 0 : i32
    %c0_i32_1 = arith.constant 0 : i32
    return %arg1, %c0_i32, %c0_i32_0 : i32, i32, i32
  }
  func.func @transform_13(%arg0: i32, %arg1: i32) -> (i32, i32, i32) {
    %c0_i32 = arith.constant 0 : i32
    %c0_i32_0 = arith.constant 0 : i32
    %c0_i32_1 = arith.constant 0 : i32
    return %arg1, %c0_i32, %c0_i32_0 : i32, i32, i32
  }
  func.func @transform_14(%arg0: i32, %arg1: i32) -> (i32, i32, i32) {
    %c0_i32 = arith.constant 0 : i32
    %c0_i32_0 = arith.constant 0 : i32
    %c0_i32_1 = arith.constant 0 : i32
    return %arg1, %c0_i32, %c0_i32_0 : i32, i32, i32
  }
  func.func @transform_15(%arg0: i32, %arg1: i32) -> (i32, i32, i32) {
    %c0_i32 = arith.constant 0 : i32
    %c0_i32_0 = arith.constant 0 : i32
    %c0_i32_1 = arith.constant 0 : i32
    return %arg1, %c0_i32, %c0_i32_0 : i32, i32, i32
  }
  func.func @transform_16(%arg0: i32, %arg1: i32) -> (i32, i32, i32) {
    %c0_i32 = arith.constant 0 : i32
    %c0_i32_0 = arith.constant 0 : i32
    %c0_i32_1 = arith.constant 0 : i32
    return %arg1, %c0_i32, %c0_i32_0 : i32, i32, i32
  }
  func.func @transform_17(%arg0: i32, %arg1: i32) -> (i32, i32) {
    %c0_i32 = arith.constant 0 : i32
    %c0_i32_0 = arith.constant 0 : i32
    %c0_i32_1 = arith.constant 0 : i32
    return %c0_i32, %c0_i32_0 : i32, i32
  }
  func.func @transform_18(%arg0: i32, %arg1: i32) -> (i32, i32) {
    %c0_i32 = arith.constant 0 : i32
    %c0_i32_0 = arith.constant 0 : i32
    %c0_i32_1 = arith.constant 0 : i32
    return %c0_i32, %c0_i32_0 : i32, i32
  }
  func.func @transform_19(%arg0: i32, %arg1: i32) -> (i32, i32, i32) {
    %c0_i32 = arith.constant 0 : i32
    %c0_i32_0 = arith.constant 0 : i32
    %c0_i32_1 = arith.constant 0 : i32
    return %arg0, %c0_i32, %c0_i32_0 : i32, i32, i32
  }
}

module attributes {stable_mosaic.version = 11 : i64} {
  func.func @_bert_stack_kernel(%arg0: i32, %arg1: i32, %arg2: memref<1x8x64xf32, #tpu.memory_space<vmem>>, %arg3: memref<1x1x8xf32, #tpu.memory_space<vmem>>, %arg4: memref<1x5x64xf32, #tpu.memory_space<vmem>>, %arg5: memref<1x64xf32, #tpu.memory_space<vmem>>, %arg6: memref<1x64xf32, #tpu.memory_space<vmem>>, %arg7: memref<1x4x64x16xf32, #tpu.memory_space<vmem>>, %arg8: memref<1x4x1x16xf32, #tpu.memory_space<vmem>>, %arg9: memref<1x4x64x16xf32, #tpu.memory_space<vmem>>, %arg10: memref<1x4x1x16xf32, #tpu.memory_space<vmem>>, %arg11: memref<1x4x64x16xf32, #tpu.memory_space<vmem>>, %arg12: memref<1x4x1x16xf32, #tpu.memory_space<vmem>>, %arg13: memref<1x4x16x64xf32, #tpu.memory_space<vmem>>, %arg14: memref<1x1x64xf32, #tpu.memory_space<vmem>>, %arg15: memref<1x1x64xf32, #tpu.memory_space<vmem>>, %arg16: memref<1x1x64xf32, #tpu.memory_space<vmem>>, %arg17: memref<1x4x64x16xf32, #tpu.memory_space<vmem>>, %arg18: memref<1x4x1x16xf32, #tpu.memory_space<vmem>>, %arg19: memref<1x4x64x16xf32, #tpu.memory_space<vmem>>, %arg20: memref<1x4x1x16xf32, #tpu.memory_space<vmem>>, %arg21: memref<1x4x64x16xf32, #tpu.memory_space<vmem>>, %arg22: memref<1x4x1x16xf32, #tpu.memory_space<vmem>>, %arg23: memref<1x4x16x64xf32, #tpu.memory_space<vmem>>, %arg24: memref<1x1x64xf32, #tpu.memory_space<vmem>>, %arg25: memref<1x1x64xf32, #tpu.memory_space<vmem>>, %arg26: memref<1x1x64xf32, #tpu.memory_space<vmem>>, %arg27: memref<1x64x256xf32, #tpu.memory_space<vmem>>, %arg28: memref<1x1x256xf32, #tpu.memory_space<vmem>>, %arg29: memref<1x256x64xf32, #tpu.memory_space<vmem>>, %arg30: memref<1x1x64xf32, #tpu.memory_space<vmem>>, %arg31: memref<1x1x64xf32, #tpu.memory_space<vmem>>, %arg32: memref<1x1x64xf32, #tpu.memory_space<vmem>>, %arg33: memref<1x8x64xf32, #tpu.memory_space<vmem>>, %arg34: memref<8x64xf32, #tpu.memory_space<vmem>>) attributes {dimension_semantics = [#tpu.dimension_semantics<parallel>, #tpu.dimension_semantics<arbitrary>], iteration_bounds = array<i64: 2, 2>, scalar_prefetch = 0 : i64, scratch_operands = 1 : i64, tpu.core_type = #tpu.core_type<tc>, window_params = [{transform_indices = @transform_0, window_bounds = array<i64: 1, 8, 64>}, {transform_indices = @transform_1, window_bounds = array<i64: 1, 1, 8>}, {transform_indices = @transform_2, window_bounds = array<i64: 1, 5, 64>}, {pipeline_mode = #tpu.pipeline_mode<synchronous>, transform_indices = @transform_3, window_bounds = array<i64: 1, 64>}, {pipeline_mode = #tpu.pipeline_mode<synchronous>, transform_indices = @transform_4, window_bounds = array<i64: 1, 64>}, {transform_indices = @transform_5, window_bounds = array<i64: 1, 4, 64, 16>}, {transform_indices = @transform_6, window_bounds = array<i64: 1, 4, 1, 16>}, {transform_indices = @transform_7, window_bounds = array<i64: 1, 4, 64, 16>}, {transform_indices = @transform_8, window_bounds = array<i64: 1, 4, 1, 16>}, {transform_indices = @transform_9, window_bounds = array<i64: 1, 4, 64, 16>}, {transform_indices = @transform_10, window_bounds = array<i64: 1, 4, 1, 16>}, {transform_indices = @transform_11, window_bounds = array<i64: 1, 4, 16, 64>}, {transform_indices = @transform_12, window_bounds = array<i64: 1, 1, 64>}, {transform_indices = @transform_13, window_bounds = array<i64: 1, 1, 64>}, {transform_indices = @transform_14, window_bounds = array<i64: 1, 1, 64>}, {transform_indices = @transform_15, window_bounds = array<i64: 1, 4, 64, 16>}, {transform_indices = @transform_16, window_bounds = array<i64: 1, 4, 1, 16>}, {transform_indices = @transform_17, window_bounds = array<i64: 1, 4, 64, 16>}, {transform_indices = @transform_18, window_bounds = array<i64: 1, 4, 1, 16>}, {transform_indices = @transform_19, window_bounds = array<i64: 1, 4, 64, 16>}, {transform_indices = @transform_20, window_bounds = array<i64: 1, 4, 1, 16>}, {transform_indices = @transform_21, window_bounds = array<i64: 1, 4, 16, 64>}, {transform_indices = @transform_22, window_bounds = array<i64: 1, 1, 64>}, {transform_indices = @transform_23, window_bounds = array<i64: 1, 1, 64>}, {transform_indices = @transform_24, window_bounds = array<i64: 1, 1, 64>}, {transform_indices = @transform_25, window_bounds = array<i64: 1, 64, 256>}, {transform_indices = @transform_26, window_bounds = array<i64: 1, 1, 256>}, {transform_indices = @transform_27, window_bounds = array<i64: 1, 256, 64>}, {transform_indices = @transform_28, window_bounds = array<i64: 1, 1, 64>}, {transform_indices = @transform_29, window_bounds = array<i64: 1, 1, 64>}, {transform_indices = @transform_30, window_bounds = array<i64: 1, 1, 64>}, {transform_indices = @transform_31, window_bounds = array<i64: 1, 8, 64>}]} {
    %c0_i32 = arith.constant 0 : i32
    %0 = arith.cmpi eq, %arg1, %c0_i32 : i32
    %1 = arith.extui %0 : i1 to i32
    %c0_i32_0 = arith.constant 0 : i32
    %2 = arith.cmpi ne, %1, %c0_i32_0 : i32
    scf.if %2 {
      %c0_156 = arith.constant 0 : index
      %c0_157 = arith.constant 0 : index
      %c0_158 = arith.constant 0 : index
      %268 = vector.load %arg2[%c0_156, %c0_157, %c0_158] : memref<1x8x64xf32, #tpu.memory_space<vmem>>, vector<1x8x64xf32>
      %269 = vector.shape_cast %268 : vector<1x8x64xf32> to vector<8x64xf32>
      %c0_159 = arith.constant 0 : index
      %c0_160 = arith.constant 0 : index
      %270 = vector.load %arg5[%c0_159, %c0_160] : memref<1x64xf32, #tpu.memory_space<vmem>>, vector<1x64xf32>
      %c0_161 = arith.constant 0 : index
      %c0_162 = arith.constant 0 : index
      %271 = vector.load %arg6[%c0_161, %c0_162] : memref<1x64xf32, #tpu.memory_space<vmem>>, vector<1x64xf32>
      %cst_163 = arith.constant dense<0.000000e+00> : vector<8xf32>
      %272 = vector.multi_reduction <add>, %269, %cst_163 [1] : vector<8x64xf32> to vector<8xf32>
      %273 = vector.shape_cast %272 : vector<8xf32> to vector<8x1xf32>
      %cst_164 = arith.constant 6.400000e+01 : f32
      %274 = vector.broadcast %cst_164 : f32 to vector<8x1xf32>
      %275 = arith.divf %273, %274 : vector<8x1xf32>
      %276 = vector.broadcast %275 : vector<8x1xf32> to vector<8x64xf32>
      %277 = arith.subf %269, %276 : vector<8x64xf32>
      %278 = arith.mulf %277, %277 : vector<8x64xf32>
      %cst_165 = arith.constant dense<0.000000e+00> : vector<8xf32>
      %279 = vector.multi_reduction <add>, %278, %cst_165 [1] : vector<8x64xf32> to vector<8xf32>
      %280 = vector.shape_cast %279 : vector<8xf32> to vector<8x1xf32>
      %cst_166 = arith.constant 6.400000e+01 : f32
      %281 = vector.broadcast %cst_166 : f32 to vector<8x1xf32>
      %282 = arith.divf %280, %281 : vector<8x1xf32>
      %cst_167 = arith.constant 9.99999996E-13 : f32
      %283 = vector.broadcast %cst_167 : f32 to vector<8x1xf32>
      %284 = arith.addf %282, %283 : vector<8x1xf32>
      %285 = math.rsqrt %284 : vector<8x1xf32>
      %286 = vector.broadcast %285 : vector<8x1xf32> to vector<8x64xf32>
      %287 = arith.mulf %277, %286 : vector<8x64xf32>
      %288 = vector.broadcast %270 : vector<1x64xf32> to vector<8x64xf32>
      %289 = arith.mulf %287, %288 : vector<8x64xf32>
      %290 = vector.broadcast %271 : vector<1x64xf32> to vector<8x64xf32>
      %291 = arith.addf %289, %290 : vector<8x64xf32>
      %c0_168 = arith.constant 0 : index
      %c0_169 = arith.constant 0 : index
      %292 = vector.load %arg34[%c0_168, %c0_169] : memref<8x64xf32, #tpu.memory_space<vmem>>, vector<8x64xf32>
      tpu.vector_store %arg34[%c0_168, %c0_169], %291 {strides = array<i32>} : memref<8x64xf32, #tpu.memory_space<vmem>>, vector<8x64xf32>,
    } else {
    }
    %c0 = arith.constant 0 : index
    %c0_1 = arith.constant 0 : index
    %3 = vector.load %arg34[%c0, %c0_1] : memref<8x64xf32, #tpu.memory_space<vmem>>, vector<8x64xf32>
    %c0_2 = arith.constant 0 : index
    %c0_3 = arith.constant 0 : index
    %c0_4 = arith.constant 0 : index
    %4 = vector.load %arg3[%c0_2, %c0_3, %c0_4] : memref<1x1x8xf32, #tpu.memory_space<vmem>>, vector<1x1x8xf32>
    %cst = arith.constant 1.000000e+00 : f32
    %5 = vector.broadcast %cst : f32 to vector<1x1x8xf32>
    %6 = arith.subf %5, %4 : vector<1x1x8xf32>
    %cst_5 = arith.constant -1.000000e+04 : f32
    %7 = vector.broadcast %cst_5 : f32 to vector<1x1x8xf32>
    %8 = arith.mulf %6, %7 : vector<1x1x8xf32>
    %c0_6 = arith.constant 0 : index
    %c0_7 = arith.constant 0 : index
    %c0_8 = arith.constant 0 : index
    %c0_9 = arith.constant 0 : index
    %9 = vector.load %arg7[%c0_6, %c0_7, %c0_8, %c0_9] : memref<1x4x64x16xf32, #tpu.memory_space<vmem>>, vector<1x4x64x16xf32>
    %10 = vector.shape_cast %9 : vector<1x4x64x16xf32> to vector<4x64x16xf32>
    %c0_10 = arith.constant 0 : index
    %c0_11 = arith.constant 0 : index
    %c0_12 = arith.constant 0 : index
    %c0_13 = arith.constant 0 : index
    %11 = vector.load %arg8[%c0_10, %c0_11, %c0_12, %c0_13] : memref<1x4x1x16xf32, #tpu.memory_space<vmem>>, vector<1x4x1x16xf32>
    %12 = vector.shape_cast %11 : vector<1x4x1x16xf32> to vector<4x1x16xf32>
    %c0_14 = arith.constant 0 : index
    %c0_15 = arith.constant 0 : index
    %c0_16 = arith.constant 0 : index
    %c0_17 = arith.constant 0 : index
    %13 = vector.load %arg9[%c0_14, %c0_15, %c0_16, %c0_17] : memref<1x4x64x16xf32, #tpu.memory_space<vmem>>, vector<1x4x64x16xf32>
    %14 = vector.shape_cast %13 : vector<1x4x64x16xf32> to vector<4x64x16xf32>
    %c0_18 = arith.constant 0 : index
    %c0_19 = arith.constant 0 : index
    %c0_20 = arith.constant 0 : index
    %c0_21 = arith.constant 0 : index
    %15 = vector.load %arg10[%c0_18, %c0_19, %c0_20, %c0_21] : memref<1x4x1x16xf32, #tpu.memory_space<vmem>>, vector<1x4x1x16xf32>
    %16 = vector.shape_cast %15 : vector<1x4x1x16xf32> to vector<4x1x16xf32>
    %c0_22 = arith.constant 0 : index
    %c0_23 = arith.constant 0 : index
    %c0_24 = arith.constant 0 : index
    %c0_25 = arith.constant 0 : index
    %17 = vector.load %arg11[%c0_22, %c0_23, %c0_24, %c0_25] : memref<1x4x64x16xf32, #tpu.memory_space<vmem>>, vector<1x4x64x16xf32>
    %18 = vector.shape_cast %17 : vector<1x4x64x16xf32> to vector<4x64x16xf32>
    %c0_26 = arith.constant 0 : index
    %c0_27 = arith.constant 0 : index
    %c0_28 = arith.constant 0 : index
    %c0_29 = arith.constant 0 : index
    %19 = vector.load %arg12[%c0_26, %c0_27, %c0_28, %c0_29] : memref<1x4x1x16xf32, #tpu.memory_space<vmem>>, vector<1x4x1x16xf32>
    %20 = vector.shape_cast %19 : vector<1x4x1x16xf32> to vector<4x1x16xf32>
    %c0_30 = arith.constant 0 : index
    %c0_31 = arith.constant 0 : index
    %c0_32 = arith.constant 0 : index
    %c0_33 = arith.constant 0 : index
    %21 = vector.load %arg13[%c0_30, %c0_31, %c0_32, %c0_33] : memref<1x4x16x64xf32, #tpu.memory_space<vmem>>, vector<1x4x16x64xf32>
    %22 = vector.shape_cast %21 : vector<1x4x16x64xf32> to vector<4x16x64xf32>
    %c0_34 = arith.constant 0 : index
    %c0_35 = arith.constant 0 : index
    %c0_36 = arith.constant 0 : index
    %23 = vector.load %arg14[%c0_34, %c0_35, %c0_36] : memref<1x1x64xf32, #tpu.memory_space<vmem>>, vector<1x1x64xf32>
    %24 = vector.shape_cast %23 : vector<1x1x64xf32> to vector<1x64xf32>
    %25 = vector.shape_cast %3 : vector<8x64xf32> to vector<1x8x64xf32>
    %26 = vector.broadcast %25 : vector<1x8x64xf32> to vector<4x8x64xf32>
    %27 = vector.shape_cast %3 : vector<8x64xf32> to vector<1x8x64xf32>
    %28 = vector.broadcast %27 : vector<1x8x64xf32> to vector<4x8x64xf32>
    %29 = arith.truncf %26 : vector<4x8x64xf32> to vector<4x8x64xbf16>
    %30 = arith.truncf %10 : vector<4x64x16xf32> to vector<4x64x16xbf16>
    %cst_37 = arith.constant dense<0.000000e+00> : vector<4x8x16xf32>
    %31 = tpu.matmul %29, %30, %cst_37 {dimension_numbers = #tpu.dot_dimension_numbers<[2], [1], [1], [2], [0, 0, 0, 1, 1, 2], [0], [0]>} : vector<4x8x64xbf16>, vector<4x64x16xbf16>, vector<4x8x16xf32> -> vector<4x8x16xf32>
    %32 = vector.broadcast %12 : vector<4x1x16xf32> to vector<4x8x16xf32>
    %33 = arith.addf %31, %32 : vector<4x8x16xf32>
    %34 = arith.truncf %28 : vector<4x8x64xf32> to vector<4x8x64xbf16>
    %35 = arith.truncf %14 : vector<4x64x16xf32> to vector<4x64x16xbf16>
    %cst_38 = arith.constant dense<0.000000e+00> : vector<4x8x16xf32>
    %36 = tpu.matmul %34, %35, %cst_38 {dimension_numbers = #tpu.dot_dimension_numbers<[2], [1], [1], [2], [0, 0, 0, 1, 1, 2], [0], [0]>} : vector<4x8x64xbf16>, vector<4x64x16xbf16>, vector<4x8x16xf32> -> vector<4x8x16xf32>
    %37 = vector.broadcast %16 : vector<4x1x16xf32> to vector<4x8x16xf32>
    %38 = arith.addf %36, %37 : vector<4x8x16xf32>
    %39 = arith.truncf %28 : vector<4x8x64xf32> to vector<4x8x64xbf16>
    %40 = arith.truncf %18 : vector<4x64x16xf32> to vector<4x64x16xbf16>
    %cst_39 = arith.constant dense<0.000000e+00> : vector<4x8x16xf32>
    %41 = tpu.matmul %39, %40, %cst_39 {dimension_numbers = #tpu.dot_dimension_numbers<[2], [1], [1], [2], [0, 0, 0, 1, 1, 2], [0], [0]>} : vector<4x8x64xbf16>, vector<4x64x16xbf16>, vector<4x8x16xf32> -> vector<4x8x16xf32>
    %42 = vector.broadcast %20 : vector<4x1x16xf32> to vector<4x8x16xf32>
    %43 = arith.addf %41, %42 : vector<4x8x16xf32>
    %44 = arith.truncf %33 : vector<4x8x16xf32> to vector<4x8x16xbf16>
    %45 = arith.truncf %38 : vector<4x8x16xf32> to vector<4x8x16xbf16>
    %cst_40 = arith.constant dense<0.000000e+00> : vector<4x8x8xf32>
    %46 = tpu.matmul %44, %45, %cst_40 {dimension_numbers = #tpu.dot_dimension_numbers<[2], [2], [1], [1], [0, 0, 0, 1, 1, 1], [0], [0]>} : vector<4x8x16xbf16>, vector<4x8x16xbf16>, vector<4x8x8xf32> -> vector<4x8x8xf32>
    %cst_41 = arith.constant 2.500000e-01 : f32
    %47 = vector.broadcast %cst_41 : f32 to vector<4x8x8xf32>
    %48 = arith.mulf %46, %47 : vector<4x8x8xf32>
    %49 = vector.broadcast %8 : vector<1x1x8xf32> to vector<4x8x8xf32>
    %50 = arith.addf %48, %49 : vector<4x8x8xf32>
    %cst_42 = arith.constant dense<0xFF800000> : vector<4x8xf32>
    %51 = vector.multi_reduction <maximumf>, %50, %cst_42 [2] : vector<4x8x8xf32> to vector<4x8xf32>
    %52 = vector.shape_cast %51 : vector<4x8xf32> to vector<4x8x1xf32>
    %53 = vector.broadcast %52 : vector<4x8x1xf32> to vector<4x8x8xf32>
    %54 = arith.subf %50, %53 : vector<4x8x8xf32>
    %55 = math.exp %54 : vector<4x8x8xf32>
    %cst_43 = arith.constant dense<0.000000e+00> : vector<4x8xf32>
    %56 = vector.multi_reduction <add>, %55, %cst_43 [2] : vector<4x8x8xf32> to vector<4x8xf32>
    %57 = vector.shape_cast %56 : vector<4x8xf32> to vector<4x8x1xf32>
    %58 = tpu.reciprocal %57 {approx = true} : vector<4x8x1xf32> -> vector<4x8x1xf32>
    %59 = vector.broadcast %58 : vector<4x8x1xf32> to vector<4x8x8xf32>
    %60 = arith.mulf %55, %59 : vector<4x8x8xf32>
    %61 = arith.truncf %60 : vector<4x8x8xf32> to vector<4x8x8xbf16>
    %62 = arith.truncf %43 : vector<4x8x16xf32> to vector<4x8x16xbf16>
    %cst_44 = arith.constant dense<0.000000e+00> : vector<4x8x16xf32>
    %63 = tpu.matmul %61, %62, %cst_44 {dimension_numbers = #tpu.dot_dimension_numbers<[2], [1], [1], [2], [0, 0, 0, 1, 1, 2], [0], [0]>} : vector<4x8x8xbf16>, vector<4x8x16xbf16>, vector<4x8x16xf32> -> vector<4x8x16xf32>
    %64 = arith.truncf %63 : vector<4x8x16xf32> to vector<4x8x16xbf16>
    %65 = arith.truncf %22 : vector<4x16x64xf32> to vector<4x16x64xbf16>
    %cst_45 = arith.constant dense<0.000000e+00> : vector<4x8x64xf32>
    %66 = tpu.matmul %64, %65, %cst_45 {dimension_numbers = #tpu.dot_dimension_numbers<[2], [1], [1], [2], [0, 0, 0, 1, 1, 2], [0], [0]>} : vector<4x8x16xbf16>, vector<4x16x64xbf16>, vector<4x8x64xf32> -> vector<4x8x64xf32>
    %cst_46 = arith.constant dense<0.000000e+00> : vector<8x64xf32>
    %67 = vector.multi_reduction <add>, %66, %cst_46 [0] : vector<4x8x64xf32> to vector<8x64xf32>
    %68 = vector.broadcast %24 : vector<1x64xf32> to vector<8x64xf32>
    %69 = arith.addf %67, %68 : vector<8x64xf32>
    %70 = arith.addf %3, %69 : vector<8x64xf32>
    %c0_47 = arith.constant 0 : index
    %c0_48 = arith.constant 0 : index
    %c0_49 = arith.constant 0 : index
    %71 = vector.load %arg15[%c0_47, %c0_48, %c0_49] : memref<1x1x64xf32, #tpu.memory_space<vmem>>, vector<1x1x64xf32>
    %72 = vector.shape_cast %71 : vector<1x1x64xf32> to vector<1x64xf32>
    %c0_50 = arith.constant 0 : index
    %c0_51 = arith.constant 0 : index
    %c0_52 = arith.constant 0 : index
    %73 = vector.load %arg16[%c0_50, %c0_51, %c0_52] : memref<1x1x64xf32, #tpu.memory_space<vmem>>, vector<1x1x64xf32>
    %74 = vector.shape_cast %73 : vector<1x1x64xf32> to vector<1x64xf32>
    %cst_53 = arith.constant dense<0.000000e+00> : vector<8xf32>
    %75 = vector.multi_reduction <add>, %70, %cst_53 [1] : vector<8x64xf32> to vector<8xf32>
    %76 = vector.shape_cast %75 : vector<8xf32> to vector<8x1xf32>
    %cst_54 = arith.constant 6.400000e+01 : f32
    %77 = vector.broadcast %cst_54 : f32 to vector<8x1xf32>
    %78 = arith.divf %76, %77 : vector<8x1xf32>
    %79 = vector.broadcast %78 : vector<8x1xf32> to vector<8x64xf32>
    %80 = arith.subf %70, %79 : vector<8x64xf32>
    %81 = arith.mulf %80, %80 : vector<8x64xf32>
    %cst_55 = arith.constant dense<0.000000e+00> : vector<8xf32>
    %82 = vector.multi_reduction <add>, %81, %cst_55 [1] : vector<8x64xf32> to vector<8xf32>
    %83 = vector.shape_cast %82 : vector<8xf32> to vector<8x1xf32>
    %cst_56 = arith.constant 6.400000e+01 : f32
    %84 = vector.broadcast %cst_56 : f32 to vector<8x1xf32>
    %85 = arith.divf %83, %84 : vector<8x1xf32>
    %cst_57 = arith.constant 9.99999996E-13 : f32
    %86 = vector.broadcast %cst_57 : f32 to vector<8x1xf32>
    %87 = arith.addf %85, %86 : vector<8x1xf32>
    %88 = math.rsqrt %87 : vector<8x1xf32>
    %89 = vector.broadcast %88 : vector<8x1xf32> to vector<8x64xf32>
    %90 = arith.mulf %80, %89 : vector<8x64xf32>
    %91 = vector.broadcast %72 : vector<1x64xf32> to vector<8x64xf32>
    %92 = arith.mulf %90, %91 : vector<8x64xf32>
    %93 = vector.broadcast %74 : vector<1x64xf32> to vector<8x64xf32>
    %94 = arith.addf %92, %93 : vector<8x64xf32>
    %c0_58 = arith.constant 0 : index
    %c0_59 = arith.constant 0 : index
    %c0_60 = arith.constant 0 : index
    %95 = vector.load %arg4[%c0_58, %c0_59, %c0_60] : memref<1x5x64xf32, #tpu.memory_space<vmem>>, vector<1x5x64xf32>
    %96 = vector.shape_cast %95 : vector<1x5x64xf32> to vector<5x64xf32>
    %c0_61 = arith.constant 0 : index
    %c0_62 = arith.constant 0 : index
    %c0_63 = arith.constant 0 : index
    %c0_64 = arith.constant 0 : index
    %97 = vector.load %arg17[%c0_61, %c0_62, %c0_63, %c0_64] : memref<1x4x64x16xf32, #tpu.memory_space<vmem>>, vector<1x4x64x16xf32>
    %98 = vector.shape_cast %97 : vector<1x4x64x16xf32> to vector<4x64x16xf32>
    %c0_65 = arith.constant 0 : index
    %c0_66 = arith.constant 0 : index
    %c0_67 = arith.constant 0 : index
    %c0_68 = arith.constant 0 : index
    %99 = vector.load %arg18[%c0_65, %c0_66, %c0_67, %c0_68] : memref<1x4x1x16xf32, #tpu.memory_space<vmem>>, vector<1x4x1x16xf32>
    %100 = vector.shape_cast %99 : vector<1x4x1x16xf32> to vector<4x1x16xf32>
    %c0_69 = arith.constant 0 : index
    %c0_70 = arith.constant 0 : index
    %c0_71 = arith.constant 0 : index
    %c0_72 = arith.constant 0 : index
    %101 = vector.load %arg19[%c0_69, %c0_70, %c0_71, %c0_72] : memref<1x4x64x16xf32, #tpu.memory_space<vmem>>, vector<1x4x64x16xf32>
    %102 = vector.shape_cast %101 : vector<1x4x64x16xf32> to vector<4x64x16xf32>
    %c0_73 = arith.constant 0 : index
    %c0_74 = arith.constant 0 : index
    %c0_75 = arith.constant 0 : index
    %c0_76 = arith.constant 0 : index
    %103 = vector.load %arg20[%c0_73, %c0_74, %c0_75, %c0_76] : memref<1x4x1x16xf32, #tpu.memory_space<vmem>>, vector<1x4x1x16xf32>
    %104 = vector.shape_cast %103 : vector<1x4x1x16xf32> to vector<4x1x16xf32>
    %c0_77 = arith.constant 0 : index
    %c0_78 = arith.constant 0 : index
    %c0_79 = arith.constant 0 : index
    %c0_80 = arith.constant 0 : index
    %105 = vector.load %arg21[%c0_77, %c0_78, %c0_79, %c0_80] : memref<1x4x64x16xf32, #tpu.memory_space<vmem>>, vector<1x4x64x16xf32>
    %106 = vector.shape_cast %105 : vector<1x4x64x16xf32> to vector<4x64x16xf32>
    %c0_81 = arith.constant 0 : index
    %c0_82 = arith.constant 0 : index
    %c0_83 = arith.constant 0 : index
    %c0_84 = arith.constant 0 : index
    %107 = vector.load %arg22[%c0_81, %c0_82, %c0_83, %c0_84] : memref<1x4x1x16xf32, #tpu.memory_space<vmem>>, vector<1x4x1x16xf32>
    %108 = vector.shape_cast %107 : vector<1x4x1x16xf32> to vector<4x1x16xf32>
    %c0_85 = arith.constant 0 : index
    %c0_86 = arith.constant 0 : index
    %c0_87 = arith.constant 0 : index
    %c0_88 = arith.constant 0 : index
    %109 = vector.load %arg23[%c0_85, %c0_86, %c0_87, %c0_88] : memref<1x4x16x64xf32, #tpu.memory_space<vmem>>, vector<1x4x16x64xf32>
    %110 = vector.shape_cast %109 : vector<1x4x16x64xf32> to vector<4x16x64xf32>
    %c0_89 = arith.constant 0 : index
    %c0_90 = arith.constant 0 : index
    %c0_91 = arith.constant 0 : index
    %111 = vector.load %arg24[%c0_89, %c0_90, %c0_91] : memref<1x1x64xf32, #tpu.memory_space<vmem>>, vector<1x1x64xf32>
    %112 = vector.shape_cast %111 : vector<1x1x64xf32> to vector<1x64xf32>
    %113 = vector.shape_cast %94 : vector<8x64xf32> to vector<1x8x64xf32>
    %114 = vector.broadcast %113 : vector<1x8x64xf32> to vector<4x8x64xf32>
    %115 = vector.shape_cast %96 : vector<5x64xf32> to vector<1x5x64xf32>
    %116 = vector.broadcast %115 : vector<1x5x64xf32> to vector<4x5x64xf32>
    %117 = arith.truncf %114 : vector<4x8x64xf32> to vector<4x8x64xbf16>
    %118 = arith.truncf %98 : vector<4x64x16xf32> to vector<4x64x16xbf16>
    %cst_92 = arith.constant dense<0.000000e+00> : vector<4x8x16xf32>
    %119 = tpu.matmul %117, %118, %cst_92 {dimension_numbers = #tpu.dot_dimension_numbers<[2], [1], [1], [2], [0, 0, 0, 1, 1, 2], [0], [0]>} : vector<4x8x64xbf16>, vector<4x64x16xbf16>, vector<4x8x16xf32> -> vector<4x8x16xf32>
    %120 = vector.broadcast %100 : vector<4x1x16xf32> to vector<4x8x16xf32>
    %121 = arith.addf %119, %120 : vector<4x8x16xf32>
    %122 = arith.truncf %116 : vector<4x5x64xf32> to vector<4x5x64xbf16>
    %123 = arith.truncf %102 : vector<4x64x16xf32> to vector<4x64x16xbf16>
    %cst_93 = arith.constant dense<0.000000e+00> : vector<4x5x16xf32>
    %124 = tpu.matmul %122, %123, %cst_93 {dimension_numbers = #tpu.dot_dimension_numbers<[2], [1], [1], [2], [0, 0, 0, 1, 1, 2], [0], [0]>} : vector<4x5x64xbf16>, vector<4x64x16xbf16>, vector<4x5x16xf32> -> vector<4x5x16xf32>
    %125 = vector.broadcast %104 : vector<4x1x16xf32> to vector<4x5x16xf32>
    %126 = arith.addf %124, %125 : vector<4x5x16xf32>
    %127 = arith.truncf %116 : vector<4x5x64xf32> to vector<4x5x64xbf16>
    %128 = arith.truncf %106 : vector<4x64x16xf32> to vector<4x64x16xbf16>
    %cst_94 = arith.constant dense<0.000000e+00> : vector<4x5x16xf32>
    %129 = tpu.matmul %127, %128, %cst_94 {dimension_numbers = #tpu.dot_dimension_numbers<[2], [1], [1], [2], [0, 0, 0, 1, 1, 2], [0], [0]>} : vector<4x5x64xbf16>, vector<4x64x16xbf16>, vector<4x5x16xf32> -> vector<4x5x16xf32>
    %130 = vector.broadcast %108 : vector<4x1x16xf32> to vector<4x5x16xf32>
    %131 = arith.addf %129, %130 : vector<4x5x16xf32>
    %132 = arith.truncf %121 : vector<4x8x16xf32> to vector<4x8x16xbf16>
    %133 = arith.truncf %126 : vector<4x5x16xf32> to vector<4x5x16xbf16>
    %cst_95 = arith.constant dense<0.000000e+00> : vector<4x8x5xf32>
    %134 = tpu.matmul %132, %133, %cst_95 {dimension_numbers = #tpu.dot_dimension_numbers<[2], [2], [1], [1], [0, 0, 0, 1, 1, 1], [0], [0]>} : vector<4x8x16xbf16>, vector<4x5x16xbf16>, vector<4x8x5xf32> -> vector<4x8x5xf32>
    %cst_96 = arith.constant 2.500000e-01 : f32
    %135 = vector.broadcast %cst_96 : f32 to vector<4x8x5xf32>
    %136 = arith.mulf %134, %135 : vector<4x8x5xf32>
    %cst_97 = arith.constant dense<0xFF800000> : vector<4x8xf32>
    %137 = vector.multi_reduction <maximumf>, %136, %cst_97 [2] : vector<4x8x5xf32> to vector<4x8xf32>
    %138 = vector.shape_cast %137 : vector<4x8xf32> to vector<4x8x1xf32>
    %139 = vector.broadcast %138 : vector<4x8x1xf32> to vector<4x8x5xf32>
    %140 = arith.subf %136, %139 : vector<4x8x5xf32>
    %141 = math.exp %140 : vector<4x8x5xf32>
    %cst_98 = arith.constant dense<0.000000e+00> : vector<4x8xf32>
    %142 = vector.multi_reduction <add>, %141, %cst_98 [2] : vector<4x8x5xf32> to vector<4x8xf32>
    %143 = vector.shape_cast %142 : vector<4x8xf32> to vector<4x8x1xf32>
    %144 = tpu.reciprocal %143 {approx = true} : vector<4x8x1xf32> -> vector<4x8x1xf32>
    %145 = vector.broadcast %144 : vector<4x8x1xf32> to vector<4x8x5xf32>
    %146 = arith.mulf %141, %145 : vector<4x8x5xf32>
    %147 = arith.truncf %146 : vector<4x8x5xf32> to vector<4x8x5xbf16>
    %148 = arith.truncf %131 : vector<4x5x16xf32> to vector<4x5x16xbf16>
    %cst_99 = arith.constant dense<0.000000e+00> : vector<4x8x16xf32>
    %149 = tpu.matmul %147, %148, %cst_99 {dimension_numbers = #tpu.dot_dimension_numbers<[2], [1], [1], [2], [0, 0, 0, 1, 1, 2], [0], [0]>} : vector<4x8x5xbf16>, vector<4x5x16xbf16>, vector<4x8x16xf32> -> vector<4x8x16xf32>
    %150 = arith.truncf %149 : vector<4x8x16xf32> to vector<4x8x16xbf16>
    %151 = arith.truncf %110 : vector<4x16x64xf32> to vector<4x16x64xbf16>
    %cst_100 = arith.constant dense<0.000000e+00> : vector<4x8x64xf32>
    %152 = tpu.matmul %150, %151, %cst_100 {dimension_numbers = #tpu.dot_dimension_numbers<[2], [1], [1], [2], [0, 0, 0, 1, 1, 2], [0], [0]>} : vector<4x8x16xbf16>, vector<4x16x64xbf16>, vector<4x8x64xf32> -> vector<4x8x64xf32>
    %cst_101 = arith.constant dense<0.000000e+00> : vector<8x64xf32>
    %153 = vector.multi_reduction <add>, %152, %cst_101 [0] : vector<4x8x64xf32> to vector<8x64xf32>
    %154 = vector.broadcast %112 : vector<1x64xf32> to vector<8x64xf32>
    %155 = arith.addf %153, %154 : vector<8x64xf32>
    %156 = arith.addf %94, %155 : vector<8x64xf32>
    %c0_102 = arith.constant 0 : index
    %c0_103 = arith.constant 0 : index
    %c0_104 = arith.constant 0 : index
    %157 = vector.load %arg25[%c0_102, %c0_103, %c0_104] : memref<1x1x64xf32, #tpu.memory_space<vmem>>, vector<1x1x64xf32>
    %158 = vector.shape_cast %157 : vector<1x1x64xf32> to vector<1x64xf32>
    %c0_105 = arith.constant 0 : index
    %c0_106 = arith.constant 0 : index
    %c0_107 = arith.constant 0 : index
    %159 = vector.load %arg26[%c0_105, %c0_106, %c0_107] : memref<1x1x64xf32, #tpu.memory_space<vmem>>, vector<1x1x64xf32>
    %160 = vector.shape_cast %159 : vector<1x1x64xf32> to vector<1x64xf32>
    %cst_108 = arith.constant dense<0.000000e+00> : vector<8xf32>
    %161 = vector.multi_reduction <add>, %156, %cst_108 [1] : vector<8x64xf32> to vector<8xf32>
    %162 = vector.shape_cast %161 : vector<8xf32> to vector<8x1xf32>
    %cst_109 = arith.constant 6.400000e+01 : f32
    %163 = vector.broadcast %cst_109 : f32 to vector<8x1xf32>
    %164 = arith.divf %162, %163 : vector<8x1xf32>
    %165 = vector.broadcast %164 : vector<8x1xf32> to vector<8x64xf32>
    %166 = arith.subf %156, %165 : vector<8x64xf32>
    %167 = arith.mulf %166, %166 : vector<8x64xf32>
    %cst_110 = arith.constant dense<0.000000e+00> : vector<8xf32>
    %168 = vector.multi_reduction <add>, %167, %cst_110 [1] : vector<8x64xf32> to vector<8xf32>
    %169 = vector.shape_cast %168 : vector<8xf32> to vector<8x1xf32>
    %cst_111 = arith.constant 6.400000e+01 : f32
    %170 = vector.broadcast %cst_111 : f32 to vector<8x1xf32>
    %171 = arith.divf %169, %170 : vector<8x1xf32>
    %cst_112 = arith.constant 9.99999996E-13 : f32
    %172 = vector.broadcast %cst_112 : f32 to vector<8x1xf32>
    %173 = arith.addf %171, %172 : vector<8x1xf32>
    %174 = math.rsqrt %173 : vector<8x1xf32>
    %175 = vector.broadcast %174 : vector<8x1xf32> to vector<8x64xf32>
    %176 = arith.mulf %166, %175 : vector<8x64xf32>
    %177 = vector.broadcast %158 : vector<1x64xf32> to vector<8x64xf32>
    %178 = arith.mulf %176, %177 : vector<8x64xf32>
    %179 = vector.broadcast %160 : vector<1x64xf32> to vector<8x64xf32>
    %180 = arith.addf %178, %179 : vector<8x64xf32>
    %c0_113 = arith.constant 0 : index
    %c0_114 = arith.constant 0 : index
    %c0_115 = arith.constant 0 : index
    %181 = vector.load %arg27[%c0_113, %c0_114, %c0_115] : memref<1x64x256xf32, #tpu.memory_space<vmem>>, vector<1x64x256xf32>
    %182 = vector.shape_cast %181 : vector<1x64x256xf32> to vector<64x256xf32>
    %183 = arith.truncf %180 : vector<8x64xf32> to vector<8x64xbf16>
    %184 = arith.truncf %182 : vector<64x256xf32> to vector<64x256xbf16>
    %cst_116 = arith.constant dense<0.000000e+00> : vector<8x256xf32>
    %185 = tpu.matmul %183, %184, %cst_116 {dimension_numbers = #tpu.dot_dimension_numbers<[1], [0], [0], [1], [0, 0, 1, 1], [], []>} : vector<8x64xbf16>, vector<64x256xbf16>, vector<8x256xf32> -> vector<8x256xf32>
    %c0_117 = arith.constant 0 : index
    %c0_118 = arith.constant 0 : index
    %c0_119 = arith.constant 0 : index
    %186 = vector.load %arg28[%c0_117, %c0_118, %c0_119] : memref<1x1x256xf32, #tpu.memory_space<vmem>>, vector<1x1x256xf32>
    %187 = vector.shape_cast %186 : vector<1x1x256xf32> to vector<1x256xf32>
    %188 = vector.broadcast %187 : vector<1x256xf32> to vector<8x256xf32>
    %189 = arith.addf %185, %188 : vector<8x256xf32>
    %cst_120 = arith.constant 5.000000e-01 : f32
    %190 = vector.broadcast %cst_120 : f32 to vector<8x256xf32>
    %191 = arith.mulf %189, %190 : vector<8x256xf32>
    %cst_121 = arith.constant 0.707106769 : f32
    %192 = vector.broadcast %cst_121 : f32 to vector<8x256xf32>
    %193 = arith.mulf %189, %192 : vector<8x256xf32>
    %194 = math.absf %193 : vector<8x256xf32>
    %cst_122 = arith.constant 0.327591091 : f32
    %195 = vector.broadcast %cst_122 : f32 to vector<8x256xf32>
    %196 = arith.mulf %195, %194 : vector<8x256xf32>
    %cst_123 = arith.constant 1.000000e+00 : f32
    %197 = vector.broadcast %cst_123 : f32 to vector<8x256xf32>
    %198 = arith.addf %197, %196 : vector<8x256xf32>
    %cst_124 = arith.constant 1.000000e+00 : f32
    %199 = vector.broadcast %cst_124 : f32 to vector<8x256xf32>
    %200 = arith.divf %199, %198 : vector<8x256xf32>
    %cst_125 = arith.constant 1.06140542 : f32
    %201 = vector.broadcast %cst_125 : f32 to vector<8x256xf32>
    %202 = arith.mulf %201, %200 : vector<8x256xf32>
    %cst_126 = arith.constant 1.45315206 : f32
    %203 = vector.broadcast %cst_126 : f32 to vector<8x256xf32>
    %204 = arith.subf %202, %203 : vector<8x256xf32>
    %205 = arith.mulf %204, %200 : vector<8x256xf32>
    %cst_127 = arith.constant 1.42141378 : f32
    %206 = vector.broadcast %cst_127 : f32 to vector<8x256xf32>
    %207 = arith.addf %205, %206 : vector<8x256xf32>
    %208 = arith.mulf %207, %200 : vector<8x256xf32>
    %cst_128 = arith.constant 0.284496725 : f32
    %209 = vector.broadcast %cst_128 : f32 to vector<8x256xf32>
    %210 = arith.subf %208, %209 : vector<8x256xf32>
    %211 = arith.mulf %210, %200 : vector<8x256xf32>
    %cst_129 = arith.constant 0.254829586 : f32
    %212 = vector.broadcast %cst_129 : f32 to vector<8x256xf32>
    %213 = arith.addf %211, %212 : vector<8x256xf32>
    %214 = arith.mulf %213, %200 : vector<8x256xf32>
    %cst_130 = arith.constant 0.000000e+00 : f32
    %215 = vector.broadcast %cst_130 : f32 to vector<8x256xf32>
    %216 = arith.subf %215, %193 : vector<8x256xf32>
    %217 = arith.mulf %216, %193 : vector<8x256xf32>
    %218 = math.exp %217 : vector<8x256xf32>
    %219 = arith.mulf %214, %218 : vector<8x256xf32>
    %cst_131 = arith.constant 1.000000e+00 : f32
    %220 = vector.broadcast %cst_131 : f32 to vector<8x256xf32>
    %221 = arith.subf %220, %219 : vector<8x256xf32>
    %cst_132 = arith.constant 0.000000e+00 : f32
    %222 = vector.broadcast %cst_132 : f32 to vector<8x256xf32>
    %223 = arith.cmpf oge, %193, %222 : vector<8x256xf32>
    %cst_133 = arith.constant 0.000000e+00 : f32
    %224 = vector.broadcast %cst_133 : f32 to vector<8x256xf32>
    %225 = arith.subf %224, %221 : vector<8x256xf32>
    %226 = arith.select %223, %221, %225 : vector<8x256xi1>, vector<8x256xf32>
    %cst_134 = arith.constant 1.000000e+00 : f32
    %227 = vector.broadcast %cst_134 : f32 to vector<8x256xf32>
    %228 = arith.addf %227, %226 : vector<8x256xf32>
    %229 = arith.mulf %191, %228 : vector<8x256xf32>
    %c0_135 = arith.constant 0 : index
    %c0_136 = arith.constant 0 : index
    %c0_137 = arith.constant 0 : index
    %230 = vector.load %arg29[%c0_135, %c0_136, %c0_137] : memref<1x256x64xf32, #tpu.memory_space<vmem>>, vector<1x256x64xf32>
    %231 = vector.shape_cast %230 : vector<1x256x64xf32> to vector<256x64xf32>
    %232 = arith.truncf %229 : vector<8x256xf32> to vector<8x256xbf16>
    %233 = arith.truncf %231 : vector<256x64xf32> to vector<256x64xbf16>
    %cst_138 = arith.constant dense<0.000000e+00> : vector<8x64xf32>
    %234 = tpu.matmul %232, %233, %cst_138 {dimension_numbers = #tpu.dot_dimension_numbers<[1], [0], [0], [1], [0, 0, 1, 1], [], []>} : vector<8x256xbf16>, vector<256x64xbf16>, vector<8x64xf32> -> vector<8x64xf32>
    %c0_139 = arith.constant 0 : index
    %c0_140 = arith.constant 0 : index
    %c0_141 = arith.constant 0 : index
    %235 = vector.load %arg30[%c0_139, %c0_140, %c0_141] : memref<1x1x64xf32, #tpu.memory_space<vmem>>, vector<1x1x64xf32>
    %236 = vector.shape_cast %235 : vector<1x1x64xf32> to vector<1x64xf32>
    %237 = vector.broadcast %236 : vector<1x64xf32> to vector<8x64xf32>
    %238 = arith.addf %234, %237 : vector<8x64xf32>
    %239 = arith.addf %180, %238 : vector<8x64xf32>
    %c0_142 = arith.constant 0 : index
    %c0_143 = arith.constant 0 : index
    %c0_144 = arith.constant 0 : index
    %240 = vector.load %arg31[%c0_142, %c0_143, %c0_144] : memref<1x1x64xf32, #tpu.memory_space<vmem>>, vector<1x1x64xf32>
    %241 = vector.shape_cast %240 : vector<1x1x64xf32> to vector<1x64xf32>
    %c0_145 = arith.constant 0 : index
    %c0_146 = arith.constant 0 : index
    %c0_147 = arith.constant 0 : index
    %242 = vector.load %arg32[%c0_145, %c0_146, %c0_147] : memref<1x1x64xf32, #tpu.memory_space<vmem>>, vector<1x1x64xf32>
    %243 = vector.shape_cast %242 : vector<1x1x64xf32> to vector<1x64xf32>
    %cst_148 = arith.constant dense<0.000000e+00> : vector<8xf32>
    %244 = vector.multi_reduction <add>, %239, %cst_148 [1] : vector<8x64xf32> to vector<8xf32>
    %245 = vector.shape_cast %244 : vector<8xf32> to vector<8x1xf32>
    %cst_149 = arith.constant 6.400000e+01 : f32
    %246 = vector.broadcast %cst_149 : f32 to vector<8x1xf32>
    %247 = arith.divf %245, %246 : vector<8x1xf32>
    %248 = vector.broadcast %247 : vector<8x1xf32> to vector<8x64xf32>
    %249 = arith.subf %239, %248 : vector<8x64xf32>
    %250 = arith.mulf %249, %249 : vector<8x64xf32>
    %cst_150 = arith.constant dense<0.000000e+00> : vector<8xf32>
    %251 = vector.multi_reduction <add>, %250, %cst_150 [1] : vector<8x64xf32> to vector<8xf32>
    %252 = vector.shape_cast %251 : vector<8xf32> to vector<8x1xf32>
    %cst_151 = arith.constant 6.400000e+01 : f32
    %253 = vector.broadcast %cst_151 : f32 to vector<8x1xf32>
    %254 = arith.divf %252, %253 : vector<8x1xf32>
    %cst_152 = arith.constant 9.99999996E-13 : f32
    %255 = vector.broadcast %cst_152 : f32 to vector<8x1xf32>
    %256 = arith.addf %254, %255 : vector<8x1xf32>
    %257 = math.rsqrt %256 : vector<8x1xf32>
    %258 = vector.broadcast %257 : vector<8x1xf32> to vector<8x64xf32>
    %259 = arith.mulf %249, %258 : vector<8x64xf32>
    %260 = vector.broadcast %241 : vector<1x64xf32> to vector<8x64xf32>
    %261 = arith.mulf %259, %260 : vector<8x64xf32>
    %262 = vector.broadcast %243 : vector<1x64xf32> to vector<8x64xf32>
    %263 = arith.addf %261, %262 : vector<8x64xf32>
    %c0_153 = arith.constant 0 : index
    %c0_154 = arith.constant 0 : index
    %264 = vector.load %arg34[%c0_153, %c0_154] : memref<8x64xf32, #tpu.memory_space<vmem>>, vector<8x64xf32>
    tpu.vector_store %arg34[%c0_153, %c0_154], %263 {strides = array<i32>} : memref<8x64xf32, #tpu.memory_space<vmem>>, vector<8x64xf32>,
    %c1_i32 = arith.constant 1 : i32
    %265 = arith.cmpi eq, %arg1, %c1_i32 : i32
    %266 = arith.extui %265 : i1 to i32
    %c0_i32_155 = arith.constant 0 : i32
    %267 = arith.cmpi ne, %266, %c0_i32_155 : i32
    scf.if %267 {
      %c0_156 = arith.constant 0 : index
      %c0_157 = arith.constant 0 : index
      %c0_158 = arith.constant 0 : index
      %268 = vector.load %arg33[%c0_156, %c0_157, %c0_158] : memref<1x8x64xf32, #tpu.memory_space<vmem>>, vector<1x8x64xf32>
      %269 = vector.shape_cast %268 : vector<1x8x64xf32> to vector<8x64xf32>
      %270 = vector.shape_cast %263 : vector<8x64xf32> to vector<1x8x64xf32>
      tpu.vector_store %arg33[%c0_156, %c0_157, %c0_158], %270 {strides = array<i32>} : memref<1x8x64xf32, #tpu.memory_space<vmem>>, vector<1x8x64xf32>,
    } else {
    }
    return
  }
  func.func @transform_0(%arg0: i32, %arg1: i32) -> (i32, i32, i32) {
    %c0_i32 = arith.constant 0 : i32
    %c0_i32_0 = arith.constant 0 : i32
    %c0_i32_1 = arith.constant 0 : i32
    return %arg0, %c0_i32, %c0_i32_0 : i32, i32, i32
  }
  func.func @transform_1(%arg0: i32, %arg1: i32) -> (i32, i32, i32) {
    %c0_i32 = arith.constant 0 : i32
    %c0_i32_0 = arith.constant 0 : i32
    %c0_i32_1 = arith.constant 0 : i32
    return %arg0, %c0_i32, %c0_i32_0 : i32, i32, i32
  }
  func.func @transform_2(%arg0: i32, %arg1: i32) -> (i32, i32, i32) {
    %c0_i32 = arith.constant 0 : i32
    %c0_i32_0 = arith.constant 0 : i32
    %c0_i32_1 = arith.constant 0 : i32
    return %arg0, %c0_i32, %c0_i32_0 : i32, i32, i32
  }
  func.func @transform_3(%arg0: i32, %arg1: i32) -> (i32, i32) {
    %c0_i32 = arith.constant 0 : i32
    %c0_i32_0 = arith.constant 0 : i32
    %c0_i32_1 = arith.constant 0 : i32
    return %c0_i32, %c0_i32_0 : i32, i32
  }
  func.func @transform_4(%arg0: i32, %arg1: i32) -> (i32, i32) {
    %c0_i32 = arith.constant 0 : i32
    %c0_i32_0 = arith.constant 0 : i32
    %c0_i32_1 = arith.constant 0 : i32
    return %c0_i32, %c0_i32_0 : i32, i32
  }
  func.func @transform_5(%arg0: i32, %arg1: i32) -> (i32, i32, i32, i32) {
    %c0_i32 = arith.constant 0 : i32
    %c0_i32_0 = arith.constant 0 : i32
    %c0_i32_1 = arith.constant 0 : i32
    %c0_i32_2 = arith.constant 0 : i32
    return %arg1, %c0_i32, %c0_i32_0, %c0_i32_1 : i32, i32, i32, i32
  }
  func.func @transform_6(%arg0: i32, %arg1: i32) -> (i32, i32, i32, i32) {
    %c0_i32 = arith.constant 0 : i32
    %c0_i32_0 = arith.constant 0 : i32
    %c0_i32_1 = arith.constant 0 : i32
    %c0_i32_2 = arith.constant 0 : i32
    return %arg1, %c0_i32, %c0_i32_0, %c0_i32_1 : i32, i32, i32, i32
  }
  func.func @transform_7(%arg0: i32, %arg1: i32) -> (i32, i32, i32, i32) {
    %c0_i32 = arith.constant 0 : i32
    %c0_i32_0 = arith.constant 0 : i32
    %c0_i32_1 = arith.constant 0 : i32
    %c0_i32_2 = arith.constant 0 : i32
    return %arg1, %c0_i32, %c0_i32_0, %c0_i32_1 : i32, i32, i32, i32
  }
  func.func @transform_8(%arg0: i32, %arg1: i32) -> (i32, i32, i32, i32) {
    %c0_i32 = arith.constant 0 : i32
    %c0_i32_0 = arith.constant 0 : i32
    %c0_i32_1 = arith.constant 0 : i32
    %c0_i32_2 = arith.constant 0 : i32
    return %arg1, %c0_i32, %c0_i32_0, %c0_i32_1 : i32, i32, i32, i32
  }
  func.func @transform_9(%arg0: i32, %arg1: i32) -> (i32, i32, i32, i32) {
    %c0_i32 = arith.constant 0 : i32
    %c0_i32_0 = arith.constant 0 : i32
    %c0_i32_1 = arith.constant 0 : i32
    %c0_i32_2 = arith.constant 0 : i32
    return %arg1, %c0_i32, %c0_i32_0, %c0_i32_1 : i32, i32, i32, i32
  }
  func.func @transform_10(%arg0: i32, %arg1: i32) -> (i32, i32, i32, i32) {
    %c0_i32 = arith.constant 0 : i32
    %c0_i32_0 = arith.constant 0 : i32
    %c0_i32_1 = arith.constant 0 : i32
    %c0_i32_2 = arith.constant 0 : i32
    return %arg1, %c0_i32, %c0_i32_0, %c0_i32_1 : i32, i32, i32, i32
  }
  func.func @transform_11(%arg0: i32, %arg1: i32) -> (i32, i32, i32, i32) {
    %c0_i32 = arith.constant 0 : i32
    %c0_i32_0 = arith.constant 0 : i32
    %c0_i32_1 = arith.constant 0 : i32
    %c0_i32_2 = arith.constant 0 : i32
    return %arg1, %c0_i32, %c0_i32_0, %c0_i32_1 : i32, i32, i32, i32
  }
  func.func @transform_12(%arg0: i32, %arg1: i32) -> (i32, i32, i32) {
    %c0_i32 = arith.constant 0 : i32
    %c0_i32_0 = arith.constant 0 : i32
    %c0_i32_1 = arith.constant 0 : i32
    return %arg1, %c0_i32, %c0_i32_0 : i32, i32, i32
  }
  func.func @transform_13(%arg0: i32, %arg1: i32) -> (i32, i32, i32) {
    %c0_i32 = arith.constant 0 : i32
    %c0_i32_0 = arith.constant 0 : i32
    %c0_i32_1 = arith.constant 0 : i32
    return %arg1, %c0_i32, %c0_i32_0 : i32, i32, i32
  }
  func.func @transform_14(%arg0: i32, %arg1: i32) -> (i32, i32, i32) {
    %c0_i32 = arith.constant 0 : i32
    %c0_i32_0 = arith.constant 0 : i32
    %c0_i32_1 = arith.constant 0 : i32
    return %arg1, %c0_i32, %c0_i32_0 : i32, i32, i32
  }
  func.func @transform_15(%arg0: i32, %arg1: i32) -> (i32, i32, i32, i32) {
    %c0_i32 = arith.constant 0 : i32
    %c0_i32_0 = arith.constant 0 : i32
    %c0_i32_1 = arith.constant 0 : i32
    %c0_i32_2 = arith.constant 0 : i32
    return %arg1, %c0_i32, %c0_i32_0, %c0_i32_1 : i32, i32, i32, i32
  }
  func.func @transform_16(%arg0: i32, %arg1: i32) -> (i32, i32, i32, i32) {
    %c0_i32 = arith.constant 0 : i32
    %c0_i32_0 = arith.constant 0 : i32
    %c0_i32_1 = arith.constant 0 : i32
    %c0_i32_2 = arith.constant 0 : i32
    return %arg1, %c0_i32, %c0_i32_0, %c0_i32_1 : i32, i32, i32, i32
  }
  func.func @transform_17(%arg0: i32, %arg1: i32) -> (i32, i32, i32, i32) {
    %c0_i32 = arith.constant 0 : i32
    %c0_i32_0 = arith.constant 0 : i32
    %c0_i32_1 = arith.constant 0 : i32
    %c0_i32_2 = arith.constant 0 : i32
    return %arg1, %c0_i32, %c0_i32_0, %c0_i32_1 : i32, i32, i32, i32
  }
  func.func @transform_18(%arg0: i32, %arg1: i32) -> (i32, i32, i32, i32) {
    %c0_i32 = arith.constant 0 : i32
    %c0_i32_0 = arith.constant 0 : i32
    %c0_i32_1 = arith.constant 0 : i32
    %c0_i32_2 = arith.constant 0 : i32
    return %arg1, %c0_i32, %c0_i32_0, %c0_i32_1 : i32, i32, i32, i32
  }
  func.func @transform_19(%arg0: i32, %arg1: i32) -> (i32, i32, i32, i32) {
    %c0_i32 = arith.constant 0 : i32
    %c0_i32_0 = arith.constant 0 : i32
    %c0_i32_1 = arith.constant 0 : i32
    %c0_i32_2 = arith.constant 0 : i32
    return %arg1, %c0_i32, %c0_i32_0, %c0_i32_1 : i32, i32, i32, i32
  }
  func.func @transform_20(%arg0: i32, %arg1: i32) -> (i32, i32, i32, i32) {
    %c0_i32 = arith.constant 0 : i32
    %c0_i32_0 = arith.constant 0 : i32
    %c0_i32_1 = arith.constant 0 : i32
    %c0_i32_2 = arith.constant 0 : i32
    return %arg1, %c0_i32, %c0_i32_0, %c0_i32_1 : i32, i32, i32, i32
  }
  func.func @transform_21(%arg0: i32, %arg1: i32) -> (i32, i32, i32, i32) {
    %c0_i32 = arith.constant 0 : i32
    %c0_i32_0 = arith.constant 0 : i32
    %c0_i32_1 = arith.constant 0 : i32
    %c0_i32_2 = arith.constant 0 : i32
    return %arg1, %c0_i32, %c0_i32_0, %c0_i32_1 : i32, i32, i32, i32
  }
  func.func @transform_22(%arg0: i32, %arg1: i32) -> (i32, i32, i32) {
    %c0_i32 = arith.constant 0 : i32
    %c0_i32_0 = arith.constant 0 : i32
    %c0_i32_1 = arith.constant 0 : i32
    return %arg1, %c0_i32, %c0_i32_0 : i32, i32, i32
  }
  func.func @transform_23(%arg0: i32, %arg1: i32) -> (i32, i32, i32) {
    %c0_i32 = arith.constant 0 : i32
    %c0_i32_0 = arith.constant 0 : i32
    %c0_i32_1 = arith.constant 0 : i32
    return %arg1, %c0_i32, %c0_i32_0 : i32, i32, i32
  }
  func.func @transform_24(%arg0: i32, %arg1: i32) -> (i32, i32, i32) {
    %c0_i32 = arith.constant 0 : i32
    %c0_i32_0 = arith.constant 0 : i32
    %c0_i32_1 = arith.constant 0 : i32
    return %arg1, %c0_i32, %c0_i32_0 : i32, i32, i32
  }
  func.func @transform_25(%arg0: i32, %arg1: i32) -> (i32, i32, i32) {
    %c0_i32 = arith.constant 0 : i32
    %c0_i32_0 = arith.constant 0 : i32
    %c0_i32_1 = arith.constant 0 : i32
    return %arg1, %c0_i32, %c0_i32_0 : i32, i32, i32
  }
  func.func @transform_26(%arg0: i32, %arg1: i32) -> (i32, i32, i32) {
    %c0_i32 = arith.constant 0 : i32
    %c0_i32_0 = arith.constant 0 : i32
    %c0_i32_1 = arith.constant 0 : i32
    return %arg1, %c0_i32, %c0_i32_0 : i32, i32, i32
  }
  func.func @transform_27(%arg0: i32, %arg1: i32) -> (i32, i32, i32) {
    %c0_i32 = arith.constant 0 : i32
    %c0_i32_0 = arith.constant 0 : i32
    %c0_i32_1 = arith.constant 0 : i32
    return %arg1, %c0_i32, %c0_i32_0 : i32, i32, i32
  }
  func.func @transform_28(%arg0: i32, %arg1: i32) -> (i32, i32, i32) {
    %c0_i32 = arith.constant 0 : i32
    %c0_i32_0 = arith.constant 0 : i32
    %c0_i32_1 = arith.constant 0 : i32
    return %arg1, %c0_i32, %c0_i32_0 : i32, i32, i32
  }
  func.func @transform_29(%arg0: i32, %arg1: i32) -> (i32, i32, i32) {
    %c0_i32 = arith.constant 0 : i32
    %c0_i32_0 = arith.constant 0 : i32
    %c0_i32_1 = arith.constant 0 : i32
    return %arg1, %c0_i32, %c0_i32_0 : i32, i32, i32
  }
  func.func @transform_30(%arg0: i32, %arg1: i32) -> (i32, i32, i32) {
    %c0_i32 = arith.constant 0 : i32
    %c0_i32_0 = arith.constant 0 : i32
    %c0_i32_1 = arith.constant 0 : i32
    return %arg1, %c0_i32, %c0_i32_0 : i32, i32, i32
  }
  func.func @transform_31(%arg0: i32, %arg1: i32) -> (i32, i32, i32) {
    %c0_i32 = arith.constant 0 : i32
    %c0_i32_0 = arith.constant 0 : i32
    %c0_i32_1 = arith.constant 0 : i32
    return %arg0, %c0_i32, %c0_i32_0 : i32, i32, i32
  }
}

</mosaic_0001>

<llo_original>
// kernel: vl_transformer_itm_forward.3
$region0: #{vl_transformer_itm_forward.3}
  #allocation0 [shape = 'u32[]', space=smem, size = 0x4, offset = 0x4, fixed_abs, tag = 'smem constant byte address 0x4 - core index']
  #allocation1 [shape = 'u32[144,128]{1,0:T(1,128)}', space=vmem, size = 0x12000, scoped, tag = 'internal scratch']
  %s0 = inlined_call_operand.vmem [shape: f32[8,768], index: 0, kind: input, shape index: {}]
  %s1 = inlined_call_operand.vmem [shape: f32[768,64], index: 1, kind: input, shape index: {}]
  %s2 = inlined_call_operand.vmem [shape: f32[1,64], index: 2, kind: input, shape index: {}]
  %s3 = inlined_call_operand.vmem [shape: f32[8,64], index: 3, kind: output, shape index: {}]
  %s4 = sld [smem:[#allocation0]]
  $region22: #{vl_transformer_itm_forward.3} parent=0
    _
  %s6 = ssub.s32 1, %s4
  %s7 = scalar_select 0, %s6, %s4
  // Predicated region
  $region2: #{vl_transformer_itm_forward.3} parent=0 // pred_check
    _
  $region3: #{vl_transformer_itm_forward.3} parent=0 // pred_check_branch
    %9 = sbr.rel (0) target = $region5
  $region4: #{vl_transformer_itm_forward.3} parent=0 // pred_region
    _
  $region5: #{vl_transformer_itm_forward.3} parent=0 // pred_fallthru
    _
  // Predicated region
  $region6: #{vl_transformer_itm_forward.3} parent=0 // pred_check
    _
  $region7: #{vl_transformer_itm_forward.3} parent=0 // pred_check_branch
    %11 = sbr.rel (0) target = $region9
  $region8: #{vl_transformer_itm_forward.3} parent=0 // pred_region
    _
  $region9: #{vl_transformer_itm_forward.3} parent=0 // pred_fallthru
    _
  // Predicated region
  $region10: #{vl_transformer_itm_forward.3} parent=0 // pred_check
    _
  $region11: #{vl_transformer_itm_forward.3} parent=0 // pred_check_branch
    %13 = sbr.rel (0) target = $region13
  $region12: #{vl_transformer_itm_forward.3} parent=0 // pred_region
    _
  $region13: #{vl_transformer_itm_forward.3} parent=0 // pred_fallthru
    _
  %v15 = vld [vmem:[%s0] sm:$0xff]
  %v16 = vld [vmem:[%s0 + $0x8] sm:$0xff]
  %v17 = vld [vmem:[%s0 + $0x10] sm:$0xff]
  %v18 = vld [vmem:[%s0 + $0x18] sm:$0xff]
  %v19 = vld [vmem:[%s0 + $0x20] sm:$0xff]
  %v20 = vld [vmem:[%s0 + $0x28] sm:$0xff]
  %v21 = vld [vmem:[%s1] sm:$0xff]
  %v22 = vld [vmem:[%s1 + $0x8] sm:$0xff]
  %v23 = vld [vmem:[%s1 + $0x10] sm:$0xff]
  %v24 = vld [vmem:[%s1 + $0x18] sm:$0xff]
  %v25 = vld [vmem:[%s1 + $0x20] sm:$0xff]
  %v26 = vld [vmem:[%s1 + $0x28] sm:$0xff]
  %v27 = vld [vmem:[%s1 + $0x30] sm:$0xff]
  %v28 = vld [vmem:[%s1 + $0x38] sm:$0xff]
  %v29 = vld [vmem:[%s1 + $0x40] sm:$0xff]
  %v30 = vld [vmem:[%s1 + $0x48] sm:$0xff]
  %v31 = vld [vmem:[%s1 + $0x50] sm:$0xff]
  %v32 = vld [vmem:[%s1 + $0x58] sm:$0xff]
  %v33 = vld [vmem:[%s1 + $0x60] sm:$0xff]
  %v34 = vld [vmem:[%s1 + $0x68] sm:$0xff]
  %v35 = vld [vmem:[%s1 + $0x70] sm:$0xff]
  %v36 = vld [vmem:[%s1 + $0x78] sm:$0xff]
  %v37 = vld [vmem:[%s1 + $0x80] sm:$0xff]
  %v38 = vld [vmem:[%s1 + $0x88] sm:$0xff]
  %v39 = vld [vmem:[%s1 + $0x90] sm:$0xff]
  %v40 = vld [vmem:[%s1 + $0x98] sm:$0xff]
  %v41 = vld [vmem:[%s1 + $0xa0] sm:$0xff]
  %v42 = vld [vmem:[%s1 + $0xa8] sm:$0xff]
  %v43 = vld [vmem:[%s1 + $0xb0] sm:$0xff]
  %v44 = vld [vmem:[%s1 + $0xb8] sm:$0xff]
  %v45 = vld [vmem:[%s1 + $0xc0] sm:$0xff]
  %v46 = vld [vmem:[%s1 + $0xc8] sm:$0xff]
  %v47 = vld [vmem:[%s1 + $0xd0] sm:$0xff]
  %v48 = vld [vmem:[%s1 + $0xd8] sm:$0xff]
  %v49 = vld [vmem:[%s1 + $0xe0] sm:$0xff]
  %v50 = vld [vmem:[%s1 + $0xe8] sm:$0xff]
  %v51 = vld [vmem:[%s1 + $0xf0] sm:$0xff]
  %v52 = vld [vmem:[%s1 + $0xf8] sm:$0xff]
  %v53 = vld [vmem:[%s1 + $0x100] sm:$0xff]
  %v54 = vld [vmem:[%s1 + $0x108] sm:$0xff]
  %v55 = vld [vmem:[%s1 + $0x110] sm:$0xff]
  %v56 = vld [vmem:[%s1 + $0x118] sm:$0xff]
  %v57 = vld [vmem:[%s1 + $0x120] sm:$0xff]
  %v58 = vld [vmem:[%s1 + $0x128] sm:$0xff]
  %v59 = vld [vmem:[%s1 + $0x130] sm:$0xff]
  %v60 = vld [vmem:[%s1 + $0x138] sm:$0xff]
  %v61 = vld [vmem:[%s1 + $0x140] sm:$0xff]
  %v62 = vld [vmem:[%s1 + $0x148] sm:$0xff]
  %v63 = vld [vmem:[%s1 + $0x150] sm:$0xff]
  %v64 = vld [vmem:[%s1 + $0x158] sm:$0xff]
  %v65 = vld [vmem:[%s1 + $0x160] sm:$0xff]
  %v66 = vld [vmem:[%s1 + $0x168] sm:$0xff]
  %v67 = vld [vmem:[%s1 + $0x170] sm:$0xff]
  %v68 = vld [vmem:[%s1 + $0x178] sm:$0xff]
  %v69 = vld [vmem:[%s1 + $0x180] sm:$0xff]
  %v70 = vld [vmem:[%s1 + $0x188] sm:$0xff]
  %v71 = vld [vmem:[%s1 + $0x190] sm:$0xff]
  %v72 = vld [vmem:[%s1 + $0x198] sm:$0xff]
  %v73 = vld [vmem:[%s1 + $0x1a0] sm:$0xff]
  %v74 = vld [vmem:[%s1 + $0x1a8] sm:$0xff]
  %v75 = vld [vmem:[%s1 + $0x1b0] sm:$0xff]
  %v76 = vld [vmem:[%s1 + $0x1b8] sm:$0xff]
  %v77 = vld [vmem:[%s1 + $0x1c0] sm:$0xff]
  %v78 = vld [vmem:[%s1 + $0x1c8] sm:$0xff]
  %v79 = vld [vmem:[%s1 + $0x1d0] sm:$0xff]
  %v80 = vld [vmem:[%s1 + $0x1d8] sm:$0xff]
  %v81 = vld [vmem:[%s1 + $0x1e0] sm:$0xff]
  %v82 = vld [vmem:[%s1 + $0x1e8] sm:$0xff]
  %v83 = vld [vmem:[%s1 + $0x1f0] sm:$0xff]
  %v84 = vld [vmem:[%s1 + $0x1f8] sm:$0xff]
  %v85 = vld [vmem:[%s1 + $0x200] sm:$0xff]
  %v86 = vld [vmem:[%s1 + $0x208] sm:$0xff]
  %v87 = vld [vmem:[%s1 + $0x210] sm:$0xff]
  %v88 = vld [vmem:[%s1 + $0x218] sm:$0xff]
  %v89 = vld [vmem:[%s1 + $0x220] sm:$0xff]
  %v90 = vld [vmem:[%s1 + $0x228] sm:$0xff]
  %v91 = vld [vmem:[%s1 + $0x230] sm:$0xff]
  %v92 = vld [vmem:[%s1 + $0x238] sm:$0xff]
  %v93 = vld [vmem:[%s1 + $0x240] sm:$0xff]
  %v94 = vld [vmem:[%s1 + $0x248] sm:$0xff]
  %v95 = vld [vmem:[%s1 + $0x250] sm:$0xff]
  %v96 = vld [vmem:[%s1 + $0x258] sm:$0xff]
  %v97 = vld [vmem:[%s1 + $0x260] sm:$0xff]
  %v98 = vld [vmem:[%s1 + $0x268] sm:$0xff]
  %v99 = vld [vmem:[%s1 + $0x270] sm:$0xff]
  %v100 = vld [vmem:[%s1 + $0x278] sm:$0xff]
  %v101 = vld [vmem:[%s1 + $0x280] sm:$0xff]
  %v102 = vld [vmem:[%s1 + $0x288] sm:$0xff]
  %v103 = vld [vmem:[%s1 + $0x290] sm:$0xff]
  %v104 = vld [vmem:[%s1 + $0x298] sm:$0xff]
  %v105 = vld [vmem:[%s1 + $0x2a0] sm:$0xff]
  %v106 = vld [vmem:[%s1 + $0x2a8] sm:$0xff]
  %v107 = vld [vmem:[%s1 + $0x2b0] sm:$0xff]
  %v108 = vld [vmem:[%s1 + $0x2b8] sm:$0xff]
  %v109 = vld [vmem:[%s1 + $0x2c0] sm:$0xff]
  %v110 = vld [vmem:[%s1 + $0x2c8] sm:$0xff]
  %v111 = vld [vmem:[%s1 + $0x2d0] sm:$0xff]
  %v112 = vld [vmem:[%s1 + $0x2d8] sm:$0xff]
  %v113 = vld [vmem:[%s1 + $0x2e0] sm:$0xff]
  %v114 = vld [vmem:[%s1 + $0x2e8] sm:$0xff]
  %v115 = vld [vmem:[%s1 + $0x2f0] sm:$0xff]
  %v116 = vld [vmem:[%s1 + $0x2f8] sm:$0xff]
  %v117 = vpack.c.bf16 %v15, %v15
  %v118 = vpack.c.bf16 %v16, %v16
  %v119 = vpack.c.bf16 %v17, %v17
  %v120 = vpack.c.bf16 %v18, %v18
  %v121 = vpack.c.bf16 %v19, %v19
  %v122 = vpack.c.bf16 %v20, %v20
  %v123 = vpack.c.bf16 %v22, %v21
  %v124 = vpack.c.bf16 %v24, %v23
  %v125 = vpack.c.bf16 %v26, %v25
  %v126 = vpack.c.bf16 %v28, %v27
  %v127 = vpack.c.bf16 %v30, %v29
  %v128 = vpack.c.bf16 %v32, %v31
  %v129 = vpack.c.bf16 %v34, %v33
  %v130 = vpack.c.bf16 %v36, %v35
  %v131 = vpack.c.bf16 %v38, %v37
  %v132 = vpack.c.bf16 %v40, %v39
  %v133 = vpack.c.bf16 %v42, %v41
  %v134 = vpack.c.bf16 %v44, %v43
  %v135 = vpack.c.bf16 %v46, %v45
  %v136 = vpack.c.bf16 %v48, %v47
  %v137 = vpack.c.bf16 %v50, %v49
  %v138 = vpack.c.bf16 %v52, %v51
  %v139 = vpack.c.bf16 %v54, %v53
  %v140 = vpack.c.bf16 %v56, %v55
  %v141 = vpack.c.bf16 %v58, %v57
  %v142 = vpack.c.bf16 %v60, %v59
  %v143 = vpack.c.bf16 %v62, %v61
  %v144 = vpack.c.bf16 %v64, %v63
  %v145 = vpack.c.bf16 %v66, %v65
  %v146 = vpack.c.bf16 %v68, %v67
  %v147 = vpack.c.bf16 %v70, %v69
  %v148 = vpack.c.bf16 %v72, %v71
  %v149 = vpack.c.bf16 %v74, %v73
  %v150 = vpack.c.bf16 %v76, %v75
  %v151 = vpack.c.bf16 %v78, %v77
  %v152 = vpack.c.bf16 %v80, %v79
  %v153 = vpack.c.bf16 %v82, %v81
  %v154 = vpack.c.bf16 %v84, %v83
  %v155 = vpack.c.bf16 %v86, %v85
  %v156 = vpack.c.bf16 %v88, %v87
  %v157 = vpack.c.bf16 %v90, %v89
  %v158 = vpack.c.bf16 %v92, %v91
  %v159 = vpack.c.bf16 %v94, %v93
  %v160 = vpack.c.bf16 %v96, %v95
  %v161 = vpack.c.bf16 %v98, %v97
  %v162 = vpack.c.bf16 %v100, %v99
  %v163 = vpack.c.bf16 %v102, %v101
  %v164 = vpack.c.bf16 %v104, %v103
  %v165 = vpack.c.bf16 %v106, %v105
  %v166 = vpack.c.bf16 %v108, %v107
  %v167 = vpack.c.bf16 %v110, %v109
  %v168 = vpack.c.bf16 %v112, %v111
  %v169 = vpack.c.bf16 %v114, %v113
  %v170 = vpack.c.bf16 %v116, %v115
  %v171 = vld [vmem:[%s2] sm:$0x1]
  %v173 = vlaneseq
  %v174 = vshrl.u32 %v173, 7
  %v175 = vsub.s32 0, %v174
  %v176 = vrot.slane %v171, %v175
  %178 = vmatprep.subr.bf16.mxu0 0
  %179 = vmatpush1.bf16.msra.mxu0 %v123
  %180 = vmatprep.subr.bf16.mxu0 0
  %181 = vmatpush1.bf16.msra.mxu0 %v124
  %182 = vmatprep.subr.bf16.mxu0 0
  %183 = vmatpush1.bf16.msra.mxu0 %v125
  %184 = vmatprep.subr.bf16.mxu0 0
  %185 = vmatpush1.bf16.msra.mxu0 %v126
  %186 = vmatprep.subr.bf16.mxu0 0
  %187 = vmatpush1.bf16.msra.mxu0 %v127
  %188 = vmatprep.subr.bf16.mxu0 0
  %189 = vmatpush1.bf16.msra.mxu0 %v128
  %190 = vmatprep.subr.bf16.mxu0 0
  %191 = vmatpush1.bf16.msra.mxu0 %v129
  %192 = vmatprep.subr.bf16.mxu0 0
  %193 = vmatpush1.bf16.msra.mxu0 %v130
  %194 = vmatprep.subr.bf16.mxu0 0
  %195 = vmatpush1.bf16.msra.mxu0 %v131
  %196 = vmatprep.subr.bf16.mxu0 0
  %197 = vmatpush1.bf16.msra.mxu0 %v132
  %198 = vmatprep.subr.bf16.mxu0 0
  %199 = vmatpush1.bf16.msra.mxu0 %v133
  %200 = vmatprep.subr.bf16.mxu0 0
  %201 = vmatpush1.bf16.msra.mxu0 %v134
  %202 = vmatprep.subr.bf16.mxu0 0
  %203 = vmatpush1.bf16.msra.mxu0 %v135
  %204 = vmatprep.subr.bf16.mxu0 0
  %205 = vmatpush1.bf16.msra.mxu0 %v136
  %206 = vmatprep.subr.bf16.mxu0 0
  %207 = vmatpush1.bf16.msra.mxu0 %v137
  %208 = vmatprep.subr.bf16.mxu0 0
  %209 = vmatpush1.bf16.msra.mxu0 %v138
  %210 = vmatprep.mubr.bf16.mxu0 %v118
  %211 = vmatmul.mubr.bf16.gmra.mrb[0].mxu0 %v117
  %v212 = vpop.f32.mrb[0].mxu0
  %v213 = vadd.f32 %v176, %v212
  %v214 = vpop.f32.mrb[0].mxu0
  %v215 = vpop.f32.mrb[0].mxu0
  %v216 = vpop.f32.mrb[0].mxu0
  %217 = vdwg.mxu0
  %218 = vmatprep.subr.bf16.mxu0 0
  %219 = vmatpush1.bf16.msra.mxu0 %v139
  %220 = vmatprep.subr.bf16.mxu0 0
  %221 = vmatpush1.bf16.msra.mxu0 %v140
  %222 = vmatprep.subr.bf16.mxu0 0
  %223 = vmatpush1.bf16.msra.mxu0 %v141
  %224 = vmatprep.subr.bf16.mxu0 0
  %225 = vmatpush1.bf16.msra.mxu0 %v142
  %226 = vmatprep.subr.bf16.mxu0 0
  %227 = vmatpush1.bf16.msra.mxu0 %v143
  %228 = vmatprep.subr.bf16.mxu0 0
  %229 = vmatpush1.bf16.msra.mxu0 %v144
  %230 = vmatprep.subr.bf16.mxu0 0
  %231 = vmatpush1.bf16.msra.mxu0 %v145
  %232 = vmatprep.subr.bf16.mxu0 0
  %233 = vmatpush1.bf16.msra.mxu0 %v146
  %234 = vmatprep.subr.bf16.mxu0 0
  %235 = vmatpush1.bf16.msra.mxu0 %v147
  %236 = vmatprep.subr.bf16.mxu0 0
  %237 = vmatpush1.bf16.msra.mxu0 %v148
  %238 = vmatprep.subr.bf16.mxu0 0
  %239 = vmatpush1.bf16.msra.mxu0 %v149
  %240 = vmatprep.subr.bf16.mxu0 0
  %241 = vmatpush1.bf16.msra.mxu0 %v150
  %242 = vmatprep.subr.bf16.mxu0 0
  %243 = vmatpush1.bf16.msra.mxu0 %v151
  %244 = vmatprep.subr.bf16.mxu0 0
  %245 = vmatpush1.bf16.msra.mxu0 %v152
  %246 = vmatprep.subr.bf16.mxu0 0
  %247 = vmatpush1.bf16.msra.mxu0 %v153
  %248 = vmatprep.subr.bf16.mxu0 0
  %249 = vmatpush1.bf16.msra.mxu0 %v154
  %250 = vmatprep.mubr.bf16.mxu0 %v120
  %251 = vmatmul.mubr.bf16.gmra.mrb[0].mxu0 %v119
  %v252 = vpop.f32.mrb[0].mxu0
  %v253 = vadd.f32 %v213, %v252
  %v254 = vpop.f32.mrb[0].mxu0
  %v255 = vpop.f32.mrb[0].mxu0
  %v256 = vpop.f32.mrb[0].mxu0
  %257 = vdwg.mxu0
  %258 = vmatprep.subr.bf16.mxu0 0
  %259 = vmatpush1.bf16.msra.mxu0 %v155
  %260 = vmatprep.subr.bf16.mxu0 0
  %261 = vmatpush1.bf16.msra.mxu0 %v156
  %262 = vmatprep.subr.bf16.mxu0 0
  %263 = vmatpush1.bf16.msra.mxu0 %v157
  %264 = vmatprep.subr.bf16.mxu0 0
  %265 = vmatpush1.bf16.msra.mxu0 %v158
  %266 = vmatprep.subr.bf16.mxu0 0
  %267 = vmatpush1.bf16.msra.mxu0 %v159
  %268 = vmatprep.subr.bf16.mxu0 0
  %269 = vmatpush1.bf16.msra.mxu0 %v160
  %270 = vmatprep.subr.bf16.mxu0 0
  %271 = vmatpush1.bf16.msra.mxu0 %v161
  %272 = vmatprep.subr.bf16.mxu0 0
  %273 = vmatpush1.bf16.msra.mxu0 %v162
  %274 = vmatprep.subr.bf16.mxu0 0
  %275 = vmatpush1.bf16.msra.mxu0 %v163
  %276 = vmatprep.subr.bf16.mxu0 0
  %277 = vmatpush1.bf16.msra.mxu0 %v164
  %278 = vmatprep.subr.bf16.mxu0 0
  %279 = vmatpush1.bf16.msra.mxu0 %v165
  %280 = vmatprep.subr.bf16.mxu0 0
  %281 = vmatpush1.bf16.msra.mxu0 %v166
  %282 = vmatprep.subr.bf16.mxu0 0
  %283 = vmatpush1.bf16.msra.mxu0 %v167
  %284 = vmatprep.subr.bf16.mxu0 0
  %285 = vmatpush1.bf16.msra.mxu0 %v168
  %286 = vmatprep.subr.bf16.mxu0 0
  %287 = vmatpush1.bf16.msra.mxu0 %v169
  %288 = vmatprep.subr.bf16.mxu0 0
  %289 = vmatpush1.bf16.msra.mxu0 %v170
  %290 = vmatprep.mubr.bf16.mxu0 %v122
  %291 = vmatmul.mubr.bf16.gmra.mrb[0].mxu0 %v121
  %v292 = vpop.f32.mrb[0].mxu0
  %v293 = vadd.f32 %v253, %v292
  %v294 = vpop.f32.mrb[0].mxu0
  %v295 = vpop.f32.mrb[0].mxu0
  %v296 = vpop.f32.mrb[0].mxu0
  %297 = vdwg.mxu0
  %vm298 = vcmask 523264
  %299 = vst.msk [vmem:[%s3] sm:$0xff] %vm298, %v293
  // Predicated region
  $region14: #{vl_transformer_itm_forward.3} parent=0 // pred_check
    _
  $region15: #{vl_transformer_itm_forward.3} parent=0 // pred_check_branch
    %301 = sbr.rel (0) target = $region17
  $region16: #{vl_transformer_itm_forward.3} parent=0 // pred_region
    _
  $region17: #{vl_transformer_itm_forward.3} parent=0 // pred_fallthru
    _
  // Predicated region
  $region18: #{vl_transformer_itm_forward.3} parent=0 // pred_check
    _
  $region19: #{vl_transformer_itm_forward.3} parent=0 // pred_check_branch
    %303 = sbr.rel (0) target = $region21
  $region20: #{vl_transformer_itm_forward.3} parent=0 // pred_region
    _
  $region21: #{vl_transformer_itm_forward.3} parent=0 // pred_fallthru
    _

// kernel: vl_transformer_itm_forward.4
$region0: #{vl_transformer_itm_forward.4}
  #allocation0 [shape = 'u32[]', space=smem, size = 0x4, offset = 0x4, fixed_abs, tag = 'smem constant byte address 0x4 - core index']
  #allocation1 [shape = 'u32[144,128]{1,0:T(1,128)}', space=vmem, size = 0x12000, scoped, tag = 'internal scratch']
  #allocation2 [shape = 'f32[5,64]{1,0:T(8,128)}', space=vmem, size = 0x1000, scoped, tag = 'scratch operand']
  %s0 = inlined_call_operand.vmem [shape: f32[2,5,64], index: 0, kind: input, shape index: {}]
  %s1 = inlined_call_operand.vmem [shape: f32[2,1,64], index: 1, kind: input, shape index: {}]
  %s2 = inlined_call_operand.vmem [shape: f32[2,1,64], index: 2, kind: input, shape index: {}]
  %s3 = inlined_call_operand.vmem [shape: f32[2,4,64,16], index: 3, kind: input, shape index: {}]
  %s4 = inlined_call_operand.vmem [shape: f32[2,4,1,16], index: 4, kind: input, shape index: {}]
  %s5 = inlined_call_operand.vmem [shape: f32[2,4,64,16], index: 5, kind: input, shape index: {}]
  %s6 = inlined_call_operand.vmem [shape: f32[2,4,1,16], index: 6, kind: input, shape index: {}]
  %s7 = inlined_call_operand.vmem [shape: f32[2,4,64,16], index: 7, kind: input, shape index: {}]
  %s8 = inlined_call_operand.vmem [shape: f32[2,4,1,16], index: 8, kind: input, shape index: {}]
  %s9 = inlined_call_operand.vmem [shape: f32[2,4,16,64], index: 9, kind: input, shape index: {}]
  %s10 = inlined_call_operand.vmem [shape: f32[2,1,64], index: 10, kind: input, shape index: {}]
  %s11 = inlined_call_operand.vmem [shape: f32[2,1,64], index: 11, kind: input, shape index: {}]
  %s12 = inlined_call_operand.vmem [shape: f32[2,1,64], index: 12, kind: input, shape index: {}]
  %s13 = inlined_call_operand.vmem [shape: f32[2,64,256], index: 13, kind: input, shape index: {}]
  %s14 = inlined_call_operand.vmem [shape: f32[2,1,256], index: 14, kind: input, shape index: {}]
  %s15 = inlined_call_operand.vmem [shape: f32[2,256,64], index: 15, kind: input, shape index: {}]
  %s16 = inlined_call_operand.vmem [shape: f32[2,1,64], index: 16, kind: input, shape index: {}]
  %s17 = inlined_call_operand.vmem [shape: f32[1,64], index: 17, kind: input, shape index: {}]
  %s18 = inlined_call_operand.vmem [shape: f32[1,64], index: 18, kind: input, shape index: {}]
  %s19 = inlined_call_operand.vmem [shape: f32[2,5,64], index: 19, kind: output, shape index: {}]
  %s20 = sld [smem:[#allocation0]]
  $region117: #{vl_transformer_itm_forward.4} parent=0
    _
  %s22 = ssub.s32 1, %s20
  %s23 = scalar_select 0, %s22, %s20
  loop: start=0, step=1, limit=6
  $region2: #{vl_transformer_itm_forward.4} parent=0 // loop_pre_header
    _
  $region3: #{vl_transformer_itm_forward.4} parent=0 // loop_header
    %s25 = sphi 0, %s29
    %p26 = scmp.ge.s32.totalorder %s25, 6
    %s32 = sphi 0, %s44
    %s33 = sphi 0, %s40
    %s34 = sphi 0, %s32
    %s35 = sphi 0, %s33
    %s36 = sphi 0, %s34
    %s37 = sphi 0, %s35
    %s47 = sphi 0, %s49
    %s50 = sphi 0, %s47
    %s51 = sphi 0, %s50
    %s67 = sphi 0, %s51
    %s73 = sphi 0, %s75
    %s76 = sphi 0, %s73
    %s77 = sphi 0, %s76
    %s93 = sphi 0, %s77
    %s99 = sphi 0, %s101
    %s102 = sphi 0, %s99
    %s103 = sphi 0, %s102
    %s119 = sphi 0, %s103
    %s125 = sphi 0, %s127
    %s128 = sphi 0, %s125
    %s129 = sphi 0, %s128
    %s145 = sphi 0, %s129
    %s151 = sphi 0, %s153
    %s154 = sphi 0, %s151
    %s155 = sphi 0, %s154
    %s171 = sphi 0, %s155
    %s177 = sphi 0, %s179
    %s180 = sphi 0, %s177
    %s181 = sphi 0, %s180
    %s197 = sphi 0, %s181
    %s203 = sphi 0, %s205
    %s206 = sphi 0, %s203
    %s207 = sphi 0, %s206
    %s223 = sphi 0, %s207
    %s229 = sphi 0, %s231
    %s232 = sphi 0, %s229
    %s233 = sphi 0, %s232
    %s249 = sphi 0, %s233
    %s255 = sphi 0, %s257
    %s258 = sphi 0, %s255
    %s259 = sphi 0, %s258
    %s275 = sphi 0, %s259
    %s281 = sphi 0, %s283
    %s284 = sphi 0, %s281
    %s285 = sphi 0, %s284
    %s301 = sphi 0, %s285
    %s307 = sphi 0, %s309
    %s310 = sphi 0, %s307
    %s311 = sphi 0, %s310
    %s327 = sphi 0, %s311
    %s333 = sphi 0, %s335
    %s336 = sphi 0, %s333
    %s337 = sphi 0, %s336
    %s353 = sphi 0, %s337
    %s359 = sphi 0, %s361
    %s362 = sphi 0, %s359
    %s363 = sphi 0, %s362
    %s379 = sphi 0, %s363
    %s385 = sphi 0, %s387
    %s388 = sphi 0, %s385
    %s389 = sphi 0, %s388
    %s405 = sphi 0, %s389
    %s411 = sphi 0, %s413
    %s414 = sphi 0, %s411
    %s415 = sphi 0, %s414
    %s431 = sphi 0, %s415
    %s437 = sphi 0, %s439
    %s440 = sphi 0, %s437
    %s441 = sphi 0, %s440
    %s457 = sphi 0, %s441
    %s463 = sphi 0, %s465
    %s466 = sphi 0, %s463
    %s467 = sphi 0, %s466
    %s483 = sphi 0, %s467
    %s487 = sphi 0, %s487
    %s489 = sphi 0, %s487
    %s490 = sphi 0, %s489
    %s504 = sphi 0, %s490
    %s508 = sphi 0, %s508
    %s510 = sphi 0, %s508
    %s511 = sphi 0, %s510
    %s525 = sphi 0, %s511
    %s531 = sphi 0, %s533
    %s534 = sphi 0, %s531
    %s535 = sphi 0, %s534
    %s551 = sphi 0, %s535
  $region4: #{vl_transformer_itm_forward.4} parent=0 // loop_header_branch
    %28 = sbr.rel (%p26) target = $region8
  $region5: #{vl_transformer_itm_forward.4} parent=0 // loop_body
    %s30 = ssub.s32 %s25, 1
    %s31 = ssub.s32 %s25, 2
    %s38 = sadd.s32 1, %s33
    %p39 = scmp.ge.s32.totalorder %s38, 2
    %s40 = scalar_select %p39, 0, %s38
    %s41 = sadd.s32 1, %s32
    %s42 = scalar_select %p39, %s41, %s32
    %p43 = scmp.ge.s32.totalorder %s42, 2
    %s44 = scalar_select %p43, 0, %s42
    %s45 = ssub.s32 %s32, %s44
    %p46 = scmp.eq.s32.totalorder %s45, 0
    %s48 = sadd.s32 %s47, 1
    %s49 = scalar_select %p46, %s47, %s48
    %p52 = pneg %p46
    %p53 = scmp.eq.s32.totalorder %s25, 3
    %p54 = por %p52, %p53
    %p55 = scmp.ne.s32.totalorder %s47, %s50
    %p56 = scmp.eq.s32.totalorder %s25, 0
    %p57 = por %p55, %p56
    %p58 = scmp.ne.s32.totalorder %s47, %s50
    %p59 = scmp.eq.s32.totalorder %s30, 3
    %p60 = por %p58, %p59
    %p61 = scmp.ne.s32.totalorder %s50, %s51
    %p62 = scmp.eq.s32.totalorder %s30, 0
    %p63 = por %p61, %p62
    %p64 = scmp.ne.s32.totalorder %s50, %s51
    %p65 = scmp.eq.s32.totalorder %s31, 3
    %p66 = por %p64, %p65
    %p68 = scmp.ne.s32.totalorder %s51, %s67
    %p69 = scmp.eq.s32.totalorder %s31, 0
    %p70 = por %p68, %p69
    %s71 = ssub.s32 %s33, %s40
    %p72 = scmp.eq.s32.totalorder %s71, 0
    %s74 = sadd.s32 %s73, 1
    %s75 = scalar_select %p72, %s73, %s74
    %p78 = pneg %p72
    %p79 = scmp.eq.s32.totalorder %s25, 3
    %p80 = por %p78, %p79
    %p81 = scmp.ne.s32.totalorder %s73, %s76
    %p82 = scmp.eq.s32.totalorder %s25, 0
    %p83 = por %p81, %p82
    %p84 = scmp.ne.s32.totalorder %s73, %s76
    %p85 = scmp.eq.s32.totalorder %s30, 3
    %p86 = por %p84, %p85
    %p87 = scmp.ne.s32.totalorder %s76, %s77
    %p88 = scmp.eq.s32.totalorder %s30, 0
    %p89 = por %p87, %p88
    %p90 = scmp.ne.s32.totalorder %s76, %s77
    %p91 = scmp.eq.s32.totalorder %s31, 3
    %p92 = por %p90, %p91
    %p94 = scmp.ne.s32.totalorder %s77, %s93
    %p95 = scmp.eq.s32.totalorder %s31, 0
    %p96 = por %p94, %p95
    %s97 = ssub.s32 %s33, %s40
    %p98 = scmp.eq.s32.totalorder %s97, 0
    %s100 = sadd.s32 %s99, 1
    %s101 = scalar_select %p98, %s99, %s100
    %p104 = pneg %p98
    %p105 = scmp.eq.s32.totalorder %s25, 3
    %p106 = por %p104, %p105
    %p107 = scmp.ne.s32.totalorder %s99, %s102
    %p108 = scmp.eq.s32.totalorder %s25, 0
    %p109 = por %p107, %p108
    %p110 = scmp.ne.s32.totalorder %s99, %s102
    %p111 = scmp.eq.s32.totalorder %s30, 3
    %p112 = por %p110, %p111
    %p113 = scmp.ne.s32.totalorder %s102, %s103
    %p114 = scmp.eq.s32.totalorder %s30, 0
    %p115 = por %p113, %p114
    %p116 = scmp.ne.s32.totalorder %s102, %s103
    %p117 = scmp.eq.s32.totalorder %s31, 3
    %p118 = por %p116, %p117
    %p120 = scmp.ne.s32.totalorder %s103, %s119
    %p121 = scmp.eq.s32.totalorder %s31, 0
    %p122 = por %p120, %p121
    %s123 = ssub.s32 %s33, %s40
    %p124 = scmp.eq.s32.totalorder %s123, 0
    %s126 = sadd.s32 %s125, 1
    %s127 = scalar_select %p124, %s125, %s126
    %p130 = pneg %p124
    %p131 = scmp.eq.s32.totalorder %s25, 3
    %p132 = por %p130, %p131
    %p133 = scmp.ne.s32.totalorder %s125, %s128
    %p134 = scmp.eq.s32.totalorder %s25, 0
    %p135 = por %p133, %p134
    %p136 = scmp.ne.s32.totalorder %s125, %s128
    %p137 = scmp.eq.s32.totalorder %s30, 3
    %p138 = por %p136, %p137
    %p139 = scmp.ne.s32.totalorder %s128, %s129
    %p140 = scmp.eq.s32.totalorder %s30, 0
    %p141 = por %p139, %p140
    %p142 = scmp.ne.s32.totalorder %s128, %s129
    %p143 = scmp.eq.s32.totalorder %s31, 3
    %p144 = por %p142, %p143
    %p146 = scmp.ne.s32.totalorder %s129, %s145
    %p147 = scmp.eq.s32.totalorder %s31, 0
    %p148 = por %p146, %p147
    %s149 = ssub.s32 %s33, %s40
    %p150 = scmp.eq.s32.totalorder %s149, 0
    %s152 = sadd.s32 %s151, 1
    %s153 = scalar_select %p150, %s151, %s152
    %p156 = pneg %p150
    %p157 = scmp.eq.s32.totalorder %s25, 3
    %p158 = por %p156, %p157
    %p159 = scmp.ne.s32.totalorder %s151, %s154
    %p160 = scmp.eq.s32.totalorder %s25, 0
    %p161 = por %p159, %p160
    %p162 = scmp.ne.s32.totalorder %s151, %s154
    %p163 = scmp.eq.s32.totalorder %s30, 3
    %p164 = por %p162, %p163
    %p165 = scmp.ne.s32.totalorder %s154, %s155
    %p166 = scmp.eq.s32.totalorder %s30, 0
    %p167 = por %p165, %p166
    %p168 = scmp.ne.s32.totalorder %s154, %s155
    %p169 = scmp.eq.s32.totalorder %s31, 3
    %p170 = por %p168, %p169
    %p172 = scmp.ne.s32.totalorder %s155, %s171
    %p173 = scmp.eq.s32.totalorder %s31, 0
    %p174 = por %p172, %p173
    %s175 = ssub.s32 %s33, %s40
    %p176 = scmp.eq.s32.totalorder %s175, 0
    %s178 = sadd.s32 %s177, 1
    %s179 = scalar_select %p176, %s177, %s178
    %p182 = pneg %p176
    %p183 = scmp.eq.s32.totalorder %s25, 3
    %p184 = por %p182, %p183
    %p185 = scmp.ne.s32.totalorder %s177, %s180
    %p186 = scmp.eq.s32.totalorder %s25, 0
    %p187 = por %p185, %p186
    %p188 = scmp.ne.s32.totalorder %s177, %s180
    %p189 = scmp.eq.s32.totalorder %s30, 3
    %p190 = por %p188, %p189
    %p191 = scmp.ne.s32.totalorder %s180, %s181
    %p192 = scmp.eq.s32.totalorder %s30, 0
    %p193 = por %p191, %p192
    %p194 = scmp.ne.s32.totalorder %s180, %s181
    %p195 = scmp.eq.s32.totalorder %s31, 3
    %p196 = por %p194, %p195
    %p198 = scmp.ne.s32.totalorder %s181, %s197
    %p199 = scmp.eq.s32.totalorder %s31, 0
    %p200 = por %p198, %p199
    %s201 = ssub.s32 %s33, %s40
    %p202 = scmp.eq.s32.totalorder %s201, 0
    %s204 = sadd.s32 %s203, 1
    %s205 = scalar_select %p202, %s203, %s204
    %p208 = pneg %p202
    %p209 = scmp.eq.s32.totalorder %s25, 3
    %p210 = por %p208, %p209
    %p211 = scmp.ne.s32.totalorder %s203, %s206
    %p212 = scmp.eq.s32.totalorder %s25, 0
    %p213 = por %p211, %p212
    %p214 = scmp.ne.s32.totalorder %s203, %s206
    %p215 = scmp.eq.s32.totalorder %s30, 3
    %p216 = por %p214, %p215
    %p217 = scmp.ne.s32.totalorder %s206, %s207
    %p218 = scmp.eq.s32.totalorder %s30, 0
    %p219 = por %p217, %p218
    %p220 = scmp.ne.s32.totalorder %s206, %s207
    %p221 = scmp.eq.s32.totalorder %s31, 3
    %p222 = por %p220, %p221
    %p224 = scmp.ne.s32.totalorder %s207, %s223
    %p225 = scmp.eq.s32.totalorder %s31, 0
    %p226 = por %p224, %p225
    %s227 = ssub.s32 %s33, %s40
    %p228 = scmp.eq.s32.totalorder %s227, 0
    %s230 = sadd.s32 %s229, 1
    %s231 = scalar_select %p228, %s229, %s230
    %p234 = pneg %p228
    %p235 = scmp.eq.s32.totalorder %s25, 3
    %p236 = por %p234, %p235
    %p237 = scmp.ne.s32.totalorder %s229, %s232
    %p238 = scmp.eq.s32.totalorder %s25, 0
    %p239 = por %p237, %p238
    %p240 = scmp.ne.s32.totalorder %s229, %s232
    %p241 = scmp.eq.s32.totalorder %s30, 3
    %p242 = por %p240, %p241
    %p243 = scmp.ne.s32.totalorder %s232, %s233
    %p244 = scmp.eq.s32.totalorder %s30, 0
    %p245 = por %p243, %p244
    %p246 = scmp.ne.s32.totalorder %s232, %s233
    %p247 = scmp.eq.s32.totalorder %s31, 3
    %p248 = por %p246, %p247
    %p250 = scmp.ne.s32.totalorder %s233, %s249
    %p251 = scmp.eq.s32.totalorder %s31, 0
    %p252 = por %p250, %p251
    %s253 = ssub.s32 %s33, %s40
    %p254 = scmp.eq.s32.totalorder %s253, 0
    %s256 = sadd.s32 %s255, 1
    %s257 = scalar_select %p254, %s255, %s256
    %p260 = pneg %p254
    %p261 = scmp.eq.s32.totalorder %s25, 3
    %p262 = por %p260, %p261
    %p263 = scmp.ne.s32.totalorder %s255, %s258
    %p264 = scmp.eq.s32.totalorder %s25, 0
    %p265 = por %p263, %p264
    %p266 = scmp.ne.s32.totalorder %s255, %s258
    %p267 = scmp.eq.s32.totalorder %s30, 3
    %p268 = por %p266, %p267
    %p269 = scmp.ne.s32.totalorder %s258, %s259
    %p270 = scmp.eq.s32.totalorder %s30, 0
    %p271 = por %p269, %p270
    %p272 = scmp.ne.s32.totalorder %s258, %s259
    %p273 = scmp.eq.s32.totalorder %s31, 3
    %p274 = por %p272, %p273
    %p276 = scmp.ne.s32.totalorder %s259, %s275
    %p277 = scmp.eq.s32.totalorder %s31, 0
    %p278 = por %p276, %p277
    %s279 = ssub.s32 %s33, %s40
    %p280 = scmp.eq.s32.totalorder %s279, 0
    %s282 = sadd.s32 %s281, 1
    %s283 = scalar_select %p280, %s281, %s282
    %p286 = pneg %p280
    %p287 = scmp.eq.s32.totalorder %s25, 3
    %p288 = por %p286, %p287
    %p289 = scmp.ne.s32.totalorder %s281, %s284
    %p290 = scmp.eq.s32.totalorder %s25, 0
    %p291 = por %p289, %p290
    %p292 = scmp.ne.s32.totalorder %s281, %s284
    %p293 = scmp.eq.s32.totalorder %s30, 3
    %p294 = por %p292, %p293
    %p295 = scmp.ne.s32.totalorder %s284, %s285
    %p296 = scmp.eq.s32.totalorder %s30, 0
    %p297 = por %p295, %p296
    %p298 = scmp.ne.s32.totalorder %s284, %s285
    %p299 = scmp.eq.s32.totalorder %s31, 3
    %p300 = por %p298, %p299
    %p302 = scmp.ne.s32.totalorder %s285, %s301
    %p303 = scmp.eq.s32.totalorder %s31, 0
    %p304 = por %p302, %p303
    %s305 = ssub.s32 %s33, %s40
    %p306 = scmp.eq.s32.totalorder %s305, 0
    %s308 = sadd.s32 %s307, 1
    %s309 = scalar_select %p306, %s307, %s308
    %p312 = pneg %p306
    %p313 = scmp.eq.s32.totalorder %s25, 3
    %p314 = por %p312, %p313
    %p315 = scmp.ne.s32.totalorder %s307, %s310
    %p316 = scmp.eq.s32.totalorder %s25, 0
    %p317 = por %p315, %p316
    %p318 = scmp.ne.s32.totalorder %s307, %s310
    %p319 = scmp.eq.s32.totalorder %s30, 3
    %p320 = por %p318, %p319
    %p321 = scmp.ne.s32.totalorder %s310, %s311
    %p322 = scmp.eq.s32.totalorder %s30, 0
    %p323 = por %p321, %p322
    %p324 = scmp.ne.s32.totalorder %s310, %s311
    %p325 = scmp.eq.s32.totalorder %s31, 3
    %p326 = por %p324, %p325
    %p328 = scmp.ne.s32.totalorder %s311, %s327
    %p329 = scmp.eq.s32.totalorder %s31, 0
    %p330 = por %p328, %p329
    %s331 = ssub.s32 %s33, %s40
    %p332 = scmp.eq.s32.totalorder %s331, 0
    %s334 = sadd.s32 %s333, 1
    %s335 = scalar_select %p332, %s333, %s334
    %p338 = pneg %p332
    %p339 = scmp.eq.s32.totalorder %s25, 3
    %p340 = por %p338, %p339
    %p341 = scmp.ne.s32.totalorder %s333, %s336
    %p342 = scmp.eq.s32.totalorder %s25, 0
    %p343 = por %p341, %p342
    %p344 = scmp.ne.s32.totalorder %s333, %s336
    %p345 = scmp.eq.s32.totalorder %s30, 3
    %p346 = por %p344, %p345
    %p347 = scmp.ne.s32.totalorder %s336, %s337
    %p348 = scmp.eq.s32.totalorder %s30, 0
    %p349 = por %p347, %p348
    %p350 = scmp.ne.s32.totalorder %s336, %s337
    %p351 = scmp.eq.s32.totalorder %s31, 3
    %p352 = por %p350, %p351
    %p354 = scmp.ne.s32.totalorder %s337, %s353
    %p355 = scmp.eq.s32.totalorder %s31, 0
    %p356 = por %p354, %p355
    %s357 = ssub.s32 %s33, %s40
    %p358 = scmp.eq.s32.totalorder %s357, 0
    %s360 = sadd.s32 %s359, 1
    %s361 = scalar_select %p358, %s359, %s360
    %p364 = pneg %p358
    %p365 = scmp.eq.s32.totalorder %s25, 3
    %p366 = por %p364, %p365
    %p367 = scmp.ne.s32.totalorder %s359, %s362
    %p368 = scmp.eq.s32.totalorder %s25, 0
    %p369 = por %p367, %p368
    %p370 = scmp.ne.s32.totalorder %s359, %s362
    %p371 = scmp.eq.s32.totalorder %s30, 3
    %p372 = por %p370, %p371
    %p373 = scmp.ne.s32.totalorder %s362, %s363
    %p374 = scmp.eq.s32.totalorder %s30, 0
    %p375 = por %p373, %p374
    %p376 = scmp.ne.s32.totalorder %s362, %s363
    %p377 = scmp.eq.s32.totalorder %s31, 3
    %p378 = por %p376, %p377
    %p380 = scmp.ne.s32.totalorder %s363, %s379
    %p381 = scmp.eq.s32.totalorder %s31, 0
    %p382 = por %p380, %p381
    %s383 = ssub.s32 %s33, %s40
    %p384 = scmp.eq.s32.totalorder %s383, 0
    %s386 = sadd.s32 %s385, 1
    %s387 = scalar_select %p384, %s385, %s386
    %p390 = pneg %p384
    %p391 = scmp.eq.s32.totalorder %s25, 3
    %p392 = por %p390, %p391
    %p393 = scmp.ne.s32.totalorder %s385, %s388
    %p394 = scmp.eq.s32.totalorder %s25, 0
    %p395 = por %p393, %p394
    %p396 = scmp.ne.s32.totalorder %s385, %s388
    %p397 = scmp.eq.s32.totalorder %s30, 3
    %p398 = por %p396, %p397
    %p399 = scmp.ne.s32.totalorder %s388, %s389
    %p400 = scmp.eq.s32.totalorder %s30, 0
    %p401 = por %p399, %p400
    %p402 = scmp.ne.s32.totalorder %s388, %s389
    %p403 = scmp.eq.s32.totalorder %s31, 3
    %p404 = por %p402, %p403
    %p406 = scmp.ne.s32.totalorder %s389, %s405
    %p407 = scmp.eq.s32.totalorder %s31, 0
    %p408 = por %p406, %p407
    %s409 = ssub.s32 %s33, %s40
    %p410 = scmp.eq.s32.totalorder %s409, 0
    %s412 = sadd.s32 %s411, 1
    %s413 = scalar_select %p410, %s411, %s412
    %p416 = pneg %p410
    %p417 = scmp.eq.s32.totalorder %s25, 3
    %p418 = por %p416, %p417
    %p419 = scmp.ne.s32.totalorder %s411, %s414
    %p420 = scmp.eq.s32.totalorder %s25, 0
    %p421 = por %p419, %p420
    %p422 = scmp.ne.s32.totalorder %s411, %s414
    %p423 = scmp.eq.s32.totalorder %s30, 3
    %p424 = por %p422, %p423
    %p425 = scmp.ne.s32.totalorder %s414, %s415
    %p426 = scmp.eq.s32.totalorder %s30, 0
    %p427 = por %p425, %p426
    %p428 = scmp.ne.s32.totalorder %s414, %s415
    %p429 = scmp.eq.s32.totalorder %s31, 3
    %p430 = por %p428, %p429
    %p432 = scmp.ne.s32.totalorder %s415, %s431
    %p433 = scmp.eq.s32.totalorder %s31, 0
    %p434 = por %p432, %p433
    %s435 = ssub.s32 %s33, %s40
    %p436 = scmp.eq.s32.totalorder %s435, 0
    %s438 = sadd.s32 %s437, 1
    %s439 = scalar_select %p436, %s437, %s438
    %p442 = pneg %p436
    %p443 = scmp.eq.s32.totalorder %s25, 3
    %p444 = por %p442, %p443
    %p445 = scmp.ne.s32.totalorder %s437, %s440
    %p446 = scmp.eq.s32.totalorder %s25, 0
    %p447 = por %p445, %p446
    %p448 = scmp.ne.s32.totalorder %s437, %s440
    %p449 = scmp.eq.s32.totalorder %s30, 3
    %p450 = por %p448, %p449
    %p451 = scmp.ne.s32.totalorder %s440, %s441
    %p452 = scmp.eq.s32.totalorder %s30, 0
    %p453 = por %p451, %p452
    %p454 = scmp.ne.s32.totalorder %s440, %s441
    %p455 = scmp.eq.s32.totalorder %s31, 3
    %p456 = por %p454, %p455
    %p458 = scmp.ne.s32.totalorder %s441, %s457
    %p459 = scmp.eq.s32.totalorder %s31, 0
    %p460 = por %p458, %p459
    %s461 = ssub.s32 %s33, %s40
    %p462 = scmp.eq.s32.totalorder %s461, 0
    %s464 = sadd.s32 %s463, 1
    %s465 = scalar_select %p462, %s463, %s464
    %p468 = pneg %p462
    %p469 = scmp.eq.s32.totalorder %s25, 3
    %p470 = por %p468, %p469
    %p471 = scmp.ne.s32.totalorder %s463, %s466
    %p472 = scmp.eq.s32.totalorder %s25, 0
    %p473 = por %p471, %p472
    %p474 = scmp.ne.s32.totalorder %s463, %s466
    %p475 = scmp.eq.s32.totalorder %s30, 3
    %p476 = por %p474, %p475
    %p477 = scmp.ne.s32.totalorder %s466, %s467
    %p478 = scmp.eq.s32.totalorder %s30, 0
    %p479 = por %p477, %p478
    %p480 = scmp.ne.s32.totalorder %s466, %s467
    %p481 = scmp.eq.s32.totalorder %s31, 3
    %p482 = por %p480, %p481
    %p484 = scmp.ne.s32.totalorder %s467, %s483
    %p485 = scmp.eq.s32.totalorder %s31, 0
    %p486 = por %p484, %p485
    %s488 = sadd.s32 %s487, 1
    %p491 = scmp.eq.s32.totalorder %s25, 3
    %p492 = scmp.ne.s32.totalorder %s487, %s489
    %p493 = scmp.eq.s32.totalorder %s25, 0
    %p494 = por %p492, %p493
    %p495 = scmp.ne.s32.totalorder %s487, %s489
    %p496 = scmp.eq.s32.totalorder %s30, 3
    %p497 = por %p495, %p496
    %p498 = scmp.ne.s32.totalorder %s489, %s490
    %p499 = scmp.eq.s32.totalorder %s30, 0
    %p500 = por %p498, %p499
    %p501 = scmp.ne.s32.totalorder %s489, %s490
    %p502 = scmp.eq.s32.totalorder %s31, 3
    %p503 = por %p501, %p502
    %p505 = scmp.ne.s32.totalorder %s490, %s504
    %p506 = scmp.eq.s32.totalorder %s31, 0
    %p507 = por %p505, %p506
    %s509 = sadd.s32 %s508, 1
    %p512 = scmp.eq.s32.totalorder %s25, 3
    %p513 = scmp.ne.s32.totalorder %s508, %s510
    %p514 = scmp.eq.s32.totalorder %s25, 0
    %p515 = por %p513, %p514
    %p516 = scmp.ne.s32.totalorder %s508, %s510
    %p517 = scmp.eq.s32.totalorder %s30, 3
    %p518 = por %p516, %p517
    %p519 = scmp.ne.s32.totalorder %s510, %s511
    %p520 = scmp.eq.s32.totalorder %s30, 0
    %p521 = por %p519, %p520
    %p522 = scmp.ne.s32.totalorder %s510, %s511
    %p523 = scmp.eq.s32.totalorder %s31, 3
    %p524 = por %p522, %p523
    %p526 = scmp.ne.s32.totalorder %s511, %s525
    %p527 = scmp.eq.s32.totalorder %s31, 0
    %p528 = por %p526, %p527
    %s529 = ssub.s32 %s32, %s44
    %p530 = scmp.eq.s32.totalorder %s529, 0
    %s532 = sadd.s32 %s531, 1
    %s533 = scalar_select %p530, %s531, %s532
    %p536 = pneg %p530
    %p537 = scmp.eq.s32.totalorder %s25, 3
    %p538 = por %p536, %p537
    %p539 = scmp.ne.s32.totalorder %s531, %s534
    %p540 = scmp.eq.s32.totalorder %s25, 0
    %p541 = por %p539, %p540
    %p542 = scmp.ne.s32.totalorder %s531, %s534
    %p543 = scmp.eq.s32.totalorder %s30, 3
    %p544 = por %p542, %p543
    %p545 = scmp.ne.s32.totalorder %s534, %s535
    %p546 = scmp.eq.s32.totalorder %s30, 0
    %p547 = por %p545, %p546
    %p548 = scmp.ne.s32.totalorder %s534, %s535
    %p549 = scmp.eq.s32.totalorder %s31, 3
    %p550 = por %p548, %p549
    %p552 = scmp.ne.s32.totalorder %s535, %s551
    %p553 = scmp.eq.s32.totalorder %s31, 0
    %p554 = por %p552, %p553
    %p555 = scmp.le.s32.totalorder 1, %s25
    %p556 = scmp.lt.s32.totalorder %s25, 5
    %p557 = pnand %p555, %p556
    %p558 = pneg %p557
    // Predicated region
    $region9: #{vl_transformer_itm_forward.4} parent=5 // pred_check
      _
    $region10: #{vl_transformer_itm_forward.4} parent=5 // pred_check_branch
      %560 = sbr.rel (%p557) target = $region12
    $region11: #{vl_transformer_itm_forward.4} parent=5 // pred_region
      %s561 = ssub.s32 %s25, 1
      // Predicated region
      $region13: #{vl_transformer_itm_forward.4} parent=11 // pred_check
        %p562 = pneg %p500
      $region14: #{vl_transformer_itm_forward.4} parent=11 // pred_check_branch
        %564 = sbr.rel (%p562) target = $region16
      $region15: #{vl_transformer_itm_forward.4} parent=11 // pred_region
        _
      $region16: #{vl_transformer_itm_forward.4} parent=11 // pred_fallthru
        _
      // Predicated region
      $region17: #{vl_transformer_itm_forward.4} parent=11 // pred_check
        %p565 = pneg %p521
      $region18: #{vl_transformer_itm_forward.4} parent=11 // pred_check_branch
        %567 = sbr.rel (%p565) target = $region20
      $region19: #{vl_transformer_itm_forward.4} parent=11 // pred_region
        _
      $region20: #{vl_transformer_itm_forward.4} parent=11 // pred_fallthru
        _
    $region12: #{vl_transformer_itm_forward.4} parent=5 // pred_fallthru
      _
    %p568 = scmp.lt.s32.totalorder %s25, 4
    // Predicated region
    $region21: #{vl_transformer_itm_forward.4} parent=5 // pred_check
      %p569 = pneg %p568
    $region22: #{vl_transformer_itm_forward.4} parent=5 // pred_check_branch
      %571 = sbr.rel (%p569) target = $region24
    $region23: #{vl_transformer_itm_forward.4} parent=5 // pred_region
      // Predicated region
      $region25: #{vl_transformer_itm_forward.4} parent=23 // pred_check
        %p572 = pneg %p57
      $region26: #{vl_transformer_itm_forward.4} parent=23 // pred_check_branch
        %574 = sbr.rel (%p572) target = $region28
      $region27: #{vl_transformer_itm_forward.4} parent=23 // pred_region
        %p575 = scmp.lt.s32.totalorder %s32, 1
        %s576 = scalar_select %p575, %s32, 1
        %s577 = smul.addr %s576, 8
        %s578 = scalar_lea.vmem %s0, %s577
      $region28: #{vl_transformer_itm_forward.4} parent=23 // pred_fallthru
        _
      // Predicated region
      $region29: #{vl_transformer_itm_forward.4} parent=23 // pred_check
        %p579 = pneg %p83
      $region30: #{vl_transformer_itm_forward.4} parent=23 // pred_check_branch
        %581 = sbr.rel (%p579) target = $region32
      $region31: #{vl_transformer_itm_forward.4} parent=23 // pred_region
        %p582 = scmp.lt.s32.totalorder %s33, 1
        %s583 = scalar_select %p582, %s33, 1
        %s584 = scalar_lea.vmem %s1, %s583
      $region32: #{vl_transformer_itm_forward.4} parent=23 // pred_fallthru
        _
      // Predicated region
      $region33: #{vl_transformer_itm_forward.4} parent=23 // pred_check
        %p585 = pneg %p109
      $region34: #{vl_transformer_itm_forward.4} parent=23 // pred_check_branch
        %587 = sbr.rel (%p585) target = $region36
      $region35: #{vl_transformer_itm_forward.4} parent=23 // pred_region
        %p588 = scmp.lt.s32.totalorder %s33, 1
        %s589 = scalar_select %p588, %s33, 1
        %s590 = scalar_lea.vmem %s2, %s589
      $region36: #{vl_transformer_itm_forward.4} parent=23 // pred_fallthru
        _
      // Predicated region
      $region37: #{vl_transformer_itm_forward.4} parent=23 // pred_check
        %p591 = pneg %p135
      $region38: #{vl_transformer_itm_forward.4} parent=23 // pred_check_branch
        %593 = sbr.rel (%p591) target = $region40
      $region39: #{vl_transformer_itm_forward.4} parent=23 // pred_region
        %p594 = scmp.lt.s32.totalorder %s33, 1
        %s595 = scalar_select %p594, %s33, 1
        %s596 = smul.addr %s595, 32
        %s597 = smul.addr %s596, 8
        %s598 = scalar_lea.vmem %s3, %s597
      $region40: #{vl_transformer_itm_forward.4} parent=23 // pred_fallthru
        _
      // Predicated region
      $region41: #{vl_transformer_itm_forward.4} parent=23 // pred_check
        %p599 = pneg %p161
      $region42: #{vl_transformer_itm_forward.4} parent=23 // pred_check_branch
        %601 = sbr.rel (%p599) target = $region44
      $region43: #{vl_transformer_itm_forward.4} parent=23 // pred_region
        %p602 = scmp.lt.s32.totalorder %s33, 1
        %s603 = scalar_select %p602, %s33, 1
        %s604 = smul.addr %s603, 4
        %s605 = scalar_lea.vmem %s4, %s604
      $region44: #{vl_transformer_itm_forward.4} parent=23 // pred_fallthru
        _
      // Predicated region
      $region45: #{vl_transformer_itm_forward.4} parent=23 // pred_check
        %p606 = pneg %p187
      $region46: #{vl_transformer_itm_forward.4} parent=23 // pred_check_branch
        %608 = sbr.rel (%p606) target = $region48
      $region47: #{vl_transformer_itm_forward.4} parent=23 // pred_region
        %p609 = scmp.lt.s32.totalorder %s33, 1
        %s610 = scalar_select %p609, %s33, 1
        %s611 = smul.addr %s610, 32
        %s612 = smul.addr %s611, 8
        %s613 = scalar_lea.vmem %s5, %s612
      $region48: #{vl_transformer_itm_forward.4} parent=23 // pred_fallthru
        _
      // Predicated region
      $region49: #{vl_transformer_itm_forward.4} parent=23 // pred_check
        %p614 = pneg %p213
      $region50: #{vl_transformer_itm_forward.4} parent=23 // pred_check_branch
        %616 = sbr.rel (%p614) target = $region52
      $region51: #{vl_transformer_itm_forward.4} parent=23 // pred_region
        %p617 = scmp.lt.s32.totalorder %s33, 1
        %s618 = scalar_select %p617, %s33, 1
        %s619 = smul.addr %s618, 4
        %s620 = scalar_lea.vmem %s6, %s619
      $region52: #{vl_transformer_itm_forward.4} parent=23 // pred_fallthru
        _
      // Predicated region
      $region53: #{vl_transformer_itm_forward.4} parent=23 // pred_check
        %p621 = pneg %p239
      $region54: #{vl_transformer_itm_forward.4} parent=23 // pred_check_branch
        %623 = sbr.rel (%p621) target = $region56
      $region55: #{vl_transformer_itm_forward.4} parent=23 // pred_region
        %p624 = scmp.lt.s32.totalorder %s33, 1
        %s625 = scalar_select %p624, %s33, 1
        %s626 = smul.addr %s625, 32
        %s627 = smul.addr %s626, 8
        %s628 = scalar_lea.vmem %s7, %s627
      $region56: #{vl_transformer_itm_forward.4} parent=23 // pred_fallthru
        _
      // Predicated region
      $region57: #{vl_transformer_itm_forward.4} parent=23 // pred_check
        %p629 = pneg %p265
      $region58: #{vl_transformer_itm_forward.4} parent=23 // pred_check_branch
        %631 = sbr.rel (%p629) target = $region60
      $region59: #{vl_transformer_itm_forward.4} parent=23 // pred_region
        %p632 = scmp.lt.s32.totalorder %s33, 1
        %s633 = scalar_select %p632, %s33, 1
        %s634 = smul.addr %s633, 4
        %s635 = scalar_lea.vmem %s8, %s634
      $region60: #{vl_transformer_itm_forward.4} parent=23 // pred_fallthru
        _
      // Predicated region
      $region61: #{vl_transformer_itm_forward.4} parent=23 // pred_check
        %p636 = pneg %p291
      $region62: #{vl_transformer_itm_forward.4} parent=23 // pred_check_branch
        %638 = sbr.rel (%p636) target = $region64
      $region63: #{vl_transformer_itm_forward.4} parent=23 // pred_region
        %p639 = scmp.lt.s32.totalorder %s33, 1
        %s640 = scalar_select %p639, %s33, 1
        %s641 = smul.addr %s640, 8
        %s642 = smul.addr %s641, 8
        %s643 = scalar_lea.vmem %s9, %s642
      $region64: #{vl_transformer_itm_forward.4} parent=23 // pred_fallthru
        _
      // Predicated region
      $region65: #{vl_transformer_itm_forward.4} parent=23 // pred_check
        %p644 = pneg %p317
      $region66: #{vl_transformer_itm_forward.4} parent=23 // pred_check_branch
        %646 = sbr.rel (%p644) target = $region68
      $region67: #{vl_transformer_itm_forward.4} parent=23 // pred_region
        %p647 = scmp.lt.s32.totalorder %s33, 1
        %s648 = scalar_select %p647, %s33, 1
        %s649 = scalar_lea.vmem %s10, %s648
      $region68: #{vl_transformer_itm_forward.4} parent=23 // pred_fallthru
        _
      // Predicated region
      $region69: #{vl_transformer_itm_forward.4} parent=23 // pred_check
        %p650 = pneg %p343
      $region70: #{vl_transformer_itm_forward.4} parent=23 // pred_check_branch
        %652 = sbr.rel (%p650) target = $region72
      $region71: #{vl_transformer_itm_forward.4} parent=23 // pred_region
        %p653 = scmp.lt.s32.totalorder %s33, 1
        %s654 = scalar_select %p653, %s33, 1
        %s655 = scalar_lea.vmem %s11, %s654
      $region72: #{vl_transformer_itm_forward.4} parent=23 // pred_fallthru
        _
      // Predicated region
      $region73: #{vl_transformer_itm_forward.4} parent=23 // pred_check
        %p656 = pneg %p369
      $region74: #{vl_transformer_itm_forward.4} parent=23 // pred_check_branch
        %658 = sbr.rel (%p656) target = $region76
      $region75: #{vl_transformer_itm_forward.4} parent=23 // pred_region
        %p659 = scmp.lt.s32.totalorder %s33, 1
        %s660 = scalar_select %p659, %s33, 1
        %s661 = scalar_lea.vmem %s12, %s660
      $region76: #{vl_transformer_itm_forward.4} parent=23 // pred_fallthru
        _
      // Predicated region
      $region77: #{vl_transformer_itm_forward.4} parent=23 // pred_check
        %p662 = pneg %p395
      $region78: #{vl_transformer_itm_forward.4} parent=23 // pred_check_branch
        %664 = sbr.rel (%p662) target = $region80
      $region79: #{vl_transformer_itm_forward.4} parent=23 // pred_region
        %p665 = scmp.lt.s32.totalorder %s33, 1
        %s666 = scalar_select %p665, %s33, 1
        %s667 = smul.addr %s666, 16
        %s668 = smul.addr %s667, 8
        %s669 = scalar_lea.vmem %s13, %s668
      $region80: #{vl_transformer_itm_forward.4} parent=23 // pred_fallthru
        _
      // Predicated region
      $region81: #{vl_transformer_itm_forward.4} parent=23 // pred_check
        %p670 = pneg %p421
      $region82: #{vl_transformer_itm_forward.4} parent=23 // pred_check_branch
        %672 = sbr.rel (%p670) target = $region84
      $region83: #{vl_transformer_itm_forward.4} parent=23 // pred_region
        %p673 = scmp.lt.s32.totalorder %s33, 1
        %s674 = scalar_select %p673, %s33, 1
        %s675 = smul.addr %s674, 2
        %s676 = scalar_lea.vmem %s14, %s675
      $region84: #{vl_transformer_itm_forward.4} parent=23 // pred_fallthru
        _
      // Predicated region
      $region85: #{vl_transformer_itm_forward.4} parent=23 // pred_check
        %p677 = pneg %p447
      $region86: #{vl_transformer_itm_forward.4} parent=23 // pred_check_branch
        %679 = sbr.rel (%p677) target = $region88
      $region87: #{vl_transformer_itm_forward.4} parent=23 // pred_region
        %p680 = scmp.lt.s32.totalorder %s33, 1
        %s681 = scalar_select %p680, %s33, 1
        %s682 = smul.addr %s681, 32
        %s683 = smul.addr %s682, 8
        %s684 = scalar_lea.vmem %s15, %s683
      $region88: #{vl_transformer_itm_forward.4} parent=23 // pred_fallthru
        _
      // Predicated region
      $region89: #{vl_transformer_itm_forward.4} parent=23 // pred_check
        %p685 = pneg %p473
      $region90: #{vl_transformer_itm_forward.4} parent=23 // pred_check_branch
        %687 = sbr.rel (%p685) target = $region92
      $region91: #{vl_transformer_itm_forward.4} parent=23 // pred_region
        %p688 = scmp.lt.s32.totalorder %s33, 1
        %s689 = scalar_select %p688, %s33, 1
        %s690 = scalar_lea.vmem %s16, %s689
      $region92: #{vl_transformer_itm_forward.4} parent=23 // pred_fallthru
        _
    $region24: #{vl_transformer_itm_forward.4} parent=5 // pred_fallthru
      _
    %p691 = scmp.le.s32.totalorder 1, %s25
    %p692 = scmp.lt.s32.totalorder %s25, 5
    %p693 = pnand %p691, %p692
    %p694 = pneg %p693
    // Predicated region
    $region93: #{vl_transformer_itm_forward.4} parent=5 // pred_check
      _
    $region94: #{vl_transformer_itm_forward.4} parent=5 // pred_check_branch
      %696 = sbr.rel (%p693) target = $region96
    $region95: #{vl_transformer_itm_forward.4} parent=5 // pred_region
      %s697 = ssub.s32 %s25, 1
      %p698 = scmp.lt.s32.totalorder %s34, 1
      %s699 = scalar_select %p698, %s34, 1
      %s700 = smul.addr %s699, 8
      %s701 = scalar_lea.vmem %s0, %s700
      %p702 = pneg %p63
      %p703 = pneg %p60
      %p704 = scmp.lt.s32.totalorder %s35, 1
      %s705 = scalar_select %p704, %s35, 1
      %s706 = scalar_lea.vmem %s1, %s705
      %p707 = pneg %p89
      %p708 = pneg %p86
      %p709 = scmp.lt.s32.totalorder %s35, 1
      %s710 = scalar_select %p709, %s35, 1
      %s711 = scalar_lea.vmem %s2, %s710
      %p712 = pneg %p115
      %p713 = pneg %p112
      %p714 = scmp.lt.s32.totalorder %s35, 1
      %s715 = scalar_select %p714, %s35, 1
      %s716 = smul.addr %s715, 32
      %s717 = smul.addr %s716, 8
      %s718 = scalar_lea.vmem %s3, %s717
      %p719 = pneg %p141
      %p720 = pneg %p138
      %p721 = scmp.lt.s32.totalorder %s35, 1
      %s722 = scalar_select %p721, %s35, 1
      %s723 = smul.addr %s722, 4
      %s724 = scalar_lea.vmem %s4, %s723
      %p725 = pneg %p167
      %p726 = pneg %p164
      %p727 = scmp.lt.s32.totalorder %s35, 1
      %s728 = scalar_select %p727, %s35, 1
      %s729 = smul.addr %s728, 32
      %s730 = smul.addr %s729, 8
      %s731 = scalar_lea.vmem %s5, %s730
      %p732 = pneg %p193
      %p733 = pneg %p190
      %p734 = scmp.lt.s32.totalorder %s35, 1
      %s735 = scalar_select %p734, %s35, 1
      %s736 = smul.addr %s735, 4
      %s737 = scalar_lea.vmem %s6, %s736
      %p738 = pneg %p219
      %p739 = pneg %p216
      %p740 = scmp.lt.s32.totalorder %s35, 1
      %s741 = scalar_select %p740, %s35, 1
      %s742 = smul.addr %s741, 32
      %s743 = smul.addr %s742, 8
      %s744 = scalar_lea.vmem %s7, %s743
      %p745 = pneg %p245
      %p746 = pneg %p242
      %p747 = scmp.lt.s32.totalorder %s35, 1
      %s748 = scalar_select %p747, %s35, 1
      %s749 = smul.addr %s748, 4
      %s750 = scalar_lea.vmem %s8, %s749
      %p751 = pneg %p271
      %p752 = pneg %p268
      %p753 = scmp.lt.s32.totalorder %s35, 1
      %s754 = scalar_select %p753, %s35, 1
      %s755 = smul.addr %s754, 8
      %s756 = smul.addr %s755, 8
      %s757 = scalar_lea.vmem %s9, %s756
      %p758 = pneg %p297
      %p759 = pneg %p294
      %p760 = scmp.lt.s32.totalorder %s35, 1
      %s761 = scalar_select %p760, %s35, 1
      %s762 = scalar_lea.vmem %s10, %s761
      %p763 = pneg %p323
      %p764 = pneg %p320
      %p765 = scmp.lt.s32.totalorder %s35, 1
      %s766 = scalar_select %p765, %s35, 1
      %s767 = scalar_lea.vmem %s11, %s766
      %p768 = pneg %p349
      %p769 = pneg %p346
      %p770 = scmp.lt.s32.totalorder %s35, 1
      %s771 = scalar_select %p770, %s35, 1
      %s772 = scalar_lea.vmem %s12, %s771
      %p773 = pneg %p375
      %p774 = pneg %p372
      %p775 = scmp.lt.s32.totalorder %s35, 1
      %s776 = scalar_select %p775, %s35, 1
      %s777 = smul.addr %s776, 16
      %s778 = smul.addr %s777, 8
      %s779 = scalar_lea.vmem %s13, %s778
      %p780 = pneg %p401
      %p781 = pneg %p398
      %p782 = scmp.lt.s32.totalorder %s35, 1
      %s783 = scalar_select %p782, %s35, 1
      %s784 = smul.addr %s783, 2
      %s785 = scalar_lea.vmem %s14, %s784
      %p786 = pneg %p427
      %p787 = pneg %p424
      %p788 = scmp.lt.s32.totalorder %s35, 1
      %s789 = scalar_select %p788, %s35, 1
      %s790 = smul.addr %s789, 32
      %s791 = smul.addr %s790, 8
      %s792 = scalar_lea.vmem %s15, %s791
      %p793 = pneg %p453
      %p794 = pneg %p450
      %p795 = scmp.lt.s32.totalorder %s35, 1
      %s796 = scalar_select %p795, %s35, 1
      %s797 = scalar_lea.vmem %s16, %s796
      %p798 = pneg %p479
      %p799 = pneg %p476
      %p800 = pneg %p500
      %p801 = pneg %p497
      %p802 = pneg %p521
      %p803 = pneg %p518
      %p804 = pneg %p547
      %p805 = pneg %p544
      %p806 = scmp.lt.s32.totalorder %s34, 1
      %s807 = scalar_select %p806, %s34, 1
      %s808 = smul.addr %s807, 8
      %s809 = scalar_lea.vmem %s19, %s808
      %p810 = scmp.lt.s32.totalorder %s34, 1
      %s811 = scalar_select %p810, %s34, 1
      %s812 = smul.addr %s811, 8
      %s813 = scalar_lea.vmem %s0, %s812
      %p814 = scmp.lt.s32.totalorder %s35, 1
      %s815 = scalar_select %p814, %s35, 1
      %s816 = scalar_lea.vmem %s1, %s815
      %p817 = scmp.lt.s32.totalorder %s35, 1
      %s818 = scalar_select %p817, %s35, 1
      %s819 = scalar_lea.vmem %s2, %s818
      %p820 = scmp.lt.s32.totalorder %s35, 1
      %s821 = scalar_select %p820, %s35, 1
      %s822 = smul.addr %s821, 32
      %s823 = smul.addr %s822, 8
      %s824 = scalar_lea.vmem %s3, %s823
      %p825 = scmp.lt.s32.totalorder %s35, 1
      %s826 = scalar_select %p825, %s35, 1
      %s827 = smul.addr %s826, 4
      %s828 = scalar_lea.vmem %s4, %s827
      %p829 = scmp.lt.s32.totalorder %s35, 1
      %s830 = scalar_select %p829, %s35, 1
      %s831 = smul.addr %s830, 32
      %s832 = smul.addr %s831, 8
      %s833 = scalar_lea.vmem %s5, %s832
      %p834 = scmp.lt.s32.totalorder %s35, 1
      %s835 = scalar_select %p834, %s35, 1
      %s836 = smul.addr %s835, 4
      %s837 = scalar_lea.vmem %s6, %s836
      %p838 = scmp.lt.s32.totalorder %s35, 1
      %s839 = scalar_select %p838, %s35, 1
      %s840 = smul.addr %s839, 32
      %s841 = smul.addr %s840, 8
      %s842 = scalar_lea.vmem %s7, %s841
      %p843 = scmp.lt.s32.totalorder %s35, 1
      %s844 = scalar_select %p843, %s35, 1
      %s845 = smul.addr %s844, 4
      %s846 = scalar_lea.vmem %s8, %s845
      %p847 = scmp.lt.s32.totalorder %s35, 1
      %s848 = scalar_select %p847, %s35, 1
      %s849 = smul.addr %s848, 8
      %s850 = smul.addr %s849, 8
      %s851 = scalar_lea.vmem %s9, %s850
      %p852 = scmp.lt.s32.totalorder %s35, 1
      %s853 = scalar_select %p852, %s35, 1
      %s854 = scalar_lea.vmem %s10, %s853
      %p855 = scmp.lt.s32.totalorder %s35, 1
      %s856 = scalar_select %p855, %s35, 1
      %s857 = scalar_lea.vmem %s11, %s856
      %p858 = scmp.lt.s32.totalorder %s35, 1
      %s859 = scalar_select %p858, %s35, 1
      %s860 = scalar_lea.vmem %s12, %s859
      %p861 = scmp.lt.s32.totalorder %s35, 1
      %s862 = scalar_select %p861, %s35, 1
      %s863 = smul.addr %s862, 16
      %s864 = smul.addr %s863, 8
      %s865 = scalar_lea.vmem %s13, %s864
      %p866 = scmp.lt.s32.totalorder %s35, 1
      %s867 = scalar_select %p866, %s35, 1
      %s868 = smul.addr %s867, 2
      %s869 = scalar_lea.vmem %s14, %s868
      %p870 = scmp.lt.s32.totalorder %s35, 1
      %s871 = scalar_select %p870, %s35, 1
      %s872 = smul.addr %s871, 32
      %s873 = smul.addr %s872, 8
      %s874 = scalar_lea.vmem %s15, %s873
      %p875 = scmp.lt.s32.totalorder %s35, 1
      %s876 = scalar_select %p875, %s35, 1
      %s877 = scalar_lea.vmem %s16, %s876
      %p878 = scmp.lt.s32.totalorder %s34, 1
      %s879 = scalar_select %p878, %s34, 1
      %s880 = smul.addr %s879, 8
      %s881 = scalar_lea.vmem %s19, %s880
      %p883 = scmp.eq.s32.totalorder %s35, 0
      // Predicated region
      $region97: #{vl_transformer_itm_forward.4} parent=95 // pred_check
        %p884 = pneg %p883
      $region98: #{vl_transformer_itm_forward.4} parent=95 // pred_check_branch
        %886 = sbr.rel (%p884) target = $region100
      $region99: #{vl_transformer_itm_forward.4} parent=95 // pred_region
        %v887 = vld [vmem:[%s813] sm:$0x1f]
        %vm888 = vcmask 520192
        %889 = vst.msk [vmem:[#allocation2] sm:$0x1f] %vm888, %v887
      $region100: #{vl_transformer_itm_forward.4} parent=95 // pred_fallthru
        _
      %v890 = vld [vmem:[#allocation2] sm:$0x1f]
      %v891 = vld [vmem:[%s816] sm:$0x1]
      %v892 = vld [vmem:[%s819] sm:$0x1]
      %vm893 = vcmask 520192
      %v894 = vsel %vm893, %v890, 0.0
      %895 = vadd.xlane.f32.xlu0 %v894
      %v896 = vpop.xlane.xlu0 %895
      %v897 = vrcp.pop 64.0
      %v898 = vmul.f32 %v896, %v897
      %v899 = vsub.f32 %v890, %v898
      %v900 = vmul.f32 %v899, %v899
      %v901 = vsel %vm893, %v900, 0.0
      %902 = vadd.xlane.f32.xlu0 %v901
      %v903 = vpop.xlane.xlu0 %902
      %v904 = vmul.f32 %v903, %v897
      %v905 = vadd.f32 %v904, 1e-06
      %v906 = vrsqrt.pop %v905
      %v907 = vmul.f32 %v899, %v906
      %v909 = vlaneseq
      %v910 = vshrl.u32 %v909, 7
      %v911 = vsub.s32 0, %v910
      %v912 = vrot.slane %v891, %v911
      %v914 = vmul.f32 %v907, %v912
      %v916 = vlaneseq
      %v917 = vshrl.u32 %v916, 7
      %v918 = vsub.s32 0, %v917
      %v919 = vrot.slane %v892, %v918
      %v921 = vadd.f32 %v914, %v919
      %v922 = vld [vmem:[%s824] sm:$0xff]
      %v923 = vld [vmem:[%s824 + $0x8] sm:$0xff]
      %v924 = vld [vmem:[%s824 + $0x10] sm:$0xff]
      %v925 = vld [vmem:[%s824 + $0x18] sm:$0xff]
      %v926 = vld [vmem:[%s824 + $0x20] sm:$0xff]
      %v927 = vld [vmem:[%s824 + $0x28] sm:$0xff]
      %v928 = vld [vmem:[%s824 + $0x30] sm:$0xff]
      %v929 = vld [vmem:[%s824 + $0x38] sm:$0xff]
      %v930 = vld [vmem:[%s824 + $0x40] sm:$0xff]
      %v931 = vld [vmem:[%s824 + $0x48] sm:$0xff]
      %v932 = vld [vmem:[%s824 + $0x50] sm:$0xff]
      %v933 = vld [vmem:[%s824 + $0x58] sm:$0xff]
      %v934 = vld [vmem:[%s824 + $0x60] sm:$0xff]
      %v935 = vld [vmem:[%s824 + $0x68] sm:$0xff]
      %v936 = vld [vmem:[%s824 + $0x70] sm:$0xff]
      %v937 = vld [vmem:[%s824 + $0x78] sm:$0xff]
      %v938 = vld [vmem:[%s824 + $0x80] sm:$0xff]
      %v939 = vld [vmem:[%s824 + $0x88] sm:$0xff]
      %v940 = vld [vmem:[%s824 + $0x90] sm:$0xff]
      %v941 = vld [vmem:[%s824 + $0x98] sm:$0xff]
      %v942 = vld [vmem:[%s824 + $0xa0] sm:$0xff]
      %v943 = vld [vmem:[%s824 + $0xa8] sm:$0xff]
      %v944 = vld [vmem:[%s824 + $0xb0] sm:$0xff]
      %v945 = vld [vmem:[%s824 + $0xb8] sm:$0xff]
      %v946 = vld [vmem:[%s824 + $0xc0] sm:$0xff]
      %v947 = vld [vmem:[%s824 + $0xc8] sm:$0xff]
      %v948 = vld [vmem:[%s824 + $0xd0] sm:$0xff]
      %v949 = vld [vmem:[%s824 + $0xd8] sm:$0xff]
      %v950 = vld [vmem:[%s824 + $0xe0] sm:$0xff]
      %v951 = vld [vmem:[%s824 + $0xe8] sm:$0xff]
      %v952 = vld [vmem:[%s824 + $0xf0] sm:$0xff]
      %v953 = vld [vmem:[%s824 + $0xf8] sm:$0xff]
      %v954 = vld [vmem:[%s828] sm:$0x1]
      %v955 = vld [vmem:[%s828 + $0x1] sm:$0x1]
      %v956 = vld [vmem:[%s828 + $0x2] sm:$0x1]
      %v957 = vld [vmem:[%s828 + $0x3] sm:$0x1]
      %v958 = vld [vmem:[%s833] sm:$0xff]
      %v959 = vld [vmem:[%s833 + $0x8] sm:$0xff]
      %v960 = vld [vmem:[%s833 + $0x10] sm:$0xff]
      %v961 = vld [vmem:[%s833 + $0x18] sm:$0xff]
      %v962 = vld [vmem:[%s833 + $0x20] sm:$0xff]
      %v963 = vld [vmem:[%s833 + $0x28] sm:$0xff]
      %v964 = vld [vmem:[%s833 + $0x30] sm:$0xff]
      %v965 = vld [vmem:[%s833 + $0x38] sm:$0xff]
      %v966 = vld [vmem:[%s833 + $0x40] sm:$0xff]
      %v967 = vld [vmem:[%s833 + $0x48] sm:$0xff]
      %v968 = vld [vmem:[%s833 + $0x50] sm:$0xff]
      %v969 = vld [vmem:[%s833 + $0x58] sm:$0xff]
      %v970 = vld [vmem:[%s833 + $0x60] sm:$0xff]
      %v971 = vld [vmem:[%s833 + $0x68] sm:$0xff]
      %v972 = vld [vmem:[%s833 + $0x70] sm:$0xff]
      %v973 = vld [vmem:[%s833 + $0x78] sm:$0xff]
      %v974 = vld [vmem:[%s833 + $0x80] sm:$0xff]
      %v975 = vld [vmem:[%s833 + $0x88] sm:$0xff]
      %v976 = vld [vmem:[%s833 + $0x90] sm:$0xff]
      %v977 = vld [vmem:[%s833 + $0x98] sm:$0xff]
      %v978 = vld [vmem:[%s833 + $0xa0] sm:$0xff]
      %v979 = vld [vmem:[%s833 + $0xa8] sm:$0xff]
      %v980 = vld [vmem:[%s833 + $0xb0] sm:$0xff]
      %v981 = vld [vmem:[%s833 + $0xb8] sm:$0xff]
      %v982 = vld [vmem:[%s833 + $0xc0] sm:$0xff]
      %v983 = vld [vmem:[%s833 + $0xc8] sm:$0xff]
      %v984 = vld [vmem:[%s833 + $0xd0] sm:$0xff]
      %v985 = vld [vmem:[%s833 + $0xd8] sm:$0xff]
      %v986 = vld [vmem:[%s833 + $0xe0] sm:$0xff]
      %v987 = vld [vmem:[%s833 + $0xe8] sm:$0xff]
      %v988 = vld [vmem:[%s833 + $0xf0] sm:$0xff]
      %v989 = vld [vmem:[%s833 + $0xf8] sm:$0xff]
      %v990 = vld [vmem:[%s837] sm:$0x1]
      %v991 = vld [vmem:[%s837 + $0x1] sm:$0x1]
      %v992 = vld [vmem:[%s837 + $0x2] sm:$0x1]
      %v993 = vld [vmem:[%s837 + $0x3] sm:$0x1]
      %v994 = vld [vmem:[%s842] sm:$0xff]
      %v995 = vld [vmem:[%s842 + $0x8] sm:$0xff]
      %v996 = vld [vmem:[%s842 + $0x10] sm:$0xff]
      %v997 = vld [vmem:[%s842 + $0x18] sm:$0xff]
      %v998 = vld [vmem:[%s842 + $0x20] sm:$0xff]
      %v999 = vld [vmem:[%s842 + $0x28] sm:$0xff]
      %v1000 = vld [vmem:[%s842 + $0x30] sm:$0xff]
      %v1001 = vld [vmem:[%s842 + $0x38] sm:$0xff]
      %v1002 = vld [vmem:[%s842 + $0x40] sm:$0xff]
      %v1003 = vld [vmem:[%s842 + $0x48] sm:$0xff]
      %v1004 = vld [vmem:[%s842 + $0x50] sm:$0xff]
      %v1005 = vld [vmem:[%s842 + $0x58] sm:$0xff]
      %v1006 = vld [vmem:[%s842 + $0x60] sm:$0xff]
      %v1007 = vld [vmem:[%s842 + $0x68] sm:$0xff]
      %v1008 = vld [vmem:[%s842 + $0x70] sm:$0xff]
      %v1009 = vld [vmem:[%s842 + $0x78] sm:$0xff]
      %v1010 = vld [vmem:[%s842 + $0x80] sm:$0xff]
      %v1011 = vld [vmem:[%s842 + $0x88] sm:$0xff]
      %v1012 = vld [vmem:[%s842 + $0x90] sm:$0xff]
      %v1013 = vld [vmem:[%s842 + $0x98] sm:$0xff]
      %v1014 = vld [vmem:[%s842 + $0xa0] sm:$0xff]
      %v1015 = vld [vmem:[%s842 + $0xa8] sm:$0xff]
      %v1016 = vld [vmem:[%s842 + $0xb0] sm:$0xff]
      %v1017 = vld [vmem:[%s842 + $0xb8] sm:$0xff]
      %v1018 = vld [vmem:[%s842 + $0xc0] sm:$0xff]
      %v1019 = vld [vmem:[%s842 + $0xc8] sm:$0xff]
      %v1020 = vld [vmem:[%s842 + $0xd0] sm:$0xff]
      %v1021 = vld [vmem:[%s842 + $0xd8] sm:$0xff]
      %v1022 = vld [vmem:[%s842 + $0xe0] sm:$0xff]
      %v1023 = vld [vmem:[%s842 + $0xe8] sm:$0xff]
      %v1024 = vld [vmem:[%s842 + $0xf0] sm:$0xff]
      %v1025 = vld [vmem:[%s842 + $0xf8] sm:$0xff]
      %v1026 = vld [vmem:[%s846] sm:$0x1]
      %v1027 = vld [vmem:[%s846 + $0x1] sm:$0x1]
      %v1028 = vld [vmem:[%s846 + $0x2] sm:$0x1]
      %v1029 = vld [vmem:[%s846 + $0x3] sm:$0x1]
      %v1030 = vld [vmem:[%s851] sm:$0xff]
      %v1031 = vld [vmem:[%s851 + $0x8] sm:$0xff]
      %v1032 = vld [vmem:[%s851 + $0x10] sm:$0xff]
      %v1033 = vld [vmem:[%s851 + $0x18] sm:$0xff]
      %v1034 = vld [vmem:[%s851 + $0x20] sm:$0xff]
      %v1035 = vld [vmem:[%s851 + $0x28] sm:$0xff]
      %v1036 = vld [vmem:[%s851 + $0x30] sm:$0xff]
      %v1037 = vld [vmem:[%s851 + $0x38] sm:$0xff]
      %v1038 = vld [vmem:[%s854] sm:$0x1]
      %v1039 = vpack.c.bf16 %v921, %v921
      %v1040 = vpack.c.bf16 %v923, %v922
      %v1041 = vpack.c.bf16 %v925, %v924
      %v1042 = vpack.c.bf16 %v927, %v926
      %v1043 = vpack.c.bf16 %v929, %v928
      %v1044 = vpack.c.bf16 %v931, %v930
      %v1045 = vpack.c.bf16 %v933, %v932
      %v1046 = vpack.c.bf16 %v935, %v934
      %v1047 = vpack.c.bf16 %v937, %v936
      %v1048 = vpack.c.bf16 %v939, %v938
      %v1049 = vpack.c.bf16 %v941, %v940
      %v1050 = vpack.c.bf16 %v943, %v942
      %v1051 = vpack.c.bf16 %v945, %v944
      %v1052 = vpack.c.bf16 %v947, %v946
      %v1053 = vpack.c.bf16 %v949, %v948
      %v1054 = vpack.c.bf16 %v951, %v950
      %v1055 = vpack.c.bf16 %v953, %v952
      %v1060 = vlaneseq
      %v1061 = vshrl.u32 %v1060, 7
      %v1062 = vsub.s32 0, %v1061
      %v1063 = vrot.slane %v954, %v1062
      %v1064 = vlaneseq
      %v1065 = vshrl.u32 %v1064, 7
      %v1066 = vsub.s32 0, %v1065
      %v1067 = vrot.slane %v955, %v1066
      %v1068 = vlaneseq
      %v1069 = vshrl.u32 %v1068, 7
      %v1070 = vsub.s32 0, %v1069
      %v1071 = vrot.slane %v956, %v1070
      %v1072 = vlaneseq
      %v1073 = vshrl.u32 %v1072, 7
      %v1074 = vsub.s32 0, %v1073
      %v1075 = vrot.slane %v957, %v1074
      %vm1080 = vcmask 523264
      %v1082 = vsel %vm1080, %v1039, 0
      %1084 = vmatprep.subr.bf16.mxu0 0
      %1085 = vmatpush1.bf16.msra.mxu0 %v1040
      %1086 = vmatprep.subr.bf16.mxu0 0
      %1087 = vmatpush1.bf16.msra.mxu0 %v1041
      %1088 = vmatprep.subr.bf16.mxu0 0
      %1089 = vmatpush1.bf16.msra.mxu0 %v1042
      %1090 = vmatprep.subr.bf16.mxu0 0
      %1091 = vmatpush1.bf16.msra.mxu0 %v1043
      %1092 = vmatprep.subr.bf16.mxu0 0
      %1093 = vmatpush1.bf16.msra.mxu0 0
      %1094 = vmatprep.subr.bf16.mxu0 0
      %1095 = vmatpush1.bf16.msra.mxu0 0
      %1096 = vmatprep.subr.bf16.mxu0 0
      %1097 = vmatpush1.bf16.msra.mxu0 0
      %1098 = vmatprep.subr.bf16.mxu0 0
      %1099 = vmatpush1.bf16.msra.mxu0 0
      %1100 = vmatprep.subr.bf16.mxu0 0
      %1101 = vmatpush1.bf16.msra.mxu0 0
      %1102 = vmatprep.subr.bf16.mxu0 0
      %1103 = vmatpush1.bf16.msra.mxu0 0
      %1104 = vmatprep.subr.bf16.mxu0 0
      %1105 = vmatpush1.bf16.msra.mxu0 0
      %1106 = vmatprep.subr.bf16.mxu0 0
      %1107 = vmatpush1.bf16.msra.mxu0 0
      %1108 = vmatprep.subr.bf16.mxu0 0
      %1109 = vmatpush1.bf16.msra.mxu0 0
      %1110 = vmatprep.subr.bf16.mxu0 0
      %1111 = vmatpush1.bf16.msra.mxu0 0
      %1112 = vmatprep.subr.bf16.mxu0 0
      %1113 = vmatpush1.bf16.msra.mxu0 0
      %1114 = vmatprep.subr.bf16.mxu0 0
      %1115 = vmatpush1.bf16.msra.mxu0 0
      %1116 = vmatprep.mubr.bf16.mxu0 0
      %1117 = vmatmul.mubr.bf16.gmra.mrb[0].mxu0 %v1082
      %v1118 = vpop.f32.mrb[0].mxu0
      %v1119 = vadd.f32 %v1063, %v1118
      %v1120 = vpop.f32.mrb[0].mxu0
      %v1121 = vpop.f32.mrb[0].mxu0
      %v1122 = vpop.f32.mrb[0].mxu0
      %1123 = vdwg.mxu0
      %1124 = vmatprep.subr.bf16.mxu0 0
      %1125 = vmatpush1.bf16.msra.mxu0 %v1044
      %1126 = vmatprep.subr.bf16.mxu0 0
      %1127 = vmatpush1.bf16.msra.mxu0 %v1045
      %1128 = vmatprep.subr.bf16.mxu0 0
      %1129 = vmatpush1.bf16.msra.mxu0 %v1046
      %1130 = vmatprep.subr.bf16.mxu0 0
      %1131 = vmatpush1.bf16.msra.mxu0 %v1047
      %1132 = vmatprep.subr.bf16.mxu0 0
      %1133 = vmatpush1.bf16.msra.mxu0 0
      %1134 = vmatprep.subr.bf16.mxu0 0
      %1135 = vmatpush1.bf16.msra.mxu0 0
      %1136 = vmatprep.subr.bf16.mxu0 0
      %1137 = vmatpush1.bf16.msra.mxu0 0
      %1138 = vmatprep.subr.bf16.mxu0 0
      %1139 = vmatpush1.bf16.msra.mxu0 0
      %1140 = vmatprep.subr.bf16.mxu0 0
      %1141 = vmatpush1.bf16.msra.mxu0 0
      %1142 = vmatprep.subr.bf16.mxu0 0
      %1143 = vmatpush1.bf16.msra.mxu0 0
      %1144 = vmatprep.subr.bf16.mxu0 0
      %1145 = vmatpush1.bf16.msra.mxu0 0
      %1146 = vmatprep.subr.bf16.mxu0 0
      %1147 = vmatpush1.bf16.msra.mxu0 0
      %1148 = vmatprep.subr.bf16.mxu0 0
      %1149 = vmatpush1.bf16.msra.mxu0 0
      %1150 = vmatprep.subr.bf16.mxu0 0
      %1151 = vmatpush1.bf16.msra.mxu0 0
      %1152 = vmatprep.subr.bf16.mxu0 0
      %1153 = vmatpush1.bf16.msra.mxu0 0
      %1154 = vmatprep.subr.bf16.mxu0 0
      %1155 = vmatpush1.bf16.msra.mxu0 0
      %1156 = vmatprep.mubr.bf16.mxu0 0
      %1157 = vmatmul.mubr.bf16.gmra.mrb[0].mxu0 %v1082
      %v1158 = vpop.f32.mrb[0].mxu0
      %v1159 = vadd.f32 %v1067, %v1158
      %v1160 = vpop.f32.mrb[0].mxu0
      %v1161 = vpop.f32.mrb[0].mxu0
      %v1162 = vpop.f32.mrb[0].mxu0
      %1163 = vdwg.mxu0
      %1164 = vmatprep.subr.bf16.mxu0 0
      %1165 = vmatpush1.bf16.msra.mxu0 %v1048
      %1166 = vmatprep.subr.bf16.mxu0 0
      %1167 = vmatpush1.bf16.msra.mxu0 %v1049
      %1168 = vmatprep.subr.bf16.mxu0 0
      %1169 = vmatpush1.bf16.msra.mxu0 %v1050
      %1170 = vmatprep.subr.bf16.mxu0 0
      %1171 = vmatpush1.bf16.msra.mxu0 %v1051
      %1172 = vmatprep.subr.bf16.mxu0 0
      %1173 = vmatpush1.bf16.msra.mxu0 0
      %1174 = vmatprep.subr.bf16.mxu0 0
      %1175 = vmatpush1.bf16.msra.mxu0 0
      %1176 = vmatprep.subr.bf16.mxu0 0
      %1177 = vmatpush1.bf16.msra.mxu0 0
      %1178 = vmatprep.subr.bf16.mxu0 0
      %1179 = vmatpush1.bf16.msra.mxu0 0
      %1180 = vmatprep.subr.bf16.mxu0 0
      %1181 = vmatpush1.bf16.msra.mxu0 0
      %1182 = vmatprep.subr.bf16.mxu0 0
      %1183 = vmatpush1.bf16.msra.mxu0 0
      %1184 = vmatprep.subr.bf16.mxu0 0
      %1185 = vmatpush1.bf16.msra.mxu0 0
      %1186 = vmatprep.subr.bf16.mxu0 0
      %1187 = vmatpush1.bf16.msra.mxu0 0
      %1188 = vmatprep.subr.bf16.mxu0 0
      %1189 = vmatpush1.bf16.msra.mxu0 0
      %1190 = vmatprep.subr.bf16.mxu0 0
      %1191 = vmatpush1.bf16.msra.mxu0 0
      %1192 = vmatprep.subr.bf16.mxu0 0
      %1193 = vmatpush1.bf16.msra.mxu0 0
      %1194 = vmatprep.subr.bf16.mxu0 0
      %1195 = vmatpush1.bf16.msra.mxu0 0
      %1196 = vmatprep.mubr.bf16.mxu0 0
      %1197 = vmatmul.mubr.bf16.gmra.mrb[0].mxu0 %v1082
      %v1198 = vpop.f32.mrb[0].mxu0
      %v1199 = vadd.f32 %v1071, %v1198
      %v1200 = vpop.f32.mrb[0].mxu0
      %v1201 = vpop.f32.mrb[0].mxu0
      %v1202 = vpop.f32.mrb[0].mxu0
      %1203 = vdwg.mxu0
      %1204 = vmatprep.subr.bf16.mxu0 0
      %1205 = vmatpush1.bf16.msra.mxu0 %v1052
      %1206 = vmatprep.subr.bf16.mxu0 0
      %1207 = vmatpush1.bf16.msra.mxu0 %v1053
      %1208 = vmatprep.subr.bf16.mxu0 0
      %1209 = vmatpush1.bf16.msra.mxu0 %v1054
      %1210 = vmatprep.subr.bf16.mxu0 0
      %1211 = vmatpush1.bf16.msra.mxu0 %v1055
      %1212 = vmatprep.subr.bf16.mxu0 0
      %1213 = vmatpush1.bf16.msra.mxu0 0
      %1214 = vmatprep.subr.bf16.mxu0 0
      %1215 = vmatpush1.bf16.msra.mxu0 0
      %1216 = vmatprep.subr.bf16.mxu0 0
      %1217 = vmatpush1.bf16.msra.mxu0 0
      %1218 = vmatprep.subr.bf16.mxu0 0
      %1219 = vmatpush1.bf16.msra.mxu0 0
      %1220 = vmatprep.subr.bf16.mxu0 0
      %1221 = vmatpush1.bf16.msra.mxu0 0
      %1222 = vmatprep.subr.bf16.mxu0 0
      %1223 = vmatpush1.bf16.msra.mxu0 0
      %1224 = vmatprep.subr.bf16.mxu0 0
      %1225 = vmatpush1.bf16.msra.mxu0 0
      %1226 = vmatprep.subr.bf16.mxu0 0
      %1227 = vmatpush1.bf16.msra.mxu0 0
      %1228 = vmatprep.subr.bf16.mxu0 0
      %1229 = vmatpush1.bf16.msra.mxu0 0
      %1230 = vmatprep.subr.bf16.mxu0 0
      %1231 = vmatpush1.bf16.msra.mxu0 0
      %1232 = vmatprep.subr.bf16.mxu0 0
      %1233 = vmatpush1.bf16.msra.mxu0 0
      %1234 = vmatprep.subr.bf16.mxu0 0
      %1235 = vmatpush1.bf16.msra.mxu0 0
      %1236 = vmatprep.mubr.bf16.mxu0 0
      %1237 = vmatmul.mubr.bf16.gmra.mrb[0].mxu0 %v1082
      %v1238 = vpop.f32.mrb[0].mxu0
      %v1239 = vadd.f32 %v1075, %v1238
      %v1240 = vpop.f32.mrb[0].mxu0
      %v1241 = vpop.f32.mrb[0].mxu0
      %v1242 = vpop.f32.mrb[0].mxu0
      %1243 = vdwg.mxu0
      %v1244 = vpack.c.bf16 %v959, %v958
      %v1245 = vpack.c.bf16 %v961, %v960
      %v1246 = vpack.c.bf16 %v963, %v962
      %v1247 = vpack.c.bf16 %v965, %v964
      %v1248 = vpack.c.bf16 %v967, %v966
      %v1249 = vpack.c.bf16 %v969, %v968
      %v1250 = vpack.c.bf16 %v971, %v970
      %v1251 = vpack.c.bf16 %v973, %v972
      %v1252 = vpack.c.bf16 %v975, %v974
      %v1253 = vpack.c.bf16 %v977, %v976
      %v1254 = vpack.c.bf16 %v979, %v978
      %v1255 = vpack.c.bf16 %v981, %v980
      %v1256 = vpack.c.bf16 %v983, %v982
      %v1257 = vpack.c.bf16 %v985, %v984
      %v1258 = vpack.c.bf16 %v987, %v986
      %v1259 = vpack.c.bf16 %v989, %v988
      %v1264 = vlaneseq
      %v1265 = vshrl.u32 %v1264, 7
      %v1266 = vsub.s32 0, %v1265
      %v1267 = vrot.slane %v990, %v1266
      %v1268 = vlaneseq
      %v1269 = vshrl.u32 %v1268, 7
      %v1270 = vsub.s32 0, %v1269
      %v1271 = vrot.slane %v991, %v1270
      %v1272 = vlaneseq
      %v1273 = vshrl.u32 %v1272, 7
      %v1274 = vsub.s32 0, %v1273
      %v1275 = vrot.slane %v992, %v1274
      %v1276 = vlaneseq
      %v1277 = vshrl.u32 %v1276, 7
      %v1278 = vsub.s32 0, %v1277
      %v1279 = vrot.slane %v993, %v1278
      %1284 = vmatprep.subr.bf16.mxu0 0
      %1285 = vmatpush1.bf16.msra.mxu0 %v1244
      %1286 = vmatprep.subr.bf16.mxu0 0
      %1287 = vmatpush1.bf16.msra.mxu0 %v1245
      %1288 = vmatprep.subr.bf16.mxu0 0
      %1289 = vmatpush1.bf16.msra.mxu0 %v1246
      %1290 = vmatprep.subr.bf16.mxu0 0
      %1291 = vmatpush1.bf16.msra.mxu0 %v1247
      %1292 = vmatprep.subr.bf16.mxu0 0
      %1293 = vmatpush1.bf16.msra.mxu0 0
      %1294 = vmatprep.subr.bf16.mxu0 0
      %1295 = vmatpush1.bf16.msra.mxu0 0
      %1296 = vmatprep.subr.bf16.mxu0 0
      %1297 = vmatpush1.bf16.msra.mxu0 0
      %1298 = vmatprep.subr.bf16.mxu0 0
      %1299 = vmatpush1.bf16.msra.mxu0 0
      %1300 = vmatprep.subr.bf16.mxu0 0
      %1301 = vmatpush1.bf16.msra.mxu0 0
      %1302 = vmatprep.subr.bf16.mxu0 0
      %1303 = vmatpush1.bf16.msra.mxu0 0
      %1304 = vmatprep.subr.bf16.mxu0 0
      %1305 = vmatpush1.bf16.msra.mxu0 0
      %1306 = vmatprep.subr.bf16.mxu0 0
      %1307 = vmatpush1.bf16.msra.mxu0 0
      %1308 = vmatprep.subr.bf16.mxu0 0
      %1309 = vmatpush1.bf16.msra.mxu0 0
      %1310 = vmatprep.subr.bf16.mxu0 0
      %1311 = vmatpush1.bf16.msra.mxu0 0
      %1312 = vmatprep.subr.bf16.mxu0 0
      %1313 = vmatpush1.bf16.msra.mxu0 0
      %1314 = vmatprep.subr.bf16.mxu0 0
      %1315 = vmatpush1.bf16.msra.mxu0 0
      %1316 = vmatprep.mubr.bf16.mxu0 0
      %1317 = vmatmul.mubr.bf16.gmra.mrb[0].mxu0 %v1082
      %v1318 = vpop.f32.mrb[0].mxu0
      %v1319 = vadd.f32 %v1267, %v1318
      %v1320 = vpop.f32.mrb[0].mxu0
      %v1321 = vpop.f32.mrb[0].mxu0
      %v1322 = vpop.f32.mrb[0].mxu0
      %1323 = vdwg.mxu0
      %1324 = vmatprep.subr.bf16.mxu0 0
      %1325 = vmatpush1.bf16.msra.mxu0 %v1248
      %1326 = vmatprep.subr.bf16.mxu0 0
      %1327 = vmatpush1.bf16.msra.mxu0 %v1249
      %1328 = vmatprep.subr.bf16.mxu0 0
      %1329 = vmatpush1.bf16.msra.mxu0 %v1250
      %1330 = vmatprep.subr.bf16.mxu0 0
      %1331 = vmatpush1.bf16.msra.mxu0 %v1251
      %1332 = vmatprep.subr.bf16.mxu0 0
      %1333 = vmatpush1.bf16.msra.mxu0 0
      %1334 = vmatprep.subr.bf16.mxu0 0
      %1335 = vmatpush1.bf16.msra.mxu0 0
      %1336 = vmatprep.subr.bf16.mxu0 0
      %1337 = vmatpush1.bf16.msra.mxu0 0
      %1338 = vmatprep.subr.bf16.mxu0 0
      %1339 = vmatpush1.bf16.msra.mxu0 0
      %1340 = vmatprep.subr.bf16.mxu0 0
      %1341 = vmatpush1.bf16.msra.mxu0 0
      %1342 = vmatprep.subr.bf16.mxu0 0
      %1343 = vmatpush1.bf16.msra.mxu0 0
      %1344 = vmatprep.subr.bf16.mxu0 0
      %1345 = vmatpush1.bf16.msra.mxu0 0
      %1346 = vmatprep.subr.bf16.mxu0 0
      %1347 = vmatpush1.bf16.msra.mxu0 0
      %1348 = vmatprep.subr.bf16.mxu0 0
      %1349 = vmatpush1.bf16.msra.mxu0 0
      %1350 = vmatprep.subr.bf16.mxu0 0
      %1351 = vmatpush1.bf16.msra.mxu0 0
      %1352 = vmatprep.subr.bf16.mxu0 0
      %1353 = vmatpush1.bf16.msra.mxu0 0
      %1354 = vmatprep.subr.bf16.mxu0 0
      %1355 = vmatpush1.bf16.msra.mxu0 0
      %1356 = vmatprep.mubr.bf16.mxu0 0
      %1357 = vmatmul.mubr.bf16.gmra.mrb[0].mxu0 %v1082
      %v1358 = vpop.f32.mrb[0].mxu0
      %v1359 = vadd.f32 %v1271, %v1358
      %v1360 = vpop.f32.mrb[0].mxu0
      %v1361 = vpop.f32.mrb[0].mxu0
      %v1362 = vpop.f32.mrb[0].mxu0
      %1363 = vdwg.mxu0
      %1364 = vmatprep.subr.bf16.mxu0 0
      %1365 = vmatpush1.bf16.msra.mxu0 %v1252
      %1366 = vmatprep.subr.bf16.mxu0 0
      %1367 = vmatpush1.bf16.msra.mxu0 %v1253
      %1368 = vmatprep.subr.bf16.mxu0 0
      %1369 = vmatpush1.bf16.msra.mxu0 %v1254
      %1370 = vmatprep.subr.bf16.mxu0 0
      %1371 = vmatpush1.bf16.msra.mxu0 %v1255
      %1372 = vmatprep.subr.bf16.mxu0 0
      %1373 = vmatpush1.bf16.msra.mxu0 0
      %1374 = vmatprep.subr.bf16.mxu0 0
      %1375 = vmatpush1.bf16.msra.mxu0 0
      %1376 = vmatprep.subr.bf16.mxu0 0
      %1377 = vmatpush1.bf16.msra.mxu0 0
      %1378 = vmatprep.subr.bf16.mxu0 0
      %1379 = vmatpush1.bf16.msra.mxu0 0
      %1380 = vmatprep.subr.bf16.mxu0 0
      %1381 = vmatpush1.bf16.msra.mxu0 0
      %1382 = vmatprep.subr.bf16.mxu0 0
      %1383 = vmatpush1.bf16.msra.mxu0 0
      %1384 = vmatprep.subr.bf16.mxu0 0
      %1385 = vmatpush1.bf16.msra.mxu0 0
      %1386 = vmatprep.subr.bf16.mxu0 0
      %1387 = vmatpush1.bf16.msra.mxu0 0
      %1388 = vmatprep.subr.bf16.mxu0 0
      %1389 = vmatpush1.bf16.msra.mxu0 0
      %1390 = vmatprep.subr.bf16.mxu0 0
      %1391 = vmatpush1.bf16.msra.mxu0 0
      %1392 = vmatprep.subr.bf16.mxu0 0
      %1393 = vmatpush1.bf16.msra.mxu0 0
      %1394 = vmatprep.subr.bf16.mxu0 0
      %1395 = vmatpush1.bf16.msra.mxu0 0
      %1396 = vmatprep.mubr.bf16.mxu0 0
      %1397 = vmatmul.mubr.bf16.gmra.mrb[0].mxu0 %v1082
      %v1398 = vpop.f32.mrb[0].mxu0
      %v1399 = vadd.f32 %v1275, %v1398
      %v1400 = vpop.f32.mrb[0].mxu0
      %v1401 = vpop.f32.mrb[0].mxu0
      %v1402 = vpop.f32.mrb[0].mxu0
      %1403 = vdwg.mxu0
      %1404 = vmatprep.subr.bf16.mxu0 0
      %1405 = vmatpush1.bf16.msra.mxu0 %v1256
      %1406 = vmatprep.subr.bf16.mxu0 0
      %1407 = vmatpush1.bf16.msra.mxu0 %v1257
      %1408 = vmatprep.subr.bf16.mxu0 0
      %1409 = vmatpush1.bf16.msra.mxu0 %v1258
      %1410 = vmatprep.subr.bf16.mxu0 0
      %1411 = vmatpush1.bf16.msra.mxu0 %v1259
      %1412 = vmatprep.subr.bf16.mxu0 0
      %1413 = vmatpush1.bf16.msra.mxu0 0
      %1414 = vmatprep.subr.bf16.mxu0 0
      %1415 = vmatpush1.bf16.msra.mxu0 0
      %1416 = vmatprep.subr.bf16.mxu0 0
      %1417 = vmatpush1.bf16.msra.mxu0 0
      %1418 = vmatprep.subr.bf16.mxu0 0
      %1419 = vmatpush1.bf16.msra.mxu0 0
      %1420 = vmatprep.subr.bf16.mxu0 0
      %1421 = vmatpush1.bf16.msra.mxu0 0
      %1422 = vmatprep.subr.bf16.mxu0 0
      %1423 = vmatpush1.bf16.msra.mxu0 0
      %1424 = vmatprep.subr.bf16.mxu0 0
      %1425 = vmatpush1.bf16.msra.mxu0 0
      %1426 = vmatprep.subr.bf16.mxu0 0
      %1427 = vmatpush1.bf16.msra.mxu0 0
      %1428 = vmatprep.subr.bf16.mxu0 0
      %1429 = vmatpush1.bf16.msra.mxu0 0
      %1430 = vmatprep.subr.bf16.mxu0 0
      %1431 = vmatpush1.bf16.msra.mxu0 0
      %1432 = vmatprep.subr.bf16.mxu0 0
      %1433 = vmatpush1.bf16.msra.mxu0 0
      %1434 = vmatprep.subr.bf16.mxu0 0
      %1435 = vmatpush1.bf16.msra.mxu0 0
      %1436 = vmatprep.mubr.bf16.mxu0 0
      %1437 = vmatmul.mubr.bf16.gmra.mrb[0].mxu0 %v1082
      %v1438 = vpop.f32.mrb[0].mxu0
      %v1439 = vadd.f32 %v1279, %v1438
      %v1440 = vpop.f32.mrb[0].mxu0
      %v1441 = vpop.f32.mrb[0].mxu0
      %v1442 = vpop.f32.mrb[0].mxu0
      %1443 = vdwg.mxu0
      %v1444 = vpack.c.bf16 %v995, %v994
      %v1445 = vpack.c.bf16 %v997, %v996
      %v1446 = vpack.c.bf16 %v999, %v998
      %v1447 = vpack.c.bf16 %v1001, %v1000
      %v1448 = vpack.c.bf16 %v1003, %v1002
      %v1449 = vpack.c.bf16 %v1005, %v1004
      %v1450 = vpack.c.bf16 %v1007, %v1006
      %v1451 = vpack.c.bf16 %v1009, %v1008
      %v1452 = vpack.c.bf16 %v1011, %v1010
      %v1453 = vpack.c.bf16 %v1013, %v1012
      %v1454 = vpack.c.bf16 %v1015, %v1014
      %v1455 = vpack.c.bf16 %v1017, %v1016
      %v1456 = vpack.c.bf16 %v1019, %v1018
      %v1457 = vpack.c.bf16 %v1021, %v1020
      %v1458 = vpack.c.bf16 %v1023, %v1022
      %v1459 = vpack.c.bf16 %v1025, %v1024
      %v1464 = vlaneseq
      %v1465 = vshrl.u32 %v1464, 7
      %v1466 = vsub.s32 0, %v1465
      %v1467 = vrot.slane %v1026, %v1466
      %v1468 = vlaneseq
      %v1469 = vshrl.u32 %v1468, 7
      %v1470 = vsub.s32 0, %v1469
      %v1471 = vrot.slane %v1027, %v1470
      %v1472 = vlaneseq
      %v1473 = vshrl.u32 %v1472, 7
      %v1474 = vsub.s32 0, %v1473
      %v1475 = vrot.slane %v1028, %v1474
      %v1476 = vlaneseq
      %v1477 = vshrl.u32 %v1476, 7
      %v1478 = vsub.s32 0, %v1477
      %v1479 = vrot.slane %v1029, %v1478
      %1484 = vmatprep.subr.bf16.mxu0 0
      %1485 = vmatpush1.bf16.msra.mxu0 %v1444
      %1486 = vmatprep.subr.bf16.mxu0 0
      %1487 = vmatpush1.bf16.msra.mxu0 %v1445
      %1488 = vmatprep.subr.bf16.mxu0 0
      %1489 = vmatpush1.bf16.msra.mxu0 %v1446
      %1490 = vmatprep.subr.bf16.mxu0 0
      %1491 = vmatpush1.bf16.msra.mxu0 %v1447
      %1492 = vmatprep.subr.bf16.mxu0 0
      %1493 = vmatpush1.bf16.msra.mxu0 0
      %1494 = vmatprep.subr.bf16.mxu0 0
      %1495 = vmatpush1.bf16.msra.mxu0 0
      %1496 = vmatprep.subr.bf16.mxu0 0
      %1497 = vmatpush1.bf16.msra.mxu0 0
      %1498 = vmatprep.subr.bf16.mxu0 0
      %1499 = vmatpush1.bf16.msra.mxu0 0
      %1500 = vmatprep.subr.bf16.mxu0 0
      %1501 = vmatpush1.bf16.msra.mxu0 0
      %1502 = vmatprep.subr.bf16.mxu0 0
      %1503 = vmatpush1.bf16.msra.mxu0 0
      %1504 = vmatprep.subr.bf16.mxu0 0
      %1505 = vmatpush1.bf16.msra.mxu0 0
      %1506 = vmatprep.subr.bf16.mxu0 0
      %1507 = vmatpush1.bf16.msra.mxu0 0
      %1508 = vmatprep.subr.bf16.mxu0 0
      %1509 = vmatpush1.bf16.msra.mxu0 0
      %1510 = vmatprep.subr.bf16.mxu0 0
      %1511 = vmatpush1.bf16.msra.mxu0 0
      %1512 = vmatprep.subr.bf16.mxu0 0
      %1513 = vmatpush1.bf16.msra.mxu0 0
      %1514 = vmatprep.subr.bf16.mxu0 0
      %1515 = vmatpush1.bf16.msra.mxu0 0
      %1516 = vmatprep.mubr.bf16.mxu0 0
      %1517 = vmatmul.mubr.bf16.gmra.mrb[0].mxu0 %v1082
      %v1518 = vpop.f32.mrb[0].mxu0
      %v1519 = vadd.f32 %v1467, %v1518
      %v1520 = vpop.f32.mrb[0].mxu0
      %v1521 = vpop.f32.mrb[0].mxu0
      %v1522 = vpop.f32.mrb[0].mxu0
      %1523 = vdwg.mxu0
      %1524 = vmatprep.subr.bf16.mxu0 0
      %1525 = vmatpush1.bf16.msra.mxu0 %v1448
      %1526 = vmatprep.subr.bf16.mxu0 0
      %1527 = vmatpush1.bf16.msra.mxu0 %v1449
      %1528 = vmatprep.subr.bf16.mxu0 0
      %1529 = vmatpush1.bf16.msra.mxu0 %v1450
      %1530 = vmatprep.subr.bf16.mxu0 0
      %1531 = vmatpush1.bf16.msra.mxu0 %v1451
      %1532 = vmatprep.subr.bf16.mxu0 0
      %1533 = vmatpush1.bf16.msra.mxu0 0
      %1534 = vmatprep.subr.bf16.mxu0 0
      %1535 = vmatpush1.bf16.msra.mxu0 0
      %1536 = vmatprep.subr.bf16.mxu0 0
      %1537 = vmatpush1.bf16.msra.mxu0 0
      %1538 = vmatprep.subr.bf16.mxu0 0
      %1539 = vmatpush1.bf16.msra.mxu0 0
      %1540 = vmatprep.subr.bf16.mxu0 0
      %1541 = vmatpush1.bf16.msra.mxu0 0
      %1542 = vmatprep.subr.bf16.mxu0 0
      %1543 = vmatpush1.bf16.msra.mxu0 0
      %1544 = vmatprep.subr.bf16.mxu0 0
      %1545 = vmatpush1.bf16.msra.mxu0 0
      %1546 = vmatprep.subr.bf16.mxu0 0
      %1547 = vmatpush1.bf16.msra.mxu0 0
      %1548 = vmatprep.subr.bf16.mxu0 0
      %1549 = vmatpush1.bf16.msra.mxu0 0
      %1550 = vmatprep.subr.bf16.mxu0 0
      %1551 = vmatpush1.bf16.msra.mxu0 0
      %1552 = vmatprep.subr.bf16.mxu0 0
      %1553 = vmatpush1.bf16.msra.mxu0 0
      %1554 = vmatprep.subr.bf16.mxu0 0
      %1555 = vmatpush1.bf16.msra.mxu0 0
      %1556 = vmatprep.mubr.bf16.mxu0 0
      %1557 = vmatmul.mubr.bf16.gmra.mrb[0].mxu0 %v1082
      %v1558 = vpop.f32.mrb[0].mxu0
      %v1559 = vadd.f32 %v1471, %v1558
      %v1560 = vpop.f32.mrb[0].mxu0
      %v1561 = vpop.f32.mrb[0].mxu0
      %v1562 = vpop.f32.mrb[0].mxu0
      %1563 = vdwg.mxu0
      %1564 = vmatprep.subr.bf16.mxu0 0
      %1565 = vmatpush1.bf16.msra.mxu0 %v1452
      %1566 = vmatprep.subr.bf16.mxu0 0
      %1567 = vmatpush1.bf16.msra.mxu0 %v1453
      %1568 = vmatprep.subr.bf16.mxu0 0
      %1569 = vmatpush1.bf16.msra.mxu0 %v1454
      %1570 = vmatprep.subr.bf16.mxu0 0
      %1571 = vmatpush1.bf16.msra.mxu0 %v1455
      %1572 = vmatprep.subr.bf16.mxu0 0
      %1573 = vmatpush1.bf16.msra.mxu0 0
      %1574 = vmatprep.subr.bf16.mxu0 0
      %1575 = vmatpush1.bf16.msra.mxu0 0
      %1576 = vmatprep.subr.bf16.mxu0 0
      %1577 = vmatpush1.bf16.msra.mxu0 0
      %1578 = vmatprep.subr.bf16.mxu0 0
      %1579 = vmatpush1.bf16.msra.mxu0 0
      %1580 = vmatprep.subr.bf16.mxu0 0
      %1581 = vmatpush1.bf16.msra.mxu0 0
      %1582 = vmatprep.subr.bf16.mxu0 0
      %1583 = vmatpush1.bf16.msra.mxu0 0
      %1584 = vmatprep.subr.bf16.mxu0 0
      %1585 = vmatpush1.bf16.msra.mxu0 0
      %1586 = vmatprep.subr.bf16.mxu0 0
      %1587 = vmatpush1.bf16.msra.mxu0 0
      %1588 = vmatprep.subr.bf16.mxu0 0
      %1589 = vmatpush1.bf16.msra.mxu0 0
      %1590 = vmatprep.subr.bf16.mxu0 0
      %1591 = vmatpush1.bf16.msra.mxu0 0
      %1592 = vmatprep.subr.bf16.mxu0 0
      %1593 = vmatpush1.bf16.msra.mxu0 0
      %1594 = vmatprep.subr.bf16.mxu0 0
      %1595 = vmatpush1.bf16.msra.mxu0 0
      %1596 = vmatprep.mubr.bf16.mxu0 0
      %1597 = vmatmul.mubr.bf16.gmra.mrb[0].mxu0 %v1082
      %v1598 = vpop.f32.mrb[0].mxu0
      %v1599 = vadd.f32 %v1475, %v1598
      %v1600 = vpop.f32.mrb[0].mxu0
      %v1601 = vpop.f32.mrb[0].mxu0
      %v1602 = vpop.f32.mrb[0].mxu0
      %1603 = vdwg.mxu0
      %1604 = vmatprep.subr.bf16.mxu0 0
      %1605 = vmatpush1.bf16.msra.mxu0 %v1456
      %1606 = vmatprep.subr.bf16.mxu0 0
      %1607 = vmatpush1.bf16.msra.mxu0 %v1457
      %1608 = vmatprep.subr.bf16.mxu0 0
      %1609 = vmatpush1.bf16.msra.mxu0 %v1458
      %1610 = vmatprep.subr.bf16.mxu0 0
      %1611 = vmatpush1.bf16.msra.mxu0 %v1459
      %1612 = vmatprep.subr.bf16.mxu0 0
      %1613 = vmatpush1.bf16.msra.mxu0 0
      %1614 = vmatprep.subr.bf16.mxu0 0
      %1615 = vmatpush1.bf16.msra.mxu0 0
      %1616 = vmatprep.subr.bf16.mxu0 0
      %1617 = vmatpush1.bf16.msra.mxu0 0
      %1618 = vmatprep.subr.bf16.mxu0 0
      %1619 = vmatpush1.bf16.msra.mxu0 0
      %1620 = vmatprep.subr.bf16.mxu0 0
      %1621 = vmatpush1.bf16.msra.mxu0 0
      %1622 = vmatprep.subr.bf16.mxu0 0
      %1623 = vmatpush1.bf16.msra.mxu0 0
      %1624 = vmatprep.subr.bf16.mxu0 0
      %1625 = vmatpush1.bf16.msra.mxu0 0
      %1626 = vmatprep.subr.bf16.mxu0 0
      %1627 = vmatpush1.bf16.msra.mxu0 0
      %1628 = vmatprep.subr.bf16.mxu0 0
      %1629 = vmatpush1.bf16.msra.mxu0 0
      %1630 = vmatprep.subr.bf16.mxu0 0
      %1631 = vmatpush1.bf16.msra.mxu0 0
      %1632 = vmatprep.subr.bf16.mxu0 0
      %1633 = vmatpush1.bf16.msra.mxu0 0
      %1634 = vmatprep.subr.bf16.mxu0 0
      %1635 = vmatpush1.bf16.msra.mxu0 0
      %1636 = vmatprep.mubr.bf16.mxu0 0
      %1637 = vmatmul.mubr.bf16.gmra.mrb[0].mxu0 %v1082
      %v1638 = vpop.f32.mrb[0].mxu0
      %v1639 = vadd.f32 %v1479, %v1638
      %v1640 = vpop.f32.mrb[0].mxu0
      %v1641 = vpop.f32.mrb[0].mxu0
      %v1642 = vpop.f32.mrb[0].mxu0
      %1643 = vdwg.mxu0
      %v1644 = vpack.c.bf16 %v1119, %v1119
      %v1645 = vpack.c.bf16 %v1159, %v1159
      %v1646 = vpack.c.bf16 %v1199, %v1199
      %v1647 = vpack.c.bf16 %v1239, %v1239
      %v1648 = vpack.c.bf16 %v1319, %v1319
      %v1649 = vpack.c.bf16 %v1359, %v1359
      %v1650 = vpack.c.bf16 %v1399, %v1399
      %v1651 = vpack.c.bf16 %v1439, %v1439
      %vm1652 = vcmask 130048
      %v1654 = vsel %vm1652, %v1644, 0
      %v1657 = vsel %vm1652, %v1648, 0
      %1659 = vmatprep.subr.bf16.mxu0 0
      %1660 = vmatpush1.bf16.xpose.msra.mxu0 %v1657
      %1661 = vmatprep.subr.bf16.mxu0 0
      %1662 = vmatpush1.bf16.xpose.msra.mxu0 0
      %1663 = vmatprep.subr.bf16.mxu0 0
      %1664 = vmatpush1.bf16.xpose.msra.mxu0 0
      %1665 = vmatprep.subr.bf16.mxu0 0
      %1666 = vmatpush1.bf16.xpose.msra.mxu0 0
      %1667 = vmatprep.subr.bf16.mxu0 0
      %1668 = vmatpush1.bf16.xpose.msra.mxu0 0
      %1669 = vmatprep.subr.bf16.mxu0 0
      %1670 = vmatpush1.bf16.xpose.msra.mxu0 0
      %1671 = vmatprep.subr.bf16.mxu0 0
      %1672 = vmatpush1.bf16.xpose.msra.mxu0 0
      %1673 = vmatprep.subr.bf16.mxu0 0
      %1674 = vmatpush1.bf16.xpose.msra.mxu0 0
      %1675 = vmatprep.subr.bf16.mxu0 0
      %1676 = vmatpush1.bf16.xpose.msra.mxu0 0
      %1677 = vmatprep.subr.bf16.mxu0 0
      %1678 = vmatpush1.bf16.xpose.msra.mxu0 0
      %1679 = vmatprep.subr.bf16.mxu0 0
      %1680 = vmatpush1.bf16.xpose.msra.mxu0 0
      %1681 = vmatprep.subr.bf16.mxu0 0
      %1682 = vmatpush1.bf16.xpose.msra.mxu0 0
      %1683 = vmatprep.subr.bf16.mxu0 0
      %1684 = vmatpush1.bf16.xpose.msra.mxu0 0
      %1685 = vmatprep.subr.bf16.mxu0 0
      %1686 = vmatpush1.bf16.xpose.msra.mxu0 0
      %1687 = vmatprep.subr.bf16.mxu0 0
      %1688 = vmatpush1.bf16.xpose.msra.mxu0 0
      %1689 = vmatprep.subr.bf16.mxu0 0
      %1690 = vmatpush1.bf16.xpose.msra.mxu0 0
      %1691 = vmatprep.mubr.bf16.mxu0 0
      %1692 = vmatmul.mubr.bf16.gmra.mrb[0].mxu0 %v1654
      %v1693 = vpop.f32.mrb[0].mxu0
      %v1694 = vadd.f32 0.0, %v1693
      %v1695 = vpop.f32.mrb[0].mxu0
      %v1696 = vpop.f32.mrb[0].mxu0
      %v1697 = vpop.f32.mrb[0].mxu0
      %1698 = vdwg.mxu0
      %v1700 = vsel %vm1652, %v1645, 0
      %v1703 = vsel %vm1652, %v1649, 0
      %1705 = vmatprep.subr.bf16.mxu0 0
      %1706 = vmatpush1.bf16.xpose.msra.mxu0 %v1703
      %1707 = vmatprep.subr.bf16.mxu0 0
      %1708 = vmatpush1.bf16.xpose.msra.mxu0 0
      %1709 = vmatprep.subr.bf16.mxu0 0
      %1710 = vmatpush1.bf16.xpose.msra.mxu0 0
      %1711 = vmatprep.subr.bf16.mxu0 0
      %1712 = vmatpush1.bf16.xpose.msra.mxu0 0
      %1713 = vmatprep.subr.bf16.mxu0 0
      %1714 = vmatpush1.bf16.xpose.msra.mxu0 0
      %1715 = vmatprep.subr.bf16.mxu0 0
      %1716 = vmatpush1.bf16.xpose.msra.mxu0 0
      %1717 = vmatprep.subr.bf16.mxu0 0
      %1718 = vmatpush1.bf16.xpose.msra.mxu0 0
      %1719 = vmatprep.subr.bf16.mxu0 0
      %1720 = vmatpush1.bf16.xpose.msra.mxu0 0
      %1721 = vmatprep.subr.bf16.mxu0 0
      %1722 = vmatpush1.bf16.xpose.msra.mxu0 0
      %1723 = vmatprep.subr.bf16.mxu0 0
      %1724 = vmatpush1.bf16.xpose.msra.mxu0 0
      %1725 = vmatprep.subr.bf16.mxu0 0
      %1726 = vmatpush1.bf16.xpose.msra.mxu0 0
      %1727 = vmatprep.subr.bf16.mxu0 0
      %1728 = vmatpush1.bf16.xpose.msra.mxu0 0
      %1729 = vmatprep.subr.bf16.mxu0 0
      %1730 = vmatpush1.bf16.xpose.msra.mxu0 0
      %1731 = vmatprep.subr.bf16.mxu0 0
      %1732 = vmatpush1.bf16.xpose.msra.mxu0 0
      %1733 = vmatprep.subr.bf16.mxu0 0
      %1734 = vmatpush1.bf16.xpose.msra.mxu0 0
      %1735 = vmatprep.subr.bf16.mxu0 0
      %1736 = vmatpush1.bf16.xpose.msra.mxu0 0
      %1737 = vmatprep.mubr.bf16.mxu0 0
      %1738 = vmatmul.mubr.bf16.gmra.mrb[0].mxu0 %v1700
      %v1739 = vpop.f32.mrb[0].mxu0
      %v1740 = vadd.f32 0.0, %v1739
      %v1741 = vpop.f32.mrb[0].mxu0
      %v1742 = vpop.f32.mrb[0].mxu0
      %v1743 = vpop.f32.mrb[0].mxu0
      %1744 = vdwg.mxu0
      %v1746 = vsel %vm1652, %v1646, 0
      %v1749 = vsel %vm1652, %v1650, 0
      %1751 = vmatprep.subr.bf16.mxu0 0
      %1752 = vmatpush1.bf16.xpose.msra.mxu0 %v1749
      %1753 = vmatprep.subr.bf16.mxu0 0
      %1754 = vmatpush1.bf16.xpose.msra.mxu0 0
      %1755 = vmatprep.subr.bf16.mxu0 0
      %1756 = vmatpush1.bf16.xpose.msra.mxu0 0
      %1757 = vmatprep.subr.bf16.mxu0 0
      %1758 = vmatpush1.bf16.xpose.msra.mxu0 0
      %1759 = vmatprep.subr.bf16.mxu0 0
      %1760 = vmatpush1.bf16.xpose.msra.mxu0 0
      %1761 = vmatprep.subr.bf16.mxu0 0
      %1762 = vmatpush1.bf16.xpose.msra.mxu0 0
      %1763 = vmatprep.subr.bf16.mxu0 0
      %1764 = vmatpush1.bf16.xpose.msra.mxu0 0
      %1765 = vmatprep.subr.bf16.mxu0 0
      %1766 = vmatpush1.bf16.xpose.msra.mxu0 0
      %1767 = vmatprep.subr.bf16.mxu0 0
      %1768 = vmatpush1.bf16.xpose.msra.mxu0 0
      %1769 = vmatprep.subr.bf16.mxu0 0
      %1770 = vmatpush1.bf16.xpose.msra.mxu0 0
      %1771 = vmatprep.subr.bf16.mxu0 0
      %1772 = vmatpush1.bf16.xpose.msra.mxu0 0
      %1773 = vmatprep.subr.bf16.mxu0 0
      %1774 = vmatpush1.bf16.xpose.msra.mxu0 0
      %1775 = vmatprep.subr.bf16.mxu0 0
      %1776 = vmatpush1.bf16.xpose.msra.mxu0 0
      %1777 = vmatprep.subr.bf16.mxu0 0
      %1778 = vmatpush1.bf16.xpose.msra.mxu0 0
      %1779 = vmatprep.subr.bf16.mxu0 0
      %1780 = vmatpush1.bf16.xpose.msra.mxu0 0
      %1781 = vmatprep.subr.bf16.mxu0 0
      %1782 = vmatpush1.bf16.xpose.msra.mxu0 0
      %1783 = vmatprep.mubr.bf16.mxu0 0
      %1784 = vmatmul.mubr.bf16.gmra.mrb[0].mxu0 %v1746
      %v1785 = vpop.f32.mrb[0].mxu0
      %v1786 = vadd.f32 0.0, %v1785
      %v1787 = vpop.f32.mrb[0].mxu0
      %v1788 = vpop.f32.mrb[0].mxu0
      %v1789 = vpop.f32.mrb[0].mxu0
      %1790 = vdwg.mxu0
      %v1792 = vsel %vm1652, %v1647, 0
      %v1795 = vsel %vm1652, %v1651, 0
      %1797 = vmatprep.subr.bf16.mxu0 0
      %1798 = vmatpush1.bf16.xpose.msra.mxu0 %v1795
      %1799 = vmatprep.subr.bf16.mxu0 0
      %1800 = vmatpush1.bf16.xpose.msra.mxu0 0
      %1801 = vmatprep.subr.bf16.mxu0 0
      %1802 = vmatpush1.bf16.xpose.msra.mxu0 0
      %1803 = vmatprep.subr.bf16.mxu0 0
      %1804 = vmatpush1.bf16.xpose.msra.mxu0 0
      %1805 = vmatprep.subr.bf16.mxu0 0
      %1806 = vmatpush1.bf16.xpose.msra.mxu0 0
      %1807 = vmatprep.subr.bf16.mxu0 0
      %1808 = vmatpush1.bf16.xpose.msra.mxu0 0
      %1809 = vmatprep.subr.bf16.mxu0 0
      %1810 = vmatpush1.bf16.xpose.msra.mxu0 0
      %1811 = vmatprep.subr.bf16.mxu0 0
      %1812 = vmatpush1.bf16.xpose.msra.mxu0 0
      %1813 = vmatprep.subr.bf16.mxu0 0
      %1814 = vmatpush1.bf16.xpose.msra.mxu0 0
      %1815 = vmatprep.subr.bf16.mxu0 0
      %1816 = vmatpush1.bf16.xpose.msra.mxu0 0
      %1817 = vmatprep.subr.bf16.mxu0 0
      %1818 = vmatpush1.bf16.xpose.msra.mxu0 0
      %1819 = vmatprep.subr.bf16.mxu0 0
      %1820 = vmatpush1.bf16.xpose.msra.mxu0 0
      %1821 = vmatprep.subr.bf16.mxu0 0
      %1822 = vmatpush1.bf16.xpose.msra.mxu0 0
      %1823 = vmatprep.subr.bf16.mxu0 0
      %1824 = vmatpush1.bf16.xpose.msra.mxu0 0
      %1825 = vmatprep.subr.bf16.mxu0 0
      %1826 = vmatpush1.bf16.xpose.msra.mxu0 0
      %1827 = vmatprep.subr.bf16.mxu0 0
      %1828 = vmatpush1.bf16.xpose.msra.mxu0 0
      %1829 = vmatprep.mubr.bf16.mxu0 0
      %1830 = vmatmul.mubr.bf16.gmra.mrb[0].mxu0 %v1792
      %v1831 = vpop.f32.mrb[0].mxu0
      %v1832 = vadd.f32 0.0, %v1831
      %v1833 = vpop.f32.mrb[0].mxu0
      %v1834 = vpop.f32.mrb[0].mxu0
      %v1835 = vpop.f32.mrb[0].mxu0
      %1836 = vdwg.mxu0
      %v1837 = vmul.f32 %v1694, 0.25
      %v1838 = vmul.f32 %v1740, 0.25
      %v1839 = vmul.f32 %v1786, 0.25
      %v1840 = vmul.f32 %v1832, 0.25
      %vm1841 = vcmask 36864
      %v1842 = vsel %vm1841, %v1837, -inf
      %1843 = vmax.xlane.f32.xlu0 %v1842
      %v1844 = vpop.xlane.xlu0 %1843
      %v1845 = vsel %vm1841, %v1838, -inf
      %1846 = vmax.xlane.f32.xlu0 %v1845
      %v1847 = vpop.xlane.xlu0 %1846
      %v1848 = vsel %vm1841, %v1839, -inf
      %1849 = vmax.xlane.f32.xlu0 %v1848
      %v1850 = vpop.xlane.xlu0 %1849
      %v1851 = vsel %vm1841, %v1840, -inf
      %1852 = vmax.xlane.f32.xlu0 %v1851
      %v1853 = vpop.xlane.xlu0 %1852
      %v1854 = vsub.f32 %v1837, %v1844
      %v1855 = vsub.f32 %v1838, %v1847
      %v1856 = vsub.f32 %v1839, %v1850
      %v1857 = vsub.f32 %v1840, %v1853
      %v1858 = vmul.f32 %v1854, 1.442695
      %v1859 = vpow.pop %v1858
      %v1860 = vmul.f32 %v1855, 1.442695
      %v1861 = vpow.pop %v1860
      %v1862 = vmul.f32 %v1856, 1.442695
      %v1863 = vpow.pop %v1862
      %v1864 = vmul.f32 %v1857, 1.442695
      %v1865 = vpow.pop %v1864
      %v1866 = vsel %vm1841, %v1859, 0.0
      %1867 = vadd.xlane.f32.xlu0 %v1866
      %v1868 = vpop.xlane.xlu0 %1867
      %v1869 = vsel %vm1841, %v1861, 0.0
      %1870 = vadd.xlane.f32.xlu0 %v1869
      %v1871 = vpop.xlane.xlu0 %1870
      %v1872 = vsel %vm1841, %v1863, 0.0
      %1873 = vadd.xlane.f32.xlu0 %v1872
      %v1874 = vpop.xlane.xlu0 %1873
      %v1875 = vsel %vm1841, %v1865, 0.0
      %1876 = vadd.xlane.f32.xlu0 %v1875
      %v1877 = vpop.xlane.xlu0 %1876
      %v1878 = vrcp.pop %v1868
      %v1879 = vrcp.pop %v1871
      %v1880 = vrcp.pop %v1874
      %v1881 = vrcp.pop %v1877
      %v1882 = vmul.f32 %v1859, %v1878
      %v1883 = vmul.f32 %v1861, %v1879
      %v1884 = vmul.f32 %v1863, %v1880
      %v1885 = vmul.f32 %v1865, %v1881
      %v1886 = vpack.c.bf16 %v1882, %v1882
      %v1887 = vpack.c.bf16 %v1883, %v1883
      %v1888 = vpack.c.bf16 %v1884, %v1884
      %v1889 = vpack.c.bf16 %v1885, %v1885
      %v1890 = vpack.c.bf16 %v1519, %v1519
      %v1891 = vpack.c.bf16 %v1559, %v1559
      %v1892 = vpack.c.bf16 %v1599, %v1599
      %v1893 = vpack.c.bf16 %v1639, %v1639
      %vm1894 = vcmask 39936
      %v1896 = vsel %vm1894, %v1886, 0
      %vm1898 = vcmask 1041408
      %vm1899 = vcmask 1042432
      %v1900 = vsel %vm1898, 4294967295, 65535
      %v1901 = vsel %vm1899, %v1900, 0
      %v1903 = vand.u32 %v1890, %v1901
      %1905 = vmatprep.subr.bf16.mxu0 0
      %1906 = vmatpush1.bf16.msra.mxu0 %v1903
      %1907 = vmatprep.subr.bf16.mxu0 0
      %1908 = vmatpush1.bf16.msra.mxu0 0
      %1909 = vmatprep.subr.bf16.mxu0 0
      %1910 = vmatpush1.bf16.msra.mxu0 0
      %1911 = vmatprep.subr.bf16.mxu0 0
      %1912 = vmatpush1.bf16.msra.mxu0 0
      %1913 = vmatprep.subr.bf16.mxu0 0
      %1914 = vmatpush1.bf16.msra.mxu0 0
      %1915 = vmatprep.subr.bf16.mxu0 0
      %1916 = vmatpush1.bf16.msra.mxu0 0
      %1917 = vmatprep.subr.bf16.mxu0 0
      %1918 = vmatpush1.bf16.msra.mxu0 0
      %1919 = vmatprep.subr.bf16.mxu0 0
      %1920 = vmatpush1.bf16.msra.mxu0 0
      %1921 = vmatprep.subr.bf16.mxu0 0
      %1922 = vmatpush1.bf16.msra.mxu0 0
      %1923 = vmatprep.subr.bf16.mxu0 0
      %1924 = vmatpush1.bf16.msra.mxu0 0
      %1925 = vmatprep.subr.bf16.mxu0 0
      %1926 = vmatpush1.bf16.msra.mxu0 0
      %1927 = vmatprep.subr.bf16.mxu0 0
      %1928 = vmatpush1.bf16.msra.mxu0 0
      %1929 = vmatprep.subr.bf16.mxu0 0
      %1930 = vmatpush1.bf16.msra.mxu0 0
      %1931 = vmatprep.subr.bf16.mxu0 0
      %1932 = vmatpush1.bf16.msra.mxu0 0
      %1933 = vmatprep.subr.bf16.mxu0 0
      %1934 = vmatpush1.bf16.msra.mxu0 0
      %1935 = vmatprep.subr.bf16.mxu0 0
      %1936 = vmatpush1.bf16.msra.mxu0 0
      %1937 = vmatprep.mubr.bf16.mxu0 0
      %1938 = vmatmul.mubr.bf16.gmra.mrb[0].mxu0 %v1896
      %v1939 = vpop.f32.mrb[0].mxu0
      %v1940 = vadd.f32 0.0, %v1939
      %v1941 = vpop.f32.mrb[0].mxu0
      %v1942 = vpop.f32.mrb[0].mxu0
      %v1943 = vpop.f32.mrb[0].mxu0
      %1944 = vdwg.mxu0
      %v1946 = vsel %vm1894, %v1887, 0
      %v1949 = vand.u32 %v1891, %v1901
      %1951 = vmatprep.subr.bf16.mxu0 0
      %1952 = vmatpush1.bf16.msra.mxu0 %v1949
      %1953 = vmatprep.subr.bf16.mxu0 0
      %1954 = vmatpush1.bf16.msra.mxu0 0
      %1955 = vmatprep.subr.bf16.mxu0 0
      %1956 = vmatpush1.bf16.msra.mxu0 0
      %1957 = vmatprep.subr.bf16.mxu0 0
      %1958 = vmatpush1.bf16.msra.mxu0 0
      %1959 = vmatprep.subr.bf16.mxu0 0
      %1960 = vmatpush1.bf16.msra.mxu0 0
      %1961 = vmatprep.subr.bf16.mxu0 0
      %1962 = vmatpush1.bf16.msra.mxu0 0
      %1963 = vmatprep.subr.bf16.mxu0 0
      %1964 = vmatpush1.bf16.msra.mxu0 0
      %1965 = vmatprep.subr.bf16.mxu0 0
      %1966 = vmatpush1.bf16.msra.mxu0 0
      %1967 = vmatprep.subr.bf16.mxu0 0
      %1968 = vmatpush1.bf16.msra.mxu0 0
      %1969 = vmatprep.subr.bf16.mxu0 0
      %1970 = vmatpush1.bf16.msra.mxu0 0
      %1971 = vmatprep.subr.bf16.mxu0 0
      %1972 = vmatpush1.bf16.msra.mxu0 0
      %1973 = vmatprep.subr.bf16.mxu0 0
      %1974 = vmatpush1.bf16.msra.mxu0 0
      %1975 = vmatprep.subr.bf16.mxu0 0
      %1976 = vmatpush1.bf16.msra.mxu0 0
      %1977 = vmatprep.subr.bf16.mxu0 0
      %1978 = vmatpush1.bf16.msra.mxu0 0
      %1979 = vmatprep.subr.bf16.mxu0 0
      %1980 = vmatpush1.bf16.msra.mxu0 0
      %1981 = vmatprep.subr.bf16.mxu0 0
      %1982 = vmatpush1.bf16.msra.mxu0 0
      %1983 = vmatprep.mubr.bf16.mxu0 0
      %1984 = vmatmul.mubr.bf16.gmra.mrb[0].mxu0 %v1946
      %v1985 = vpop.f32.mrb[0].mxu0
      %v1986 = vadd.f32 0.0, %v1985
      %v1987 = vpop.f32.mrb[0].mxu0
      %v1988 = vpop.f32.mrb[0].mxu0
      %v1989 = vpop.f32.mrb[0].mxu0
      %1990 = vdwg.mxu0
      %v1992 = vsel %vm1894, %v1888, 0
      %v1995 = vand.u32 %v1892, %v1901
      %1997 = vmatprep.subr.bf16.mxu0 0
      %1998 = vmatpush1.bf16.msra.mxu0 %v1995
      %1999 = vmatprep.subr.bf16.mxu0 0
      %2000 = vmatpush1.bf16.msra.mxu0 0
      %2001 = vmatprep.subr.bf16.mxu0 0
      %2002 = vmatpush1.bf16.msra.mxu0 0
      %2003 = vmatprep.subr.bf16.mxu0 0
      %2004 = vmatpush1.bf16.msra.mxu0 0
      %2005 = vmatprep.subr.bf16.mxu0 0
      %2006 = vmatpush1.bf16.msra.mxu0 0
      %2007 = vmatprep.subr.bf16.mxu0 0
      %2008 = vmatpush1.bf16.msra.mxu0 0
      %2009 = vmatprep.subr.bf16.mxu0 0
      %2010 = vmatpush1.bf16.msra.mxu0 0
      %2011 = vmatprep.subr.bf16.mxu0 0
      %2012 = vmatpush1.bf16.msra.mxu0 0
      %2013 = vmatprep.subr.bf16.mxu0 0
      %2014 = vmatpush1.bf16.msra.mxu0 0
      %2015 = vmatprep.subr.bf16.mxu0 0
      %2016 = vmatpush1.bf16.msra.mxu0 0
      %2017 = vmatprep.subr.bf16.mxu0 0
      %2018 = vmatpush1.bf16.msra.mxu0 0
      %2019 = vmatprep.subr.bf16.mxu0 0
      %2020 = vmatpush1.bf16.msra.mxu0 0
      %2021 = vmatprep.subr.bf16.mxu0 0
      %2022 = vmatpush1.bf16.msra.mxu0 0
      %2023 = vmatprep.subr.bf16.mxu0 0
      %2024 = vmatpush1.bf16.msra.mxu0 0
      %2025 = vmatprep.subr.bf16.mxu0 0
      %2026 = vmatpush1.bf16.msra.mxu0 0
      %2027 = vmatprep.subr.bf16.mxu0 0
      %2028 = vmatpush1.bf16.msra.mxu0 0
      %2029 = vmatprep.mubr.bf16.mxu0 0
      %2030 = vmatmul.mubr.bf16.gmra.mrb[0].mxu0 %v1992
      %v2031 = vpop.f32.mrb[0].mxu0
      %v2032 = vadd.f32 0.0, %v2031
      %v2033 = vpop.f32.mrb[0].mxu0
      %v2034 = vpop.f32.mrb[0].mxu0
      %v2035 = vpop.f32.mrb[0].mxu0
      %2036 = vdwg.mxu0
      %v2038 = vsel %vm1894, %v1889, 0
      %v2041 = vand.u32 %v1893, %v1901
      %2043 = vmatprep.subr.bf16.mxu0 0
      %2044 = vmatpush1.bf16.msra.mxu0 %v2041
      %2045 = vmatprep.subr.bf16.mxu0 0
      %2046 = vmatpush1.bf16.msra.mxu0 0
      %2047 = vmatprep.subr.bf16.mxu0 0
      %2048 = vmatpush1.bf16.msra.mxu0 0
      %2049 = vmatprep.subr.bf16.mxu0 0
      %2050 = vmatpush1.bf16.msra.mxu0 0
      %2051 = vmatprep.subr.bf16.mxu0 0
      %2052 = vmatpush1.bf16.msra.mxu0 0
      %2053 = vmatprep.subr.bf16.mxu0 0
      %2054 = vmatpush1.bf16.msra.mxu0 0
      %2055 = vmatprep.subr.bf16.mxu0 0
      %2056 = vmatpush1.bf16.msra.mxu0 0
      %2057 = vmatprep.subr.bf16.mxu0 0
      %2058 = vmatpush1.bf16.msra.mxu0 0
      %2059 = vmatprep.subr.bf16.mxu0 0
      %2060 = vmatpush1.bf16.msra.mxu0 0
      %2061 = vmatprep.subr.bf16.mxu0 0
      %2062 = vmatpush1.bf16.msra.mxu0 0
      %2063 = vmatprep.subr.bf16.mxu0 0
      %2064 = vmatpush1.bf16.msra.mxu0 0
      %2065 = vmatprep.subr.bf16.mxu0 0
      %2066 = vmatpush1.bf16.msra.mxu0 0
      %2067 = vmatprep.subr.bf16.mxu0 0
      %2068 = vmatpush1.bf16.msra.mxu0 0
      %2069 = vmatprep.subr.bf16.mxu0 0
      %2070 = vmatpush1.bf16.msra.mxu0 0
      %2071 = vmatprep.subr.bf16.mxu0 0
      %2072 = vmatpush1.bf16.msra.mxu0 0
      %2073 = vmatprep.subr.bf16.mxu0 0
      %2074 = vmatpush1.bf16.msra.mxu0 0
      %2075 = vmatprep.mubr.bf16.mxu0 0
      %2076 = vmatmul.mubr.bf16.gmra.mrb[0].mxu0 %v2038
      %v2077 = vpop.f32.mrb[0].mxu0
      %v2078 = vadd.f32 0.0, %v2077
      %v2079 = vpop.f32.mrb[0].mxu0
      %v2080 = vpop.f32.mrb[0].mxu0
      %v2081 = vpop.f32.mrb[0].mxu0
      %2082 = vdwg.mxu0
      %v2083 = vpack.c.bf16 %v1940, %v1940
      %v2084 = vpack.c.bf16 %v1986, %v1986
      %v2085 = vpack.c.bf16 %v2032, %v2032
      %v2086 = vpack.c.bf16 %v2078, %v2078
      %v2087 = vpack.c.bf16 %v1031, %v1030
      %v2088 = vpack.c.bf16 %v1033, %v1032
      %v2089 = vpack.c.bf16 %v1035, %v1034
      %v2090 = vpack.c.bf16 %v1037, %v1036
      %v2092 = vsel %vm1652, %v2083, 0
      %2094 = vmatprep.subr.bf16.mxu0 0
      %2095 = vmatpush1.bf16.msra.mxu0 %v2087
      %2096 = vmatprep.subr.bf16.mxu0 0
      %2097 = vmatpush1.bf16.msra.mxu0 0
      %2098 = vmatprep.subr.bf16.mxu0 0
      %2099 = vmatpush1.bf16.msra.mxu0 0
      %2100 = vmatprep.subr.bf16.mxu0 0
      %2101 = vmatpush1.bf16.msra.mxu0 0
      %2102 = vmatprep.subr.bf16.mxu0 0
      %2103 = vmatpush1.bf16.msra.mxu0 0
      %2104 = vmatprep.subr.bf16.mxu0 0
      %2105 = vmatpush1.bf16.msra.mxu0 0
      %2106 = vmatprep.subr.bf16.mxu0 0
      %2107 = vmatpush1.bf16.msra.mxu0 0
      %2108 = vmatprep.subr.bf16.mxu0 0
      %2109 = vmatpush1.bf16.msra.mxu0 0
      %2110 = vmatprep.subr.bf16.mxu0 0
      %2111 = vmatpush1.bf16.msra.mxu0 0
      %2112 = vmatprep.subr.bf16.mxu0 0
      %2113 = vmatpush1.bf16.msra.mxu0 0
      %2114 = vmatprep.subr.bf16.mxu0 0
      %2115 = vmatpush1.bf16.msra.mxu0 0
      %2116 = vmatprep.subr.bf16.mxu0 0
      %2117 = vmatpush1.bf16.msra.mxu0 0
      %2118 = vmatprep.subr.bf16.mxu0 0
      %2119 = vmatpush1.bf16.msra.mxu0 0
      %2120 = vmatprep.subr.bf16.mxu0 0
      %2121 = vmatpush1.bf16.msra.mxu0 0
      %2122 = vmatprep.subr.bf16.mxu0 0
      %2123 = vmatpush1.bf16.msra.mxu0 0
      %2124 = vmatprep.subr.bf16.mxu0 0
      %2125 = vmatpush1.bf16.msra.mxu0 0
      %2126 = vmatprep.mubr.bf16.mxu0 0
      %2127 = vmatmul.mubr.bf16.gmra.mrb[0].mxu0 %v2092
      %v2128 = vpop.f32.mrb[0].mxu0
      %v2129 = vadd.f32 0.0, %v2128
      %v2130 = vpop.f32.mrb[0].mxu0
      %v2131 = vpop.f32.mrb[0].mxu0
      %v2132 = vpop.f32.mrb[0].mxu0
      %2133 = vdwg.mxu0
      %v2135 = vsel %vm1652, %v2084, 0
      %2137 = vmatprep.subr.bf16.mxu0 0
      %2138 = vmatpush1.bf16.msra.mxu0 %v2088
      %2139 = vmatprep.subr.bf16.mxu0 0
      %2140 = vmatpush1.bf16.msra.mxu0 0
      %2141 = vmatprep.subr.bf16.mxu0 0
      %2142 = vmatpush1.bf16.msra.mxu0 0
      %2143 = vmatprep.subr.bf16.mxu0 0
      %2144 = vmatpush1.bf16.msra.mxu0 0
      %2145 = vmatprep.subr.bf16.mxu0 0
      %2146 = vmatpush1.bf16.msra.mxu0 0
      %2147 = vmatprep.subr.bf16.mxu0 0
      %2148 = vmatpush1.bf16.msra.mxu0 0
      %2149 = vmatprep.subr.bf16.mxu0 0
      %2150 = vmatpush1.bf16.msra.mxu0 0
      %2151 = vmatprep.subr.bf16.mxu0 0
      %2152 = vmatpush1.bf16.msra.mxu0 0
      %2153 = vmatprep.subr.bf16.mxu0 0
      %2154 = vmatpush1.bf16.msra.mxu0 0
      %2155 = vmatprep.subr.bf16.mxu0 0
      %2156 = vmatpush1.bf16.msra.mxu0 0
      %2157 = vmatprep.subr.bf16.mxu0 0
      %2158 = vmatpush1.bf16.msra.mxu0 0
      %2159 = vmatprep.subr.bf16.mxu0 0
      %2160 = vmatpush1.bf16.msra.mxu0 0
      %2161 = vmatprep.subr.bf16.mxu0 0
      %2162 = vmatpush1.bf16.msra.mxu0 0
      %2163 = vmatprep.subr.bf16.mxu0 0
      %2164 = vmatpush1.bf16.msra.mxu0 0
      %2165 = vmatprep.subr.bf16.mxu0 0
      %2166 = vmatpush1.bf16.msra.mxu0 0
      %2167 = vmatprep.subr.bf16.mxu0 0
      %2168 = vmatpush1.bf16.msra.mxu0 0
      %2169 = vmatprep.mubr.bf16.mxu0 0
      %2170 = vmatmul.mubr.bf16.gmra.mrb[0].mxu0 %v2135
      %v2171 = vpop.f32.mrb[0].mxu0
      %v2172 = vadd.f32 0.0, %v2171
      %v2173 = vpop.f32.mrb[0].mxu0
      %v2174 = vpop.f32.mrb[0].mxu0
      %v2175 = vpop.f32.mrb[0].mxu0
      %2176 = vdwg.mxu0
      %v2178 = vsel %vm1652, %v2085, 0
      %2180 = vmatprep.subr.bf16.mxu0 0
      %2181 = vmatpush1.bf16.msra.mxu0 %v2089
      %2182 = vmatprep.subr.bf16.mxu0 0
      %2183 = vmatpush1.bf16.msra.mxu0 0
      %2184 = vmatprep.subr.bf16.mxu0 0
      %2185 = vmatpush1.bf16.msra.mxu0 0
      %2186 = vmatprep.subr.bf16.mxu0 0
      %2187 = vmatpush1.bf16.msra.mxu0 0
      %2188 = vmatprep.subr.bf16.mxu0 0
      %2189 = vmatpush1.bf16.msra.mxu0 0
      %2190 = vmatprep.subr.bf16.mxu0 0
      %2191 = vmatpush1.bf16.msra.mxu0 0
      %2192 = vmatprep.subr.bf16.mxu0 0
      %2193 = vmatpush1.bf16.msra.mxu0 0
      %2194 = vmatprep.subr.bf16.mxu0 0
      %2195 = vmatpush1.bf16.msra.mxu0 0
      %2196 = vmatprep.subr.bf16.mxu0 0
      %2197 = vmatpush1.bf16.msra.mxu0 0
      %2198 = vmatprep.subr.bf16.mxu0 0
      %2199 = vmatpush1.bf16.msra.mxu0 0
      %2200 = vmatprep.subr.bf16.mxu0 0
      %2201 = vmatpush1.bf16.msra.mxu0 0
      %2202 = vmatprep.subr.bf16.mxu0 0
      %2203 = vmatpush1.bf16.msra.mxu0 0
      %2204 = vmatprep.subr.bf16.mxu0 0
      %2205 = vmatpush1.bf16.msra.mxu0 0
      %2206 = vmatprep.subr.bf16.mxu0 0
      %2207 = vmatpush1.bf16.msra.mxu0 0
      %2208 = vmatprep.subr.bf16.mxu0 0
      %2209 = vmatpush1.bf16.msra.mxu0 0
      %2210 = vmatprep.subr.bf16.mxu0 0
      %2211 = vmatpush1.bf16.msra.mxu0 0
      %2212 = vmatprep.mubr.bf16.mxu0 0
      %2213 = vmatmul.mubr.bf16.gmra.mrb[0].mxu0 %v2178
      %v2214 = vpop.f32.mrb[0].mxu0
      %v2215 = vadd.f32 0.0, %v2214
      %v2216 = vpop.f32.mrb[0].mxu0
      %v2217 = vpop.f32.mrb[0].mxu0
      %v2218 = vpop.f32.mrb[0].mxu0
      %2219 = vdwg.mxu0
      %v2221 = vsel %vm1652, %v2086, 0
      %2223 = vmatprep.subr.bf16.mxu0 0
      %2224 = vmatpush1.bf16.msra.mxu0 %v2090
      %2225 = vmatprep.subr.bf16.mxu0 0
      %2226 = vmatpush1.bf16.msra.mxu0 0
      %2227 = vmatprep.subr.bf16.mxu0 0
      %2228 = vmatpush1.bf16.msra.mxu0 0
      %2229 = vmatprep.subr.bf16.mxu0 0
      %2230 = vmatpush1.bf16.msra.mxu0 0
      %2231 = vmatprep.subr.bf16.mxu0 0
      %2232 = vmatpush1.bf16.msra.mxu0 0
      %2233 = vmatprep.subr.bf16.mxu0 0
      %2234 = vmatpush1.bf16.msra.mxu0 0
      %2235 = vmatprep.subr.bf16.mxu0 0
      %2236 = vmatpush1.bf16.msra.mxu0 0
      %2237 = vmatprep.subr.bf16.mxu0 0
      %2238 = vmatpush1.bf16.msra.mxu0 0
      %2239 = vmatprep.subr.bf16.mxu0 0
      %2240 = vmatpush1.bf16.msra.mxu0 0
      %2241 = vmatprep.subr.bf16.mxu0 0
      %2242 = vmatpush1.bf16.msra.mxu0 0
      %2243 = vmatprep.subr.bf16.mxu0 0
      %2244 = vmatpush1.bf16.msra.mxu0 0
      %2245 = vmatprep.subr.bf16.mxu0 0
      %2246 = vmatpush1.bf16.msra.mxu0 0
      %2247 = vmatprep.subr.bf16.mxu0 0
      %2248 = vmatpush1.bf16.msra.mxu0 0
      %2249 = vmatprep.subr.bf16.mxu0 0
      %2250 = vmatpush1.bf16.msra.mxu0 0
      %2251 = vmatprep.subr.bf16.mxu0 0
      %2252 = vmatpush1.bf16.msra.mxu0 0
      %2253 = vmatprep.subr.bf16.mxu0 0
      %2254 = vmatpush1.bf16.msra.mxu0 0
      %2255 = vmatprep.mubr.bf16.mxu0 0
      %2256 = vmatmul.mubr.bf16.gmra.mrb[0].mxu0 %v2221
      %v2257 = vpop.f32.mrb[0].mxu0
      %v2258 = vadd.f32 0.0, %v2257
      %v2259 = vpop.f32.mrb[0].mxu0
      %v2260 = vpop.f32.mrb[0].mxu0
      %v2261 = vpop.f32.mrb[0].mxu0
      %2262 = vdwg.mxu0
      %v2263 = vsel %vm893, %v2129, 0.0
      %v2264 = vsel %vm893, %v2172, 0.0
      %v2265 = vadd.f32 %v2263, %v2264
      %v2266 = vsel %vm893, %v2215, 0.0
      %v2267 = vadd.f32 %v2265, %v2266
      %v2268 = vsel %vm893, %v2258, 0.0
      %v2269 = vadd.f32 %v2267, %v2268
      %v2271 = vlaneseq
      %v2272 = vshrl.u32 %v2271, 7
      %v2273 = vsub.s32 0, %v2272
      %v2274 = vrot.slane %v1038, %v2273
      %v2276 = vadd.f32 %v2269, %v2274
      %v2277 = vadd.f32 %v890, %v2276
      %v2278 = vld [vmem:[%s857] sm:$0x1]
      %v2279 = vld [vmem:[%s860] sm:$0x1]
      %v2280 = vsel %vm893, %v2277, 0.0
      %2281 = vadd.xlane.f32.xlu0 %v2280
      %v2282 = vpop.xlane.xlu0 %2281
      %v2283 = vmul.f32 %v2282, %v897
      %v2284 = vsub.f32 %v2277, %v2283
      %v2285 = vmul.f32 %v2284, %v2284
      %v2286 = vsel %vm893, %v2285, 0.0
      %2287 = vadd.xlane.f32.xlu0 %v2286
      %v2288 = vpop.xlane.xlu0 %2287
      %v2289 = vmul.f32 %v2288, %v897
      %v2290 = vadd.f32 %v2289, 1e-06
      %v2291 = vrsqrt.pop %v2290
      %v2292 = vmul.f32 %v2284, %v2291
      %v2294 = vlaneseq
      %v2295 = vshrl.u32 %v2294, 7
      %v2296 = vsub.s32 0, %v2295
      %v2297 = vrot.slane %v2278, %v2296
      %v2299 = vmul.f32 %v2292, %v2297
      %v2301 = vlaneseq
      %v2302 = vshrl.u32 %v2301, 7
      %v2303 = vsub.s32 0, %v2302
      %v2304 = vrot.slane %v2279, %v2303
      %v2306 = vadd.f32 %v2299, %v2304
      %v2307 = vld [vmem:[%s865] sm:$0xff]
      %v2308 = vld [vmem:[%s865 + $0x8] sm:$0xff]
      %v2309 = vld [vmem:[%s865 + $0x10] sm:$0xff]
      %v2310 = vld [vmem:[%s865 + $0x18] sm:$0xff]
      %v2311 = vld [vmem:[%s865 + $0x20] sm:$0xff]
      %v2312 = vld [vmem:[%s865 + $0x28] sm:$0xff]
      %v2313 = vld [vmem:[%s865 + $0x30] sm:$0xff]
      %v2314 = vld [vmem:[%s865 + $0x38] sm:$0xff]
      %v2315 = vld [vmem:[%s865 + $0x40] sm:$0xff]
      %v2316 = vld [vmem:[%s865 + $0x48] sm:$0xff]
      %v2317 = vld [vmem:[%s865 + $0x50] sm:$0xff]
      %v2318 = vld [vmem:[%s865 + $0x58] sm:$0xff]
      %v2319 = vld [vmem:[%s865 + $0x60] sm:$0xff]
      %v2320 = vld [vmem:[%s865 + $0x68] sm:$0xff]
      %v2321 = vld [vmem:[%s865 + $0x70] sm:$0xff]
      %v2322 = vld [vmem:[%s865 + $0x78] sm:$0xff]
      %v2323 = vpack.c.bf16 %v2306, %v2306
      %v2324 = vpack.c.bf16 %v2309, %v2307
      %v2325 = vpack.c.bf16 %v2310, %v2308
      %v2326 = vpack.c.bf16 %v2313, %v2311
      %v2327 = vpack.c.bf16 %v2314, %v2312
      %v2328 = vpack.c.bf16 %v2317, %v2315
      %v2329 = vpack.c.bf16 %v2318, %v2316
      %v2330 = vpack.c.bf16 %v2321, %v2319
      %v2331 = vpack.c.bf16 %v2322, %v2320
      %v2332 = vld [vmem:[%s869] sm:$0x3]
      %v2334 = vlaneseq
      %v2335 = vshrl.u32 %v2334, 7
      %v2336 = vsub.s32 0, %v2335
      %v2337 = vrot.slane %v2332, %v2336
      %v2338 = vlaneseq
      %v2339 = vshrl.u32 %v2338, 7
      %v2340 = vsub.s32 1, %v2339
      %v2341 = vrot.slane %v2332, %v2340
      %v2345 = vsel %vm1080, %v2323, 0
      %2347 = vmatprep.subr.bf16.mxu0 %v2325
      %2348 = vmatpush1.bf16.msra.mxu0 %v2324
      %2349 = vmatprep.subr.bf16.mxu0 %v2327
      %2350 = vmatpush1.bf16.msra.mxu0 %v2326
      %2351 = vmatprep.subr.bf16.mxu0 %v2329
      %2352 = vmatpush1.bf16.msra.mxu0 %v2328
      %2353 = vmatprep.subr.bf16.mxu0 %v2331
      %2354 = vmatpush1.bf16.msra.mxu0 %v2330
      %2355 = vmatprep.subr.bf16.mxu0 0
      %2356 = vmatpush1.bf16.msra.mxu0 0
      %2357 = vmatprep.subr.bf16.mxu0 0
      %2358 = vmatpush1.bf16.msra.mxu0 0
      %2359 = vmatprep.subr.bf16.mxu0 0
      %2360 = vmatpush1.bf16.msra.mxu0 0
      %2361 = vmatprep.subr.bf16.mxu0 0
      %2362 = vmatpush1.bf16.msra.mxu0 0
      %2363 = vmatprep.subr.bf16.mxu0 0
      %2364 = vmatpush1.bf16.msra.mxu0 0
      %2365 = vmatprep.subr.bf16.mxu0 0
      %2366 = vmatpush1.bf16.msra.mxu0 0
      %2367 = vmatprep.subr.bf16.mxu0 0
      %2368 = vmatpush1.bf16.msra.mxu0 0
      %2369 = vmatprep.subr.bf16.mxu0 0
      %2370 = vmatpush1.bf16.msra.mxu0 0
      %2371 = vmatprep.subr.bf16.mxu0 0
      %2372 = vmatpush1.bf16.msra.mxu0 0
      %2373 = vmatprep.subr.bf16.mxu0 0
      %2374 = vmatpush1.bf16.msra.mxu0 0
      %2375 = vmatprep.subr.bf16.mxu0 0
      %2376 = vmatpush1.bf16.msra.mxu0 0
      %2377 = vmatprep.subr.bf16.mxu0 0
      %2378 = vmatpush1.bf16.msra.mxu0 0
      %2379 = vmatprep.mubr.bf16.mxu0 0
      %2380 = vmatmul.mubr.bf16.gmra.mrb[0].mxu0 %v2345
      %v2381 = vpop.f32.mrb[0].mxu0
      %v2382 = vadd.f32 %v2337, %v2381
      %v2383 = vpop.f32.mrb[0].mxu0
      %v2384 = vadd.f32 %v2341, %v2383
      %v2385 = vpop.f32.mrb[0].mxu0
      %v2386 = vpop.f32.mrb[0].mxu0
      %2387 = vdwg.mxu0
      %v2388 = vmul.f32 %v2382, 0.5
      %v2389 = vmul.f32 %v2384, 0.5
      %v2390 = vmul.f32 %v2382, 0.70710677
      %v2391 = vmul.f32 %v2384, 0.70710677
      %v2392 = vand.u32 2147483647, %v2390
      %v2393 = vand.u32 2147483647, %v2391
      %v2394 = vmul.f32 %v2392, 0.3275911
      %v2395 = vmul.f32 %v2393, 0.3275911
      %v2396 = vadd.f32 %v2394, 1.0
      %v2397 = vadd.f32 %v2395, 1.0
      %v2398 = vrcp.pop %v2396
      %v2399 = vmul.f32 1.0, %v2398
      %v2400 = vrcp.pop %v2397
      %v2401 = vmul.f32 1.0, %v2400
      %v2402 = vmul.f32 %v2399, 1.0614054
      %v2403 = vmul.f32 %v2401, 1.0614054
      %v2404 = vsub.f32 %v2402, 1.4531521
      %v2405 = vsub.f32 %v2403, 1.4531521
      %v2406 = vmul.f32 %v2404, %v2399
      %v2407 = vmul.f32 %v2405, %v2401
      %v2408 = vadd.f32 %v2406, 1.4214138
      %v2409 = vadd.f32 %v2407, 1.4214138
      %v2410 = vmul.f32 %v2408, %v2399
      %v2411 = vmul.f32 %v2409, %v2401
      %v2412 = vsub.f32 %v2410, 0.28449672
      %v2413 = vsub.f32 %v2411, 0.28449672
      %v2414 = vmul.f32 %v2412, %v2399
      %v2415 = vmul.f32 %v2413, %v2401
      %v2416 = vadd.f32 %v2414, 0.2548296
      %v2417 = vadd.f32 %v2415, 0.2548296
      %v2418 = vmul.f32 %v2416, %v2399
      %v2419 = vmul.f32 %v2417, %v2401
      %v2420 = vsub.f32 0.0, %v2390
      %v2421 = vsub.f32 0.0, %v2391
      %v2422 = vmul.f32 %v2420, %v2390
      %v2423 = vmul.f32 %v2421, %v2391
      %v2424 = vmul.f32 %v2422, 1.442695
      %v2425 = vpow.pop %v2424
      %v2426 = vmul.f32 %v2423, 1.442695
      %v2427 = vpow.pop %v2426
      %v2428 = vmul.f32 %v2418, %v2425
      %v2429 = vmul.f32 %v2419, %v2427
      %v2430 = vsub.f32 1.0, %v2428
      %v2431 = vsub.f32 1.0, %v2429
      %vm2432 = vcmp.ge.f32.partialorder %v2390, 0.0
      %vm2433 = vcmp.ge.f32.partialorder %v2391, 0.0
      %v2434 = vsub.f32 0.0, %v2430
      %v2435 = vsub.f32 0.0, %v2431
      %v2436 = vsel %vm2432, %v2430, %v2434
      %v2437 = vsel %vm2433, %v2431, %v2435
      %v2438 = vadd.f32 %v2436, 1.0
      %v2439 = vadd.f32 %v2437, 1.0
      %v2440 = vmul.f32 %v2388, %v2438
      %v2441 = vmul.f32 %v2389, %v2439
      %v2442 = vld [vmem:[%s874] sm:$0xff]
      %v2443 = vld [vmem:[%s874 + $0x8] sm:$0xff]
      %v2444 = vld [vmem:[%s874 + $0x10] sm:$0xff]
      %v2445 = vld [vmem:[%s874 + $0x18] sm:$0xff]
      %v2446 = vld [vmem:[%s874 + $0x20] sm:$0xff]
      %v2447 = vld [vmem:[%s874 + $0x28] sm:$0xff]
      %v2448 = vld [vmem:[%s874 + $0x30] sm:$0xff]
      %v2449 = vld [vmem:[%s874 + $0x38] sm:$0xff]
      %v2450 = vld [vmem:[%s874 + $0x40] sm:$0xff]
      %v2451 = vld [vmem:[%s874 + $0x48] sm:$0xff]
      %v2452 = vld [vmem:[%s874 + $0x50] sm:$0xff]
      %v2453 = vld [vmem:[%s874 + $0x58] sm:$0xff]
      %v2454 = vld [vmem:[%s874 + $0x60] sm:$0xff]
      %v2455 = vld [vmem:[%s874 + $0x68] sm:$0xff]
      %v2456 = vld [vmem:[%s874 + $0x70] sm:$0xff]
      %v2457 = vld [vmem:[%s874 + $0x78] sm:$0xff]
      %v2458 = vld [vmem:[%s874 + $0x80] sm:$0xff]
      %v2459 = vld [vmem:[%s874 + $0x88] sm:$0xff]
      %v2460 = vld [vmem:[%s874 + $0x90] sm:$0xff]
      %v2461 = vld [vmem:[%s874 + $0x98] sm:$0xff]
      %v2462 = vld [vmem:[%s874 + $0xa0] sm:$0xff]
      %v2463 = vld [vmem:[%s874 + $0xa8] sm:$0xff]
      %v2464 = vld [vmem:[%s874 + $0xb0] sm:$0xff]
      %v2465 = vld [vmem:[%s874 + $0xb8] sm:$0xff]
      %v2466 = vld [vmem:[%s874 + $0xc0] sm:$0xff]
      %v2467 = vld [vmem:[%s874 + $0xc8] sm:$0xff]
      %v2468 = vld [vmem:[%s874 + $0xd0] sm:$0xff]
      %v2469 = vld [vmem:[%s874 + $0xd8] sm:$0xff]
      %v2470 = vld [vmem:[%s874 + $0xe0] sm:$0xff]
      %v2471 = vld [vmem:[%s874 + $0xe8] sm:$0xff]
      %v2472 = vld [vmem:[%s874 + $0xf0] sm:$0xff]
      %v2473 = vld [vmem:[%s874 + $0xf8] sm:$0xff]
      %v2474 = vpack.c.bf16 %v2440, %v2440
      %v2475 = vpack.c.bf16 %v2441, %v2441
      %v2476 = vpack.c.bf16 %v2443, %v2442
      %v2477 = vpack.c.bf16 %v2445, %v2444
      %v2478 = vpack.c.bf16 %v2447, %v2446
      %v2479 = vpack.c.bf16 %v2449, %v2448
      %v2480 = vpack.c.bf16 %v2451, %v2450
      %v2481 = vpack.c.bf16 %v2453, %v2452
      %v2482 = vpack.c.bf16 %v2455, %v2454
      %v2483 = vpack.c.bf16 %v2457, %v2456
      %v2484 = vpack.c.bf16 %v2459, %v2458
      %v2485 = vpack.c.bf16 %v2461, %v2460
      %v2486 = vpack.c.bf16 %v2463, %v2462
      %v2487 = vpack.c.bf16 %v2465, %v2464
      %v2488 = vpack.c.bf16 %v2467, %v2466
      %v2489 = vpack.c.bf16 %v2469, %v2468
      %v2490 = vpack.c.bf16 %v2471, %v2470
      %v2491 = vpack.c.bf16 %v2473, %v2472
      %v2492 = vld [vmem:[%s877] sm:$0x1]
      %v2494 = vlaneseq
      %v2495 = vshrl.u32 %v2494, 7
      %v2496 = vsub.s32 0, %v2495
      %v2497 = vrot.slane %v2492, %v2496
      %2499 = vmatprep.subr.bf16.mxu0 0
      %2500 = vmatpush1.bf16.msra.mxu0 %v2476
      %2501 = vmatprep.subr.bf16.mxu0 0
      %2502 = vmatpush1.bf16.msra.mxu0 %v2477
      %2503 = vmatprep.subr.bf16.mxu0 0
      %2504 = vmatpush1.bf16.msra.mxu0 %v2478
      %2505 = vmatprep.subr.bf16.mxu0 0
      %2506 = vmatpush1.bf16.msra.mxu0 %v2479
      %2507 = vmatprep.subr.bf16.mxu0 0
      %2508 = vmatpush1.bf16.msra.mxu0 %v2480
      %2509 = vmatprep.subr.bf16.mxu0 0
      %2510 = vmatpush1.bf16.msra.mxu0 %v2481
      %2511 = vmatprep.subr.bf16.mxu0 0
      %2512 = vmatpush1.bf16.msra.mxu0 %v2482
      %2513 = vmatprep.subr.bf16.mxu0 0
      %2514 = vmatpush1.bf16.msra.mxu0 %v2483
      %2515 = vmatprep.subr.bf16.mxu0 0
      %2516 = vmatpush1.bf16.msra.mxu0 %v2484
      %2517 = vmatprep.subr.bf16.mxu0 0
      %2518 = vmatpush1.bf16.msra.mxu0 %v2485
      %2519 = vmatprep.subr.bf16.mxu0 0
      %2520 = vmatpush1.bf16.msra.mxu0 %v2486
      %2521 = vmatprep.subr.bf16.mxu0 0
      %2522 = vmatpush1.bf16.msra.mxu0 %v2487
      %2523 = vmatprep.subr.bf16.mxu0 0
      %2524 = vmatpush1.bf16.msra.mxu0 %v2488
      %2525 = vmatprep.subr.bf16.mxu0 0
      %2526 = vmatpush1.bf16.msra.mxu0 %v2489
      %2527 = vmatprep.subr.bf16.mxu0 0
      %2528 = vmatpush1.bf16.msra.mxu0 %v2490
      %2529 = vmatprep.subr.bf16.mxu0 0
      %2530 = vmatpush1.bf16.msra.mxu0 %v2491
      %2531 = vmatprep.mubr.bf16.mxu0 %v2475
      %2532 = vmatmul.mubr.bf16.gmra.mrb[0].mxu0 %v2474
      %v2533 = vpop.f32.mrb[0].mxu0
      %v2534 = vadd.f32 %v2497, %v2533
      %v2535 = vpop.f32.mrb[0].mxu0
      %v2536 = vpop.f32.mrb[0].mxu0
      %v2537 = vpop.f32.mrb[0].mxu0
      %2538 = vdwg.mxu0
      %v2539 = vadd.f32 %v2277, %v2534
      %2540 = vst.msk [vmem:[#allocation2] sm:$0x1f] %vm893, %v2539
      %p2541 = scmp.eq.s32.totalorder %s35, 1
      // Predicated region
      $region101: #{vl_transformer_itm_forward.4} parent=95 // pred_check
        %p2542 = pneg %p2541
      $region102: #{vl_transformer_itm_forward.4} parent=95 // pred_check_branch
        %2544 = sbr.rel (%p2542) target = $region104
      $region103: #{vl_transformer_itm_forward.4} parent=95 // pred_region
        %v2545 = vld [vmem:[%s17] sm:$0x1]
        %v2546 = vld [vmem:[%s18] sm:$0x1]
        %v2547 = vsel %vm893, %v2539, 0.0
        %2548 = vadd.xlane.f32.xlu0 %v2547
        %v2549 = vpop.xlane.xlu0 %2548
        %v2550 = vmul.f32 %v2549, %v897
        %v2551 = vsub.f32 %v2539, %v2550
        %v2552 = vmul.f32 %v2551, %v2551
        %v2553 = vsel %vm893, %v2552, 0.0
        %2554 = vadd.xlane.f32.xlu0 %v2553
        %v2555 = vpop.xlane.xlu0 %2554
        %v2556 = vmul.f32 %v2555, %v897
        %v2557 = vadd.f32 %v2556, 1e-06
        %v2558 = vrsqrt.pop %v2557
        %v2559 = vmul.f32 %v2551, %v2558
        %v2561 = vlaneseq
        %v2562 = vshrl.u32 %v2561, 7
        %v2563 = vsub.s32 0, %v2562
        %v2564 = vrot.slane %v2545, %v2563
        %v2566 = vmul.f32 %v2559, %v2564
        %v2568 = vlaneseq
        %v2569 = vshrl.u32 %v2568, 7
        %v2570 = vsub.s32 0, %v2569
        %v2571 = vrot.slane %v2546, %v2570
        %v2573 = vadd.f32 %v2566, %v2571
        %2574 = vst.msk [vmem:[%s881] sm:$0x1f] %vm893, %v2573
      $region104: #{vl_transformer_itm_forward.4} parent=95 // pred_fallthru
        _
      %p2575 = scmp.lt.s32.totalorder %s34, 1
      %s2576 = scalar_select %p2575, %s34, 1
      %s2577 = smul.addr %s2576, 8
      %s2578 = scalar_lea.vmem %s19, %s2577
      // Predicated region
      $region105: #{vl_transformer_itm_forward.4} parent=95 // pred_check
        %p2579 = pneg %p544
      $region106: #{vl_transformer_itm_forward.4} parent=95 // pred_check_branch
        %2581 = sbr.rel (%p2579) target = $region108
      $region107: #{vl_transformer_itm_forward.4} parent=95 // pred_region
        _
      $region108: #{vl_transformer_itm_forward.4} parent=95 // pred_fallthru
        _
    $region96: #{vl_transformer_itm_forward.4} parent=5 // pred_fallthru
      _
    %p2582 = scmp.le.s32.totalorder 2, %s25
    // Predicated region
    $region109: #{vl_transformer_itm_forward.4} parent=5 // pred_check
      %p2583 = pneg %p2582
    $region110: #{vl_transformer_itm_forward.4} parent=5 // pred_check_branch
      %2585 = sbr.rel (%p2583) target = $region112
    $region111: #{vl_transformer_itm_forward.4} parent=5 // pred_region
      %s2586 = ssub.s32 %s25, 2
      // Predicated region
      $region113: #{vl_transformer_itm_forward.4} parent=111 // pred_check
        %p2587 = pneg %p550
      $region114: #{vl_transformer_itm_forward.4} parent=111 // pred_check_branch
        %2589 = sbr.rel (%p2587) target = $region116
      $region115: #{vl_transformer_itm_forward.4} parent=111 // pred_region
        %p2590 = scmp.lt.s32.totalorder %s36, 1
        %s2591 = scalar_select %p2590, %s36, 1
        %s2592 = smul.addr %s2591, 8
        %s2593 = scalar_lea.vmem %s19, %s2592
      $region116: #{vl_transformer_itm_forward.4} parent=111 // pred_fallthru
        _
    $region112: #{vl_transformer_itm_forward.4} parent=5 // pred_fallthru
      _
  $region6: #{vl_transformer_itm_forward.4} parent=0 // loop_footer
    %s29 = sadd.s32 1, %s25
  $region7: #{vl_transformer_itm_forward.4} parent=0 // loop_footer_branch
    %24 = sbr.rel target = $region3
  $region8: #{vl_transformer_itm_forward.4} parent=0 // loop_exit
    _

// kernel: vl_transformer_itm_forward.5
$region0: #{vl_transformer_itm_forward.5}
  #allocation0 [shape = 'u32[]', space=smem, size = 0x4, offset = 0x4, fixed_abs, tag = 'smem constant byte address 0x4 - core index']
  #allocation1 [shape = 'u32[144,128]{1,0:T(1,128)}', space=vmem, size = 0x12000, scoped, tag = 'internal scratch']
  #allocation2 [shape = 'f32[8,64]{1,0:T(8,128)}', space=vmem, size = 0x1000, scoped, tag = 'scratch operand']
  %s0 = inlined_call_operand.smem [shape: u32[32], index: -1, kind: input, shape index: {}]
  %s1 = sld [smem:[%s0]]
  %s2 = scalar_lea.smem %s0, 1
  %s3 = sld [smem:[%s2]]
  %s4 = scalar_lea.smem %s0, 2
  %s5 = sld [smem:[%s4]]
  %s6 = scalar_lea.smem %s0, 3
  %s7 = sld [smem:[%s6]]
  %s8 = scalar_lea.smem %s0, 4
  %s9 = sld [smem:[%s8]]
  %s10 = scalar_lea.smem %s0, 5
  %s11 = sld [smem:[%s10]]
  %s12 = scalar_lea.smem %s0, 6
  %s13 = sld [smem:[%s12]]
  %s14 = scalar_lea.smem %s0, 7
  %s15 = sld [smem:[%s14]]
  %s16 = scalar_lea.smem %s0, 8
  %s17 = sld [smem:[%s16]]
  %s18 = scalar_lea.smem %s0, 9
  %s19 = sld [smem:[%s18]]
  %s20 = scalar_lea.smem %s0, 10
  %s21 = sld [smem:[%s20]]
  %s22 = scalar_lea.smem %s0, 11
  %s23 = sld [smem:[%s22]]
  %s24 = scalar_lea.smem %s0, 12
  %s25 = sld [smem:[%s24]]
  %s26 = scalar_lea.smem %s0, 13
  %s27 = sld [smem:[%s26]]
  %s28 = scalar_lea.smem %s0, 14
  %s29 = sld [smem:[%s28]]
  %s30 = scalar_lea.smem %s0, 15
  %s31 = sld [smem:[%s30]]
  %s32 = scalar_lea.smem %s0, 16
  %s33 = sld [smem:[%s32]]
  %s34 = scalar_lea.smem %s0, 17
  %s35 = sld [smem:[%s34]]
  %s36 = scalar_lea.smem %s0, 18
  %s37 = sld [smem:[%s36]]
  %s38 = scalar_lea.smem %s0, 19
  %s39 = sld [smem:[%s38]]
  %s40 = scalar_lea.smem %s0, 20
  %s41 = sld [smem:[%s40]]
  %s42 = scalar_lea.smem %s0, 21
  %s43 = sld [smem:[%s42]]
  %s44 = scalar_lea.smem %s0, 22
  %s45 = sld [smem:[%s44]]
  %s46 = scalar_lea.smem %s0, 23
  %s47 = sld [smem:[%s46]]
  %s48 = scalar_lea.smem %s0, 24
  %s49 = sld [smem:[%s48]]
  %s50 = scalar_lea.smem %s0, 25
  %s51 = sld [smem:[%s50]]
  %s52 = scalar_lea.smem %s0, 26
  %s53 = sld [smem:[%s52]]
  %s54 = scalar_lea.smem %s0, 27
  %s55 = sld [smem:[%s54]]
  %s56 = scalar_lea.smem %s0, 28
  %s57 = sld [smem:[%s56]]
  %s58 = scalar_lea.smem %s0, 29
  %s59 = sld [smem:[%s58]]
  %s60 = scalar_lea.smem %s0, 30
  %s61 = sld [smem:[%s60]]
  %s62 = scalar_lea.smem %s0, 31
  %s63 = sld [smem:[%s62]]
  %s64 = sld [smem:[#allocation0]]
  $region165: #{vl_transformer_itm_forward.5} parent=0
    _
  %s66 = ssub.s32 1, %s64
  %s67 = scalar_select 0, %s66, %s64
  loop: start=0, step=1, limit=6
  $region2: #{vl_transformer_itm_forward.5} parent=0 // loop_pre_header
    _
  $region3: #{vl_transformer_itm_forward.5} parent=0 // loop_header
    %s69 = sphi 0, %s73
    %p70 = scmp.ge.s32.totalorder %s69, 6
    %s76 = sphi 0, %s88
    %s77 = sphi 0, %s84
    %s78 = sphi 0, %s76
    %s79 = sphi 0, %s77
    %s80 = sphi 0, %s78
    %s81 = sphi 0, %s79
    %s91 = sphi 0, %s93
    %s94 = sphi 0, %s91
    %s95 = sphi 0, %s94
    %s111 = sphi 0, %s95
    %s117 = sphi 0, %s119
    %s120 = sphi 0, %s117
    %s121 = sphi 0, %s120
    %s137 = sphi 0, %s121
    %s143 = sphi 0, %s145
    %s146 = sphi 0, %s143
    %s147 = sphi 0, %s146
    %s163 = sphi 0, %s147
    %s167 = sphi 0, %s167
    %s169 = sphi 0, %s167
    %s170 = sphi 0, %s169
    %s184 = sphi 0, %s170
    %s188 = sphi 0, %s188
    %s190 = sphi 0, %s188
    %s191 = sphi 0, %s190
    %s205 = sphi 0, %s191
    %s211 = sphi 0, %s213
    %s214 = sphi 0, %s211
    %s215 = sphi 0, %s214
    %s231 = sphi 0, %s215
    %s237 = sphi 0, %s239
    %s240 = sphi 0, %s237
    %s241 = sphi 0, %s240
    %s257 = sphi 0, %s241
    %s263 = sphi 0, %s265
    %s266 = sphi 0, %s263
    %s267 = sphi 0, %s266
    %s283 = sphi 0, %s267
    %s289 = sphi 0, %s291
    %s292 = sphi 0, %s289
    %s293 = sphi 0, %s292
    %s309 = sphi 0, %s293
    %s315 = sphi 0, %s317
    %s318 = sphi 0, %s315
    %s319 = sphi 0, %s318
    %s335 = sphi 0, %s319
    %s341 = sphi 0, %s343
    %s344 = sphi 0, %s341
    %s345 = sphi 0, %s344
    %s361 = sphi 0, %s345
    %s367 = sphi 0, %s369
    %s370 = sphi 0, %s367
    %s371 = sphi 0, %s370
    %s387 = sphi 0, %s371
    %s393 = sphi 0, %s395
    %s396 = sphi 0, %s393
    %s397 = sphi 0, %s396
    %s413 = sphi 0, %s397
    %s419 = sphi 0, %s421
    %s422 = sphi 0, %s419
    %s423 = sphi 0, %s422
    %s439 = sphi 0, %s423
    %s445 = sphi 0, %s447
    %s448 = sphi 0, %s445
    %s449 = sphi 0, %s448
    %s465 = sphi 0, %s449
    %s471 = sphi 0, %s473
    %s474 = sphi 0, %s471
    %s475 = sphi 0, %s474
    %s491 = sphi 0, %s475
    %s497 = sphi 0, %s499
    %s500 = sphi 0, %s497
    %s501 = sphi 0, %s500
    %s517 = sphi 0, %s501
    %s523 = sphi 0, %s525
    %s526 = sphi 0, %s523
    %s527 = sphi 0, %s526
    %s543 = sphi 0, %s527
    %s549 = sphi 0, %s551
    %s552 = sphi 0, %s549
    %s553 = sphi 0, %s552
    %s569 = sphi 0, %s553
    %s575 = sphi 0, %s577
    %s578 = sphi 0, %s575
    %s579 = sphi 0, %s578
    %s595 = sphi 0, %s579
    %s601 = sphi 0, %s603
    %s604 = sphi 0, %s601
    %s605 = sphi 0, %s604
    %s621 = sphi 0, %s605
    %s627 = sphi 0, %s629
    %s630 = sphi 0, %s627
    %s631 = sphi 0, %s630
    %s647 = sphi 0, %s631
    %s653 = sphi 0, %s655
    %s656 = sphi 0, %s653
    %s657 = sphi 0, %s656
    %s673 = sphi 0, %s657
    %s679 = sphi 0, %s681
    %s682 = sphi 0, %s679
    %s683 = sphi 0, %s682
    %s699 = sphi 0, %s683
    %s705 = sphi 0, %s707
    %s708 = sphi 0, %s705
    %s709 = sphi 0, %s708
    %s725 = sphi 0, %s709
    %s731 = sphi 0, %s733
    %s734 = sphi 0, %s731
    %s735 = sphi 0, %s734
    %s751 = sphi 0, %s735
    %s757 = sphi 0, %s759
    %s760 = sphi 0, %s757
    %s761 = sphi 0, %s760
    %s777 = sphi 0, %s761
    %s783 = sphi 0, %s785
    %s786 = sphi 0, %s783
    %s787 = sphi 0, %s786
    %s803 = sphi 0, %s787
    %s809 = sphi 0, %s811
    %s812 = sphi 0, %s809
    %s813 = sphi 0, %s812
    %s829 = sphi 0, %s813
    %s835 = sphi 0, %s837
    %s838 = sphi 0, %s835
    %s839 = sphi 0, %s838
    %s855 = sphi 0, %s839
    %s861 = sphi 0, %s863
    %s864 = sphi 0, %s861
    %s865 = sphi 0, %s864
    %s881 = sphi 0, %s865
    %s887 = sphi 0, %s889
    %s890 = sphi 0, %s887
    %s891 = sphi 0, %s890
    %s907 = sphi 0, %s891
  $region4: #{vl_transformer_itm_forward.5} parent=0 // loop_header_branch
    %72 = sbr.rel (%p70) target = $region8
  $region5: #{vl_transformer_itm_forward.5} parent=0 // loop_body
    %s74 = ssub.s32 %s69, 1
    %s75 = ssub.s32 %s69, 2
    %s82 = sadd.s32 1, %s77
    %p83 = scmp.ge.s32.totalorder %s82, 2
    %s84 = scalar_select %p83, 0, %s82
    %s85 = sadd.s32 1, %s76
    %s86 = scalar_select %p83, %s85, %s76
    %p87 = scmp.ge.s32.totalorder %s86, 2
    %s88 = scalar_select %p87, 0, %s86
    %s89 = ssub.s32 %s76, %s88
    %p90 = scmp.eq.s32.totalorder %s89, 0
    %s92 = sadd.s32 %s91, 1
    %s93 = scalar_select %p90, %s91, %s92
    %p96 = pneg %p90
    %p97 = scmp.eq.s32.totalorder %s69, 3
    %p98 = por %p96, %p97
    %p99 = scmp.ne.s32.totalorder %s91, %s94
    %p100 = scmp.eq.s32.totalorder %s69, 0
    %p101 = por %p99, %p100
    %p102 = scmp.ne.s32.totalorder %s91, %s94
    %p103 = scmp.eq.s32.totalorder %s74, 3
    %p104 = por %p102, %p103
    %p105 = scmp.ne.s32.totalorder %s94, %s95
    %p106 = scmp.eq.s32.totalorder %s74, 0
    %p107 = por %p105, %p106
    %p108 = scmp.ne.s32.totalorder %s94, %s95
    %p109 = scmp.eq.s32.totalorder %s75, 3
    %p110 = por %p108, %p109
    %p112 = scmp.ne.s32.totalorder %s95, %s111
    %p113 = scmp.eq.s32.totalorder %s75, 0
    %p114 = por %p112, %p113
    %s115 = ssub.s32 %s76, %s88
    %p116 = scmp.eq.s32.totalorder %s115, 0
    %s118 = sadd.s32 %s117, 1
    %s119 = scalar_select %p116, %s117, %s118
    %p122 = pneg %p116
    %p123 = scmp.eq.s32.totalorder %s69, 3
    %p124 = por %p122, %p123
    %p125 = scmp.ne.s32.totalorder %s117, %s120
    %p126 = scmp.eq.s32.totalorder %s69, 0
    %p127 = por %p125, %p126
    %p128 = scmp.ne.s32.totalorder %s117, %s120
    %p129 = scmp.eq.s32.totalorder %s74, 3
    %p130 = por %p128, %p129
    %p131 = scmp.ne.s32.totalorder %s120, %s121
    %p132 = scmp.eq.s32.totalorder %s74, 0
    %p133 = por %p131, %p132
    %p134 = scmp.ne.s32.totalorder %s120, %s121
    %p135 = scmp.eq.s32.totalorder %s75, 3
    %p136 = por %p134, %p135
    %p138 = scmp.ne.s32.totalorder %s121, %s137
    %p139 = scmp.eq.s32.totalorder %s75, 0
    %p140 = por %p138, %p139
    %s141 = ssub.s32 %s76, %s88
    %p142 = scmp.eq.s32.totalorder %s141, 0
    %s144 = sadd.s32 %s143, 1
    %s145 = scalar_select %p142, %s143, %s144
    %p148 = pneg %p142
    %p149 = scmp.eq.s32.totalorder %s69, 3
    %p150 = por %p148, %p149
    %p151 = scmp.ne.s32.totalorder %s143, %s146
    %p152 = scmp.eq.s32.totalorder %s69, 0
    %p153 = por %p151, %p152
    %p154 = scmp.ne.s32.totalorder %s143, %s146
    %p155 = scmp.eq.s32.totalorder %s74, 3
    %p156 = por %p154, %p155
    %p157 = scmp.ne.s32.totalorder %s146, %s147
    %p158 = scmp.eq.s32.totalorder %s74, 0
    %p159 = por %p157, %p158
    %p160 = scmp.ne.s32.totalorder %s146, %s147
    %p161 = scmp.eq.s32.totalorder %s75, 3
    %p162 = por %p160, %p161
    %p164 = scmp.ne.s32.totalorder %s147, %s163
    %p165 = scmp.eq.s32.totalorder %s75, 0
    %p166 = por %p164, %p165
    %s168 = sadd.s32 %s167, 1
    %p171 = scmp.eq.s32.totalorder %s69, 3
    %p172 = scmp.ne.s32.totalorder %s167, %s169
    %p173 = scmp.eq.s32.totalorder %s69, 0
    %p174 = por %p172, %p173
    %p175 = scmp.ne.s32.totalorder %s167, %s169
    %p176 = scmp.eq.s32.totalorder %s74, 3
    %p177 = por %p175, %p176
    %p178 = scmp.ne.s32.totalorder %s169, %s170
    %p179 = scmp.eq.s32.totalorder %s74, 0
    %p180 = por %p178, %p179
    %p181 = scmp.ne.s32.totalorder %s169, %s170
    %p182 = scmp.eq.s32.totalorder %s75, 3
    %p183 = por %p181, %p182
    %p185 = scmp.ne.s32.totalorder %s170, %s184
    %p186 = scmp.eq.s32.totalorder %s75, 0
    %p187 = por %p185, %p186
    %s189 = sadd.s32 %s188, 1
    %p192 = scmp.eq.s32.totalorder %s69, 3
    %p193 = scmp.ne.s32.totalorder %s188, %s190
    %p194 = scmp.eq.s32.totalorder %s69, 0
    %p195 = por %p193, %p194
    %p196 = scmp.ne.s32.totalorder %s188, %s190
    %p197 = scmp.eq.s32.totalorder %s74, 3
    %p198 = por %p196, %p197
    %p199 = scmp.ne.s32.totalorder %s190, %s191
    %p200 = scmp.eq.s32.totalorder %s74, 0
    %p201 = por %p199, %p200
    %p202 = scmp.ne.s32.totalorder %s190, %s191
    %p203 = scmp.eq.s32.totalorder %s75, 3
    %p204 = por %p202, %p203
    %p206 = scmp.ne.s32.totalorder %s191, %s205
    %p207 = scmp.eq.s32.totalorder %s75, 0
    %p208 = por %p206, %p207
    %s209 = ssub.s32 %s77, %s84
    %p210 = scmp.eq.s32.totalorder %s209, 0
    %s212 = sadd.s32 %s211, 1
    %s213 = scalar_select %p210, %s211, %s212
    %p216 = pneg %p210
    %p217 = scmp.eq.s32.totalorder %s69, 3
    %p218 = por %p216, %p217
    %p219 = scmp.ne.s32.totalorder %s211, %s214
    %p220 = scmp.eq.s32.totalorder %s69, 0
    %p221 = por %p219, %p220
    %p222 = scmp.ne.s32.totalorder %s211, %s214
    %p223 = scmp.eq.s32.totalorder %s74, 3
    %p224 = por %p222, %p223
    %p225 = scmp.ne.s32.totalorder %s214, %s215
    %p226 = scmp.eq.s32.totalorder %s74, 0
    %p227 = por %p225, %p226
    %p228 = scmp.ne.s32.totalorder %s214, %s215
    %p229 = scmp.eq.s32.totalorder %s75, 3
    %p230 = por %p228, %p229
    %p232 = scmp.ne.s32.totalorder %s215, %s231
    %p233 = scmp.eq.s32.totalorder %s75, 0
    %p234 = por %p232, %p233
    %s235 = ssub.s32 %s77, %s84
    %p236 = scmp.eq.s32.totalorder %s235, 0
    %s238 = sadd.s32 %s237, 1
    %s239 = scalar_select %p236, %s237, %s238
    %p242 = pneg %p236
    %p243 = scmp.eq.s32.totalorder %s69, 3
    %p244 = por %p242, %p243
    %p245 = scmp.ne.s32.totalorder %s237, %s240
    %p246 = scmp.eq.s32.totalorder %s69, 0
    %p247 = por %p245, %p246
    %p248 = scmp.ne.s32.totalorder %s237, %s240
    %p249 = scmp.eq.s32.totalorder %s74, 3
    %p250 = por %p248, %p249
    %p251 = scmp.ne.s32.totalorder %s240, %s241
    %p252 = scmp.eq.s32.totalorder %s74, 0
    %p253 = por %p251, %p252
    %p254 = scmp.ne.s32.totalorder %s240, %s241
    %p255 = scmp.eq.s32.totalorder %s75, 3
    %p256 = por %p254, %p255
    %p258 = scmp.ne.s32.totalorder %s241, %s257
    %p259 = scmp.eq.s32.totalorder %s75, 0
    %p260 = por %p258, %p259
    %s261 = ssub.s32 %s77, %s84
    %p262 = scmp.eq.s32.totalorder %s261, 0
    %s264 = sadd.s32 %s263, 1
    %s265 = scalar_select %p262, %s263, %s264
    %p268 = pneg %p262
    %p269 = scmp.eq.s32.totalorder %s69, 3
    %p270 = por %p268, %p269
    %p271 = scmp.ne.s32.totalorder %s263, %s266
    %p272 = scmp.eq.s32.totalorder %s69, 0
    %p273 = por %p271, %p272
    %p274 = scmp.ne.s32.totalorder %s263, %s266
    %p275 = scmp.eq.s32.totalorder %s74, 3
    %p276 = por %p274, %p275
    %p277 = scmp.ne.s32.totalorder %s266, %s267
    %p278 = scmp.eq.s32.totalorder %s74, 0
    %p279 = por %p277, %p278
    %p280 = scmp.ne.s32.totalorder %s266, %s267
    %p281 = scmp.eq.s32.totalorder %s75, 3
    %p282 = por %p280, %p281
    %p284 = scmp.ne.s32.totalorder %s267, %s283
    %p285 = scmp.eq.s32.totalorder %s75, 0
    %p286 = por %p284, %p285
    %s287 = ssub.s32 %s77, %s84
    %p288 = scmp.eq.s32.totalorder %s287, 0
    %s290 = sadd.s32 %s289, 1
    %s291 = scalar_select %p288, %s289, %s290
    %p294 = pneg %p288
    %p295 = scmp.eq.s32.totalorder %s69, 3
    %p296 = por %p294, %p295
    %p297 = scmp.ne.s32.totalorder %s289, %s292
    %p298 = scmp.eq.s32.totalorder %s69, 0
    %p299 = por %p297, %p298
    %p300 = scmp.ne.s32.totalorder %s289, %s292
    %p301 = scmp.eq.s32.totalorder %s74, 3
    %p302 = por %p300, %p301
    %p303 = scmp.ne.s32.totalorder %s292, %s293
    %p304 = scmp.eq.s32.totalorder %s74, 0
    %p305 = por %p303, %p304
    %p306 = scmp.ne.s32.totalorder %s292, %s293
    %p307 = scmp.eq.s32.totalorder %s75, 3
    %p308 = por %p306, %p307
    %p310 = scmp.ne.s32.totalorder %s293, %s309
    %p311 = scmp.eq.s32.totalorder %s75, 0
    %p312 = por %p310, %p311
    %s313 = ssub.s32 %s77, %s84
    %p314 = scmp.eq.s32.totalorder %s313, 0
    %s316 = sadd.s32 %s315, 1
    %s317 = scalar_select %p314, %s315, %s316
    %p320 = pneg %p314
    %p321 = scmp.eq.s32.totalorder %s69, 3
    %p322 = por %p320, %p321
    %p323 = scmp.ne.s32.totalorder %s315, %s318
    %p324 = scmp.eq.s32.totalorder %s69, 0
    %p325 = por %p323, %p324
    %p326 = scmp.ne.s32.totalorder %s315, %s318
    %p327 = scmp.eq.s32.totalorder %s74, 3
    %p328 = por %p326, %p327
    %p329 = scmp.ne.s32.totalorder %s318, %s319
    %p330 = scmp.eq.s32.totalorder %s74, 0
    %p331 = por %p329, %p330
    %p332 = scmp.ne.s32.totalorder %s318, %s319
    %p333 = scmp.eq.s32.totalorder %s75, 3
    %p334 = por %p332, %p333
    %p336 = scmp.ne.s32.totalorder %s319, %s335
    %p337 = scmp.eq.s32.totalorder %s75, 0
    %p338 = por %p336, %p337
    %s339 = ssub.s32 %s77, %s84
    %p340 = scmp.eq.s32.totalorder %s339, 0
    %s342 = sadd.s32 %s341, 1
    %s343 = scalar_select %p340, %s341, %s342
    %p346 = pneg %p340
    %p347 = scmp.eq.s32.totalorder %s69, 3
    %p348 = por %p346, %p347
    %p349 = scmp.ne.s32.totalorder %s341, %s344
    %p350 = scmp.eq.s32.totalorder %s69, 0
    %p351 = por %p349, %p350
    %p352 = scmp.ne.s32.totalorder %s341, %s344
    %p353 = scmp.eq.s32.totalorder %s74, 3
    %p354 = por %p352, %p353
    %p355 = scmp.ne.s32.totalorder %s344, %s345
    %p356 = scmp.eq.s32.totalorder %s74, 0
    %p357 = por %p355, %p356
    %p358 = scmp.ne.s32.totalorder %s344, %s345
    %p359 = scmp.eq.s32.totalorder %s75, 3
    %p360 = por %p358, %p359
    %p362 = scmp.ne.s32.totalorder %s345, %s361
    %p363 = scmp.eq.s32.totalorder %s75, 0
    %p364 = por %p362, %p363
    %s365 = ssub.s32 %s77, %s84
    %p366 = scmp.eq.s32.totalorder %s365, 0
    %s368 = sadd.s32 %s367, 1
    %s369 = scalar_select %p366, %s367, %s368
    %p372 = pneg %p366
    %p373 = scmp.eq.s32.totalorder %s69, 3
    %p374 = por %p372, %p373
    %p375 = scmp.ne.s32.totalorder %s367, %s370
    %p376 = scmp.eq.s32.totalorder %s69, 0
    %p377 = por %p375, %p376
    %p378 = scmp.ne.s32.totalorder %s367, %s370
    %p379 = scmp.eq.s32.totalorder %s74, 3
    %p380 = por %p378, %p379
    %p381 = scmp.ne.s32.totalorder %s370, %s371
    %p382 = scmp.eq.s32.totalorder %s74, 0
    %p383 = por %p381, %p382
    %p384 = scmp.ne.s32.totalorder %s370, %s371
    %p385 = scmp.eq.s32.totalorder %s75, 3
    %p386 = por %p384, %p385
    %p388 = scmp.ne.s32.totalorder %s371, %s387
    %p389 = scmp.eq.s32.totalorder %s75, 0
    %p390 = por %p388, %p389
    %s391 = ssub.s32 %s77, %s84
    %p392 = scmp.eq.s32.totalorder %s391, 0
    %s394 = sadd.s32 %s393, 1
    %s395 = scalar_select %p392, %s393, %s394
    %p398 = pneg %p392
    %p399 = scmp.eq.s32.totalorder %s69, 3
    %p400 = por %p398, %p399
    %p401 = scmp.ne.s32.totalorder %s393, %s396
    %p402 = scmp.eq.s32.totalorder %s69, 0
    %p403 = por %p401, %p402
    %p404 = scmp.ne.s32.totalorder %s393, %s396
    %p405 = scmp.eq.s32.totalorder %s74, 3
    %p406 = por %p404, %p405
    %p407 = scmp.ne.s32.totalorder %s396, %s397
    %p408 = scmp.eq.s32.totalorder %s74, 0
    %p409 = por %p407, %p408
    %p410 = scmp.ne.s32.totalorder %s396, %s397
    %p411 = scmp.eq.s32.totalorder %s75, 3
    %p412 = por %p410, %p411
    %p414 = scmp.ne.s32.totalorder %s397, %s413
    %p415 = scmp.eq.s32.totalorder %s75, 0
    %p416 = por %p414, %p415
    %s417 = ssub.s32 %s77, %s84
    %p418 = scmp.eq.s32.totalorder %s417, 0
    %s420 = sadd.s32 %s419, 1
    %s421 = scalar_select %p418, %s419, %s420
    %p424 = pneg %p418
    %p425 = scmp.eq.s32.totalorder %s69, 3
    %p426 = por %p424, %p425
    %p427 = scmp.ne.s32.totalorder %s419, %s422
    %p428 = scmp.eq.s32.totalorder %s69, 0
    %p429 = por %p427, %p428
    %p430 = scmp.ne.s32.totalorder %s419, %s422
    %p431 = scmp.eq.s32.totalorder %s74, 3
    %p432 = por %p430, %p431
    %p433 = scmp.ne.s32.totalorder %s422, %s423
    %p434 = scmp.eq.s32.totalorder %s74, 0
    %p435 = por %p433, %p434
    %p436 = scmp.ne.s32.totalorder %s422, %s423
    %p437 = scmp.eq.s32.totalorder %s75, 3
    %p438 = por %p436, %p437
    %p440 = scmp.ne.s32.totalorder %s423, %s439
    %p441 = scmp.eq.s32.totalorder %s75, 0
    %p442 = por %p440, %p441
    %s443 = ssub.s32 %s77, %s84
    %p444 = scmp.eq.s32.totalorder %s443, 0
    %s446 = sadd.s32 %s445, 1
    %s447 = scalar_select %p444, %s445, %s446
    %p450 = pneg %p444
    %p451 = scmp.eq.s32.totalorder %s69, 3
    %p452 = por %p450, %p451
    %p453 = scmp.ne.s32.totalorder %s445, %s448
    %p454 = scmp.eq.s32.totalorder %s69, 0
    %p455 = por %p453, %p454
    %p456 = scmp.ne.s32.totalorder %s445, %s448
    %p457 = scmp.eq.s32.totalorder %s74, 3
    %p458 = por %p456, %p457
    %p459 = scmp.ne.s32.totalorder %s448, %s449
    %p460 = scmp.eq.s32.totalorder %s74, 0
    %p461 = por %p459, %p460
    %p462 = scmp.ne.s32.totalorder %s448, %s449
    %p463 = scmp.eq.s32.totalorder %s75, 3
    %p464 = por %p462, %p463
    %p466 = scmp.ne.s32.totalorder %s449, %s465
    %p467 = scmp.eq.s32.totalorder %s75, 0
    %p468 = por %p466, %p467
    %s469 = ssub.s32 %s77, %s84
    %p470 = scmp.eq.s32.totalorder %s469, 0
    %s472 = sadd.s32 %s471, 1
    %s473 = scalar_select %p470, %s471, %s472
    %p476 = pneg %p470
    %p477 = scmp.eq.s32.totalorder %s69, 3
    %p478 = por %p476, %p477
    %p479 = scmp.ne.s32.totalorder %s471, %s474
    %p480 = scmp.eq.s32.totalorder %s69, 0
    %p481 = por %p479, %p480
    %p482 = scmp.ne.s32.totalorder %s471, %s474
    %p483 = scmp.eq.s32.totalorder %s74, 3
    %p484 = por %p482, %p483
    %p485 = scmp.ne.s32.totalorder %s474, %s475
    %p486 = scmp.eq.s32.totalorder %s74, 0
    %p487 = por %p485, %p486
    %p488 = scmp.ne.s32.totalorder %s474, %s475
    %p489 = scmp.eq.s32.totalorder %s75, 3
    %p490 = por %p488, %p489
    %p492 = scmp.ne.s32.totalorder %s475, %s491
    %p493 = scmp.eq.s32.totalorder %s75, 0
    %p494 = por %p492, %p493
    %s495 = ssub.s32 %s77, %s84
    %p496 = scmp.eq.s32.totalorder %s495, 0
    %s498 = sadd.s32 %s497, 1
    %s499 = scalar_select %p496, %s497, %s498
    %p502 = pneg %p496
    %p503 = scmp.eq.s32.totalorder %s69, 3
    %p504 = por %p502, %p503
    %p505 = scmp.ne.s32.totalorder %s497, %s500
    %p506 = scmp.eq.s32.totalorder %s69, 0
    %p507 = por %p505, %p506
    %p508 = scmp.ne.s32.totalorder %s497, %s500
    %p509 = scmp.eq.s32.totalorder %s74, 3
    %p510 = por %p508, %p509
    %p511 = scmp.ne.s32.totalorder %s500, %s501
    %p512 = scmp.eq.s32.totalorder %s74, 0
    %p513 = por %p511, %p512
    %p514 = scmp.ne.s32.totalorder %s500, %s501
    %p515 = scmp.eq.s32.totalorder %s75, 3
    %p516 = por %p514, %p515
    %p518 = scmp.ne.s32.totalorder %s501, %s517
    %p519 = scmp.eq.s32.totalorder %s75, 0
    %p520 = por %p518, %p519
    %s521 = ssub.s32 %s77, %s84
    %p522 = scmp.eq.s32.totalorder %s521, 0
    %s524 = sadd.s32 %s523, 1
    %s525 = scalar_select %p522, %s523, %s524
    %p528 = pneg %p522
    %p529 = scmp.eq.s32.totalorder %s69, 3
    %p530 = por %p528, %p529
    %p531 = scmp.ne.s32.totalorder %s523, %s526
    %p532 = scmp.eq.s32.totalorder %s69, 0
    %p533 = por %p531, %p532
    %p534 = scmp.ne.s32.totalorder %s523, %s526
    %p535 = scmp.eq.s32.totalorder %s74, 3
    %p536 = por %p534, %p535
    %p537 = scmp.ne.s32.totalorder %s526, %s527
    %p538 = scmp.eq.s32.totalorder %s74, 0
    %p539 = por %p537, %p538
    %p540 = scmp.ne.s32.totalorder %s526, %s527
    %p541 = scmp.eq.s32.totalorder %s75, 3
    %p542 = por %p540, %p541
    %p544 = scmp.ne.s32.totalorder %s527, %s543
    %p545 = scmp.eq.s32.totalorder %s75, 0
    %p546 = por %p544, %p545
    %s547 = ssub.s32 %s77, %s84
    %p548 = scmp.eq.s32.totalorder %s547, 0
    %s550 = sadd.s32 %s549, 1
    %s551 = scalar_select %p548, %s549, %s550
    %p554 = pneg %p548
    %p555 = scmp.eq.s32.totalorder %s69, 3
    %p556 = por %p554, %p555
    %p557 = scmp.ne.s32.totalorder %s549, %s552
    %p558 = scmp.eq.s32.totalorder %s69, 0
    %p559 = por %p557, %p558
    %p560 = scmp.ne.s32.totalorder %s549, %s552
    %p561 = scmp.eq.s32.totalorder %s74, 3
    %p562 = por %p560, %p561
    %p563 = scmp.ne.s32.totalorder %s552, %s553
    %p564 = scmp.eq.s32.totalorder %s74, 0
    %p565 = por %p563, %p564
    %p566 = scmp.ne.s32.totalorder %s552, %s553
    %p567 = scmp.eq.s32.totalorder %s75, 3
    %p568 = por %p566, %p567
    %p570 = scmp.ne.s32.totalorder %s553, %s569
    %p571 = scmp.eq.s32.totalorder %s75, 0
    %p572 = por %p570, %p571
    %s573 = ssub.s32 %s77, %s84
    %p574 = scmp.eq.s32.totalorder %s573, 0
    %s576 = sadd.s32 %s575, 1
    %s577 = scalar_select %p574, %s575, %s576
    %p580 = pneg %p574
    %p581 = scmp.eq.s32.totalorder %s69, 3
    %p582 = por %p580, %p581
    %p583 = scmp.ne.s32.totalorder %s575, %s578
    %p584 = scmp.eq.s32.totalorder %s69, 0
    %p585 = por %p583, %p584
    %p586 = scmp.ne.s32.totalorder %s575, %s578
    %p587 = scmp.eq.s32.totalorder %s74, 3
    %p588 = por %p586, %p587
    %p589 = scmp.ne.s32.totalorder %s578, %s579
    %p590 = scmp.eq.s32.totalorder %s74, 0
    %p591 = por %p589, %p590
    %p592 = scmp.ne.s32.totalorder %s578, %s579
    %p593 = scmp.eq.s32.totalorder %s75, 3
    %p594 = por %p592, %p593
    %p596 = scmp.ne.s32.totalorder %s579, %s595
    %p597 = scmp.eq.s32.totalorder %s75, 0
    %p598 = por %p596, %p597
    %s599 = ssub.s32 %s77, %s84
    %p600 = scmp.eq.s32.totalorder %s599, 0
    %s602 = sadd.s32 %s601, 1
    %s603 = scalar_select %p600, %s601, %s602
    %p606 = pneg %p600
    %p607 = scmp.eq.s32.totalorder %s69, 3
    %p608 = por %p606, %p607
    %p609 = scmp.ne.s32.totalorder %s601, %s604
    %p610 = scmp.eq.s32.totalorder %s69, 0
    %p611 = por %p609, %p610
    %p612 = scmp.ne.s32.totalorder %s601, %s604
    %p613 = scmp.eq.s32.totalorder %s74, 3
    %p614 = por %p612, %p613
    %p615 = scmp.ne.s32.totalorder %s604, %s605
    %p616 = scmp.eq.s32.totalorder %s74, 0
    %p617 = por %p615, %p616
    %p618 = scmp.ne.s32.totalorder %s604, %s605
    %p619 = scmp.eq.s32.totalorder %s75, 3
    %p620 = por %p618, %p619
    %p622 = scmp.ne.s32.totalorder %s605, %s621
    %p623 = scmp.eq.s32.totalorder %s75, 0
    %p624 = por %p622, %p623
    %s625 = ssub.s32 %s77, %s84
    %p626 = scmp.eq.s32.totalorder %s625, 0
    %s628 = sadd.s32 %s627, 1
    %s629 = scalar_select %p626, %s627, %s628
    %p632 = pneg %p626
    %p633 = scmp.eq.s32.totalorder %s69, 3
    %p634 = por %p632, %p633
    %p635 = scmp.ne.s32.totalorder %s627, %s630
    %p636 = scmp.eq.s32.totalorder %s69, 0
    %p637 = por %p635, %p636
    %p638 = scmp.ne.s32.totalorder %s627, %s630
    %p639 = scmp.eq.s32.totalorder %s74, 3
    %p640 = por %p638, %p639
    %p641 = scmp.ne.s32.totalorder %s630, %s631
    %p642 = scmp.eq.s32.totalorder %s74, 0
    %p643 = por %p641, %p642
    %p644 = scmp.ne.s32.totalorder %s630, %s631
    %p645 = scmp.eq.s32.totalorder %s75, 3
    %p646 = por %p644, %p645
    %p648 = scmp.ne.s32.totalorder %s631, %s647
    %p649 = scmp.eq.s32.totalorder %s75, 0
    %p650 = por %p648, %p649
    %s651 = ssub.s32 %s77, %s84
    %p652 = scmp.eq.s32.totalorder %s651, 0
    %s654 = sadd.s32 %s653, 1
    %s655 = scalar_select %p652, %s653, %s654
    %p658 = pneg %p652
    %p659 = scmp.eq.s32.totalorder %s69, 3
    %p660 = por %p658, %p659
    %p661 = scmp.ne.s32.totalorder %s653, %s656
    %p662 = scmp.eq.s32.totalorder %s69, 0
    %p663 = por %p661, %p662
    %p664 = scmp.ne.s32.totalorder %s653, %s656
    %p665 = scmp.eq.s32.totalorder %s74, 3
    %p666 = por %p664, %p665
    %p667 = scmp.ne.s32.totalorder %s656, %s657
    %p668 = scmp.eq.s32.totalorder %s74, 0
    %p669 = por %p667, %p668
    %p670 = scmp.ne.s32.totalorder %s656, %s657
    %p671 = scmp.eq.s32.totalorder %s75, 3
    %p672 = por %p670, %p671
    %p674 = scmp.ne.s32.totalorder %s657, %s673
    %p675 = scmp.eq.s32.totalorder %s75, 0
    %p676 = por %p674, %p675
    %s677 = ssub.s32 %s77, %s84
    %p678 = scmp.eq.s32.totalorder %s677, 0
    %s680 = sadd.s32 %s679, 1
    %s681 = scalar_select %p678, %s679, %s680
    %p684 = pneg %p678
    %p685 = scmp.eq.s32.totalorder %s69, 3
    %p686 = por %p684, %p685
    %p687 = scmp.ne.s32.totalorder %s679, %s682
    %p688 = scmp.eq.s32.totalorder %s69, 0
    %p689 = por %p687, %p688
    %p690 = scmp.ne.s32.totalorder %s679, %s682
    %p691 = scmp.eq.s32.totalorder %s74, 3
    %p692 = por %p690, %p691
    %p693 = scmp.ne.s32.totalorder %s682, %s683
    %p694 = scmp.eq.s32.totalorder %s74, 0
    %p695 = por %p693, %p694
    %p696 = scmp.ne.s32.totalorder %s682, %s683
    %p697 = scmp.eq.s32.totalorder %s75, 3
    %p698 = por %p696, %p697
    %p700 = scmp.ne.s32.totalorder %s683, %s699
    %p701 = scmp.eq.s32.totalorder %s75, 0
    %p702 = por %p700, %p701
    %s703 = ssub.s32 %s77, %s84
    %p704 = scmp.eq.s32.totalorder %s703, 0
    %s706 = sadd.s32 %s705, 1
    %s707 = scalar_select %p704, %s705, %s706
    %p710 = pneg %p704
    %p711 = scmp.eq.s32.totalorder %s69, 3
    %p712 = por %p710, %p711
    %p713 = scmp.ne.s32.totalorder %s705, %s708
    %p714 = scmp.eq.s32.totalorder %s69, 0
    %p715 = por %p713, %p714
    %p716 = scmp.ne.s32.totalorder %s705, %s708
    %p717 = scmp.eq.s32.totalorder %s74, 3
    %p718 = por %p716, %p717
    %p719 = scmp.ne.s32.totalorder %s708, %s709
    %p720 = scmp.eq.s32.totalorder %s74, 0
    %p721 = por %p719, %p720
    %p722 = scmp.ne.s32.totalorder %s708, %s709
    %p723 = scmp.eq.s32.totalorder %s75, 3
    %p724 = por %p722, %p723
    %p726 = scmp.ne.s32.totalorder %s709, %s725
    %p727 = scmp.eq.s32.totalorder %s75, 0
    %p728 = por %p726, %p727
    %s729 = ssub.s32 %s77, %s84
    %p730 = scmp.eq.s32.totalorder %s729, 0
    %s732 = sadd.s32 %s731, 1
    %s733 = scalar_select %p730, %s731, %s732
    %p736 = pneg %p730
    %p737 = scmp.eq.s32.totalorder %s69, 3
    %p738 = por %p736, %p737
    %p739 = scmp.ne.s32.totalorder %s731, %s734
    %p740 = scmp.eq.s32.totalorder %s69, 0
    %p741 = por %p739, %p740
    %p742 = scmp.ne.s32.totalorder %s731, %s734
    %p743 = scmp.eq.s32.totalorder %s74, 3
    %p744 = por %p742, %p743
    %p745 = scmp.ne.s32.totalorder %s734, %s735
    %p746 = scmp.eq.s32.totalorder %s74, 0
    %p747 = por %p745, %p746
    %p748 = scmp.ne.s32.totalorder %s734, %s735
    %p749 = scmp.eq.s32.totalorder %s75, 3
    %p750 = por %p748, %p749
    %p752 = scmp.ne.s32.totalorder %s735, %s751
    %p753 = scmp.eq.s32.totalorder %s75, 0
    %p754 = por %p752, %p753
    %s755 = ssub.s32 %s77, %s84
    %p756 = scmp.eq.s32.totalorder %s755, 0
    %s758 = sadd.s32 %s757, 1
    %s759 = scalar_select %p756, %s757, %s758
    %p762 = pneg %p756
    %p763 = scmp.eq.s32.totalorder %s69, 3
    %p764 = por %p762, %p763
    %p765 = scmp.ne.s32.totalorder %s757, %s760
    %p766 = scmp.eq.s32.totalorder %s69, 0
    %p767 = por %p765, %p766
    %p768 = scmp.ne.s32.totalorder %s757, %s760
    %p769 = scmp.eq.s32.totalorder %s74, 3
    %p770 = por %p768, %p769
    %p771 = scmp.ne.s32.totalorder %s760, %s761
    %p772 = scmp.eq.s32.totalorder %s74, 0
    %p773 = por %p771, %p772
    %p774 = scmp.ne.s32.totalorder %s760, %s761
    %p775 = scmp.eq.s32.totalorder %s75, 3
    %p776 = por %p774, %p775
    %p778 = scmp.ne.s32.totalorder %s761, %s777
    %p779 = scmp.eq.s32.totalorder %s75, 0
    %p780 = por %p778, %p779
    %s781 = ssub.s32 %s77, %s84
    %p782 = scmp.eq.s32.totalorder %s781, 0
    %s784 = sadd.s32 %s783, 1
    %s785 = scalar_select %p782, %s783, %s784
    %p788 = pneg %p782
    %p789 = scmp.eq.s32.totalorder %s69, 3
    %p790 = por %p788, %p789
    %p791 = scmp.ne.s32.totalorder %s783, %s786
    %p792 = scmp.eq.s32.totalorder %s69, 0
    %p793 = por %p791, %p792
    %p794 = scmp.ne.s32.totalorder %s783, %s786
    %p795 = scmp.eq.s32.totalorder %s74, 3
    %p796 = por %p794, %p795
    %p797 = scmp.ne.s32.totalorder %s786, %s787
    %p798 = scmp.eq.s32.totalorder %s74, 0
    %p799 = por %p797, %p798
    %p800 = scmp.ne.s32.totalorder %s786, %s787
    %p801 = scmp.eq.s32.totalorder %s75, 3
    %p802 = por %p800, %p801
    %p804 = scmp.ne.s32.totalorder %s787, %s803
    %p805 = scmp.eq.s32.totalorder %s75, 0
    %p806 = por %p804, %p805
    %s807 = ssub.s32 %s77, %s84
    %p808 = scmp.eq.s32.totalorder %s807, 0
    %s810 = sadd.s32 %s809, 1
    %s811 = scalar_select %p808, %s809, %s810
    %p814 = pneg %p808
    %p815 = scmp.eq.s32.totalorder %s69, 3
    %p816 = por %p814, %p815
    %p817 = scmp.ne.s32.totalorder %s809, %s812
    %p818 = scmp.eq.s32.totalorder %s69, 0
    %p819 = por %p817, %p818
    %p820 = scmp.ne.s32.totalorder %s809, %s812
    %p821 = scmp.eq.s32.totalorder %s74, 3
    %p822 = por %p820, %p821
    %p823 = scmp.ne.s32.totalorder %s812, %s813
    %p824 = scmp.eq.s32.totalorder %s74, 0
    %p825 = por %p823, %p824
    %p826 = scmp.ne.s32.totalorder %s812, %s813
    %p827 = scmp.eq.s32.totalorder %s75, 3
    %p828 = por %p826, %p827
    %p830 = scmp.ne.s32.totalorder %s813, %s829
    %p831 = scmp.eq.s32.totalorder %s75, 0
    %p832 = por %p830, %p831
    %s833 = ssub.s32 %s77, %s84
    %p834 = scmp.eq.s32.totalorder %s833, 0
    %s836 = sadd.s32 %s835, 1
    %s837 = scalar_select %p834, %s835, %s836
    %p840 = pneg %p834
    %p841 = scmp.eq.s32.totalorder %s69, 3
    %p842 = por %p840, %p841
    %p843 = scmp.ne.s32.totalorder %s835, %s838
    %p844 = scmp.eq.s32.totalorder %s69, 0
    %p845 = por %p843, %p844
    %p846 = scmp.ne.s32.totalorder %s835, %s838
    %p847 = scmp.eq.s32.totalorder %s74, 3
    %p848 = por %p846, %p847
    %p849 = scmp.ne.s32.totalorder %s838, %s839
    %p850 = scmp.eq.s32.totalorder %s74, 0
    %p851 = por %p849, %p850
    %p852 = scmp.ne.s32.totalorder %s838, %s839
    %p853 = scmp.eq.s32.totalorder %s75, 3
    %p854 = por %p852, %p853
    %p856 = scmp.ne.s32.totalorder %s839, %s855
    %p857 = scmp.eq.s32.totalorder %s75, 0
    %p858 = por %p856, %p857
    %s859 = ssub.s32 %s77, %s84
    %p860 = scmp.eq.s32.totalorder %s859, 0
    %s862 = sadd.s32 %s861, 1
    %s863 = scalar_select %p860, %s861, %s862
    %p866 = pneg %p860
    %p867 = scmp.eq.s32.totalorder %s69, 3
    %p868 = por %p866, %p867
    %p869 = scmp.ne.s32.totalorder %s861, %s864
    %p870 = scmp.eq.s32.totalorder %s69, 0
    %p871 = por %p869, %p870
    %p872 = scmp.ne.s32.totalorder %s861, %s864
    %p873 = scmp.eq.s32.totalorder %s74, 3
    %p874 = por %p872, %p873
    %p875 = scmp.ne.s32.totalorder %s864, %s865
    %p876 = scmp.eq.s32.totalorder %s74, 0
    %p877 = por %p875, %p876
    %p878 = scmp.ne.s32.totalorder %s864, %s865
    %p879 = scmp.eq.s32.totalorder %s75, 3
    %p880 = por %p878, %p879
    %p882 = scmp.ne.s32.totalorder %s865, %s881
    %p883 = scmp.eq.s32.totalorder %s75, 0
    %p884 = por %p882, %p883
    %s885 = ssub.s32 %s76, %s88
    %p886 = scmp.eq.s32.totalorder %s885, 0
    %s888 = sadd.s32 %s887, 1
    %s889 = scalar_select %p886, %s887, %s888
    %p892 = pneg %p886
    %p893 = scmp.eq.s32.totalorder %s69, 3
    %p894 = por %p892, %p893
    %p895 = scmp.ne.s32.totalorder %s887, %s890
    %p896 = scmp.eq.s32.totalorder %s69, 0
    %p897 = por %p895, %p896
    %p898 = scmp.ne.s32.totalorder %s887, %s890
    %p899 = scmp.eq.s32.totalorder %s74, 3
    %p900 = por %p898, %p899
    %p901 = scmp.ne.s32.totalorder %s890, %s891
    %p902 = scmp.eq.s32.totalorder %s74, 0
    %p903 = por %p901, %p902
    %p904 = scmp.ne.s32.totalorder %s890, %s891
    %p905 = scmp.eq.s32.totalorder %s75, 3
    %p906 = por %p904, %p905
    %p908 = scmp.ne.s32.totalorder %s891, %s907
    %p909 = scmp.eq.s32.totalorder %s75, 0
    %p910 = por %p908, %p909
    %p911 = scmp.le.s32.totalorder 1, %s69
    %p912 = scmp.lt.s32.totalorder %s69, 5
    %p913 = pnand %p911, %p912
    %p914 = pneg %p913
    // Predicated region
    $region9: #{vl_transformer_itm_forward.5} parent=5 // pred_check
      _
    $region10: #{vl_transformer_itm_forward.5} parent=5 // pred_check_branch
      %916 = sbr.rel (%p913) target = $region12
    $region11: #{vl_transformer_itm_forward.5} parent=5 // pred_region
      %s917 = ssub.s32 %s69, 1
      // Predicated region
      $region13: #{vl_transformer_itm_forward.5} parent=11 // pred_check
        %p918 = pneg %p180
      $region14: #{vl_transformer_itm_forward.5} parent=11 // pred_check_branch
        %920 = sbr.rel (%p918) target = $region16
      $region15: #{vl_transformer_itm_forward.5} parent=11 // pred_region
        _
      $region16: #{vl_transformer_itm_forward.5} parent=11 // pred_fallthru
        _
      // Predicated region
      $region17: #{vl_transformer_itm_forward.5} parent=11 // pred_check
        %p921 = pneg %p201
      $region18: #{vl_transformer_itm_forward.5} parent=11 // pred_check_branch
        %923 = sbr.rel (%p921) target = $region20
      $region19: #{vl_transformer_itm_forward.5} parent=11 // pred_region
        _
      $region20: #{vl_transformer_itm_forward.5} parent=11 // pred_fallthru
        _
    $region12: #{vl_transformer_itm_forward.5} parent=5 // pred_fallthru
      _
    %p924 = scmp.lt.s32.totalorder %s69, 4
    // Predicated region
    $region21: #{vl_transformer_itm_forward.5} parent=5 // pred_check
      %p925 = pneg %p924
    $region22: #{vl_transformer_itm_forward.5} parent=5 // pred_check_branch
      %927 = sbr.rel (%p925) target = $region24
    $region23: #{vl_transformer_itm_forward.5} parent=5 // pred_region
      // Predicated region
      $region25: #{vl_transformer_itm_forward.5} parent=23 // pred_check
        %p928 = pneg %p101
      $region26: #{vl_transformer_itm_forward.5} parent=23 // pred_check_branch
        %930 = sbr.rel (%p928) target = $region28
      $region27: #{vl_transformer_itm_forward.5} parent=23 // pred_region
        %p931 = scmp.lt.s32.totalorder %s76, 1
        %s932 = scalar_select %p931, %s76, 1
        %s933 = smul.addr %s932, 8
        %s934 = scalar_lea.vmem %s1, %s933
      $region28: #{vl_transformer_itm_forward.5} parent=23 // pred_fallthru
        _
      // Predicated region
      $region29: #{vl_transformer_itm_forward.5} parent=23 // pred_check
        %p935 = pneg %p127
      $region30: #{vl_transformer_itm_forward.5} parent=23 // pred_check_branch
        %937 = sbr.rel (%p935) target = $region32
      $region31: #{vl_transformer_itm_forward.5} parent=23 // pred_region
        %p938 = scmp.lt.s32.totalorder %s76, 1
        %s939 = scalar_select %p938, %s76, 1
        %s940 = scalar_lea.vmem %s3, %s939
      $region32: #{vl_transformer_itm_forward.5} parent=23 // pred_fallthru
        _
      // Predicated region
      $region33: #{vl_transformer_itm_forward.5} parent=23 // pred_check
        %p941 = pneg %p153
      $region34: #{vl_transformer_itm_forward.5} parent=23 // pred_check_branch
        %943 = sbr.rel (%p941) target = $region36
      $region35: #{vl_transformer_itm_forward.5} parent=23 // pred_region
        %p944 = scmp.lt.s32.totalorder %s76, 1
        %s945 = scalar_select %p944, %s76, 1
        %s946 = smul.addr %s945, 8
        %s947 = scalar_lea.vmem %s5, %s946
      $region36: #{vl_transformer_itm_forward.5} parent=23 // pred_fallthru
        _
      // Predicated region
      $region37: #{vl_transformer_itm_forward.5} parent=23 // pred_check
        %p948 = pneg %p221
      $region38: #{vl_transformer_itm_forward.5} parent=23 // pred_check_branch
        %950 = sbr.rel (%p948) target = $region40
      $region39: #{vl_transformer_itm_forward.5} parent=23 // pred_region
        %p951 = scmp.lt.s32.totalorder %s77, 1
        %s952 = scalar_select %p951, %s77, 1
        %s953 = smul.addr %s952, 32
        %s954 = smul.addr %s953, 8
        %s955 = scalar_lea.vmem %s11, %s954
      $region40: #{vl_transformer_itm_forward.5} parent=23 // pred_fallthru
        _
      // Predicated region
      $region41: #{vl_transformer_itm_forward.5} parent=23 // pred_check
        %p956 = pneg %p247
      $region42: #{vl_transformer_itm_forward.5} parent=23 // pred_check_branch
        %958 = sbr.rel (%p956) target = $region44
      $region43: #{vl_transformer_itm_forward.5} parent=23 // pred_region
        %p959 = scmp.lt.s32.totalorder %s77, 1
        %s960 = scalar_select %p959, %s77, 1
        %s961 = smul.addr %s960, 4
        %s962 = scalar_lea.vmem %s13, %s961
      $region44: #{vl_transformer_itm_forward.5} parent=23 // pred_fallthru
        _
      // Predicated region
      $region45: #{vl_transformer_itm_forward.5} parent=23 // pred_check
        %p963 = pneg %p273
      $region46: #{vl_transformer_itm_forward.5} parent=23 // pred_check_branch
        %965 = sbr.rel (%p963) target = $region48
      $region47: #{vl_transformer_itm_forward.5} parent=23 // pred_region
        %p966 = scmp.lt.s32.totalorder %s77, 1
        %s967 = scalar_select %p966, %s77, 1
        %s968 = smul.addr %s967, 32
        %s969 = smul.addr %s968, 8
        %s970 = scalar_lea.vmem %s15, %s969
      $region48: #{vl_transformer_itm_forward.5} parent=23 // pred_fallthru
        _
      // Predicated region
      $region49: #{vl_transformer_itm_forward.5} parent=23 // pred_check
        %p971 = pneg %p299
      $region50: #{vl_transformer_itm_forward.5} parent=23 // pred_check_branch
        %973 = sbr.rel (%p971) target = $region52
      $region51: #{vl_transformer_itm_forward.5} parent=23 // pred_region
        %p974 = scmp.lt.s32.totalorder %s77, 1
        %s975 = scalar_select %p974, %s77, 1
        %s976 = smul.addr %s975, 4
        %s977 = scalar_lea.vmem %s17, %s976
      $region52: #{vl_transformer_itm_forward.5} parent=23 // pred_fallthru
        _
      // Predicated region
      $region53: #{vl_transformer_itm_forward.5} parent=23 // pred_check
        %p978 = pneg %p325
      $region54: #{vl_transformer_itm_forward.5} parent=23 // pred_check_branch
        %980 = sbr.rel (%p978) target = $region56
      $region55: #{vl_transformer_itm_forward.5} parent=23 // pred_region
        %p981 = scmp.lt.s32.totalorder %s77, 1
        %s982 = scalar_select %p981, %s77, 1
        %s983 = smul.addr %s982, 32
        %s984 = smul.addr %s983, 8
        %s985 = scalar_lea.vmem %s19, %s984
      $region56: #{vl_transformer_itm_forward.5} parent=23 // pred_fallthru
        _
      // Predicated region
      $region57: #{vl_transformer_itm_forward.5} parent=23 // pred_check
        %p986 = pneg %p351
      $region58: #{vl_transformer_itm_forward.5} parent=23 // pred_check_branch
        %988 = sbr.rel (%p986) target = $region60
      $region59: #{vl_transformer_itm_forward.5} parent=23 // pred_region
        %p989 = scmp.lt.s32.totalorder %s77, 1
        %s990 = scalar_select %p989, %s77, 1
        %s991 = smul.addr %s990, 4
        %s992 = scalar_lea.vmem %s21, %s991
      $region60: #{vl_transformer_itm_forward.5} parent=23 // pred_fallthru
        _
      // Predicated region
      $region61: #{vl_transformer_itm_forward.5} parent=23 // pred_check
        %p993 = pneg %p377
      $region62: #{vl_transformer_itm_forward.5} parent=23 // pred_check_branch
        %995 = sbr.rel (%p993) target = $region64
      $region63: #{vl_transformer_itm_forward.5} parent=23 // pred_region
        %p996 = scmp.lt.s32.totalorder %s77, 1
        %s997 = scalar_select %p996, %s77, 1
        %s998 = smul.addr %s997, 8
        %s999 = smul.addr %s998, 8
        %s1000 = scalar_lea.vmem %s23, %s999
      $region64: #{vl_transformer_itm_forward.5} parent=23 // pred_fallthru
        _
      // Predicated region
      $region65: #{vl_transformer_itm_forward.5} parent=23 // pred_check
        %p1001 = pneg %p403
      $region66: #{vl_transformer_itm_forward.5} parent=23 // pred_check_branch
        %1003 = sbr.rel (%p1001) target = $region68
      $region67: #{vl_transformer_itm_forward.5} parent=23 // pred_region
        %p1004 = scmp.lt.s32.totalorder %s77, 1
        %s1005 = scalar_select %p1004, %s77, 1
        %s1006 = scalar_lea.vmem %s25, %s1005
      $region68: #{vl_transformer_itm_forward.5} parent=23 // pred_fallthru
        _
      // Predicated region
      $region69: #{vl_transformer_itm_forward.5} parent=23 // pred_check
        %p1007 = pneg %p429
      $region70: #{vl_transformer_itm_forward.5} parent=23 // pred_check_branch
        %1009 = sbr.rel (%p1007) target = $region72
      $region71: #{vl_transformer_itm_forward.5} parent=23 // pred_region
        %p1010 = scmp.lt.s32.totalorder %s77, 1
        %s1011 = scalar_select %p1010, %s77, 1
        %s1012 = scalar_lea.vmem %s27, %s1011
      $region72: #{vl_transformer_itm_forward.5} parent=23 // pred_fallthru
        _
      // Predicated region
      $region73: #{vl_transformer_itm_forward.5} parent=23 // pred_check
        %p1013 = pneg %p455
      $region74: #{vl_transformer_itm_forward.5} parent=23 // pred_check_branch
        %1015 = sbr.rel (%p1013) target = $region76
      $region75: #{vl_transformer_itm_forward.5} parent=23 // pred_region
        %p1016 = scmp.lt.s32.totalorder %s77, 1
        %s1017 = scalar_select %p1016, %s77, 1
        %s1018 = scalar_lea.vmem %s29, %s1017
      $region76: #{vl_transformer_itm_forward.5} parent=23 // pred_fallthru
        _
      // Predicated region
      $region77: #{vl_transformer_itm_forward.5} parent=23 // pred_check
        %p1019 = pneg %p481
      $region78: #{vl_transformer_itm_forward.5} parent=23 // pred_check_branch
        %1021 = sbr.rel (%p1019) target = $region80
      $region79: #{vl_transformer_itm_forward.5} parent=23 // pred_region
        %p1022 = scmp.lt.s32.totalorder %s77, 1
        %s1023 = scalar_select %p1022, %s77, 1
        %s1024 = smul.addr %s1023, 32
        %s1025 = smul.addr %s1024, 8
        %s1026 = scalar_lea.vmem %s31, %s1025
      $region80: #{vl_transformer_itm_forward.5} parent=23 // pred_fallthru
        _
      // Predicated region
      $region81: #{vl_transformer_itm_forward.5} parent=23 // pred_check
        %p1027 = pneg %p507
      $region82: #{vl_transformer_itm_forward.5} parent=23 // pred_check_branch
        %1029 = sbr.rel (%p1027) target = $region84
      $region83: #{vl_transformer_itm_forward.5} parent=23 // pred_region
        %p1030 = scmp.lt.s32.totalorder %s77, 1
        %s1031 = scalar_select %p1030, %s77, 1
        %s1032 = smul.addr %s1031, 4
        %s1033 = scalar_lea.vmem %s33, %s1032
      $region84: #{vl_transformer_itm_forward.5} parent=23 // pred_fallthru
        _
      // Predicated region
      $region85: #{vl_transformer_itm_forward.5} parent=23 // pred_check
        %p1034 = pneg %p533
      $region86: #{vl_transformer_itm_forward.5} parent=23 // pred_check_branch
        %1036 = sbr.rel (%p1034) target = $region88
      $region87: #{vl_transformer_itm_forward.5} parent=23 // pred_region
        %p1037 = scmp.lt.s32.totalorder %s77, 1
        %s1038 = scalar_select %p1037, %s77, 1
        %s1039 = smul.addr %s1038, 32
        %s1040 = smul.addr %s1039, 8
        %s1041 = scalar_lea.vmem %s35, %s1040
      $region88: #{vl_transformer_itm_forward.5} parent=23 // pred_fallthru
        _
      // Predicated region
      $region89: #{vl_transformer_itm_forward.5} parent=23 // pred_check
        %p1042 = pneg %p559
      $region90: #{vl_transformer_itm_forward.5} parent=23 // pred_check_branch
        %1044 = sbr.rel (%p1042) target = $region92
      $region91: #{vl_transformer_itm_forward.5} parent=23 // pred_region
        %p1045 = scmp.lt.s32.totalorder %s77, 1
        %s1046 = scalar_select %p1045, %s77, 1
        %s1047 = smul.addr %s1046, 4
        %s1048 = scalar_lea.vmem %s37, %s1047
      $region92: #{vl_transformer_itm_forward.5} parent=23 // pred_fallthru
        _
      // Predicated region
      $region93: #{vl_transformer_itm_forward.5} parent=23 // pred_check
        %p1049 = pneg %p585
      $region94: #{vl_transformer_itm_forward.5} parent=23 // pred_check_branch
        %1051 = sbr.rel (%p1049) target = $region96
      $region95: #{vl_transformer_itm_forward.5} parent=23 // pred_region
        %p1052 = scmp.lt.s32.totalorder %s77, 1
        %s1053 = scalar_select %p1052, %s77, 1
        %s1054 = smul.addr %s1053, 32
        %s1055 = smul.addr %s1054, 8
        %s1056 = scalar_lea.vmem %s39, %s1055
      $region96: #{vl_transformer_itm_forward.5} parent=23 // pred_fallthru
        _
      // Predicated region
      $region97: #{vl_transformer_itm_forward.5} parent=23 // pred_check
        %p1057 = pneg %p611
      $region98: #{vl_transformer_itm_forward.5} parent=23 // pred_check_branch
        %1059 = sbr.rel (%p1057) target = $region100
      $region99: #{vl_transformer_itm_forward.5} parent=23 // pred_region
        %p1060 = scmp.lt.s32.totalorder %s77, 1
        %s1061 = scalar_select %p1060, %s77, 1
        %s1062 = smul.addr %s1061, 4
        %s1063 = scalar_lea.vmem %s41, %s1062
      $region100: #{vl_transformer_itm_forward.5} parent=23 // pred_fallthru
        _
      // Predicated region
      $region101: #{vl_transformer_itm_forward.5} parent=23 // pred_check
        %p1064 = pneg %p637
      $region102: #{vl_transformer_itm_forward.5} parent=23 // pred_check_branch
        %1066 = sbr.rel (%p1064) target = $region104
      $region103: #{vl_transformer_itm_forward.5} parent=23 // pred_region
        %p1067 = scmp.lt.s32.totalorder %s77, 1
        %s1068 = scalar_select %p1067, %s77, 1
        %s1069 = smul.addr %s1068, 8
        %s1070 = smul.addr %s1069, 8
        %s1071 = scalar_lea.vmem %s43, %s1070
      $region104: #{vl_transformer_itm_forward.5} parent=23 // pred_fallthru
        _
      // Predicated region
      $region105: #{vl_transformer_itm_forward.5} parent=23 // pred_check
        %p1072 = pneg %p663
      $region106: #{vl_transformer_itm_forward.5} parent=23 // pred_check_branch
        %1074 = sbr.rel (%p1072) target = $region108
      $region107: #{vl_transformer_itm_forward.5} parent=23 // pred_region
        %p1075 = scmp.lt.s32.totalorder %s77, 1
        %s1076 = scalar_select %p1075, %s77, 1
        %s1077 = scalar_lea.vmem %s45, %s1076
      $region108: #{vl_transformer_itm_forward.5} parent=23 // pred_fallthru
        _
      // Predicated region
      $region109: #{vl_transformer_itm_forward.5} parent=23 // pred_check
        %p1078 = pneg %p689
      $region110: #{vl_transformer_itm_forward.5} parent=23 // pred_check_branch
        %1080 = sbr.rel (%p1078) target = $region112
      $region111: #{vl_transformer_itm_forward.5} parent=23 // pred_region
        %p1081 = scmp.lt.s32.totalorder %s77, 1
        %s1082 = scalar_select %p1081, %s77, 1
        %s1083 = scalar_lea.vmem %s47, %s1082
      $region112: #{vl_transformer_itm_forward.5} parent=23 // pred_fallthru
        _
      // Predicated region
      $region113: #{vl_transformer_itm_forward.5} parent=23 // pred_check
        %p1084 = pneg %p715
      $region114: #{vl_transformer_itm_forward.5} parent=23 // pred_check_branch
        %1086 = sbr.rel (%p1084) target = $region116
      $region115: #{vl_transformer_itm_forward.5} parent=23 // pred_region
        %p1087 = scmp.lt.s32.totalorder %s77, 1
        %s1088 = scalar_select %p1087, %s77, 1
        %s1089 = scalar_lea.vmem %s49, %s1088
      $region116: #{vl_transformer_itm_forward.5} parent=23 // pred_fallthru
        _
      // Predicated region
      $region117: #{vl_transformer_itm_forward.5} parent=23 // pred_check
        %p1090 = pneg %p741
      $region118: #{vl_transformer_itm_forward.5} parent=23 // pred_check_branch
        %1092 = sbr.rel (%p1090) target = $region120
      $region119: #{vl_transformer_itm_forward.5} parent=23 // pred_region
        %p1093 = scmp.lt.s32.totalorder %s77, 1
        %s1094 = scalar_select %p1093, %s77, 1
        %s1095 = smul.addr %s1094, 16
        %s1096 = smul.addr %s1095, 8
        %s1097 = scalar_lea.vmem %s51, %s1096
      $region120: #{vl_transformer_itm_forward.5} parent=23 // pred_fallthru
        _
      // Predicated region
      $region121: #{vl_transformer_itm_forward.5} parent=23 // pred_check
        %p1098 = pneg %p767
      $region122: #{vl_transformer_itm_forward.5} parent=23 // pred_check_branch
        %1100 = sbr.rel (%p1098) target = $region124
      $region123: #{vl_transformer_itm_forward.5} parent=23 // pred_region
        %p1101 = scmp.lt.s32.totalorder %s77, 1
        %s1102 = scalar_select %p1101, %s77, 1
        %s1103 = smul.addr %s1102, 2
        %s1104 = scalar_lea.vmem %s53, %s1103
      $region124: #{vl_transformer_itm_forward.5} parent=23 // pred_fallthru
        _
      // Predicated region
      $region125: #{vl_transformer_itm_forward.5} parent=23 // pred_check
        %p1105 = pneg %p793
      $region126: #{vl_transformer_itm_forward.5} parent=23 // pred_check_branch
        %1107 = sbr.rel (%p1105) target = $region128
      $region127: #{vl_transformer_itm_forward.5} parent=23 // pred_region
        %p1108 = scmp.lt.s32.totalorder %s77, 1
        %s1109 = scalar_select %p1108, %s77, 1
        %s1110 = smul.addr %s1109, 32
        %s1111 = smul.addr %s1110, 8
        %s1112 = scalar_lea.vmem %s55, %s1111
      $region128: #{vl_transformer_itm_forward.5} parent=23 // pred_fallthru
        _
      // Predicated region
      $region129: #{vl_transformer_itm_forward.5} parent=23 // pred_check
        %p1113 = pneg %p819
      $region130: #{vl_transformer_itm_forward.5} parent=23 // pred_check_branch
        %1115 = sbr.rel (%p1113) target = $region132
      $region131: #{vl_transformer_itm_forward.5} parent=23 // pred_region
        %p1116 = scmp.lt.s32.totalorder %s77, 1
        %s1117 = scalar_select %p1116, %s77, 1
        %s1118 = scalar_lea.vmem %s57, %s1117
      $region132: #{vl_transformer_itm_forward.5} parent=23 // pred_fallthru
        _
      // Predicated region
      $region133: #{vl_transformer_itm_forward.5} parent=23 // pred_check
        %p1119 = pneg %p845
      $region134: #{vl_transformer_itm_forward.5} parent=23 // pred_check_branch
        %1121 = sbr.rel (%p1119) target = $region136
      $region135: #{vl_transformer_itm_forward.5} parent=23 // pred_region
        %p1122 = scmp.lt.s32.totalorder %s77, 1
        %s1123 = scalar_select %p1122, %s77, 1
        %s1124 = scalar_lea.vmem %s59, %s1123
      $region136: #{vl_transformer_itm_forward.5} parent=23 // pred_fallthru
        _
      // Predicated region
      $region137: #{vl_transformer_itm_forward.5} parent=23 // pred_check
        %p1125 = pneg %p871
      $region138: #{vl_transformer_itm_forward.5} parent=23 // pred_check_branch
        %1127 = sbr.rel (%p1125) target = $region140
      $region139: #{vl_transformer_itm_forward.5} parent=23 // pred_region
        %p1128 = scmp.lt.s32.totalorder %s77, 1
        %s1129 = scalar_select %p1128, %s77, 1
        %s1130 = scalar_lea.vmem %s61, %s1129
      $region140: #{vl_transformer_itm_forward.5} parent=23 // pred_fallthru
        _
    $region24: #{vl_transformer_itm_forward.5} parent=5 // pred_fallthru
      _
    %p1131 = scmp.le.s32.totalorder 1, %s69
    %p1132 = scmp.lt.s32.totalorder %s69, 5
    %p1133 = pnand %p1131, %p1132
    %p1134 = pneg %p1133
    // Predicated region
    $region141: #{vl_transformer_itm_forward.5} parent=5 // pred_check
      _
    $region142: #{vl_transformer_itm_forward.5} parent=5 // pred_check_branch
      %1136 = sbr.rel (%p1133) target = $region144
    $region143: #{vl_transformer_itm_forward.5} parent=5 // pred_region
      %s1137 = ssub.s32 %s69, 1
      %p1138 = scmp.lt.s32.totalorder %s78, 1
      %s1139 = scalar_select %p1138, %s78, 1
      %s1140 = smul.addr %s1139, 8
      %s1141 = scalar_lea.vmem %s1, %s1140
      %p1142 = pneg %p107
      %p1143 = pneg %p104
      %p1144 = scmp.lt.s32.totalorder %s78, 1
      %s1145 = scalar_select %p1144, %s78, 1
      %s1146 = scalar_lea.vmem %s3, %s1145
      %p1147 = pneg %p133
      %p1148 = pneg %p130
      %p1149 = scmp.lt.s32.totalorder %s78, 1
      %s1150 = scalar_select %p1149, %s78, 1
      %s1151 = smul.addr %s1150, 8
      %s1152 = scalar_lea.vmem %s5, %s1151
      %p1153 = pneg %p159
      %p1154 = pneg %p156
      %p1155 = pneg %p180
      %p1156 = pneg %p177
      %p1157 = pneg %p201
      %p1158 = pneg %p198
      %p1159 = scmp.lt.s32.totalorder %s79, 1
      %s1160 = scalar_select %p1159, %s79, 1
      %s1161 = smul.addr %s1160, 32
      %s1162 = smul.addr %s1161, 8
      %s1163 = scalar_lea.vmem %s11, %s1162
      %p1164 = pneg %p227
      %p1165 = pneg %p224
      %p1166 = scmp.lt.s32.totalorder %s79, 1
      %s1167 = scalar_select %p1166, %s79, 1
      %s1168 = smul.addr %s1167, 4
      %s1169 = scalar_lea.vmem %s13, %s1168
      %p1170 = pneg %p253
      %p1171 = pneg %p250
      %p1172 = scmp.lt.s32.totalorder %s79, 1
      %s1173 = scalar_select %p1172, %s79, 1
      %s1174 = smul.addr %s1173, 32
      %s1175 = smul.addr %s1174, 8
      %s1176 = scalar_lea.vmem %s15, %s1175
      %p1177 = pneg %p279
      %p1178 = pneg %p276
      %p1179 = scmp.lt.s32.totalorder %s79, 1
      %s1180 = scalar_select %p1179, %s79, 1
      %s1181 = smul.addr %s1180, 4
      %s1182 = scalar_lea.vmem %s17, %s1181
      %p1183 = pneg %p305
      %p1184 = pneg %p302
      %p1185 = scmp.lt.s32.totalorder %s79, 1
      %s1186 = scalar_select %p1185, %s79, 1
      %s1187 = smul.addr %s1186, 32
      %s1188 = smul.addr %s1187, 8
      %s1189 = scalar_lea.vmem %s19, %s1188
      %p1190 = pneg %p331
      %p1191 = pneg %p328
      %p1192 = scmp.lt.s32.totalorder %s79, 1
      %s1193 = scalar_select %p1192, %s79, 1
      %s1194 = smul.addr %s1193, 4
      %s1195 = scalar_lea.vmem %s21, %s1194
      %p1196 = pneg %p357
      %p1197 = pneg %p354
      %p1198 = scmp.lt.s32.totalorder %s79, 1
      %s1199 = scalar_select %p1198, %s79, 1
      %s1200 = smul.addr %s1199, 8
      %s1201 = smul.addr %s1200, 8
      %s1202 = scalar_lea.vmem %s23, %s1201
      %p1203 = pneg %p383
      %p1204 = pneg %p380
      %p1205 = scmp.lt.s32.totalorder %s79, 1
      %s1206 = scalar_select %p1205, %s79, 1
      %s1207 = scalar_lea.vmem %s25, %s1206
      %p1208 = pneg %p409
      %p1209 = pneg %p406
      %p1210 = scmp.lt.s32.totalorder %s79, 1
      %s1211 = scalar_select %p1210, %s79, 1
      %s1212 = scalar_lea.vmem %s27, %s1211
      %p1213 = pneg %p435
      %p1214 = pneg %p432
      %p1215 = scmp.lt.s32.totalorder %s79, 1
      %s1216 = scalar_select %p1215, %s79, 1
      %s1217 = scalar_lea.vmem %s29, %s1216
      %p1218 = pneg %p461
      %p1219 = pneg %p458
      %p1220 = scmp.lt.s32.totalorder %s79, 1
      %s1221 = scalar_select %p1220, %s79, 1
      %s1222 = smul.addr %s1221, 32
      %s1223 = smul.addr %s1222, 8
      %s1224 = scalar_lea.vmem %s31, %s1223
      %p1225 = pneg %p487
      %p1226 = pneg %p484
      %p1227 = scmp.lt.s32.totalorder %s79, 1
      %s1228 = scalar_select %p1227, %s79, 1
      %s1229 = smul.addr %s1228, 4
      %s1230 = scalar_lea.vmem %s33, %s1229
      %p1231 = pneg %p513
      %p1232 = pneg %p510
      %p1233 = scmp.lt.s32.totalorder %s79, 1
      %s1234 = scalar_select %p1233, %s79, 1
      %s1235 = smul.addr %s1234, 32
      %s1236 = smul.addr %s1235, 8
      %s1237 = scalar_lea.vmem %s35, %s1236
      %p1238 = pneg %p539
      %p1239 = pneg %p536
      %p1240 = scmp.lt.s32.totalorder %s79, 1
      %s1241 = scalar_select %p1240, %s79, 1
      %s1242 = smul.addr %s1241, 4
      %s1243 = scalar_lea.vmem %s37, %s1242
      %p1244 = pneg %p565
      %p1245 = pneg %p562
      %p1246 = scmp.lt.s32.totalorder %s79, 1
      %s1247 = scalar_select %p1246, %s79, 1
      %s1248 = smul.addr %s1247, 32
      %s1249 = smul.addr %s1248, 8
      %s1250 = scalar_lea.vmem %s39, %s1249
      %p1251 = pneg %p591
      %p1252 = pneg %p588
      %p1253 = scmp.lt.s32.totalorder %s79, 1
      %s1254 = scalar_select %p1253, %s79, 1
      %s1255 = smul.addr %s1254, 4
      %s1256 = scalar_lea.vmem %s41, %s1255
      %p1257 = pneg %p617
      %p1258 = pneg %p614
      %p1259 = scmp.lt.s32.totalorder %s79, 1
      %s1260 = scalar_select %p1259, %s79, 1
      %s1261 = smul.addr %s1260, 8
      %s1262 = smul.addr %s1261, 8
      %s1263 = scalar_lea.vmem %s43, %s1262
      %p1264 = pneg %p643
      %p1265 = pneg %p640
      %p1266 = scmp.lt.s32.totalorder %s79, 1
      %s1267 = scalar_select %p1266, %s79, 1
      %s1268 = scalar_lea.vmem %s45, %s1267
      %p1269 = pneg %p669
      %p1270 = pneg %p666
      %p1271 = scmp.lt.s32.totalorder %s79, 1
      %s1272 = scalar_select %p1271, %s79, 1
      %s1273 = scalar_lea.vmem %s47, %s1272
      %p1274 = pneg %p695
      %p1275 = pneg %p692
      %p1276 = scmp.lt.s32.totalorder %s79, 1
      %s1277 = scalar_select %p1276, %s79, 1
      %s1278 = scalar_lea.vmem %s49, %s1277
      %p1279 = pneg %p721
      %p1280 = pneg %p718
      %p1281 = scmp.lt.s32.totalorder %s79, 1
      %s1282 = scalar_select %p1281, %s79, 1
      %s1283 = smul.addr %s1282, 16
      %s1284 = smul.addr %s1283, 8
      %s1285 = scalar_lea.vmem %s51, %s1284
      %p1286 = pneg %p747
      %p1287 = pneg %p744
      %p1288 = scmp.lt.s32.totalorder %s79, 1
      %s1289 = scalar_select %p1288, %s79, 1
      %s1290 = smul.addr %s1289, 2
      %s1291 = scalar_lea.vmem %s53, %s1290
      %p1292 = pneg %p773
      %p1293 = pneg %p770
      %p1294 = scmp.lt.s32.totalorder %s79, 1
      %s1295 = scalar_select %p1294, %s79, 1
      %s1296 = smul.addr %s1295, 32
      %s1297 = smul.addr %s1296, 8
      %s1298 = scalar_lea.vmem %s55, %s1297
      %p1299 = pneg %p799
      %p1300 = pneg %p796
      %p1301 = scmp.lt.s32.totalorder %s79, 1
      %s1302 = scalar_select %p1301, %s79, 1
      %s1303 = scalar_lea.vmem %s57, %s1302
      %p1304 = pneg %p825
      %p1305 = pneg %p822
      %p1306 = scmp.lt.s32.totalorder %s79, 1
      %s1307 = scalar_select %p1306, %s79, 1
      %s1308 = scalar_lea.vmem %s59, %s1307
      %p1309 = pneg %p851
      %p1310 = pneg %p848
      %p1311 = scmp.lt.s32.totalorder %s79, 1
      %s1312 = scalar_select %p1311, %s79, 1
      %s1313 = scalar_lea.vmem %s61, %s1312
      %p1314 = pneg %p877
      %p1315 = pneg %p874
      %p1316 = pneg %p903
      %p1317 = pneg %p900
      %p1318 = scmp.lt.s32.totalorder %s78, 1
      %s1319 = scalar_select %p1318, %s78, 1
      %s1320 = smul.addr %s1319, 8
      %s1321 = scalar_lea.vmem %s63, %s1320
      %p1322 = scmp.lt.s32.totalorder %s78, 1
      %s1323 = scalar_select %p1322, %s78, 1
      %s1324 = smul.addr %s1323, 8
      %s1325 = scalar_lea.vmem %s1, %s1324
      %p1326 = scmp.lt.s32.totalorder %s78, 1
      %s1327 = scalar_select %p1326, %s78, 1
      %s1328 = scalar_lea.vmem %s3, %s1327
      %p1329 = scmp.lt.s32.totalorder %s78, 1
      %s1330 = scalar_select %p1329, %s78, 1
      %s1331 = smul.addr %s1330, 8
      %s1332 = scalar_lea.vmem %s5, %s1331
      %p1333 = scmp.lt.s32.totalorder %s79, 1
      %s1334 = scalar_select %p1333, %s79, 1
      %s1335 = smul.addr %s1334, 32
      %s1336 = smul.addr %s1335, 8
      %s1337 = scalar_lea.vmem %s11, %s1336
      %p1338 = scmp.lt.s32.totalorder %s79, 1
      %s1339 = scalar_select %p1338, %s79, 1
      %s1340 = smul.addr %s1339, 4
      %s1341 = scalar_lea.vmem %s13, %s1340
      %p1342 = scmp.lt.s32.totalorder %s79, 1
      %s1343 = scalar_select %p1342, %s79, 1
      %s1344 = smul.addr %s1343, 32
      %s1345 = smul.addr %s1344, 8
      %s1346 = scalar_lea.vmem %s15, %s1345
      %p1347 = scmp.lt.s32.totalorder %s79, 1
      %s1348 = scalar_select %p1347, %s79, 1
      %s1349 = smul.addr %s1348, 4
      %s1350 = scalar_lea.vmem %s17, %s1349
      %p1351 = scmp.lt.s32.totalorder %s79, 1
      %s1352 = scalar_select %p1351, %s79, 1
      %s1353 = smul.addr %s1352, 32
      %s1354 = smul.addr %s1353, 8
      %s1355 = scalar_lea.vmem %s19, %s1354
      %p1356 = scmp.lt.s32.totalorder %s79, 1
      %s1357 = scalar_select %p1356, %s79, 1
      %s1358 = smul.addr %s1357, 4
      %s1359 = scalar_lea.vmem %s21, %s1358
      %p1360 = scmp.lt.s32.totalorder %s79, 1
      %s1361 = scalar_select %p1360, %s79, 1
      %s1362 = smul.addr %s1361, 8
      %s1363 = smul.addr %s1362, 8
      %s1364 = scalar_lea.vmem %s23, %s1363
      %p1365 = scmp.lt.s32.totalorder %s79, 1
      %s1366 = scalar_select %p1365, %s79, 1
      %s1367 = scalar_lea.vmem %s25, %s1366
      %p1368 = scmp.lt.s32.totalorder %s79, 1
      %s1369 = scalar_select %p1368, %s79, 1
      %s1370 = scalar_lea.vmem %s27, %s1369
      %p1371 = scmp.lt.s32.totalorder %s79, 1
      %s1372 = scalar_select %p1371, %s79, 1
      %s1373 = scalar_lea.vmem %s29, %s1372
      %p1374 = scmp.lt.s32.totalorder %s79, 1
      %s1375 = scalar_select %p1374, %s79, 1
      %s1376 = smul.addr %s1375, 32
      %s1377 = smul.addr %s1376, 8
      %s1378 = scalar_lea.vmem %s31, %s1377
      %p1379 = scmp.lt.s32.totalorder %s79, 1
      %s1380 = scalar_select %p1379, %s79, 1
      %s1381 = smul.addr %s1380, 4
      %s1382 = scalar_lea.vmem %s33, %s1381
      %p1383 = scmp.lt.s32.totalorder %s79, 1
      %s1384 = scalar_select %p1383, %s79, 1
      %s1385 = smul.addr %s1384, 32
      %s1386 = smul.addr %s1385, 8
      %s1387 = scalar_lea.vmem %s35, %s1386
      %p1388 = scmp.lt.s32.totalorder %s79, 1
      %s1389 = scalar_select %p1388, %s79, 1
      %s1390 = smul.addr %s1389, 4
      %s1391 = scalar_lea.vmem %s37, %s1390
      %p1392 = scmp.lt.s32.totalorder %s79, 1
      %s1393 = scalar_select %p1392, %s79, 1
      %s1394 = smul.addr %s1393, 32
      %s1395 = smul.addr %s1394, 8
      %s1396 = scalar_lea.vmem %s39, %s1395
      %p1397 = scmp.lt.s32.totalorder %s79, 1
      %s1398 = scalar_select %p1397, %s79, 1
      %s1399 = smul.addr %s1398, 4
      %s1400 = scalar_lea.vmem %s41, %s1399
      %p1401 = scmp.lt.s32.totalorder %s79, 1
      %s1402 = scalar_select %p1401, %s79, 1
      %s1403 = smul.addr %s1402, 8
      %s1404 = smul.addr %s1403, 8
      %s1405 = scalar_lea.vmem %s43, %s1404
      %p1406 = scmp.lt.s32.totalorder %s79, 1
      %s1407 = scalar_select %p1406, %s79, 1
      %s1408 = scalar_lea.vmem %s45, %s1407
      %p1409 = scmp.lt.s32.totalorder %s79, 1
      %s1410 = scalar_select %p1409, %s79, 1
      %s1411 = scalar_lea.vmem %s47, %s1410
      %p1412 = scmp.lt.s32.totalorder %s79, 1
      %s1413 = scalar_select %p1412, %s79, 1
      %s1414 = scalar_lea.vmem %s49, %s1413
      %p1415 = scmp.lt.s32.totalorder %s79, 1
      %s1416 = scalar_select %p1415, %s79, 1
      %s1417 = smul.addr %s1416, 16
      %s1418 = smul.addr %s1417, 8
      %s1419 = scalar_lea.vmem %s51, %s1418
      %p1420 = scmp.lt.s32.totalorder %s79, 1
      %s1421 = scalar_select %p1420, %s79, 1
      %s1422 = smul.addr %s1421, 2
      %s1423 = scalar_lea.vmem %s53, %s1422
      %p1424 = scmp.lt.s32.totalorder %s79, 1
      %s1425 = scalar_select %p1424, %s79, 1
      %s1426 = smul.addr %s1425, 32
      %s1427 = smul.addr %s1426, 8
      %s1428 = scalar_lea.vmem %s55, %s1427
      %p1429 = scmp.lt.s32.totalorder %s79, 1
      %s1430 = scalar_select %p1429, %s79, 1
      %s1431 = scalar_lea.vmem %s57, %s1430
      %p1432 = scmp.lt.s32.totalorder %s79, 1
      %s1433 = scalar_select %p1432, %s79, 1
      %s1434 = scalar_lea.vmem %s59, %s1433
      %p1435 = scmp.lt.s32.totalorder %s79, 1
      %s1436 = scalar_select %p1435, %s79, 1
      %s1437 = scalar_lea.vmem %s61, %s1436
      %p1438 = scmp.lt.s32.totalorder %s78, 1
      %s1439 = scalar_select %p1438, %s78, 1
      %s1440 = smul.addr %s1439, 8
      %s1441 = scalar_lea.vmem %s63, %s1440
      %p1443 = scmp.eq.s32.totalorder %s79, 0
      // Predicated region
      $region145: #{vl_transformer_itm_forward.5} parent=143 // pred_check
        %p1444 = pneg %p1443
      $region146: #{vl_transformer_itm_forward.5} parent=143 // pred_check_branch
        %1446 = sbr.rel (%p1444) target = $region148
      $region147: #{vl_transformer_itm_forward.5} parent=143 // pred_region
        %v1447 = vld [vmem:[%s1325] sm:$0xff]
        %v1448 = vld [vmem:[%s7] sm:$0x1]
        %v1449 = vld [vmem:[%s9] sm:$0x1]
        %vm1450 = vcmask 523264
        %v1451 = vsel %vm1450, %v1447, 0.0
        %1452 = vadd.xlane.f32.xlu0 %v1451
        %v1453 = vpop.xlane.xlu0 %1452
        %v1454 = vrcp.pop 64.0
        %v1455 = vmul.f32 %v1453, %v1454
        %v1456 = vsub.f32 %v1447, %v1455
        %v1457 = vmul.f32 %v1456, %v1456
        %v1458 = vsel %vm1450, %v1457, 0.0
        %1459 = vadd.xlane.f32.xlu0 %v1458
        %v1460 = vpop.xlane.xlu0 %1459
        %v1461 = vmul.f32 %v1460, %v1454
        %v1462 = vadd.f32 %v1461, 1e-12
        %v1463 = vrsqrt.pop %v1462
        %v1464 = vmul.f32 %v1456, %v1463
        %v1466 = vlaneseq
        %v1467 = vshrl.u32 %v1466, 7
        %v1468 = vsub.s32 0, %v1467
        %v1469 = vrot.slane %v1448, %v1468
        %v1471 = vmul.f32 %v1464, %v1469
        %v1473 = vlaneseq
        %v1474 = vshrl.u32 %v1473, 7
        %v1475 = vsub.s32 0, %v1474
        %v1476 = vrot.slane %v1449, %v1475
        %v1478 = vadd.f32 %v1471, %v1476
        %1479 = vst.msk [vmem:[#allocation2] sm:$0xff] %vm1450, %v1478
      $region148: #{vl_transformer_itm_forward.5} parent=143 // pred_fallthru
        _
      %v1480 = vld [vmem:[#allocation2] sm:$0xff]
      %v1481 = vld [vmem:[%s1328] sm:$0x1]
      %v1482 = vsub.f32 1.0, %v1481
      %v1483 = vmul.f32 %v1482, -10000.0
      %v1484 = vld [vmem:[%s1337] sm:$0xff]
      %v1485 = vld [vmem:[%s1337 + $0x8] sm:$0xff]
      %v1486 = vld [vmem:[%s1337 + $0x10] sm:$0xff]
      %v1487 = vld [vmem:[%s1337 + $0x18] sm:$0xff]
      %v1488 = vld [vmem:[%s1337 + $0x20] sm:$0xff]
      %v1489 = vld [vmem:[%s1337 + $0x28] sm:$0xff]
      %v1490 = vld [vmem:[%s1337 + $0x30] sm:$0xff]
      %v1491 = vld [vmem:[%s1337 + $0x38] sm:$0xff]
      %v1492 = vld [vmem:[%s1337 + $0x40] sm:$0xff]
      %v1493 = vld [vmem:[%s1337 + $0x48] sm:$0xff]
      %v1494 = vld [vmem:[%s1337 + $0x50] sm:$0xff]
      %v1495 = vld [vmem:[%s1337 + $0x58] sm:$0xff]
      %v1496 = vld [vmem:[%s1337 + $0x60] sm:$0xff]
      %v1497 = vld [vmem:[%s1337 + $0x68] sm:$0xff]
      %v1498 = vld [vmem:[%s1337 + $0x70] sm:$0xff]
      %v1499 = vld [vmem:[%s1337 + $0x78] sm:$0xff]
      %v1500 = vld [vmem:[%s1337 + $0x80] sm:$0xff]
      %v1501 = vld [vmem:[%s1337 + $0x88] sm:$0xff]
      %v1502 = vld [vmem:[%s1337 + $0x90] sm:$0xff]
      %v1503 = vld [vmem:[%s1337 + $0x98] sm:$0xff]
      %v1504 = vld [vmem:[%s1337 + $0xa0] sm:$0xff]
      %v1505 = vld [vmem:[%s1337 + $0xa8] sm:$0xff]
      %v1506 = vld [vmem:[%s1337 + $0xb0] sm:$0xff]
      %v1507 = vld [vmem:[%s1337 + $0xb8] sm:$0xff]
      %v1508 = vld [vmem:[%s1337 + $0xc0] sm:$0xff]
      %v1509 = vld [vmem:[%s1337 + $0xc8] sm:$0xff]
      %v1510 = vld [vmem:[%s1337 + $0xd0] sm:$0xff]
      %v1511 = vld [vmem:[%s1337 + $0xd8] sm:$0xff]
      %v1512 = vld [vmem:[%s1337 + $0xe0] sm:$0xff]
      %v1513 = vld [vmem:[%s1337 + $0xe8] sm:$0xff]
      %v1514 = vld [vmem:[%s1337 + $0xf0] sm:$0xff]
      %v1515 = vld [vmem:[%s1337 + $0xf8] sm:$0xff]
      %v1516 = vld [vmem:[%s1341] sm:$0x1]
      %v1517 = vld [vmem:[%s1341 + $0x1] sm:$0x1]
      %v1518 = vld [vmem:[%s1341 + $0x2] sm:$0x1]
      %v1519 = vld [vmem:[%s1341 + $0x3] sm:$0x1]
      %v1520 = vld [vmem:[%s1346] sm:$0xff]
      %v1521 = vld [vmem:[%s1346 + $0x8] sm:$0xff]
      %v1522 = vld [vmem:[%s1346 + $0x10] sm:$0xff]
      %v1523 = vld [vmem:[%s1346 + $0x18] sm:$0xff]
      %v1524 = vld [vmem:[%s1346 + $0x20] sm:$0xff]
      %v1525 = vld [vmem:[%s1346 + $0x28] sm:$0xff]
      %v1526 = vld [vmem:[%s1346 + $0x30] sm:$0xff]
      %v1527 = vld [vmem:[%s1346 + $0x38] sm:$0xff]
      %v1528 = vld [vmem:[%s1346 + $0x40] sm:$0xff]
      %v1529 = vld [vmem:[%s1346 + $0x48] sm:$0xff]
      %v1530 = vld [vmem:[%s1346 + $0x50] sm:$0xff]
      %v1531 = vld [vmem:[%s1346 + $0x58] sm:$0xff]
      %v1532 = vld [vmem:[%s1346 + $0x60] sm:$0xff]
      %v1533 = vld [vmem:[%s1346 + $0x68] sm:$0xff]
      %v1534 = vld [vmem:[%s1346 + $0x70] sm:$0xff]
      %v1535 = vld [vmem:[%s1346 + $0x78] sm:$0xff]
      %v1536 = vld [vmem:[%s1346 + $0x80] sm:$0xff]
      %v1537 = vld [vmem:[%s1346 + $0x88] sm:$0xff]
      %v1538 = vld [vmem:[%s1346 + $0x90] sm:$0xff]
      %v1539 = vld [vmem:[%s1346 + $0x98] sm:$0xff]
      %v1540 = vld [vmem:[%s1346 + $0xa0] sm:$0xff]
      %v1541 = vld [vmem:[%s1346 + $0xa8] sm:$0xff]
      %v1542 = vld [vmem:[%s1346 + $0xb0] sm:$0xff]
      %v1543 = vld [vmem:[%s1346 + $0xb8] sm:$0xff]
      %v1544 = vld [vmem:[%s1346 + $0xc0] sm:$0xff]
      %v1545 = vld [vmem:[%s1346 + $0xc8] sm:$0xff]
      %v1546 = vld [vmem:[%s1346 + $0xd0] sm:$0xff]
      %v1547 = vld [vmem:[%s1346 + $0xd8] sm:$0xff]
      %v1548 = vld [vmem:[%s1346 + $0xe0] sm:$0xff]
      %v1549 = vld [vmem:[%s1346 + $0xe8] sm:$0xff]
      %v1550 = vld [vmem:[%s1346 + $0xf0] sm:$0xff]
      %v1551 = vld [vmem:[%s1346 + $0xf8] sm:$0xff]
      %v1552 = vld [vmem:[%s1350] sm:$0x1]
      %v1553 = vld [vmem:[%s1350 + $0x1] sm:$0x1]
      %v1554 = vld [vmem:[%s1350 + $0x2] sm:$0x1]
      %v1555 = vld [vmem:[%s1350 + $0x3] sm:$0x1]
      %v1556 = vld [vmem:[%s1355] sm:$0xff]
      %v1557 = vld [vmem:[%s1355 + $0x8] sm:$0xff]
      %v1558 = vld [vmem:[%s1355 + $0x10] sm:$0xff]
      %v1559 = vld [vmem:[%s1355 + $0x18] sm:$0xff]
      %v1560 = vld [vmem:[%s1355 + $0x20] sm:$0xff]
      %v1561 = vld [vmem:[%s1355 + $0x28] sm:$0xff]
      %v1562 = vld [vmem:[%s1355 + $0x30] sm:$0xff]
      %v1563 = vld [vmem:[%s1355 + $0x38] sm:$0xff]
      %v1564 = vld [vmem:[%s1355 + $0x40] sm:$0xff]
      %v1565 = vld [vmem:[%s1355 + $0x48] sm:$0xff]
      %v1566 = vld [vmem:[%s1355 + $0x50] sm:$0xff]
      %v1567 = vld [vmem:[%s1355 + $0x58] sm:$0xff]
      %v1568 = vld [vmem:[%s1355 + $0x60] sm:$0xff]
      %v1569 = vld [vmem:[%s1355 + $0x68] sm:$0xff]
      %v1570 = vld [vmem:[%s1355 + $0x70] sm:$0xff]
      %v1571 = vld [vmem:[%s1355 + $0x78] sm:$0xff]
      %v1572 = vld [vmem:[%s1355 + $0x80] sm:$0xff]
      %v1573 = vld [vmem:[%s1355 + $0x88] sm:$0xff]
      %v1574 = vld [vmem:[%s1355 + $0x90] sm:$0xff]
      %v1575 = vld [vmem:[%s1355 + $0x98] sm:$0xff]
      %v1576 = vld [vmem:[%s1355 + $0xa0] sm:$0xff]
      %v1577 = vld [vmem:[%s1355 + $0xa8] sm:$0xff]
      %v1578 = vld [vmem:[%s1355 + $0xb0] sm:$0xff]
      %v1579 = vld [vmem:[%s1355 + $0xb8] sm:$0xff]
      %v1580 = vld [vmem:[%s1355 + $0xc0] sm:$0xff]
      %v1581 = vld [vmem:[%s1355 + $0xc8] sm:$0xff]
      %v1582 = vld [vmem:[%s1355 + $0xd0] sm:$0xff]
      %v1583 = vld [vmem:[%s1355 + $0xd8] sm:$0xff]
      %v1584 = vld [vmem:[%s1355 + $0xe0] sm:$0xff]
      %v1585 = vld [vmem:[%s1355 + $0xe8] sm:$0xff]
      %v1586 = vld [vmem:[%s1355 + $0xf0] sm:$0xff]
      %v1587 = vld [vmem:[%s1355 + $0xf8] sm:$0xff]
      %v1588 = vld [vmem:[%s1359] sm:$0x1]
      %v1589 = vld [vmem:[%s1359 + $0x1] sm:$0x1]
      %v1590 = vld [vmem:[%s1359 + $0x2] sm:$0x1]
      %v1591 = vld [vmem:[%s1359 + $0x3] sm:$0x1]
      %v1592 = vld [vmem:[%s1364] sm:$0xff]
      %v1593 = vld [vmem:[%s1364 + $0x8] sm:$0xff]
      %v1594 = vld [vmem:[%s1364 + $0x10] sm:$0xff]
      %v1595 = vld [vmem:[%s1364 + $0x18] sm:$0xff]
      %v1596 = vld [vmem:[%s1364 + $0x20] sm:$0xff]
      %v1597 = vld [vmem:[%s1364 + $0x28] sm:$0xff]
      %v1598 = vld [vmem:[%s1364 + $0x30] sm:$0xff]
      %v1599 = vld [vmem:[%s1364 + $0x38] sm:$0xff]
      %v1600 = vld [vmem:[%s1367] sm:$0x1]
      %v1601 = vpack.c.bf16 %v1480, %v1480
      %v1602 = vpack.c.bf16 %v1485, %v1484
      %v1603 = vpack.c.bf16 %v1487, %v1486
      %v1604 = vpack.c.bf16 %v1489, %v1488
      %v1605 = vpack.c.bf16 %v1491, %v1490
      %v1606 = vpack.c.bf16 %v1493, %v1492
      %v1607 = vpack.c.bf16 %v1495, %v1494
      %v1608 = vpack.c.bf16 %v1497, %v1496
      %v1609 = vpack.c.bf16 %v1499, %v1498
      %v1610 = vpack.c.bf16 %v1501, %v1500
      %v1611 = vpack.c.bf16 %v1503, %v1502
      %v1612 = vpack.c.bf16 %v1505, %v1504
      %v1613 = vpack.c.bf16 %v1507, %v1506
      %v1614 = vpack.c.bf16 %v1509, %v1508
      %v1615 = vpack.c.bf16 %v1511, %v1510
      %v1616 = vpack.c.bf16 %v1513, %v1512
      %v1617 = vpack.c.bf16 %v1515, %v1514
      %v1622 = vlaneseq
      %v1623 = vshrl.u32 %v1622, 7
      %v1624 = vsub.s32 0, %v1623
      %v1625 = vrot.slane %v1516, %v1624
      %v1626 = vlaneseq
      %v1627 = vshrl.u32 %v1626, 7
      %v1628 = vsub.s32 0, %v1627
      %v1629 = vrot.slane %v1517, %v1628
      %v1630 = vlaneseq
      %v1631 = vshrl.u32 %v1630, 7
      %v1632 = vsub.s32 0, %v1631
      %v1633 = vrot.slane %v1518, %v1632
      %v1634 = vlaneseq
      %v1635 = vshrl.u32 %v1634, 7
      %v1636 = vsub.s32 0, %v1635
      %v1637 = vrot.slane %v1519, %v1636
      %vm1642 = vcmask 523264
      %v1644 = vsel %vm1642, %v1601, 0
      %1646 = vmatprep.subr.bf16.mxu0 0
      %1647 = vmatpush1.bf16.msra.mxu0 %v1602
      %1648 = vmatprep.subr.bf16.mxu0 0
      %1649 = vmatpush1.bf16.msra.mxu0 %v1603
      %1650 = vmatprep.subr.bf16.mxu0 0
      %1651 = vmatpush1.bf16.msra.mxu0 %v1604
      %1652 = vmatprep.subr.bf16.mxu0 0
      %1653 = vmatpush1.bf16.msra.mxu0 %v1605
      %1654 = vmatprep.subr.bf16.mxu0 0
      %1655 = vmatpush1.bf16.msra.mxu0 0
      %1656 = vmatprep.subr.bf16.mxu0 0
      %1657 = vmatpush1.bf16.msra.mxu0 0
      %1658 = vmatprep.subr.bf16.mxu0 0
      %1659 = vmatpush1.bf16.msra.mxu0 0
      %1660 = vmatprep.subr.bf16.mxu0 0
      %1661 = vmatpush1.bf16.msra.mxu0 0
      %1662 = vmatprep.subr.bf16.mxu0 0
      %1663 = vmatpush1.bf16.msra.mxu0 0
      %1664 = vmatprep.subr.bf16.mxu0 0
      %1665 = vmatpush1.bf16.msra.mxu0 0
      %1666 = vmatprep.subr.bf16.mxu0 0
      %1667 = vmatpush1.bf16.msra.mxu0 0
      %1668 = vmatprep.subr.bf16.mxu0 0
      %1669 = vmatpush1.bf16.msra.mxu0 0
      %1670 = vmatprep.subr.bf16.mxu0 0
      %1671 = vmatpush1.bf16.msra.mxu0 0
      %1672 = vmatprep.subr.bf16.mxu0 0
      %1673 = vmatpush1.bf16.msra.mxu0 0
      %1674 = vmatprep.subr.bf16.mxu0 0
      %1675 = vmatpush1.bf16.msra.mxu0 0
      %1676 = vmatprep.subr.bf16.mxu0 0
      %1677 = vmatpush1.bf16.msra.mxu0 0
      %1678 = vmatprep.mubr.bf16.mxu0 0
      %1679 = vmatmul.mubr.bf16.gmra.mrb[0].mxu0 %v1644
      %v1680 = vpop.f32.mrb[0].mxu0
      %v1681 = vadd.f32 %v1625, %v1680
      %v1682 = vpop.f32.mrb[0].mxu0
      %v1683 = vpop.f32.mrb[0].mxu0
      %v1684 = vpop.f32.mrb[0].mxu0
      %1685 = vdwg.mxu0
      %1686 = vmatprep.subr.bf16.mxu0 0
      %1687 = vmatpush1.bf16.msra.mxu0 %v1606
      %1688 = vmatprep.subr.bf16.mxu0 0
      %1689 = vmatpush1.bf16.msra.mxu0 %v1607
      %1690 = vmatprep.subr.bf16.mxu0 0
      %1691 = vmatpush1.bf16.msra.mxu0 %v1608
      %1692 = vmatprep.subr.bf16.mxu0 0
      %1693 = vmatpush1.bf16.msra.mxu0 %v1609
      %1694 = vmatprep.subr.bf16.mxu0 0
      %1695 = vmatpush1.bf16.msra.mxu0 0
      %1696 = vmatprep.subr.bf16.mxu0 0
      %1697 = vmatpush1.bf16.msra.mxu0 0
      %1698 = vmatprep.subr.bf16.mxu0 0
      %1699 = vmatpush1.bf16.msra.mxu0 0
      %1700 = vmatprep.subr.bf16.mxu0 0
      %1701 = vmatpush1.bf16.msra.mxu0 0
      %1702 = vmatprep.subr.bf16.mxu0 0
      %1703 = vmatpush1.bf16.msra.mxu0 0
      %1704 = vmatprep.subr.bf16.mxu0 0
      %1705 = vmatpush1.bf16.msra.mxu0 0
      %1706 = vmatprep.subr.bf16.mxu0 0
      %1707 = vmatpush1.bf16.msra.mxu0 0
      %1708 = vmatprep.subr.bf16.mxu0 0
      %1709 = vmatpush1.bf16.msra.mxu0 0
      %1710 = vmatprep.subr.bf16.mxu0 0
      %1711 = vmatpush1.bf16.msra.mxu0 0
      %1712 = vmatprep.subr.bf16.mxu0 0
      %1713 = vmatpush1.bf16.msra.mxu0 0
      %1714 = vmatprep.subr.bf16.mxu0 0
      %1715 = vmatpush1.bf16.msra.mxu0 0
      %1716 = vmatprep.subr.bf16.mxu0 0
      %1717 = vmatpush1.bf16.msra.mxu0 0
      %1718 = vmatprep.mubr.bf16.mxu0 0
      %1719 = vmatmul.mubr.bf16.gmra.mrb[0].mxu0 %v1644
      %v1720 = vpop.f32.mrb[0].mxu0
      %v1721 = vadd.f32 %v1629, %v1720
      %v1722 = vpop.f32.mrb[0].mxu0
      %v1723 = vpop.f32.mrb[0].mxu0
      %v1724 = vpop.f32.mrb[0].mxu0
      %1725 = vdwg.mxu0
      %1726 = vmatprep.subr.bf16.mxu0 0
      %1727 = vmatpush1.bf16.msra.mxu0 %v1610
      %1728 = vmatprep.subr.bf16.mxu0 0
      %1729 = vmatpush1.bf16.msra.mxu0 %v1611
      %1730 = vmatprep.subr.bf16.mxu0 0
      %1731 = vmatpush1.bf16.msra.mxu0 %v1612
      %1732 = vmatprep.subr.bf16.mxu0 0
      %1733 = vmatpush1.bf16.msra.mxu0 %v1613
      %1734 = vmatprep.subr.bf16.mxu0 0
      %1735 = vmatpush1.bf16.msra.mxu0 0
      %1736 = vmatprep.subr.bf16.mxu0 0
      %1737 = vmatpush1.bf16.msra.mxu0 0
      %1738 = vmatprep.subr.bf16.mxu0 0
      %1739 = vmatpush1.bf16.msra.mxu0 0
      %1740 = vmatprep.subr.bf16.mxu0 0
      %1741 = vmatpush1.bf16.msra.mxu0 0
      %1742 = vmatprep.subr.bf16.mxu0 0
      %1743 = vmatpush1.bf16.msra.mxu0 0
      %1744 = vmatprep.subr.bf16.mxu0 0
      %1745 = vmatpush1.bf16.msra.mxu0 0
      %1746 = vmatprep.subr.bf16.mxu0 0
      %1747 = vmatpush1.bf16.msra.mxu0 0
      %1748 = vmatprep.subr.bf16.mxu0 0
      %1749 = vmatpush1.bf16.msra.mxu0 0
      %1750 = vmatprep.subr.bf16.mxu0 0
      %1751 = vmatpush1.bf16.msra.mxu0 0
      %1752 = vmatprep.subr.bf16.mxu0 0
      %1753 = vmatpush1.bf16.msra.mxu0 0
      %1754 = vmatprep.subr.bf16.mxu0 0
      %1755 = vmatpush1.bf16.msra.mxu0 0
      %1756 = vmatprep.subr.bf16.mxu0 0
      %1757 = vmatpush1.bf16.msra.mxu0 0
      %1758 = vmatprep.mubr.bf16.mxu0 0
      %1759 = vmatmul.mubr.bf16.gmra.mrb[0].mxu0 %v1644
      %v1760 = vpop.f32.mrb[0].mxu0
      %v1761 = vadd.f32 %v1633, %v1760
      %v1762 = vpop.f32.mrb[0].mxu0
      %v1763 = vpop.f32.mrb[0].mxu0
      %v1764 = vpop.f32.mrb[0].mxu0
      %1765 = vdwg.mxu0
      %1766 = vmatprep.subr.bf16.mxu0 0
      %1767 = vmatpush1.bf16.msra.mxu0 %v1614
      %1768 = vmatprep.subr.bf16.mxu0 0
      %1769 = vmatpush1.bf16.msra.mxu0 %v1615
      %1770 = vmatprep.subr.bf16.mxu0 0
      %1771 = vmatpush1.bf16.msra.mxu0 %v1616
      %1772 = vmatprep.subr.bf16.mxu0 0
      %1773 = vmatpush1.bf16.msra.mxu0 %v1617
      %1774 = vmatprep.subr.bf16.mxu0 0
      %1775 = vmatpush1.bf16.msra.mxu0 0
      %1776 = vmatprep.subr.bf16.mxu0 0
      %1777 = vmatpush1.bf16.msra.mxu0 0
      %1778 = vmatprep.subr.bf16.mxu0 0
      %1779 = vmatpush1.bf16.msra.mxu0 0
      %1780 = vmatprep.subr.bf16.mxu0 0
      %1781 = vmatpush1.bf16.msra.mxu0 0
      %1782 = vmatprep.subr.bf16.mxu0 0
      %1783 = vmatpush1.bf16.msra.mxu0 0
      %1784 = vmatprep.subr.bf16.mxu0 0
      %1785 = vmatpush1.bf16.msra.mxu0 0
      %1786 = vmatprep.subr.bf16.mxu0 0
      %1787 = vmatpush1.bf16.msra.mxu0 0
      %1788 = vmatprep.subr.bf16.mxu0 0
      %1789 = vmatpush1.bf16.msra.mxu0 0
      %1790 = vmatprep.subr.bf16.mxu0 0
      %1791 = vmatpush1.bf16.msra.mxu0 0
      %1792 = vmatprep.subr.bf16.mxu0 0
      %1793 = vmatpush1.bf16.msra.mxu0 0
      %1794 = vmatprep.subr.bf16.mxu0 0
      %1795 = vmatpush1.bf16.msra.mxu0 0
      %1796 = vmatprep.subr.bf16.mxu0 0
      %1797 = vmatpush1.bf16.msra.mxu0 0
      %1798 = vmatprep.mubr.bf16.mxu0 0
      %1799 = vmatmul.mubr.bf16.gmra.mrb[0].mxu0 %v1644
      %v1800 = vpop.f32.mrb[0].mxu0
      %v1801 = vadd.f32 %v1637, %v1800
      %v1802 = vpop.f32.mrb[0].mxu0
      %v1803 = vpop.f32.mrb[0].mxu0
      %v1804 = vpop.f32.mrb[0].mxu0
      %1805 = vdwg.mxu0
      %v1806 = vpack.c.bf16 %v1521, %v1520
      %v1807 = vpack.c.bf16 %v1523, %v1522
      %v1808 = vpack.c.bf16 %v1525, %v1524
      %v1809 = vpack.c.bf16 %v1527, %v1526
      %v1810 = vpack.c.bf16 %v1529, %v1528
      %v1811 = vpack.c.bf16 %v1531, %v1530
      %v1812 = vpack.c.bf16 %v1533, %v1532
      %v1813 = vpack.c.bf16 %v1535, %v1534
      %v1814 = vpack.c.bf16 %v1537, %v1536
      %v1815 = vpack.c.bf16 %v1539, %v1538
      %v1816 = vpack.c.bf16 %v1541, %v1540
      %v1817 = vpack.c.bf16 %v1543, %v1542
      %v1818 = vpack.c.bf16 %v1545, %v1544
      %v1819 = vpack.c.bf16 %v1547, %v1546
      %v1820 = vpack.c.bf16 %v1549, %v1548
      %v1821 = vpack.c.bf16 %v1551, %v1550
      %v1826 = vlaneseq
      %v1827 = vshrl.u32 %v1826, 7
      %v1828 = vsub.s32 0, %v1827
      %v1829 = vrot.slane %v1552, %v1828
      %v1830 = vlaneseq
      %v1831 = vshrl.u32 %v1830, 7
      %v1832 = vsub.s32 0, %v1831
      %v1833 = vrot.slane %v1553, %v1832
      %v1834 = vlaneseq
      %v1835 = vshrl.u32 %v1834, 7
      %v1836 = vsub.s32 0, %v1835
      %v1837 = vrot.slane %v1554, %v1836
      %v1838 = vlaneseq
      %v1839 = vshrl.u32 %v1838, 7
      %v1840 = vsub.s32 0, %v1839
      %v1841 = vrot.slane %v1555, %v1840
      %1846 = vmatprep.subr.bf16.mxu0 0
      %1847 = vmatpush1.bf16.msra.mxu0 %v1806
      %1848 = vmatprep.subr.bf16.mxu0 0
      %1849 = vmatpush1.bf16.msra.mxu0 %v1807
      %1850 = vmatprep.subr.bf16.mxu0 0
      %1851 = vmatpush1.bf16.msra.mxu0 %v1808
      %1852 = vmatprep.subr.bf16.mxu0 0
      %1853 = vmatpush1.bf16.msra.mxu0 %v1809
      %1854 = vmatprep.subr.bf16.mxu0 0
      %1855 = vmatpush1.bf16.msra.mxu0 0
      %1856 = vmatprep.subr.bf16.mxu0 0
      %1857 = vmatpush1.bf16.msra.mxu0 0
      %1858 = vmatprep.subr.bf16.mxu0 0
      %1859 = vmatpush1.bf16.msra.mxu0 0
      %1860 = vmatprep.subr.bf16.mxu0 0
      %1861 = vmatpush1.bf16.msra.mxu0 0
      %1862 = vmatprep.subr.bf16.mxu0 0
      %1863 = vmatpush1.bf16.msra.mxu0 0
      %1864 = vmatprep.subr.bf16.mxu0 0
      %1865 = vmatpush1.bf16.msra.mxu0 0
      %1866 = vmatprep.subr.bf16.mxu0 0
      %1867 = vmatpush1.bf16.msra.mxu0 0
      %1868 = vmatprep.subr.bf16.mxu0 0
      %1869 = vmatpush1.bf16.msra.mxu0 0
      %1870 = vmatprep.subr.bf16.mxu0 0
      %1871 = vmatpush1.bf16.msra.mxu0 0
      %1872 = vmatprep.subr.bf16.mxu0 0
      %1873 = vmatpush1.bf16.msra.mxu0 0
      %1874 = vmatprep.subr.bf16.mxu0 0
      %1875 = vmatpush1.bf16.msra.mxu0 0
      %1876 = vmatprep.subr.bf16.mxu0 0
      %1877 = vmatpush1.bf16.msra.mxu0 0
      %1878 = vmatprep.mubr.bf16.mxu0 0
      %1879 = vmatmul.mubr.bf16.gmra.mrb[0].mxu0 %v1644
      %v1880 = vpop.f32.mrb[0].mxu0
      %v1881 = vadd.f32 %v1829, %v1880
      %v1882 = vpop.f32.mrb[0].mxu0
      %v1883 = vpop.f32.mrb[0].mxu0
      %v1884 = vpop.f32.mrb[0].mxu0
      %1885 = vdwg.mxu0
      %1886 = vmatprep.subr.bf16.mxu0 0
      %1887 = vmatpush1.bf16.msra.mxu0 %v1810
      %1888 = vmatprep.subr.bf16.mxu0 0
      %1889 = vmatpush1.bf16.msra.mxu0 %v1811
      %1890 = vmatprep.subr.bf16.mxu0 0
      %1891 = vmatpush1.bf16.msra.mxu0 %v1812
      %1892 = vmatprep.subr.bf16.mxu0 0
      %1893 = vmatpush1.bf16.msra.mxu0 %v1813
      %1894 = vmatprep.subr.bf16.mxu0 0
      %1895 = vmatpush1.bf16.msra.mxu0 0
      %1896 = vmatprep.subr.bf16.mxu0 0
      %1897 = vmatpush1.bf16.msra.mxu0 0
      %1898 = vmatprep.subr.bf16.mxu0 0
      %1899 = vmatpush1.bf16.msra.mxu0 0
      %1900 = vmatprep.subr.bf16.mxu0 0
      %1901 = vmatpush1.bf16.msra.mxu0 0
      %1902 = vmatprep.subr.bf16.mxu0 0
      %1903 = vmatpush1.bf16.msra.mxu0 0
      %1904 = vmatprep.subr.bf16.mxu0 0
      %1905 = vmatpush1.bf16.msra.mxu0 0
      %1906 = vmatprep.subr.bf16.mxu0 0
      %1907 = vmatpush1.bf16.msra.mxu0 0
      %1908 = vmatprep.subr.bf16.mxu0 0
      %1909 = vmatpush1.bf16.msra.mxu0 0
      %1910 = vmatprep.subr.bf16.mxu0 0
      %1911 = vmatpush1.bf16.msra.mxu0 0
      %1912 = vmatprep.subr.bf16.mxu0 0
      %1913 = vmatpush1.bf16.msra.mxu0 0
      %1914 = vmatprep.subr.bf16.mxu0 0
      %1915 = vmatpush1.bf16.msra.mxu0 0
      %1916 = vmatprep.subr.bf16.mxu0 0
      %1917 = vmatpush1.bf16.msra.mxu0 0
      %1918 = vmatprep.mubr.bf16.mxu0 0
      %1919 = vmatmul.mubr.bf16.gmra.mrb[0].mxu0 %v1644
      %v1920 = vpop.f32.mrb[0].mxu0
      %v1921 = vadd.f32 %v1833, %v1920
      %v1922 = vpop.f32.mrb[0].mxu0
      %v1923 = vpop.f32.mrb[0].mxu0
      %v1924 = vpop.f32.mrb[0].mxu0
      %1925 = vdwg.mxu0
      %1926 = vmatprep.subr.bf16.mxu0 0
      %1927 = vmatpush1.bf16.msra.mxu0 %v1814
      %1928 = vmatprep.subr.bf16.mxu0 0
      %1929 = vmatpush1.bf16.msra.mxu0 %v1815
      %1930 = vmatprep.subr.bf16.mxu0 0
      %1931 = vmatpush1.bf16.msra.mxu0 %v1816
      %1932 = vmatprep.subr.bf16.mxu0 0
      %1933 = vmatpush1.bf16.msra.mxu0 %v1817
      %1934 = vmatprep.subr.bf16.mxu0 0
      %1935 = vmatpush1.bf16.msra.mxu0 0
      %1936 = vmatprep.subr.bf16.mxu0 0
      %1937 = vmatpush1.bf16.msra.mxu0 0
      %1938 = vmatprep.subr.bf16.mxu0 0
      %1939 = vmatpush1.bf16.msra.mxu0 0
      %1940 = vmatprep.subr.bf16.mxu0 0
      %1941 = vmatpush1.bf16.msra.mxu0 0
      %1942 = vmatprep.subr.bf16.mxu0 0
      %1943 = vmatpush1.bf16.msra.mxu0 0
      %1944 = vmatprep.subr.bf16.mxu0 0
      %1945 = vmatpush1.bf16.msra.mxu0 0
      %1946 = vmatprep.subr.bf16.mxu0 0
      %1947 = vmatpush1.bf16.msra.mxu0 0
      %1948 = vmatprep.subr.bf16.mxu0 0
      %1949 = vmatpush1.bf16.msra.mxu0 0
      %1950 = vmatprep.subr.bf16.mxu0 0
      %1951 = vmatpush1.bf16.msra.mxu0 0
      %1952 = vmatprep.subr.bf16.mxu0 0
      %1953 = vmatpush1.bf16.msra.mxu0 0
      %1954 = vmatprep.subr.bf16.mxu0 0
      %1955 = vmatpush1.bf16.msra.mxu0 0
      %1956 = vmatprep.subr.bf16.mxu0 0
      %1957 = vmatpush1.bf16.msra.mxu0 0
      %1958 = vmatprep.mubr.bf16.mxu0 0
      %1959 = vmatmul.mubr.bf16.gmra.mrb[0].mxu0 %v1644
      %v1960 = vpop.f32.mrb[0].mxu0
      %v1961 = vadd.f32 %v1837, %v1960
      %v1962 = vpop.f32.mrb[0].mxu0
      %v1963 = vpop.f32.mrb[0].mxu0
      %v1964 = vpop.f32.mrb[0].mxu0
      %1965 = vdwg.mxu0
      %1966 = vmatprep.subr.bf16.mxu0 0
      %1967 = vmatpush1.bf16.msra.mxu0 %v1818
      %1968 = vmatprep.subr.bf16.mxu0 0
      %1969 = vmatpush1.bf16.msra.mxu0 %v1819
      %1970 = vmatprep.subr.bf16.mxu0 0
      %1971 = vmatpush1.bf16.msra.mxu0 %v1820
      %1972 = vmatprep.subr.bf16.mxu0 0
      %1973 = vmatpush1.bf16.msra.mxu0 %v1821
      %1974 = vmatprep.subr.bf16.mxu0 0
      %1975 = vmatpush1.bf16.msra.mxu0 0
      %1976 = vmatprep.subr.bf16.mxu0 0
      %1977 = vmatpush1.bf16.msra.mxu0 0
      %1978 = vmatprep.subr.bf16.mxu0 0
      %1979 = vmatpush1.bf16.msra.mxu0 0
      %1980 = vmatprep.subr.bf16.mxu0 0
      %1981 = vmatpush1.bf16.msra.mxu0 0
      %1982 = vmatprep.subr.bf16.mxu0 0
      %1983 = vmatpush1.bf16.msra.mxu0 0
      %1984 = vmatprep.subr.bf16.mxu0 0
      %1985 = vmatpush1.bf16.msra.mxu0 0
      %1986 = vmatprep.subr.bf16.mxu0 0
      %1987 = vmatpush1.bf16.msra.mxu0 0
      %1988 = vmatprep.subr.bf16.mxu0 0
      %1989 = vmatpush1.bf16.msra.mxu0 0
      %1990 = vmatprep.subr.bf16.mxu0 0
      %1991 = vmatpush1.bf16.msra.mxu0 0
      %1992 = vmatprep.subr.bf16.mxu0 0
      %1993 = vmatpush1.bf16.msra.mxu0 0
      %1994 = vmatprep.subr.bf16.mxu0 0
      %1995 = vmatpush1.bf16.msra.mxu0 0
      %1996 = vmatprep.subr.bf16.mxu0 0
      %1997 = vmatpush1.bf16.msra.mxu0 0
      %1998 = vmatprep.mubr.bf16.mxu0 0
      %1999 = vmatmul.mubr.bf16.gmra.mrb[0].mxu0 %v1644
      %v2000 = vpop.f32.mrb[0].mxu0
      %v2001 = vadd.f32 %v1841, %v2000
      %v2002 = vpop.f32.mrb[0].mxu0
      %v2003 = vpop.f32.mrb[0].mxu0
      %v2004 = vpop.f32.mrb[0].mxu0
      %2005 = vdwg.mxu0
      %v2006 = vpack.c.bf16 %v1557, %v1556
      %v2007 = vpack.c.bf16 %v1559, %v1558
      %v2008 = vpack.c.bf16 %v1561, %v1560
      %v2009 = vpack.c.bf16 %v1563, %v1562
      %v2010 = vpack.c.bf16 %v1565, %v1564
      %v2011 = vpack.c.bf16 %v1567, %v1566
      %v2012 = vpack.c.bf16 %v1569, %v1568
      %v2013 = vpack.c.bf16 %v1571, %v1570
      %v2014 = vpack.c.bf16 %v1573, %v1572
      %v2015 = vpack.c.bf16 %v1575, %v1574
      %v2016 = vpack.c.bf16 %v1577, %v1576
      %v2017 = vpack.c.bf16 %v1579, %v1578
      %v2018 = vpack.c.bf16 %v1581, %v1580
      %v2019 = vpack.c.bf16 %v1583, %v1582
      %v2020 = vpack.c.bf16 %v1585, %v1584
      %v2021 = vpack.c.bf16 %v1587, %v1586
      %v2026 = vlaneseq
      %v2027 = vshrl.u32 %v2026, 7
      %v2028 = vsub.s32 0, %v2027
      %v2029 = vrot.slane %v1588, %v2028
      %v2030 = vlaneseq
      %v2031 = vshrl.u32 %v2030, 7
      %v2032 = vsub.s32 0, %v2031
      %v2033 = vrot.slane %v1589, %v2032
      %v2034 = vlaneseq
      %v2035 = vshrl.u32 %v2034, 7
      %v2036 = vsub.s32 0, %v2035
      %v2037 = vrot.slane %v1590, %v2036
      %v2038 = vlaneseq
      %v2039 = vshrl.u32 %v2038, 7
      %v2040 = vsub.s32 0, %v2039
      %v2041 = vrot.slane %v1591, %v2040
      %2046 = vmatprep.subr.bf16.mxu0 0
      %2047 = vmatpush1.bf16.msra.mxu0 %v2006
      %2048 = vmatprep.subr.bf16.mxu0 0
      %2049 = vmatpush1.bf16.msra.mxu0 %v2007
      %2050 = vmatprep.subr.bf16.mxu0 0
      %2051 = vmatpush1.bf16.msra.mxu0 %v2008
      %2052 = vmatprep.subr.bf16.mxu0 0
      %2053 = vmatpush1.bf16.msra.mxu0 %v2009
      %2054 = vmatprep.subr.bf16.mxu0 0
      %2055 = vmatpush1.bf16.msra.mxu0 0
      %2056 = vmatprep.subr.bf16.mxu0 0
      %2057 = vmatpush1.bf16.msra.mxu0 0
      %2058 = vmatprep.subr.bf16.mxu0 0
      %2059 = vmatpush1.bf16.msra.mxu0 0
      %2060 = vmatprep.subr.bf16.mxu0 0
      %2061 = vmatpush1.bf16.msra.mxu0 0
      %2062 = vmatprep.subr.bf16.mxu0 0
      %2063 = vmatpush1.bf16.msra.mxu0 0
      %2064 = vmatprep.subr.bf16.mxu0 0
      %2065 = vmatpush1.bf16.msra.mxu0 0
      %2066 = vmatprep.subr.bf16.mxu0 0
      %2067 = vmatpush1.bf16.msra.mxu0 0
      %2068 = vmatprep.subr.bf16.mxu0 0
      %2069 = vmatpush1.bf16.msra.mxu0 0
      %2070 = vmatprep.subr.bf16.mxu0 0
      %2071 = vmatpush1.bf16.msra.mxu0 0
      %2072 = vmatprep.subr.bf16.mxu0 0
      %2073 = vmatpush1.bf16.msra.mxu0 0
      %2074 = vmatprep.subr.bf16.mxu0 0
      %2075 = vmatpush1.bf16.msra.mxu0 0
      %2076 = vmatprep.subr.bf16.mxu0 0
      %2077 = vmatpush1.bf16.msra.mxu0 0
      %2078 = vmatprep.mubr.bf16.mxu0 0
      %2079 = vmatmul.mubr.bf16.gmra.mrb[0].mxu0 %v1644
      %v2080 = vpop.f32.mrb[0].mxu0
      %v2081 = vadd.f32 %v2029, %v2080
      %v2082 = vpop.f32.mrb[0].mxu0
      %v2083 = vpop.f32.mrb[0].mxu0
      %v2084 = vpop.f32.mrb[0].mxu0
      %2085 = vdwg.mxu0
      %2086 = vmatprep.subr.bf16.mxu0 0
      %2087 = vmatpush1.bf16.msra.mxu0 %v2010
      %2088 = vmatprep.subr.bf16.mxu0 0
      %2089 = vmatpush1.bf16.msra.mxu0 %v2011
      %2090 = vmatprep.subr.bf16.mxu0 0
      %2091 = vmatpush1.bf16.msra.mxu0 %v2012
      %2092 = vmatprep.subr.bf16.mxu0 0
      %2093 = vmatpush1.bf16.msra.mxu0 %v2013
      %2094 = vmatprep.subr.bf16.mxu0 0
      %2095 = vmatpush1.bf16.msra.mxu0 0
      %2096 = vmatprep.subr.bf16.mxu0 0
      %2097 = vmatpush1.bf16.msra.mxu0 0
      %2098 = vmatprep.subr.bf16.mxu0 0
      %2099 = vmatpush1.bf16.msra.mxu0 0
      %2100 = vmatprep.subr.bf16.mxu0 0
      %2101 = vmatpush1.bf16.msra.mxu0 0
      %2102 = vmatprep.subr.bf16.mxu0 0
      %2103 = vmatpush1.bf16.msra.mxu0 0
      %2104 = vmatprep.subr.bf16.mxu0 0
      %2105 = vmatpush1.bf16.msra.mxu0 0
      %2106 = vmatprep.subr.bf16.mxu0 0
      %2107 = vmatpush1.bf16.msra.mxu0 0
      %2108 = vmatprep.subr.bf16.mxu0 0
      %2109 = vmatpush1.bf16.msra.mxu0 0
      %2110 = vmatprep.subr.bf16.mxu0 0
      %2111 = vmatpush1.bf16.msra.mxu0 0
      %2112 = vmatprep.subr.bf16.mxu0 0
      %2113 = vmatpush1.bf16.msra.mxu0 0
      %2114 = vmatprep.subr.bf16.mxu0 0
      %2115 = vmatpush1.bf16.msra.mxu0 0
      %2116 = vmatprep.subr.bf16.mxu0 0
      %2117 = vmatpush1.bf16.msra.mxu0 0
      %2118 = vmatprep.mubr.bf16.mxu0 0
      %2119 = vmatmul.mubr.bf16.gmra.mrb[0].mxu0 %v1644
      %v2120 = vpop.f32.mrb[0].mxu0
      %v2121 = vadd.f32 %v2033, %v2120
      %v2122 = vpop.f32.mrb[0].mxu0
      %v2123 = vpop.f32.mrb[0].mxu0
      %v2124 = vpop.f32.mrb[0].mxu0
      %2125 = vdwg.mxu0
      %2126 = vmatprep.subr.bf16.mxu0 0
      %2127 = vmatpush1.bf16.msra.mxu0 %v2014
      %2128 = vmatprep.subr.bf16.mxu0 0
      %2129 = vmatpush1.bf16.msra.mxu0 %v2015
      %2130 = vmatprep.subr.bf16.mxu0 0
      %2131 = vmatpush1.bf16.msra.mxu0 %v2016
      %2132 = vmatprep.subr.bf16.mxu0 0
      %2133 = vmatpush1.bf16.msra.mxu0 %v2017
      %2134 = vmatprep.subr.bf16.mxu0 0
      %2135 = vmatpush1.bf16.msra.mxu0 0
      %2136 = vmatprep.subr.bf16.mxu0 0
      %2137 = vmatpush1.bf16.msra.mxu0 0
      %2138 = vmatprep.subr.bf16.mxu0 0
      %2139 = vmatpush1.bf16.msra.mxu0 0
      %2140 = vmatprep.subr.bf16.mxu0 0
      %2141 = vmatpush1.bf16.msra.mxu0 0
      %2142 = vmatprep.subr.bf16.mxu0 0
      %2143 = vmatpush1.bf16.msra.mxu0 0
      %2144 = vmatprep.subr.bf16.mxu0 0
      %2145 = vmatpush1.bf16.msra.mxu0 0
      %2146 = vmatprep.subr.bf16.mxu0 0
      %2147 = vmatpush1.bf16.msra.mxu0 0
      %2148 = vmatprep.subr.bf16.mxu0 0
      %2149 = vmatpush1.bf16.msra.mxu0 0
      %2150 = vmatprep.subr.bf16.mxu0 0
      %2151 = vmatpush1.bf16.msra.mxu0 0
      %2152 = vmatprep.subr.bf16.mxu0 0
      %2153 = vmatpush1.bf16.msra.mxu0 0
      %2154 = vmatprep.subr.bf16.mxu0 0
      %2155 = vmatpush1.bf16.msra.mxu0 0
      %2156 = vmatprep.subr.bf16.mxu0 0
      %2157 = vmatpush1.bf16.msra.mxu0 0
      %2158 = vmatprep.mubr.bf16.mxu0 0
      %2159 = vmatmul.mubr.bf16.gmra.mrb[0].mxu0 %v1644
      %v2160 = vpop.f32.mrb[0].mxu0
      %v2161 = vadd.f32 %v2037, %v2160
      %v2162 = vpop.f32.mrb[0].mxu0
      %v2163 = vpop.f32.mrb[0].mxu0
      %v2164 = vpop.f32.mrb[0].mxu0
      %2165 = vdwg.mxu0
      %2166 = vmatprep.subr.bf16.mxu0 0
      %2167 = vmatpush1.bf16.msra.mxu0 %v2018
      %2168 = vmatprep.subr.bf16.mxu0 0
      %2169 = vmatpush1.bf16.msra.mxu0 %v2019
      %2170 = vmatprep.subr.bf16.mxu0 0
      %2171 = vmatpush1.bf16.msra.mxu0 %v2020
      %2172 = vmatprep.subr.bf16.mxu0 0
      %2173 = vmatpush1.bf16.msra.mxu0 %v2021
      %2174 = vmatprep.subr.bf16.mxu0 0
      %2175 = vmatpush1.bf16.msra.mxu0 0
      %2176 = vmatprep.subr.bf16.mxu0 0
      %2177 = vmatpush1.bf16.msra.mxu0 0
      %2178 = vmatprep.subr.bf16.mxu0 0
      %2179 = vmatpush1.bf16.msra.mxu0 0
      %2180 = vmatprep.subr.bf16.mxu0 0
      %2181 = vmatpush1.bf16.msra.mxu0 0
      %2182 = vmatprep.subr.bf16.mxu0 0
      %2183 = vmatpush1.bf16.msra.mxu0 0
      %2184 = vmatprep.subr.bf16.mxu0 0
      %2185 = vmatpush1.bf16.msra.mxu0 0
      %2186 = vmatprep.subr.bf16.mxu0 0
      %2187 = vmatpush1.bf16.msra.mxu0 0
      %2188 = vmatprep.subr.bf16.mxu0 0
      %2189 = vmatpush1.bf16.msra.mxu0 0
      %2190 = vmatprep.subr.bf16.mxu0 0
      %2191 = vmatpush1.bf16.msra.mxu0 0
      %2192 = vmatprep.subr.bf16.mxu0 0
      %2193 = vmatpush1.bf16.msra.mxu0 0
      %2194 = vmatprep.subr.bf16.mxu0 0
      %2195 = vmatpush1.bf16.msra.mxu0 0
      %2196 = vmatprep.subr.bf16.mxu0 0
      %2197 = vmatpush1.bf16.msra.mxu0 0
      %2198 = vmatprep.mubr.bf16.mxu0 0
      %2199 = vmatmul.mubr.bf16.gmra.mrb[0].mxu0 %v1644
      %v2200 = vpop.f32.mrb[0].mxu0
      %v2201 = vadd.f32 %v2041, %v2200
      %v2202 = vpop.f32.mrb[0].mxu0
      %v2203 = vpop.f32.mrb[0].mxu0
      %v2204 = vpop.f32.mrb[0].mxu0
      %2205 = vdwg.mxu0
      %v2206 = vpack.c.bf16 %v1681, %v1681
      %v2207 = vpack.c.bf16 %v1721, %v1721
      %v2208 = vpack.c.bf16 %v1761, %v1761
      %v2209 = vpack.c.bf16 %v1801, %v1801
      %v2210 = vpack.c.bf16 %v1881, %v1881
      %v2211 = vpack.c.bf16 %v1921, %v1921
      %v2212 = vpack.c.bf16 %v1961, %v1961
      %v2213 = vpack.c.bf16 %v2001, %v2001
      %vm2214 = vcmask 130048
      %v2216 = vsel %vm2214, %v2206, 0
      %v2219 = vsel %vm2214, %v2210, 0
      %2221 = vmatprep.subr.bf16.mxu0 0
      %2222 = vmatpush1.bf16.xpose.msra.mxu0 %v2219
      %2223 = vmatprep.subr.bf16.mxu0 0
      %2224 = vmatpush1.bf16.xpose.msra.mxu0 0
      %2225 = vmatprep.subr.bf16.mxu0 0
      %2226 = vmatpush1.bf16.xpose.msra.mxu0 0
      %2227 = vmatprep.subr.bf16.mxu0 0
      %2228 = vmatpush1.bf16.xpose.msra.mxu0 0
      %2229 = vmatprep.subr.bf16.mxu0 0
      %2230 = vmatpush1.bf16.xpose.msra.mxu0 0
      %2231 = vmatprep.subr.bf16.mxu0 0
      %2232 = vmatpush1.bf16.xpose.msra.mxu0 0
      %2233 = vmatprep.subr.bf16.mxu0 0
      %2234 = vmatpush1.bf16.xpose.msra.mxu0 0
      %2235 = vmatprep.subr.bf16.mxu0 0
      %2236 = vmatpush1.bf16.xpose.msra.mxu0 0
      %2237 = vmatprep.subr.bf16.mxu0 0
      %2238 = vmatpush1.bf16.xpose.msra.mxu0 0
      %2239 = vmatprep.subr.bf16.mxu0 0
      %2240 = vmatpush1.bf16.xpose.msra.mxu0 0
      %2241 = vmatprep.subr.bf16.mxu0 0
      %2242 = vmatpush1.bf16.xpose.msra.mxu0 0
      %2243 = vmatprep.subr.bf16.mxu0 0
      %2244 = vmatpush1.bf16.xpose.msra.mxu0 0
      %2245 = vmatprep.subr.bf16.mxu0 0
      %2246 = vmatpush1.bf16.xpose.msra.mxu0 0
      %2247 = vmatprep.subr.bf16.mxu0 0
      %2248 = vmatpush1.bf16.xpose.msra.mxu0 0
      %2249 = vmatprep.subr.bf16.mxu0 0
      %2250 = vmatpush1.bf16.xpose.msra.mxu0 0
      %2251 = vmatprep.subr.bf16.mxu0 0
      %2252 = vmatpush1.bf16.xpose.msra.mxu0 0
      %2253 = vmatprep.mubr.bf16.mxu0 0
      %2254 = vmatmul.mubr.bf16.gmra.mrb[0].mxu0 %v2216
      %v2255 = vpop.f32.mrb[0].mxu0
      %v2256 = vadd.f32 0.0, %v2255
      %v2257 = vpop.f32.mrb[0].mxu0
      %v2258 = vpop.f32.mrb[0].mxu0
      %v2259 = vpop.f32.mrb[0].mxu0
      %2260 = vdwg.mxu0
      %v2262 = vsel %vm2214, %v2207, 0
      %v2265 = vsel %vm2214, %v2211, 0
      %2267 = vmatprep.subr.bf16.mxu0 0
      %2268 = vmatpush1.bf16.xpose.msra.mxu0 %v2265
      %2269 = vmatprep.subr.bf16.mxu0 0
      %2270 = vmatpush1.bf16.xpose.msra.mxu0 0
      %2271 = vmatprep.subr.bf16.mxu0 0
      %2272 = vmatpush1.bf16.xpose.msra.mxu0 0
      %2273 = vmatprep.subr.bf16.mxu0 0
      %2274 = vmatpush1.bf16.xpose.msra.mxu0 0
      %2275 = vmatprep.subr.bf16.mxu0 0
      %2276 = vmatpush1.bf16.xpose.msra.mxu0 0
      %2277 = vmatprep.subr.bf16.mxu0 0
      %2278 = vmatpush1.bf16.xpose.msra.mxu0 0
      %2279 = vmatprep.subr.bf16.mxu0 0
      %2280 = vmatpush1.bf16.xpose.msra.mxu0 0
      %2281 = vmatprep.subr.bf16.mxu0 0
      %2282 = vmatpush1.bf16.xpose.msra.mxu0 0
      %2283 = vmatprep.subr.bf16.mxu0 0
      %2284 = vmatpush1.bf16.xpose.msra.mxu0 0
      %2285 = vmatprep.subr.bf16.mxu0 0
      %2286 = vmatpush1.bf16.xpose.msra.mxu0 0
      %2287 = vmatprep.subr.bf16.mxu0 0
      %2288 = vmatpush1.bf16.xpose.msra.mxu0 0
      %2289 = vmatprep.subr.bf16.mxu0 0
      %2290 = vmatpush1.bf16.xpose.msra.mxu0 0
      %2291 = vmatprep.subr.bf16.mxu0 0
      %2292 = vmatpush1.bf16.xpose.msra.mxu0 0
      %2293 = vmatprep.subr.bf16.mxu0 0
      %2294 = vmatpush1.bf16.xpose.msra.mxu0 0
      %2295 = vmatprep.subr.bf16.mxu0 0
      %2296 = vmatpush1.bf16.xpose.msra.mxu0 0
      %2297 = vmatprep.subr.bf16.mxu0 0
      %2298 = vmatpush1.bf16.xpose.msra.mxu0 0
      %2299 = vmatprep.mubr.bf16.mxu0 0
      %2300 = vmatmul.mubr.bf16.gmra.mrb[0].mxu0 %v2262
      %v2301 = vpop.f32.mrb[0].mxu0
      %v2302 = vadd.f32 0.0, %v2301
      %v2303 = vpop.f32.mrb[0].mxu0
      %v2304 = vpop.f32.mrb[0].mxu0
      %v2305 = vpop.f32.mrb[0].mxu0
      %2306 = vdwg.mxu0
      %v2308 = vsel %vm2214, %v2208, 0
      %v2311 = vsel %vm2214, %v2212, 0
      %2313 = vmatprep.subr.bf16.mxu0 0
      %2314 = vmatpush1.bf16.xpose.msra.mxu0 %v2311
      %2315 = vmatprep.subr.bf16.mxu0 0
      %2316 = vmatpush1.bf16.xpose.msra.mxu0 0
      %2317 = vmatprep.subr.bf16.mxu0 0
      %2318 = vmatpush1.bf16.xpose.msra.mxu0 0
      %2319 = vmatprep.subr.bf16.mxu0 0
      %2320 = vmatpush1.bf16.xpose.msra.mxu0 0
      %2321 = vmatprep.subr.bf16.mxu0 0
      %2322 = vmatpush1.bf16.xpose.msra.mxu0 0
      %2323 = vmatprep.subr.bf16.mxu0 0
      %2324 = vmatpush1.bf16.xpose.msra.mxu0 0
      %2325 = vmatprep.subr.bf16.mxu0 0
      %2326 = vmatpush1.bf16.xpose.msra.mxu0 0
      %2327 = vmatprep.subr.bf16.mxu0 0
      %2328 = vmatpush1.bf16.xpose.msra.mxu0 0
      %2329 = vmatprep.subr.bf16.mxu0 0
      %2330 = vmatpush1.bf16.xpose.msra.mxu0 0
      %2331 = vmatprep.subr.bf16.mxu0 0
      %2332 = vmatpush1.bf16.xpose.msra.mxu0 0
      %2333 = vmatprep.subr.bf16.mxu0 0
      %2334 = vmatpush1.bf16.xpose.msra.mxu0 0
      %2335 = vmatprep.subr.bf16.mxu0 0
      %2336 = vmatpush1.bf16.xpose.msra.mxu0 0
      %2337 = vmatprep.subr.bf16.mxu0 0
      %2338 = vmatpush1.bf16.xpose.msra.mxu0 0
      %2339 = vmatprep.subr.bf16.mxu0 0
      %2340 = vmatpush1.bf16.xpose.msra.mxu0 0
      %2341 = vmatprep.subr.bf16.mxu0 0
      %2342 = vmatpush1.bf16.xpose.msra.mxu0 0
      %2343 = vmatprep.subr.bf16.mxu0 0
      %2344 = vmatpush1.bf16.xpose.msra.mxu0 0
      %2345 = vmatprep.mubr.bf16.mxu0 0
      %2346 = vmatmul.mubr.bf16.gmra.mrb[0].mxu0 %v2308
      %v2347 = vpop.f32.mrb[0].mxu0
      %v2348 = vadd.f32 0.0, %v2347
      %v2349 = vpop.f32.mrb[0].mxu0
      %v2350 = vpop.f32.mrb[0].mxu0
      %v2351 = vpop.f32.mrb[0].mxu0
      %2352 = vdwg.mxu0
      %v2354 = vsel %vm2214, %v2209, 0
      %v2357 = vsel %vm2214, %v2213, 0
      %2359 = vmatprep.subr.bf16.mxu0 0
      %2360 = vmatpush1.bf16.xpose.msra.mxu0 %v2357
      %2361 = vmatprep.subr.bf16.mxu0 0
      %2362 = vmatpush1.bf16.xpose.msra.mxu0 0
      %2363 = vmatprep.subr.bf16.mxu0 0
      %2364 = vmatpush1.bf16.xpose.msra.mxu0 0
      %2365 = vmatprep.subr.bf16.mxu0 0
      %2366 = vmatpush1.bf16.xpose.msra.mxu0 0
      %2367 = vmatprep.subr.bf16.mxu0 0
      %2368 = vmatpush1.bf16.xpose.msra.mxu0 0
      %2369 = vmatprep.subr.bf16.mxu0 0
      %2370 = vmatpush1.bf16.xpose.msra.mxu0 0
      %2371 = vmatprep.subr.bf16.mxu0 0
      %2372 = vmatpush1.bf16.xpose.msra.mxu0 0
      %2373 = vmatprep.subr.bf16.mxu0 0
      %2374 = vmatpush1.bf16.xpose.msra.mxu0 0
      %2375 = vmatprep.subr.bf16.mxu0 0
      %2376 = vmatpush1.bf16.xpose.msra.mxu0 0
      %2377 = vmatprep.subr.bf16.mxu0 0
      %2378 = vmatpush1.bf16.xpose.msra.mxu0 0
      %2379 = vmatprep.subr.bf16.mxu0 0
      %2380 = vmatpush1.bf16.xpose.msra.mxu0 0
      %2381 = vmatprep.subr.bf16.mxu0 0
      %2382 = vmatpush1.bf16.xpose.msra.mxu0 0
      %2383 = vmatprep.subr.bf16.mxu0 0
      %2384 = vmatpush1.bf16.xpose.msra.mxu0 0
      %2385 = vmatprep.subr.bf16.mxu0 0
      %2386 = vmatpush1.bf16.xpose.msra.mxu0 0
      %2387 = vmatprep.subr.bf16.mxu0 0
      %2388 = vmatpush1.bf16.xpose.msra.mxu0 0
      %2389 = vmatprep.subr.bf16.mxu0 0
      %2390 = vmatpush1.bf16.xpose.msra.mxu0 0
      %2391 = vmatprep.mubr.bf16.mxu0 0
      %2392 = vmatmul.mubr.bf16.gmra.mrb[0].mxu0 %v2354
      %v2393 = vpop.f32.mrb[0].mxu0
      %v2394 = vadd.f32 0.0, %v2393
      %v2395 = vpop.f32.mrb[0].mxu0
      %v2396 = vpop.f32.mrb[0].mxu0
      %v2397 = vpop.f32.mrb[0].mxu0
      %2398 = vdwg.mxu0
      %v2399 = vmul.f32 %v2256, 0.25
      %v2400 = vmul.f32 %v2302, 0.25
      %v2401 = vmul.f32 %v2348, 0.25
      %v2402 = vmul.f32 %v2394, 0.25
      %v2404 = vlaneseq
      %v2405 = vshrl.u32 %v2404, 7
      %v2406 = vsub.s32 0, %v2405
      %v2407 = vrot.slane %v1483, %v2406
      %v2409 = vadd.f32 %v2399, %v2407
      %v2410 = vadd.f32 %v2400, %v2407
      %v2411 = vadd.f32 %v2401, %v2407
      %v2412 = vadd.f32 %v2402, %v2407
      %vm2413 = vcmask 64512
      %v2414 = vsel %vm2413, %v2409, -inf
      %2415 = vmax.xlane.f32.xlu0 %v2414
      %v2416 = vpop.xlane.xlu0 %2415
      %v2417 = vsel %vm2413, %v2410, -inf
      %2418 = vmax.xlane.f32.xlu0 %v2417
      %v2419 = vpop.xlane.xlu0 %2418
      %v2420 = vsel %vm2413, %v2411, -inf
      %2421 = vmax.xlane.f32.xlu0 %v2420
      %v2422 = vpop.xlane.xlu0 %2421
      %v2423 = vsel %vm2413, %v2412, -inf
      %2424 = vmax.xlane.f32.xlu0 %v2423
      %v2425 = vpop.xlane.xlu0 %2424
      %v2426 = vsub.f32 %v2409, %v2416
      %v2427 = vsub.f32 %v2410, %v2419
      %v2428 = vsub.f32 %v2411, %v2422
      %v2429 = vsub.f32 %v2412, %v2425
      %v2430 = vmul.f32 %v2426, 1.442695
      %v2431 = vpow.pop %v2430
      %v2432 = vmul.f32 %v2427, 1.442695
      %v2433 = vpow.pop %v2432
      %v2434 = vmul.f32 %v2428, 1.442695
      %v2435 = vpow.pop %v2434
      %v2436 = vmul.f32 %v2429, 1.442695
      %v2437 = vpow.pop %v2436
      %v2438 = vsel %vm2413, %v2431, 0.0
      %2439 = vadd.xlane.f32.xlu0 %v2438
      %v2440 = vpop.xlane.xlu0 %2439
      %v2441 = vsel %vm2413, %v2433, 0.0
      %2442 = vadd.xlane.f32.xlu0 %v2441
      %v2443 = vpop.xlane.xlu0 %2442
      %v2444 = vsel %vm2413, %v2435, 0.0
      %2445 = vadd.xlane.f32.xlu0 %v2444
      %v2446 = vpop.xlane.xlu0 %2445
      %v2447 = vsel %vm2413, %v2437, 0.0
      %2448 = vadd.xlane.f32.xlu0 %v2447
      %v2449 = vpop.xlane.xlu0 %2448
      %v2450 = vrcp.pop %v2440
      %v2451 = vrcp.pop %v2443
      %v2452 = vrcp.pop %v2446
      %v2453 = vrcp.pop %v2449
      %v2454 = vmul.f32 %v2431, %v2450
      %v2455 = vmul.f32 %v2433, %v2451
      %v2456 = vmul.f32 %v2435, %v2452
      %v2457 = vmul.f32 %v2437, %v2453
      %v2458 = vpack.c.bf16 %v2454, %v2454
      %v2459 = vpack.c.bf16 %v2455, %v2455
      %v2460 = vpack.c.bf16 %v2456, %v2456
      %v2461 = vpack.c.bf16 %v2457, %v2457
      %v2462 = vpack.c.bf16 %v2081, %v2081
      %v2463 = vpack.c.bf16 %v2121, %v2121
      %v2464 = vpack.c.bf16 %v2161, %v2161
      %v2465 = vpack.c.bf16 %v2201, %v2201
      %v2467 = vsel %vm2413, %v2458, 0
      %vm2469 = vcmask 1043456
      %v2471 = vsel %vm2469, %v2462, 0
      %2473 = vmatprep.subr.bf16.mxu0 0
      %2474 = vmatpush1.bf16.msra.mxu0 %v2471
      %2475 = vmatprep.subr.bf16.mxu0 0
      %2476 = vmatpush1.bf16.msra.mxu0 0
      %2477 = vmatprep.subr.bf16.mxu0 0
      %2478 = vmatpush1.bf16.msra.mxu0 0
      %2479 = vmatprep.subr.bf16.mxu0 0
      %2480 = vmatpush1.bf16.msra.mxu0 0
      %2481 = vmatprep.subr.bf16.mxu0 0
      %2482 = vmatpush1.bf16.msra.mxu0 0
      %2483 = vmatprep.subr.bf16.mxu0 0
      %2484 = vmatpush1.bf16.msra.mxu0 0
      %2485 = vmatprep.subr.bf16.mxu0 0
      %2486 = vmatpush1.bf16.msra.mxu0 0
      %2487 = vmatprep.subr.bf16.mxu0 0
      %2488 = vmatpush1.bf16.msra.mxu0 0
      %2489 = vmatprep.subr.bf16.mxu0 0
      %2490 = vmatpush1.bf16.msra.mxu0 0
      %2491 = vmatprep.subr.bf16.mxu0 0
      %2492 = vmatpush1.bf16.msra.mxu0 0
      %2493 = vmatprep.subr.bf16.mxu0 0
      %2494 = vmatpush1.bf16.msra.mxu0 0
      %2495 = vmatprep.subr.bf16.mxu0 0
      %2496 = vmatpush1.bf16.msra.mxu0 0
      %2497 = vmatprep.subr.bf16.mxu0 0
      %2498 = vmatpush1.bf16.msra.mxu0 0
      %2499 = vmatprep.subr.bf16.mxu0 0
      %2500 = vmatpush1.bf16.msra.mxu0 0
      %2501 = vmatprep.subr.bf16.mxu0 0
      %2502 = vmatpush1.bf16.msra.mxu0 0
      %2503 = vmatprep.subr.bf16.mxu0 0
      %2504 = vmatpush1.bf16.msra.mxu0 0
      %2505 = vmatprep.mubr.bf16.mxu0 0
      %2506 = vmatmul.mubr.bf16.gmra.mrb[0].mxu0 %v2467
      %v2507 = vpop.f32.mrb[0].mxu0
      %v2508 = vadd.f32 0.0, %v2507
      %v2509 = vpop.f32.mrb[0].mxu0
      %v2510 = vpop.f32.mrb[0].mxu0
      %v2511 = vpop.f32.mrb[0].mxu0
      %2512 = vdwg.mxu0
      %v2514 = vsel %vm2413, %v2459, 0
      %v2517 = vsel %vm2469, %v2463, 0
      %2519 = vmatprep.subr.bf16.mxu0 0
      %2520 = vmatpush1.bf16.msra.mxu0 %v2517
      %2521 = vmatprep.subr.bf16.mxu0 0
      %2522 = vmatpush1.bf16.msra.mxu0 0
      %2523 = vmatprep.subr.bf16.mxu0 0
      %2524 = vmatpush1.bf16.msra.mxu0 0
      %2525 = vmatprep.subr.bf16.mxu0 0
      %2526 = vmatpush1.bf16.msra.mxu0 0
      %2527 = vmatprep.subr.bf16.mxu0 0
      %2528 = vmatpush1.bf16.msra.mxu0 0
      %2529 = vmatprep.subr.bf16.mxu0 0
      %2530 = vmatpush1.bf16.msra.mxu0 0
      %2531 = vmatprep.subr.bf16.mxu0 0
      %2532 = vmatpush1.bf16.msra.mxu0 0
      %2533 = vmatprep.subr.bf16.mxu0 0
      %2534 = vmatpush1.bf16.msra.mxu0 0
      %2535 = vmatprep.subr.bf16.mxu0 0
      %2536 = vmatpush1.bf16.msra.mxu0 0
      %2537 = vmatprep.subr.bf16.mxu0 0
      %2538 = vmatpush1.bf16.msra.mxu0 0
      %2539 = vmatprep.subr.bf16.mxu0 0
      %2540 = vmatpush1.bf16.msra.mxu0 0
      %2541 = vmatprep.subr.bf16.mxu0 0
      %2542 = vmatpush1.bf16.msra.mxu0 0
      %2543 = vmatprep.subr.bf16.mxu0 0
      %2544 = vmatpush1.bf16.msra.mxu0 0
      %2545 = vmatprep.subr.bf16.mxu0 0
      %2546 = vmatpush1.bf16.msra.mxu0 0
      %2547 = vmatprep.subr.bf16.mxu0 0
      %2548 = vmatpush1.bf16.msra.mxu0 0
      %2549 = vmatprep.subr.bf16.mxu0 0
      %2550 = vmatpush1.bf16.msra.mxu0 0
      %2551 = vmatprep.mubr.bf16.mxu0 0
      %2552 = vmatmul.mubr.bf16.gmra.mrb[0].mxu0 %v2514
      %v2553 = vpop.f32.mrb[0].mxu0
      %v2554 = vadd.f32 0.0, %v2553
      %v2555 = vpop.f32.mrb[0].mxu0
      %v2556 = vpop.f32.mrb[0].mxu0
      %v2557 = vpop.f32.mrb[0].mxu0
      %2558 = vdwg.mxu0
      %v2560 = vsel %vm2413, %v2460, 0
      %v2563 = vsel %vm2469, %v2464, 0
      %2565 = vmatprep.subr.bf16.mxu0 0
      %2566 = vmatpush1.bf16.msra.mxu0 %v2563
      %2567 = vmatprep.subr.bf16.mxu0 0
      %2568 = vmatpush1.bf16.msra.mxu0 0
      %2569 = vmatprep.subr.bf16.mxu0 0
      %2570 = vmatpush1.bf16.msra.mxu0 0
      %2571 = vmatprep.subr.bf16.mxu0 0
      %2572 = vmatpush1.bf16.msra.mxu0 0
      %2573 = vmatprep.subr.bf16.mxu0 0
      %2574 = vmatpush1.bf16.msra.mxu0 0
      %2575 = vmatprep.subr.bf16.mxu0 0
      %2576 = vmatpush1.bf16.msra.mxu0 0
      %2577 = vmatprep.subr.bf16.mxu0 0
      %2578 = vmatpush1.bf16.msra.mxu0 0
      %2579 = vmatprep.subr.bf16.mxu0 0
      %2580 = vmatpush1.bf16.msra.mxu0 0
      %2581 = vmatprep.subr.bf16.mxu0 0
      %2582 = vmatpush1.bf16.msra.mxu0 0
      %2583 = vmatprep.subr.bf16.mxu0 0
      %2584 = vmatpush1.bf16.msra.mxu0 0
      %2585 = vmatprep.subr.bf16.mxu0 0
      %2586 = vmatpush1.bf16.msra.mxu0 0
      %2587 = vmatprep.subr.bf16.mxu0 0
      %2588 = vmatpush1.bf16.msra.mxu0 0
      %2589 = vmatprep.subr.bf16.mxu0 0
      %2590 = vmatpush1.bf16.msra.mxu0 0
      %2591 = vmatprep.subr.bf16.mxu0 0
      %2592 = vmatpush1.bf16.msra.mxu0 0
      %2593 = vmatprep.subr.bf16.mxu0 0
      %2594 = vmatpush1.bf16.msra.mxu0 0
      %2595 = vmatprep.subr.bf16.mxu0 0
      %2596 = vmatpush1.bf16.msra.mxu0 0
      %2597 = vmatprep.mubr.bf16.mxu0 0
      %2598 = vmatmul.mubr.bf16.gmra.mrb[0].mxu0 %v2560
      %v2599 = vpop.f32.mrb[0].mxu0
      %v2600 = vadd.f32 0.0, %v2599
      %v2601 = vpop.f32.mrb[0].mxu0
      %v2602 = vpop.f32.mrb[0].mxu0
      %v2603 = vpop.f32.mrb[0].mxu0
      %2604 = vdwg.mxu0
      %v2606 = vsel %vm2413, %v2461, 0
      %v2609 = vsel %vm2469, %v2465, 0
      %2611 = vmatprep.subr.bf16.mxu0 0
      %2612 = vmatpush1.bf16.msra.mxu0 %v2609
      %2613 = vmatprep.subr.bf16.mxu0 0
      %2614 = vmatpush1.bf16.msra.mxu0 0
      %2615 = vmatprep.subr.bf16.mxu0 0
      %2616 = vmatpush1.bf16.msra.mxu0 0
      %2617 = vmatprep.subr.bf16.mxu0 0
      %2618 = vmatpush1.bf16.msra.mxu0 0
      %2619 = vmatprep.subr.bf16.mxu0 0
      %2620 = vmatpush1.bf16.msra.mxu0 0
      %2621 = vmatprep.subr.bf16.mxu0 0
      %2622 = vmatpush1.bf16.msra.mxu0 0
      %2623 = vmatprep.subr.bf16.mxu0 0
      %2624 = vmatpush1.bf16.msra.mxu0 0
      %2625 = vmatprep.subr.bf16.mxu0 0
      %2626 = vmatpush1.bf16.msra.mxu0 0
      %2627 = vmatprep.subr.bf16.mxu0 0
      %2628 = vmatpush1.bf16.msra.mxu0 0
      %2629 = vmatprep.subr.bf16.mxu0 0
      %2630 = vmatpush1.bf16.msra.mxu0 0
      %2631 = vmatprep.subr.bf16.mxu0 0
      %2632 = vmatpush1.bf16.msra.mxu0 0
      %2633 = vmatprep.subr.bf16.mxu0 0
      %2634 = vmatpush1.bf16.msra.mxu0 0
      %2635 = vmatprep.subr.bf16.mxu0 0
      %2636 = vmatpush1.bf16.msra.mxu0 0
      %2637 = vmatprep.subr.bf16.mxu0 0
      %2638 = vmatpush1.bf16.msra.mxu0 0
      %2639 = vmatprep.subr.bf16.mxu0 0
      %2640 = vmatpush1.bf16.msra.mxu0 0
      %2641 = vmatprep.subr.bf16.mxu0 0
      %2642 = vmatpush1.bf16.msra.mxu0 0
      %2643 = vmatprep.mubr.bf16.mxu0 0
      %2644 = vmatmul.mubr.bf16.gmra.mrb[0].mxu0 %v2606
      %v2645 = vpop.f32.mrb[0].mxu0
      %v2646 = vadd.f32 0.0, %v2645
      %v2647 = vpop.f32.mrb[0].mxu0
      %v2648 = vpop.f32.mrb[0].mxu0
      %v2649 = vpop.f32.mrb[0].mxu0
      %2650 = vdwg.mxu0
      %v2651 = vpack.c.bf16 %v2508, %v2508
      %v2652 = vpack.c.bf16 %v2554, %v2554
      %v2653 = vpack.c.bf16 %v2600, %v2600
      %v2654 = vpack.c.bf16 %v2646, %v2646
      %v2655 = vpack.c.bf16 %v1593, %v1592
      %v2656 = vpack.c.bf16 %v1595, %v1594
      %v2657 = vpack.c.bf16 %v1597, %v1596
      %v2658 = vpack.c.bf16 %v1599, %v1598
      %v2660 = vsel %vm2214, %v2651, 0
      %2662 = vmatprep.subr.bf16.mxu0 0
      %2663 = vmatpush1.bf16.msra.mxu0 %v2655
      %2664 = vmatprep.subr.bf16.mxu0 0
      %2665 = vmatpush1.bf16.msra.mxu0 0
      %2666 = vmatprep.subr.bf16.mxu0 0
      %2667 = vmatpush1.bf16.msra.mxu0 0
      %2668 = vmatprep.subr.bf16.mxu0 0
      %2669 = vmatpush1.bf16.msra.mxu0 0
      %2670 = vmatprep.subr.bf16.mxu0 0
      %2671 = vmatpush1.bf16.msra.mxu0 0
      %2672 = vmatprep.subr.bf16.mxu0 0
      %2673 = vmatpush1.bf16.msra.mxu0 0
      %2674 = vmatprep.subr.bf16.mxu0 0
      %2675 = vmatpush1.bf16.msra.mxu0 0
      %2676 = vmatprep.subr.bf16.mxu0 0
      %2677 = vmatpush1.bf16.msra.mxu0 0
      %2678 = vmatprep.subr.bf16.mxu0 0
      %2679 = vmatpush1.bf16.msra.mxu0 0
      %2680 = vmatprep.subr.bf16.mxu0 0
      %2681 = vmatpush1.bf16.msra.mxu0 0
      %2682 = vmatprep.subr.bf16.mxu0 0
      %2683 = vmatpush1.bf16.msra.mxu0 0
      %2684 = vmatprep.subr.bf16.mxu0 0
      %2685 = vmatpush1.bf16.msra.mxu0 0
      %2686 = vmatprep.subr.bf16.mxu0 0
      %2687 = vmatpush1.bf16.msra.mxu0 0
      %2688 = vmatprep.subr.bf16.mxu0 0
      %2689 = vmatpush1.bf16.msra.mxu0 0
      %2690 = vmatprep.subr.bf16.mxu0 0
      %2691 = vmatpush1.bf16.msra.mxu0 0
      %2692 = vmatprep.subr.bf16.mxu0 0
      %2693 = vmatpush1.bf16.msra.mxu0 0
      %2694 = vmatprep.mubr.bf16.mxu0 0
      %2695 = vmatmul.mubr.bf16.gmra.mrb[0].mxu0 %v2660
      %v2696 = vpop.f32.mrb[0].mxu0
      %v2697 = vadd.f32 0.0, %v2696
      %v2698 = vpop.f32.mrb[0].mxu0
      %v2699 = vpop.f32.mrb[0].mxu0
      %v2700 = vpop.f32.mrb[0].mxu0
      %2701 = vdwg.mxu0
      %v2703 = vsel %vm2214, %v2652, 0
      %2705 = vmatprep.subr.bf16.mxu0 0
      %2706 = vmatpush1.bf16.msra.mxu0 %v2656
      %2707 = vmatprep.subr.bf16.mxu0 0
      %2708 = vmatpush1.bf16.msra.mxu0 0
      %2709 = vmatprep.subr.bf16.mxu0 0
      %2710 = vmatpush1.bf16.msra.mxu0 0
      %2711 = vmatprep.subr.bf16.mxu0 0
      %2712 = vmatpush1.bf16.msra.mxu0 0
      %2713 = vmatprep.subr.bf16.mxu0 0
      %2714 = vmatpush1.bf16.msra.mxu0 0
      %2715 = vmatprep.subr.bf16.mxu0 0
      %2716 = vmatpush1.bf16.msra.mxu0 0
      %2717 = vmatprep.subr.bf16.mxu0 0
      %2718 = vmatpush1.bf16.msra.mxu0 0
      %2719 = vmatprep.subr.bf16.mxu0 0
      %2720 = vmatpush1.bf16.msra.mxu0 0
      %2721 = vmatprep.subr.bf16.mxu0 0
      %2722 = vmatpush1.bf16.msra.mxu0 0
      %2723 = vmatprep.subr.bf16.mxu0 0
      %2724 = vmatpush1.bf16.msra.mxu0 0
      %2725 = vmatprep.subr.bf16.mxu0 0
      %2726 = vmatpush1.bf16.msra.mxu0 0
      %2727 = vmatprep.subr.bf16.mxu0 0
      %2728 = vmatpush1.bf16.msra.mxu0 0
      %2729 = vmatprep.subr.bf16.mxu0 0
      %2730 = vmatpush1.bf16.msra.mxu0 0
      %2731 = vmatprep.subr.bf16.mxu0 0
      %2732 = vmatpush1.bf16.msra.mxu0 0
      %2733 = vmatprep.subr.bf16.mxu0 0
      %2734 = vmatpush1.bf16.msra.mxu0 0
      %2735 = vmatprep.subr.bf16.mxu0 0
      %2736 = vmatpush1.bf16.msra.mxu0 0
      %2737 = vmatprep.mubr.bf16.mxu0 0
      %2738 = vmatmul.mubr.bf16.gmra.mrb[0].mxu0 %v2703
      %v2739 = vpop.f32.mrb[0].mxu0
      %v2740 = vadd.f32 0.0, %v2739
      %v2741 = vpop.f32.mrb[0].mxu0
      %v2742 = vpop.f32.mrb[0].mxu0
      %v2743 = vpop.f32.mrb[0].mxu0
      %2744 = vdwg.mxu0
      %v2746 = vsel %vm2214, %v2653, 0
      %2748 = vmatprep.subr.bf16.mxu0 0
      %2749 = vmatpush1.bf16.msra.mxu0 %v2657
      %2750 = vmatprep.subr.bf16.mxu0 0
      %2751 = vmatpush1.bf16.msra.mxu0 0
      %2752 = vmatprep.subr.bf16.mxu0 0
      %2753 = vmatpush1.bf16.msra.mxu0 0
      %2754 = vmatprep.subr.bf16.mxu0 0
      %2755 = vmatpush1.bf16.msra.mxu0 0
      %2756 = vmatprep.subr.bf16.mxu0 0
      %2757 = vmatpush1.bf16.msra.mxu0 0
      %2758 = vmatprep.subr.bf16.mxu0 0
      %2759 = vmatpush1.bf16.msra.mxu0 0
      %2760 = vmatprep.subr.bf16.mxu0 0
      %2761 = vmatpush1.bf16.msra.mxu0 0
      %2762 = vmatprep.subr.bf16.mxu0 0
      %2763 = vmatpush1.bf16.msra.mxu0 0
      %2764 = vmatprep.subr.bf16.mxu0 0
      %2765 = vmatpush1.bf16.msra.mxu0 0
      %2766 = vmatprep.subr.bf16.mxu0 0
      %2767 = vmatpush1.bf16.msra.mxu0 0
      %2768 = vmatprep.subr.bf16.mxu0 0
      %2769 = vmatpush1.bf16.msra.mxu0 0
      %2770 = vmatprep.subr.bf16.mxu0 0
      %2771 = vmatpush1.bf16.msra.mxu0 0
      %2772 = vmatprep.subr.bf16.mxu0 0
      %2773 = vmatpush1.bf16.msra.mxu0 0
      %2774 = vmatprep.subr.bf16.mxu0 0
      %2775 = vmatpush1.bf16.msra.mxu0 0
      %2776 = vmatprep.subr.bf16.mxu0 0
      %2777 = vmatpush1.bf16.msra.mxu0 0
      %2778 = vmatprep.subr.bf16.mxu0 0
      %2779 = vmatpush1.bf16.msra.mxu0 0
      %2780 = vmatprep.mubr.bf16.mxu0 0
      %2781 = vmatmul.mubr.bf16.gmra.mrb[0].mxu0 %v2746
      %v2782 = vpop.f32.mrb[0].mxu0
      %v2783 = vadd.f32 0.0, %v2782
      %v2784 = vpop.f32.mrb[0].mxu0
      %v2785 = vpop.f32.mrb[0].mxu0
      %v2786 = vpop.f32.mrb[0].mxu0
      %2787 = vdwg.mxu0
      %v2789 = vsel %vm2214, %v2654, 0
      %2791 = vmatprep.subr.bf16.mxu0 0
      %2792 = vmatpush1.bf16.msra.mxu0 %v2658
      %2793 = vmatprep.subr.bf16.mxu0 0
      %2794 = vmatpush1.bf16.msra.mxu0 0
      %2795 = vmatprep.subr.bf16.mxu0 0
      %2796 = vmatpush1.bf16.msra.mxu0 0
      %2797 = vmatprep.subr.bf16.mxu0 0
      %2798 = vmatpush1.bf16.msra.mxu0 0
      %2799 = vmatprep.subr.bf16.mxu0 0
      %2800 = vmatpush1.bf16.msra.mxu0 0
      %2801 = vmatprep.subr.bf16.mxu0 0
      %2802 = vmatpush1.bf16.msra.mxu0 0
      %2803 = vmatprep.subr.bf16.mxu0 0
      %2804 = vmatpush1.bf16.msra.mxu0 0
      %2805 = vmatprep.subr.bf16.mxu0 0
      %2806 = vmatpush1.bf16.msra.mxu0 0
      %2807 = vmatprep.subr.bf16.mxu0 0
      %2808 = vmatpush1.bf16.msra.mxu0 0
      %2809 = vmatprep.subr.bf16.mxu0 0
      %2810 = vmatpush1.bf16.msra.mxu0 0
      %2811 = vmatprep.subr.bf16.mxu0 0
      %2812 = vmatpush1.bf16.msra.mxu0 0
      %2813 = vmatprep.subr.bf16.mxu0 0
      %2814 = vmatpush1.bf16.msra.mxu0 0
      %2815 = vmatprep.subr.bf16.mxu0 0
      %2816 = vmatpush1.bf16.msra.mxu0 0
      %2817 = vmatprep.subr.bf16.mxu0 0
      %2818 = vmatpush1.bf16.msra.mxu0 0
      %2819 = vmatprep.subr.bf16.mxu0 0
      %2820 = vmatpush1.bf16.msra.mxu0 0
      %2821 = vmatprep.subr.bf16.mxu0 0
      %2822 = vmatpush1.bf16.msra.mxu0 0
      %2823 = vmatprep.mubr.bf16.mxu0 0
      %2824 = vmatmul.mubr.bf16.gmra.mrb[0].mxu0 %v2789
      %v2825 = vpop.f32.mrb[0].mxu0
      %v2826 = vadd.f32 0.0, %v2825
      %v2827 = vpop.f32.mrb[0].mxu0
      %v2828 = vpop.f32.mrb[0].mxu0
      %v2829 = vpop.f32.mrb[0].mxu0
      %2830 = vdwg.mxu0
      %v2831 = vsel %vm1642, %v2697, 0.0
      %v2832 = vsel %vm1642, %v2740, 0.0
      %v2833 = vadd.f32 %v2831, %v2832
      %v2834 = vsel %vm1642, %v2783, 0.0
      %v2835 = vadd.f32 %v2833, %v2834
      %v2836 = vsel %vm1642, %v2826, 0.0
      %v2837 = vadd.f32 %v2835, %v2836
      %v2839 = vlaneseq
      %v2840 = vshrl.u32 %v2839, 7
      %v2841 = vsub.s32 0, %v2840
      %v2842 = vrot.slane %v1600, %v2841
      %v2844 = vadd.f32 %v2837, %v2842
      %v2845 = vadd.f32 %v1480, %v2844
      %v2846 = vld [vmem:[%s1370] sm:$0x1]
      %v2847 = vld [vmem:[%s1373] sm:$0x1]
      %v2848 = vsel %vm1642, %v2845, 0.0
      %2849 = vadd.xlane.f32.xlu0 %v2848
      %v2850 = vpop.xlane.xlu0 %2849
      %v2851 = vrcp.pop 64.0
      %v2852 = vmul.f32 %v2850, %v2851
      %v2853 = vsub.f32 %v2845, %v2852
      %v2854 = vmul.f32 %v2853, %v2853
      %v2855 = vsel %vm1642, %v2854, 0.0
      %2856 = vadd.xlane.f32.xlu0 %v2855
      %v2857 = vpop.xlane.xlu0 %2856
      %v2858 = vmul.f32 %v2857, %v2851
      %v2859 = vadd.f32 %v2858, 1e-12
      %v2860 = vrsqrt.pop %v2859
      %v2861 = vmul.f32 %v2853, %v2860
      %v2863 = vlaneseq
      %v2864 = vshrl.u32 %v2863, 7
      %v2865 = vsub.s32 0, %v2864
      %v2866 = vrot.slane %v2846, %v2865
      %v2868 = vmul.f32 %v2861, %v2866
      %v2870 = vlaneseq
      %v2871 = vshrl.u32 %v2870, 7
      %v2872 = vsub.s32 0, %v2871
      %v2873 = vrot.slane %v2847, %v2872
      %v2875 = vadd.f32 %v2868, %v2873
      %v2876 = vld [vmem:[%s1332] sm:$0x1f]
      %v2877 = vld [vmem:[%s1378] sm:$0xff]
      %v2878 = vld [vmem:[%s1378 + $0x8] sm:$0xff]
      %v2879 = vld [vmem:[%s1378 + $0x10] sm:$0xff]
      %v2880 = vld [vmem:[%s1378 + $0x18] sm:$0xff]
      %v2881 = vld [vmem:[%s1378 + $0x20] sm:$0xff]
      %v2882 = vld [vmem:[%s1378 + $0x28] sm:$0xff]
      %v2883 = vld [vmem:[%s1378 + $0x30] sm:$0xff]
      %v2884 = vld [vmem:[%s1378 + $0x38] sm:$0xff]
      %v2885 = vld [vmem:[%s1378 + $0x40] sm:$0xff]
      %v2886 = vld [vmem:[%s1378 + $0x48] sm:$0xff]
      %v2887 = vld [vmem:[%s1378 + $0x50] sm:$0xff]
      %v2888 = vld [vmem:[%s1378 + $0x58] sm:$0xff]
      %v2889 = vld [vmem:[%s1378 + $0x60] sm:$0xff]
      %v2890 = vld [vmem:[%s1378 + $0x68] sm:$0xff]
      %v2891 = vld [vmem:[%s1378 + $0x70] sm:$0xff]
      %v2892 = vld [vmem:[%s1378 + $0x78] sm:$0xff]
      %v2893 = vld [vmem:[%s1378 + $0x80] sm:$0xff]
      %v2894 = vld [vmem:[%s1378 + $0x88] sm:$0xff]
      %v2895 = vld [vmem:[%s1378 + $0x90] sm:$0xff]
      %v2896 = vld [vmem:[%s1378 + $0x98] sm:$0xff]
      %v2897 = vld [vmem:[%s1378 + $0xa0] sm:$0xff]
      %v2898 = vld [vmem:[%s1378 + $0xa8] sm:$0xff]
      %v2899 = vld [vmem:[%s1378 + $0xb0] sm:$0xff]
      %v2900 = vld [vmem:[%s1378 + $0xb8] sm:$0xff]
      %v2901 = vld [vmem:[%s1378 + $0xc0] sm:$0xff]
      %v2902 = vld [vmem:[%s1378 + $0xc8] sm:$0xff]
      %v2903 = vld [vmem:[%s1378 + $0xd0] sm:$0xff]
      %v2904 = vld [vmem:[%s1378 + $0xd8] sm:$0xff]
      %v2905 = vld [vmem:[%s1378 + $0xe0] sm:$0xff]
      %v2906 = vld [vmem:[%s1378 + $0xe8] sm:$0xff]
      %v2907 = vld [vmem:[%s1378 + $0xf0] sm:$0xff]
      %v2908 = vld [vmem:[%s1378 + $0xf8] sm:$0xff]
      %v2909 = vld [vmem:[%s1382] sm:$0x1]
      %v2910 = vld [vmem:[%s1382 + $0x1] sm:$0x1]
      %v2911 = vld [vmem:[%s1382 + $0x2] sm:$0x1]
      %v2912 = vld [vmem:[%s1382 + $0x3] sm:$0x1]
      %v2913 = vld [vmem:[%s1387] sm:$0xff]
      %v2914 = vld [vmem:[%s1387 + $0x8] sm:$0xff]
      %v2915 = vld [vmem:[%s1387 + $0x10] sm:$0xff]
      %v2916 = vld [vmem:[%s1387 + $0x18] sm:$0xff]
      %v2917 = vld [vmem:[%s1387 + $0x20] sm:$0xff]
      %v2918 = vld [vmem:[%s1387 + $0x28] sm:$0xff]
      %v2919 = vld [vmem:[%s1387 + $0x30] sm:$0xff]
      %v2920 = vld [vmem:[%s1387 + $0x38] sm:$0xff]
      %v2921 = vld [vmem:[%s1387 + $0x40] sm:$0xff]
      %v2922 = vld [vmem:[%s1387 + $0x48] sm:$0xff]
      %v2923 = vld [vmem:[%s1387 + $0x50] sm:$0xff]
      %v2924 = vld [vmem:[%s1387 + $0x58] sm:$0xff]
      %v2925 = vld [vmem:[%s1387 + $0x60] sm:$0xff]
      %v2926 = vld [vmem:[%s1387 + $0x68] sm:$0xff]
      %v2927 = vld [vmem:[%s1387 + $0x70] sm:$0xff]
      %v2928 = vld [vmem:[%s1387 + $0x78] sm:$0xff]
      %v2929 = vld [vmem:[%s1387 + $0x80] sm:$0xff]
      %v2930 = vld [vmem:[%s1387 + $0x88] sm:$0xff]
      %v2931 = vld [vmem:[%s1387 + $0x90] sm:$0xff]
      %v2932 = vld [vmem:[%s1387 + $0x98] sm:$0xff]
      %v2933 = vld [vmem:[%s1387 + $0xa0] sm:$0xff]
      %v2934 = vld [vmem:[%s1387 + $0xa8] sm:$0xff]
      %v2935 = vld [vmem:[%s1387 + $0xb0] sm:$0xff]
      %v2936 = vld [vmem:[%s1387 + $0xb8] sm:$0xff]
      %v2937 = vld [vmem:[%s1387 + $0xc0] sm:$0xff]
      %v2938 = vld [vmem:[%s1387 + $0xc8] sm:$0xff]
      %v2939 = vld [vmem:[%s1387 + $0xd0] sm:$0xff]
      %v2940 = vld [vmem:[%s1387 + $0xd8] sm:$0xff]
      %v2941 = vld [vmem:[%s1387 + $0xe0] sm:$0xff]
      %v2942 = vld [vmem:[%s1387 + $0xe8] sm:$0xff]
      %v2943 = vld [vmem:[%s1387 + $0xf0] sm:$0xff]
      %v2944 = vld [vmem:[%s1387 + $0xf8] sm:$0xff]
      %v2945 = vld [vmem:[%s1391] sm:$0x1]
      %v2946 = vld [vmem:[%s1391 + $0x1] sm:$0x1]
      %v2947 = vld [vmem:[%s1391 + $0x2] sm:$0x1]
      %v2948 = vld [vmem:[%s1391 + $0x3] sm:$0x1]
      %v2949 = vld [vmem:[%s1396] sm:$0xff]
      %v2950 = vld [vmem:[%s1396 + $0x8] sm:$0xff]
      %v2951 = vld [vmem:[%s1396 + $0x10] sm:$0xff]
      %v2952 = vld [vmem:[%s1396 + $0x18] sm:$0xff]
      %v2953 = vld [vmem:[%s1396 + $0x20] sm:$0xff]
      %v2954 = vld [vmem:[%s1396 + $0x28] sm:$0xff]
      %v2955 = vld [vmem:[%s1396 + $0x30] sm:$0xff]
      %v2956 = vld [vmem:[%s1396 + $0x38] sm:$0xff]
      %v2957 = vld [vmem:[%s1396 + $0x40] sm:$0xff]
      %v2958 = vld [vmem:[%s1396 + $0x48] sm:$0xff]
      %v2959 = vld [vmem:[%s1396 + $0x50] sm:$0xff]
      %v2960 = vld [vmem:[%s1396 + $0x58] sm:$0xff]
      %v2961 = vld [vmem:[%s1396 + $0x60] sm:$0xff]
      %v2962 = vld [vmem:[%s1396 + $0x68] sm:$0xff]
      %v2963 = vld [vmem:[%s1396 + $0x70] sm:$0xff]
      %v2964 = vld [vmem:[%s1396 + $0x78] sm:$0xff]
      %v2965 = vld [vmem:[%s1396 + $0x80] sm:$0xff]
      %v2966 = vld [vmem:[%s1396 + $0x88] sm:$0xff]
      %v2967 = vld [vmem:[%s1396 + $0x90] sm:$0xff]
      %v2968 = vld [vmem:[%s1396 + $0x98] sm:$0xff]
      %v2969 = vld [vmem:[%s1396 + $0xa0] sm:$0xff]
      %v2970 = vld [vmem:[%s1396 + $0xa8] sm:$0xff]
      %v2971 = vld [vmem:[%s1396 + $0xb0] sm:$0xff]
      %v2972 = vld [vmem:[%s1396 + $0xb8] sm:$0xff]
      %v2973 = vld [vmem:[%s1396 + $0xc0] sm:$0xff]
      %v2974 = vld [vmem:[%s1396 + $0xc8] sm:$0xff]
      %v2975 = vld [vmem:[%s1396 + $0xd0] sm:$0xff]
      %v2976 = vld [vmem:[%s1396 + $0xd8] sm:$0xff]
      %v2977 = vld [vmem:[%s1396 + $0xe0] sm:$0xff]
      %v2978 = vld [vmem:[%s1396 + $0xe8] sm:$0xff]
      %v2979 = vld [vmem:[%s1396 + $0xf0] sm:$0xff]
      %v2980 = vld [vmem:[%s1396 + $0xf8] sm:$0xff]
      %v2981 = vld [vmem:[%s1400] sm:$0x1]
      %v2982 = vld [vmem:[%s1400 + $0x1] sm:$0x1]
      %v2983 = vld [vmem:[%s1400 + $0x2] sm:$0x1]
      %v2984 = vld [vmem:[%s1400 + $0x3] sm:$0x1]
      %v2985 = vld [vmem:[%s1405] sm:$0xff]
      %v2986 = vld [vmem:[%s1405 + $0x8] sm:$0xff]
      %v2987 = vld [vmem:[%s1405 + $0x10] sm:$0xff]
      %v2988 = vld [vmem:[%s1405 + $0x18] sm:$0xff]
      %v2989 = vld [vmem:[%s1405 + $0x20] sm:$0xff]
      %v2990 = vld [vmem:[%s1405 + $0x28] sm:$0xff]
      %v2991 = vld [vmem:[%s1405 + $0x30] sm:$0xff]
      %v2992 = vld [vmem:[%s1405 + $0x38] sm:$0xff]
      %v2993 = vld [vmem:[%s1408] sm:$0x1]
      %v2994 = vpack.c.bf16 %v2875, %v2875
      %v2995 = vpack.c.bf16 %v2878, %v2877
      %v2996 = vpack.c.bf16 %v2880, %v2879
      %v2997 = vpack.c.bf16 %v2882, %v2881
      %v2998 = vpack.c.bf16 %v2884, %v2883
      %v2999 = vpack.c.bf16 %v2886, %v2885
      %v3000 = vpack.c.bf16 %v2888, %v2887
      %v3001 = vpack.c.bf16 %v2890, %v2889
      %v3002 = vpack.c.bf16 %v2892, %v2891
      %v3003 = vpack.c.bf16 %v2894, %v2893
      %v3004 = vpack.c.bf16 %v2896, %v2895
      %v3005 = vpack.c.bf16 %v2898, %v2897
      %v3006 = vpack.c.bf16 %v2900, %v2899
      %v3007 = vpack.c.bf16 %v2902, %v2901
      %v3008 = vpack.c.bf16 %v2904, %v2903
      %v3009 = vpack.c.bf16 %v2906, %v2905
      %v3010 = vpack.c.bf16 %v2908, %v2907
      %v3015 = vlaneseq
      %v3016 = vshrl.u32 %v3015, 7
      %v3017 = vsub.s32 0, %v3016
      %v3018 = vrot.slane %v2909, %v3017
      %v3019 = vlaneseq
      %v3020 = vshrl.u32 %v3019, 7
      %v3021 = vsub.s32 0, %v3020
      %v3022 = vrot.slane %v2910, %v3021
      %v3023 = vlaneseq
      %v3024 = vshrl.u32 %v3023, 7
      %v3025 = vsub.s32 0, %v3024
      %v3026 = vrot.slane %v2911, %v3025
      %v3027 = vlaneseq
      %v3028 = vshrl.u32 %v3027, 7
      %v3029 = vsub.s32 0, %v3028
      %v3030 = vrot.slane %v2912, %v3029
      %v3036 = vsel %vm1642, %v2994, 0
      %3038 = vmatprep.subr.bf16.mxu0 0
      %3039 = vmatpush1.bf16.msra.mxu0 %v2995
      %3040 = vmatprep.subr.bf16.mxu0 0
      %3041 = vmatpush1.bf16.msra.mxu0 %v2996
      %3042 = vmatprep.subr.bf16.mxu0 0
      %3043 = vmatpush1.bf16.msra.mxu0 %v2997
      %3044 = vmatprep.subr.bf16.mxu0 0
      %3045 = vmatpush1.bf16.msra.mxu0 %v2998
      %3046 = vmatprep.subr.bf16.mxu0 0
      %3047 = vmatpush1.bf16.msra.mxu0 0
      %3048 = vmatprep.subr.bf16.mxu0 0
      %3049 = vmatpush1.bf16.msra.mxu0 0
      %3050 = vmatprep.subr.bf16.mxu0 0
      %3051 = vmatpush1.bf16.msra.mxu0 0
      %3052 = vmatprep.subr.bf16.mxu0 0
      %3053 = vmatpush1.bf16.msra.mxu0 0
      %3054 = vmatprep.subr.bf16.mxu0 0
      %3055 = vmatpush1.bf16.msra.mxu0 0
      %3056 = vmatprep.subr.bf16.mxu0 0
      %3057 = vmatpush1.bf16.msra.mxu0 0
      %3058 = vmatprep.subr.bf16.mxu0 0
      %3059 = vmatpush1.bf16.msra.mxu0 0
      %3060 = vmatprep.subr.bf16.mxu0 0
      %3061 = vmatpush1.bf16.msra.mxu0 0
      %3062 = vmatprep.subr.bf16.mxu0 0
      %3063 = vmatpush1.bf16.msra.mxu0 0
      %3064 = vmatprep.subr.bf16.mxu0 0
      %3065 = vmatpush1.bf16.msra.mxu0 0
      %3066 = vmatprep.subr.bf16.mxu0 0
      %3067 = vmatpush1.bf16.msra.mxu0 0
      %3068 = vmatprep.subr.bf16.mxu0 0
      %3069 = vmatpush1.bf16.msra.mxu0 0
      %3070 = vmatprep.mubr.bf16.mxu0 0
      %3071 = vmatmul.mubr.bf16.gmra.mrb[0].mxu0 %v3036
      %v3072 = vpop.f32.mrb[0].mxu0
      %v3073 = vadd.f32 %v3018, %v3072
      %v3074 = vpop.f32.mrb[0].mxu0
      %v3075 = vpop.f32.mrb[0].mxu0
      %v3076 = vpop.f32.mrb[0].mxu0
      %3077 = vdwg.mxu0
      %3078 = vmatprep.subr.bf16.mxu0 0
      %3079 = vmatpush1.bf16.msra.mxu0 %v2999
      %3080 = vmatprep.subr.bf16.mxu0 0
      %3081 = vmatpush1.bf16.msra.mxu0 %v3000
      %3082 = vmatprep.subr.bf16.mxu0 0
      %3083 = vmatpush1.bf16.msra.mxu0 %v3001
      %3084 = vmatprep.subr.bf16.mxu0 0
      %3085 = vmatpush1.bf16.msra.mxu0 %v3002
      %3086 = vmatprep.subr.bf16.mxu0 0
      %3087 = vmatpush1.bf16.msra.mxu0 0
      %3088 = vmatprep.subr.bf16.mxu0 0
      %3089 = vmatpush1.bf16.msra.mxu0 0
      %3090 = vmatprep.subr.bf16.mxu0 0
      %3091 = vmatpush1.bf16.msra.mxu0 0
      %3092 = vmatprep.subr.bf16.mxu0 0
      %3093 = vmatpush1.bf16.msra.mxu0 0
      %3094 = vmatprep.subr.bf16.mxu0 0
      %3095 = vmatpush1.bf16.msra.mxu0 0
      %3096 = vmatprep.subr.bf16.mxu0 0
      %3097 = vmatpush1.bf16.msra.mxu0 0
      %3098 = vmatprep.subr.bf16.mxu0 0
      %3099 = vmatpush1.bf16.msra.mxu0 0
      %3100 = vmatprep.subr.bf16.mxu0 0
      %3101 = vmatpush1.bf16.msra.mxu0 0
      %3102 = vmatprep.subr.bf16.mxu0 0
      %3103 = vmatpush1.bf16.msra.mxu0 0
      %3104 = vmatprep.subr.bf16.mxu0 0
      %3105 = vmatpush1.bf16.msra.mxu0 0
      %3106 = vmatprep.subr.bf16.mxu0 0
      %3107 = vmatpush1.bf16.msra.mxu0 0
      %3108 = vmatprep.subr.bf16.mxu0 0
      %3109 = vmatpush1.bf16.msra.mxu0 0
      %3110 = vmatprep.mubr.bf16.mxu0 0
      %3111 = vmatmul.mubr.bf16.gmra.mrb[0].mxu0 %v3036
      %v3112 = vpop.f32.mrb[0].mxu0
      %v3113 = vadd.f32 %v3022, %v3112
      %v3114 = vpop.f32.mrb[0].mxu0
      %v3115 = vpop.f32.mrb[0].mxu0
      %v3116 = vpop.f32.mrb[0].mxu0
      %3117 = vdwg.mxu0
      %3118 = vmatprep.subr.bf16.mxu0 0
      %3119 = vmatpush1.bf16.msra.mxu0 %v3003
      %3120 = vmatprep.subr.bf16.mxu0 0
      %3121 = vmatpush1.bf16.msra.mxu0 %v3004
      %3122 = vmatprep.subr.bf16.mxu0 0
      %3123 = vmatpush1.bf16.msra.mxu0 %v3005
      %3124 = vmatprep.subr.bf16.mxu0 0
      %3125 = vmatpush1.bf16.msra.mxu0 %v3006
      %3126 = vmatprep.subr.bf16.mxu0 0
      %3127 = vmatpush1.bf16.msra.mxu0 0
      %3128 = vmatprep.subr.bf16.mxu0 0
      %3129 = vmatpush1.bf16.msra.mxu0 0
      %3130 = vmatprep.subr.bf16.mxu0 0
      %3131 = vmatpush1.bf16.msra.mxu0 0
      %3132 = vmatprep.subr.bf16.mxu0 0
      %3133 = vmatpush1.bf16.msra.mxu0 0
      %3134 = vmatprep.subr.bf16.mxu0 0
      %3135 = vmatpush1.bf16.msra.mxu0 0
      %3136 = vmatprep.subr.bf16.mxu0 0
      %3137 = vmatpush1.bf16.msra.mxu0 0
      %3138 = vmatprep.subr.bf16.mxu0 0
      %3139 = vmatpush1.bf16.msra.mxu0 0
      %3140 = vmatprep.subr.bf16.mxu0 0
      %3141 = vmatpush1.bf16.msra.mxu0 0
      %3142 = vmatprep.subr.bf16.mxu0 0
      %3143 = vmatpush1.bf16.msra.mxu0 0
      %3144 = vmatprep.subr.bf16.mxu0 0
      %3145 = vmatpush1.bf16.msra.mxu0 0
      %3146 = vmatprep.subr.bf16.mxu0 0
      %3147 = vmatpush1.bf16.msra.mxu0 0
      %3148 = vmatprep.subr.bf16.mxu0 0
      %3149 = vmatpush1.bf16.msra.mxu0 0
      %3150 = vmatprep.mubr.bf16.mxu0 0
      %3151 = vmatmul.mubr.bf16.gmra.mrb[0].mxu0 %v3036
      %v3152 = vpop.f32.mrb[0].mxu0
      %v3153 = vadd.f32 %v3026, %v3152
      %v3154 = vpop.f32.mrb[0].mxu0
      %v3155 = vpop.f32.mrb[0].mxu0
      %v3156 = vpop.f32.mrb[0].mxu0
      %3157 = vdwg.mxu0
      %3158 = vmatprep.subr.bf16.mxu0 0
      %3159 = vmatpush1.bf16.msra.mxu0 %v3007
      %3160 = vmatprep.subr.bf16.mxu0 0
      %3161 = vmatpush1.bf16.msra.mxu0 %v3008
      %3162 = vmatprep.subr.bf16.mxu0 0
      %3163 = vmatpush1.bf16.msra.mxu0 %v3009
      %3164 = vmatprep.subr.bf16.mxu0 0
      %3165 = vmatpush1.bf16.msra.mxu0 %v3010
      %3166 = vmatprep.subr.bf16.mxu0 0
      %3167 = vmatpush1.bf16.msra.mxu0 0
      %3168 = vmatprep.subr.bf16.mxu0 0
      %3169 = vmatpush1.bf16.msra.mxu0 0
      %3170 = vmatprep.subr.bf16.mxu0 0
      %3171 = vmatpush1.bf16.msra.mxu0 0
      %3172 = vmatprep.subr.bf16.mxu0 0
      %3173 = vmatpush1.bf16.msra.mxu0 0
      %3174 = vmatprep.subr.bf16.mxu0 0
      %3175 = vmatpush1.bf16.msra.mxu0 0
      %3176 = vmatprep.subr.bf16.mxu0 0
      %3177 = vmatpush1.bf16.msra.mxu0 0
      %3178 = vmatprep.subr.bf16.mxu0 0
      %3179 = vmatpush1.bf16.msra.mxu0 0
      %3180 = vmatprep.subr.bf16.mxu0 0
      %3181 = vmatpush1.bf16.msra.mxu0 0
      %3182 = vmatprep.subr.bf16.mxu0 0
      %3183 = vmatpush1.bf16.msra.mxu0 0
      %3184 = vmatprep.subr.bf16.mxu0 0
      %3185 = vmatpush1.bf16.msra.mxu0 0
      %3186 = vmatprep.subr.bf16.mxu0 0
      %3187 = vmatpush1.bf16.msra.mxu0 0
      %3188 = vmatprep.subr.bf16.mxu0 0
      %3189 = vmatpush1.bf16.msra.mxu0 0
      %3190 = vmatprep.mubr.bf16.mxu0 0
      %3191 = vmatmul.mubr.bf16.gmra.mrb[0].mxu0 %v3036
      %v3192 = vpop.f32.mrb[0].mxu0
      %v3193 = vadd.f32 %v3030, %v3192
      %v3194 = vpop.f32.mrb[0].mxu0
      %v3195 = vpop.f32.mrb[0].mxu0
      %v3196 = vpop.f32.mrb[0].mxu0
      %3197 = vdwg.mxu0
      %v3198 = vpack.c.bf16 %v2876, %v2876
      %v3199 = vpack.c.bf16 %v2914, %v2913
      %v3200 = vpack.c.bf16 %v2916, %v2915
      %v3201 = vpack.c.bf16 %v2918, %v2917
      %v3202 = vpack.c.bf16 %v2920, %v2919
      %v3203 = vpack.c.bf16 %v2922, %v2921
      %v3204 = vpack.c.bf16 %v2924, %v2923
      %v3205 = vpack.c.bf16 %v2926, %v2925
      %v3206 = vpack.c.bf16 %v2928, %v2927
      %v3207 = vpack.c.bf16 %v2930, %v2929
      %v3208 = vpack.c.bf16 %v2932, %v2931
      %v3209 = vpack.c.bf16 %v2934, %v2933
      %v3210 = vpack.c.bf16 %v2936, %v2935
      %v3211 = vpack.c.bf16 %v2938, %v2937
      %v3212 = vpack.c.bf16 %v2940, %v2939
      %v3213 = vpack.c.bf16 %v2942, %v2941
      %v3214 = vpack.c.bf16 %v2944, %v2943
      %v3219 = vlaneseq
      %v3220 = vshrl.u32 %v3219, 7
      %v3221 = vsub.s32 0, %v3220
      %v3222 = vrot.slane %v2945, %v3221
      %v3223 = vlaneseq
      %v3224 = vshrl.u32 %v3223, 7
      %v3225 = vsub.s32 0, %v3224
      %v3226 = vrot.slane %v2946, %v3225
      %v3227 = vlaneseq
      %v3228 = vshrl.u32 %v3227, 7
      %v3229 = vsub.s32 0, %v3228
      %v3230 = vrot.slane %v2947, %v3229
      %v3231 = vlaneseq
      %v3232 = vshrl.u32 %v3231, 7
      %v3233 = vsub.s32 0, %v3232
      %v3234 = vrot.slane %v2948, %v3233
      %v3240 = vsel %vm1642, %v3198, 0
      %3242 = vmatprep.subr.bf16.mxu0 0
      %3243 = vmatpush1.bf16.msra.mxu0 %v3199
      %3244 = vmatprep.subr.bf16.mxu0 0
      %3245 = vmatpush1.bf16.msra.mxu0 %v3200
      %3246 = vmatprep.subr.bf16.mxu0 0
      %3247 = vmatpush1.bf16.msra.mxu0 %v3201
      %3248 = vmatprep.subr.bf16.mxu0 0
      %3249 = vmatpush1.bf16.msra.mxu0 %v3202
      %3250 = vmatprep.subr.bf16.mxu0 0
      %3251 = vmatpush1.bf16.msra.mxu0 0
      %3252 = vmatprep.subr.bf16.mxu0 0
      %3253 = vmatpush1.bf16.msra.mxu0 0
      %3254 = vmatprep.subr.bf16.mxu0 0
      %3255 = vmatpush1.bf16.msra.mxu0 0
      %3256 = vmatprep.subr.bf16.mxu0 0
      %3257 = vmatpush1.bf16.msra.mxu0 0
      %3258 = vmatprep.subr.bf16.mxu0 0
      %3259 = vmatpush1.bf16.msra.mxu0 0
      %3260 = vmatprep.subr.bf16.mxu0 0
      %3261 = vmatpush1.bf16.msra.mxu0 0
      %3262 = vmatprep.subr.bf16.mxu0 0
      %3263 = vmatpush1.bf16.msra.mxu0 0
      %3264 = vmatprep.subr.bf16.mxu0 0
      %3265 = vmatpush1.bf16.msra.mxu0 0
      %3266 = vmatprep.subr.bf16.mxu0 0
      %3267 = vmatpush1.bf16.msra.mxu0 0
      %3268 = vmatprep.subr.bf16.mxu0 0
      %3269 = vmatpush1.bf16.msra.mxu0 0
      %3270 = vmatprep.subr.bf16.mxu0 0
      %3271 = vmatpush1.bf16.msra.mxu0 0
      %3272 = vmatprep.subr.bf16.mxu0 0
      %3273 = vmatpush1.bf16.msra.mxu0 0
      %3274 = vmatprep.mubr.bf16.mxu0 0
      %3275 = vmatmul.mubr.bf16.gmra.mrb[0].mxu0 %v3240
      %v3276 = vpop.f32.mrb[0].mxu0
      %v3277 = vadd.f32 %v3222, %v3276
      %v3278 = vpop.f32.mrb[0].mxu0
      %v3279 = vpop.f32.mrb[0].mxu0
      %v3280 = vpop.f32.mrb[0].mxu0
      %3281 = vdwg.mxu0
      %3282 = vmatprep.subr.bf16.mxu0 0
      %3283 = vmatpush1.bf16.msra.mxu0 %v3203
      %3284 = vmatprep.subr.bf16.mxu0 0
      %3285 = vmatpush1.bf16.msra.mxu0 %v3204
      %3286 = vmatprep.subr.bf16.mxu0 0
      %3287 = vmatpush1.bf16.msra.mxu0 %v3205
      %3288 = vmatprep.subr.bf16.mxu0 0
      %3289 = vmatpush1.bf16.msra.mxu0 %v3206
      %3290 = vmatprep.subr.bf16.mxu0 0
      %3291 = vmatpush1.bf16.msra.mxu0 0
      %3292 = vmatprep.subr.bf16.mxu0 0
      %3293 = vmatpush1.bf16.msra.mxu0 0
      %3294 = vmatprep.subr.bf16.mxu0 0
      %3295 = vmatpush1.bf16.msra.mxu0 0
      %3296 = vmatprep.subr.bf16.mxu0 0
      %3297 = vmatpush1.bf16.msra.mxu0 0
      %3298 = vmatprep.subr.bf16.mxu0 0
      %3299 = vmatpush1.bf16.msra.mxu0 0
      %3300 = vmatprep.subr.bf16.mxu0 0
      %3301 = vmatpush1.bf16.msra.mxu0 0
      %3302 = vmatprep.subr.bf16.mxu0 0
      %3303 = vmatpush1.bf16.msra.mxu0 0
      %3304 = vmatprep.subr.bf16.mxu0 0
      %3305 = vmatpush1.bf16.msra.mxu0 0
      %3306 = vmatprep.subr.bf16.mxu0 0
      %3307 = vmatpush1.bf16.msra.mxu0 0
      %3308 = vmatprep.subr.bf16.mxu0 0
      %3309 = vmatpush1.bf16.msra.mxu0 0
      %3310 = vmatprep.subr.bf16.mxu0 0
      %3311 = vmatpush1.bf16.msra.mxu0 0
      %3312 = vmatprep.subr.bf16.mxu0 0
      %3313 = vmatpush1.bf16.msra.mxu0 0
      %3314 = vmatprep.mubr.bf16.mxu0 0
      %3315 = vmatmul.mubr.bf16.gmra.mrb[0].mxu0 %v3240
      %v3316 = vpop.f32.mrb[0].mxu0
      %v3317 = vadd.f32 %v3226, %v3316
      %v3318 = vpop.f32.mrb[0].mxu0
      %v3319 = vpop.f32.mrb[0].mxu0
      %v3320 = vpop.f32.mrb[0].mxu0
      %3321 = vdwg.mxu0
      %3322 = vmatprep.subr.bf16.mxu0 0
      %3323 = vmatpush1.bf16.msra.mxu0 %v3207
      %3324 = vmatprep.subr.bf16.mxu0 0
      %3325 = vmatpush1.bf16.msra.mxu0 %v3208
      %3326 = vmatprep.subr.bf16.mxu0 0
      %3327 = vmatpush1.bf16.msra.mxu0 %v3209
      %3328 = vmatprep.subr.bf16.mxu0 0
      %3329 = vmatpush1.bf16.msra.mxu0 %v3210
      %3330 = vmatprep.subr.bf16.mxu0 0
      %3331 = vmatpush1.bf16.msra.mxu0 0
      %3332 = vmatprep.subr.bf16.mxu0 0
      %3333 = vmatpush1.bf16.msra.mxu0 0
      %3334 = vmatprep.subr.bf16.mxu0 0
      %3335 = vmatpush1.bf16.msra.mxu0 0
      %3336 = vmatprep.subr.bf16.mxu0 0
      %3337 = vmatpush1.bf16.msra.mxu0 0
      %3338 = vmatprep.subr.bf16.mxu0 0
      %3339 = vmatpush1.bf16.msra.mxu0 0
      %3340 = vmatprep.subr.bf16.mxu0 0
      %3341 = vmatpush1.bf16.msra.mxu0 0
      %3342 = vmatprep.subr.bf16.mxu0 0
      %3343 = vmatpush1.bf16.msra.mxu0 0
      %3344 = vmatprep.subr.bf16.mxu0 0
      %3345 = vmatpush1.bf16.msra.mxu0 0
      %3346 = vmatprep.subr.bf16.mxu0 0
      %3347 = vmatpush1.bf16.msra.mxu0 0
      %3348 = vmatprep.subr.bf16.mxu0 0
      %3349 = vmatpush1.bf16.msra.mxu0 0
      %3350 = vmatprep.subr.bf16.mxu0 0
      %3351 = vmatpush1.bf16.msra.mxu0 0
      %3352 = vmatprep.subr.bf16.mxu0 0
      %3353 = vmatpush1.bf16.msra.mxu0 0
      %3354 = vmatprep.mubr.bf16.mxu0 0
      %3355 = vmatmul.mubr.bf16.gmra.mrb[0].mxu0 %v3240
      %v3356 = vpop.f32.mrb[0].mxu0
      %v3357 = vadd.f32 %v3230, %v3356
      %v3358 = vpop.f32.mrb[0].mxu0
      %v3359 = vpop.f32.mrb[0].mxu0
      %v3360 = vpop.f32.mrb[0].mxu0
      %3361 = vdwg.mxu0
      %3362 = vmatprep.subr.bf16.mxu0 0
      %3363 = vmatpush1.bf16.msra.mxu0 %v3211
      %3364 = vmatprep.subr.bf16.mxu0 0
      %3365 = vmatpush1.bf16.msra.mxu0 %v3212
      %3366 = vmatprep.subr.bf16.mxu0 0
      %3367 = vmatpush1.bf16.msra.mxu0 %v3213
      %3368 = vmatprep.subr.bf16.mxu0 0
      %3369 = vmatpush1.bf16.msra.mxu0 %v3214
      %3370 = vmatprep.subr.bf16.mxu0 0
      %3371 = vmatpush1.bf16.msra.mxu0 0
      %3372 = vmatprep.subr.bf16.mxu0 0
      %3373 = vmatpush1.bf16.msra.mxu0 0
      %3374 = vmatprep.subr.bf16.mxu0 0
      %3375 = vmatpush1.bf16.msra.mxu0 0
      %3376 = vmatprep.subr.bf16.mxu0 0
      %3377 = vmatpush1.bf16.msra.mxu0 0
      %3378 = vmatprep.subr.bf16.mxu0 0
      %3379 = vmatpush1.bf16.msra.mxu0 0
      %3380 = vmatprep.subr.bf16.mxu0 0
      %3381 = vmatpush1.bf16.msra.mxu0 0
      %3382 = vmatprep.subr.bf16.mxu0 0
      %3383 = vmatpush1.bf16.msra.mxu0 0
      %3384 = vmatprep.subr.bf16.mxu0 0
      %3385 = vmatpush1.bf16.msra.mxu0 0
      %3386 = vmatprep.subr.bf16.mxu0 0
      %3387 = vmatpush1.bf16.msra.mxu0 0
      %3388 = vmatprep.subr.bf16.mxu0 0
      %3389 = vmatpush1.bf16.msra.mxu0 0
      %3390 = vmatprep.subr.bf16.mxu0 0
      %3391 = vmatpush1.bf16.msra.mxu0 0
      %3392 = vmatprep.subr.bf16.mxu0 0
      %3393 = vmatpush1.bf16.msra.mxu0 0
      %3394 = vmatprep.mubr.bf16.mxu0 0
      %3395 = vmatmul.mubr.bf16.gmra.mrb[0].mxu0 %v3240
      %v3396 = vpop.f32.mrb[0].mxu0
      %v3397 = vadd.f32 %v3234, %v3396
      %v3398 = vpop.f32.mrb[0].mxu0
      %v3399 = vpop.f32.mrb[0].mxu0
      %v3400 = vpop.f32.mrb[0].mxu0
      %3401 = vdwg.mxu0
      %v3402 = vpack.c.bf16 %v2950, %v2949
      %v3403 = vpack.c.bf16 %v2952, %v2951
      %v3404 = vpack.c.bf16 %v2954, %v2953
      %v3405 = vpack.c.bf16 %v2956, %v2955
      %v3406 = vpack.c.bf16 %v2958, %v2957
      %v3407 = vpack.c.bf16 %v2960, %v2959
      %v3408 = vpack.c.bf16 %v2962, %v2961
      %v3409 = vpack.c.bf16 %v2964, %v2963
      %v3410 = vpack.c.bf16 %v2966, %v2965
      %v3411 = vpack.c.bf16 %v2968, %v2967
      %v3412 = vpack.c.bf16 %v2970, %v2969
      %v3413 = vpack.c.bf16 %v2972, %v2971
      %v3414 = vpack.c.bf16 %v2974, %v2973
      %v3415 = vpack.c.bf16 %v2976, %v2975
      %v3416 = vpack.c.bf16 %v2978, %v2977
      %v3417 = vpack.c.bf16 %v2980, %v2979
      %v3422 = vlaneseq
      %v3423 = vshrl.u32 %v3422, 7
      %v3424 = vsub.s32 0, %v3423
      %v3425 = vrot.slane %v2981, %v3424
      %v3426 = vlaneseq
      %v3427 = vshrl.u32 %v3426, 7
      %v3428 = vsub.s32 0, %v3427
      %v3429 = vrot.slane %v2982, %v3428
      %v3430 = vlaneseq
      %v3431 = vshrl.u32 %v3430, 7
      %v3432 = vsub.s32 0, %v3431
      %v3433 = vrot.slane %v2983, %v3432
      %v3434 = vlaneseq
      %v3435 = vshrl.u32 %v3434, 7
      %v3436 = vsub.s32 0, %v3435
      %v3437 = vrot.slane %v2984, %v3436
      %3442 = vmatprep.subr.bf16.mxu0 0
      %3443 = vmatpush1.bf16.msra.mxu0 %v3402
      %3444 = vmatprep.subr.bf16.mxu0 0
      %3445 = vmatpush1.bf16.msra.mxu0 %v3403
      %3446 = vmatprep.subr.bf16.mxu0 0
      %3447 = vmatpush1.bf16.msra.mxu0 %v3404
      %3448 = vmatprep.subr.bf16.mxu0 0
      %3449 = vmatpush1.bf16.msra.mxu0 %v3405
      %3450 = vmatprep.subr.bf16.mxu0 0
      %3451 = vmatpush1.bf16.msra.mxu0 0
      %3452 = vmatprep.subr.bf16.mxu0 0
      %3453 = vmatpush1.bf16.msra.mxu0 0
      %3454 = vmatprep.subr.bf16.mxu0 0
      %3455 = vmatpush1.bf16.msra.mxu0 0
      %3456 = vmatprep.subr.bf16.mxu0 0
      %3457 = vmatpush1.bf16.msra.mxu0 0
      %3458 = vmatprep.subr.bf16.mxu0 0
      %3459 = vmatpush1.bf16.msra.mxu0 0
      %3460 = vmatprep.subr.bf16.mxu0 0
      %3461 = vmatpush1.bf16.msra.mxu0 0
      %3462 = vmatprep.subr.bf16.mxu0 0
      %3463 = vmatpush1.bf16.msra.mxu0 0
      %3464 = vmatprep.subr.bf16.mxu0 0
      %3465 = vmatpush1.bf16.msra.mxu0 0
      %3466 = vmatprep.subr.bf16.mxu0 0
      %3467 = vmatpush1.bf16.msra.mxu0 0
      %3468 = vmatprep.subr.bf16.mxu0 0
      %3469 = vmatpush1.bf16.msra.mxu0 0
      %3470 = vmatprep.subr.bf16.mxu0 0
      %3471 = vmatpush1.bf16.msra.mxu0 0
      %3472 = vmatprep.subr.bf16.mxu0 0
      %3473 = vmatpush1.bf16.msra.mxu0 0
      %3474 = vmatprep.mubr.bf16.mxu0 0
      %3475 = vmatmul.mubr.bf16.gmra.mrb[0].mxu0 %v3240
      %v3476 = vpop.f32.mrb[0].mxu0
      %v3477 = vadd.f32 %v3425, %v3476
      %v3478 = vpop.f32.mrb[0].mxu0
      %v3479 = vpop.f32.mrb[0].mxu0
      %v3480 = vpop.f32.mrb[0].mxu0
      %3481 = vdwg.mxu0
      %3482 = vmatprep.subr.bf16.mxu0 0
      %3483 = vmatpush1.bf16.msra.mxu0 %v3406
      %3484 = vmatprep.subr.bf16.mxu0 0
      %3485 = vmatpush1.bf16.msra.mxu0 %v3407
      %3486 = vmatprep.subr.bf16.mxu0 0
      %3487 = vmatpush1.bf16.msra.mxu0 %v3408
      %3488 = vmatprep.subr.bf16.mxu0 0
      %3489 = vmatpush1.bf16.msra.mxu0 %v3409
      %3490 = vmatprep.subr.bf16.mxu0 0
      %3491 = vmatpush1.bf16.msra.mxu0 0
      %3492 = vmatprep.subr.bf16.mxu0 0
      %3493 = vmatpush1.bf16.msra.mxu0 0
      %3494 = vmatprep.subr.bf16.mxu0 0
      %3495 = vmatpush1.bf16.msra.mxu0 0
      %3496 = vmatprep.subr.bf16.mxu0 0
      %3497 = vmatpush1.bf16.msra.mxu0 0
      %3498 = vmatprep.subr.bf16.mxu0 0
      %3499 = vmatpush1.bf16.msra.mxu0 0
      %3500 = vmatprep.subr.bf16.mxu0 0
      %3501 = vmatpush1.bf16.msra.mxu0 0
      %3502 = vmatprep.subr.bf16.mxu0 0
      %3503 = vmatpush1.bf16.msra.mxu0 0
      %3504 = vmatprep.subr.bf16.mxu0 0
      %3505 = vmatpush1.bf16.msra.mxu0 0
      %3506 = vmatprep.subr.bf16.mxu0 0
      %3507 = vmatpush1.bf16.msra.mxu0 0
      %3508 = vmatprep.subr.bf16.mxu0 0
      %3509 = vmatpush1.bf16.msra.mxu0 0
      %3510 = vmatprep.subr.bf16.mxu0 0
      %3511 = vmatpush1.bf16.msra.mxu0 0
      %3512 = vmatprep.subr.bf16.mxu0 0
      %3513 = vmatpush1.bf16.msra.mxu0 0
      %3514 = vmatprep.mubr.bf16.mxu0 0
      %3515 = vmatmul.mubr.bf16.gmra.mrb[0].mxu0 %v3240
      %v3516 = vpop.f32.mrb[0].mxu0
      %v3517 = vadd.f32 %v3429, %v3516
      %v3518 = vpop.f32.mrb[0].mxu0
      %v3519 = vpop.f32.mrb[0].mxu0
      %v3520 = vpop.f32.mrb[0].mxu0
      %3521 = vdwg.mxu0
      %3522 = vmatprep.subr.bf16.mxu0 0
      %3523 = vmatpush1.bf16.msra.mxu0 %v3410
      %3524 = vmatprep.subr.bf16.mxu0 0
      %3525 = vmatpush1.bf16.msra.mxu0 %v3411
      %3526 = vmatprep.subr.bf16.mxu0 0
      %3527 = vmatpush1.bf16.msra.mxu0 %v3412
      %3528 = vmatprep.subr.bf16.mxu0 0
      %3529 = vmatpush1.bf16.msra.mxu0 %v3413
      %3530 = vmatprep.subr.bf16.mxu0 0
      %3531 = vmatpush1.bf16.msra.mxu0 0
      %3532 = vmatprep.subr.bf16.mxu0 0
      %3533 = vmatpush1.bf16.msra.mxu0 0
      %3534 = vmatprep.subr.bf16.mxu0 0
      %3535 = vmatpush1.bf16.msra.mxu0 0
      %3536 = vmatprep.subr.bf16.mxu0 0
      %3537 = vmatpush1.bf16.msra.mxu0 0
      %3538 = vmatprep.subr.bf16.mxu0 0
      %3539 = vmatpush1.bf16.msra.mxu0 0
      %3540 = vmatprep.subr.bf16.mxu0 0
      %3541 = vmatpush1.bf16.msra.mxu0 0
      %3542 = vmatprep.subr.bf16.mxu0 0
      %3543 = vmatpush1.bf16.msra.mxu0 0
      %3544 = vmatprep.subr.bf16.mxu0 0
      %3545 = vmatpush1.bf16.msra.mxu0 0
      %3546 = vmatprep.subr.bf16.mxu0 0
      %3547 = vmatpush1.bf16.msra.mxu0 0
      %3548 = vmatprep.subr.bf16.mxu0 0
      %3549 = vmatpush1.bf16.msra.mxu0 0
      %3550 = vmatprep.subr.bf16.mxu0 0
      %3551 = vmatpush1.bf16.msra.mxu0 0
      %3552 = vmatprep.subr.bf16.mxu0 0
      %3553 = vmatpush1.bf16.msra.mxu0 0
      %3554 = vmatprep.mubr.bf16.mxu0 0
      %3555 = vmatmul.mubr.bf16.gmra.mrb[0].mxu0 %v3240
      %v3556 = vpop.f32.mrb[0].mxu0
      %v3557 = vadd.f32 %v3433, %v3556
      %v3558 = vpop.f32.mrb[0].mxu0
      %v3559 = vpop.f32.mrb[0].mxu0
      %v3560 = vpop.f32.mrb[0].mxu0
      %3561 = vdwg.mxu0
      %3562 = vmatprep.subr.bf16.mxu0 0
      %3563 = vmatpush1.bf16.msra.mxu0 %v3414
      %3564 = vmatprep.subr.bf16.mxu0 0
      %3565 = vmatpush1.bf16.msra.mxu0 %v3415
      %3566 = vmatprep.subr.bf16.mxu0 0
      %3567 = vmatpush1.bf16.msra.mxu0 %v3416
      %3568 = vmatprep.subr.bf16.mxu0 0
      %3569 = vmatpush1.bf16.msra.mxu0 %v3417
      %3570 = vmatprep.subr.bf16.mxu0 0
      %3571 = vmatpush1.bf16.msra.mxu0 0
      %3572 = vmatprep.subr.bf16.mxu0 0
      %3573 = vmatpush1.bf16.msra.mxu0 0
      %3574 = vmatprep.subr.bf16.mxu0 0
      %3575 = vmatpush1.bf16.msra.mxu0 0
      %3576 = vmatprep.subr.bf16.mxu0 0
      %3577 = vmatpush1.bf16.msra.mxu0 0
      %3578 = vmatprep.subr.bf16.mxu0 0
      %3579 = vmatpush1.bf16.msra.mxu0 0
      %3580 = vmatprep.subr.bf16.mxu0 0
      %3581 = vmatpush1.bf16.msra.mxu0 0
      %3582 = vmatprep.subr.bf16.mxu0 0
      %3583 = vmatpush1.bf16.msra.mxu0 0
      %3584 = vmatprep.subr.bf16.mxu0 0
      %3585 = vmatpush1.bf16.msra.mxu0 0
      %3586 = vmatprep.subr.bf16.mxu0 0
      %3587 = vmatpush1.bf16.msra.mxu0 0
      %3588 = vmatprep.subr.bf16.mxu0 0
      %3589 = vmatpush1.bf16.msra.mxu0 0
      %3590 = vmatprep.subr.bf16.mxu0 0
      %3591 = vmatpush1.bf16.msra.mxu0 0
      %3592 = vmatprep.subr.bf16.mxu0 0
      %3593 = vmatpush1.bf16.msra.mxu0 0
      %3594 = vmatprep.mubr.bf16.mxu0 0
      %3595 = vmatmul.mubr.bf16.gmra.mrb[0].mxu0 %v3240
      %v3596 = vpop.f32.mrb[0].mxu0
      %v3597 = vadd.f32 %v3437, %v3596
      %v3598 = vpop.f32.mrb[0].mxu0
      %v3599 = vpop.f32.mrb[0].mxu0
      %v3600 = vpop.f32.mrb[0].mxu0
      %3601 = vdwg.mxu0
      %v3602 = vpack.c.bf16 %v3073, %v3073
      %v3603 = vpack.c.bf16 %v3113, %v3113
      %v3604 = vpack.c.bf16 %v3153, %v3153
      %v3605 = vpack.c.bf16 %v3193, %v3193
      %v3606 = vpack.c.bf16 %v3277, %v3277
      %v3607 = vpack.c.bf16 %v3317, %v3317
      %v3608 = vpack.c.bf16 %v3357, %v3357
      %v3609 = vpack.c.bf16 %v3397, %v3397
      %v3611 = vsel %vm2214, %v3602, 0
      %v3614 = vsel %vm2214, %v3606, 0
      %3616 = vmatprep.subr.bf16.mxu0 0
      %3617 = vmatpush1.bf16.xpose.msra.mxu0 %v3614
      %3618 = vmatprep.subr.bf16.mxu0 0
      %3619 = vmatpush1.bf16.xpose.msra.mxu0 0
      %3620 = vmatprep.subr.bf16.mxu0 0
      %3621 = vmatpush1.bf16.xpose.msra.mxu0 0
      %3622 = vmatprep.subr.bf16.mxu0 0
      %3623 = vmatpush1.bf16.xpose.msra.mxu0 0
      %3624 = vmatprep.subr.bf16.mxu0 0
      %3625 = vmatpush1.bf16.xpose.msra.mxu0 0
      %3626 = vmatprep.subr.bf16.mxu0 0
      %3627 = vmatpush1.bf16.xpose.msra.mxu0 0
      %3628 = vmatprep.subr.bf16.mxu0 0
      %3629 = vmatpush1.bf16.xpose.msra.mxu0 0
      %3630 = vmatprep.subr.bf16.mxu0 0
      %3631 = vmatpush1.bf16.xpose.msra.mxu0 0
      %3632 = vmatprep.subr.bf16.mxu0 0
      %3633 = vmatpush1.bf16.xpose.msra.mxu0 0
      %3634 = vmatprep.subr.bf16.mxu0 0
      %3635 = vmatpush1.bf16.xpose.msra.mxu0 0
      %3636 = vmatprep.subr.bf16.mxu0 0
      %3637 = vmatpush1.bf16.xpose.msra.mxu0 0
      %3638 = vmatprep.subr.bf16.mxu0 0
      %3639 = vmatpush1.bf16.xpose.msra.mxu0 0
      %3640 = vmatprep.subr.bf16.mxu0 0
      %3641 = vmatpush1.bf16.xpose.msra.mxu0 0
      %3642 = vmatprep.subr.bf16.mxu0 0
      %3643 = vmatpush1.bf16.xpose.msra.mxu0 0
      %3644 = vmatprep.subr.bf16.mxu0 0
      %3645 = vmatpush1.bf16.xpose.msra.mxu0 0
      %3646 = vmatprep.subr.bf16.mxu0 0
      %3647 = vmatpush1.bf16.xpose.msra.mxu0 0
      %3648 = vmatprep.mubr.bf16.mxu0 0
      %3649 = vmatmul.mubr.bf16.gmra.mrb[0].mxu0 %v3611
      %v3650 = vpop.f32.mrb[0].mxu0
      %v3651 = vadd.f32 0.0, %v3650
      %v3652 = vpop.f32.mrb[0].mxu0
      %v3653 = vpop.f32.mrb[0].mxu0
      %v3654 = vpop.f32.mrb[0].mxu0
      %3655 = vdwg.mxu0
      %v3657 = vsel %vm2214, %v3603, 0
      %v3660 = vsel %vm2214, %v3607, 0
      %3662 = vmatprep.subr.bf16.mxu0 0
      %3663 = vmatpush1.bf16.xpose.msra.mxu0 %v3660
      %3664 = vmatprep.subr.bf16.mxu0 0
      %3665 = vmatpush1.bf16.xpose.msra.mxu0 0
      %3666 = vmatprep.subr.bf16.mxu0 0
      %3667 = vmatpush1.bf16.xpose.msra.mxu0 0
      %3668 = vmatprep.subr.bf16.mxu0 0
      %3669 = vmatpush1.bf16.xpose.msra.mxu0 0
      %3670 = vmatprep.subr.bf16.mxu0 0
      %3671 = vmatpush1.bf16.xpose.msra.mxu0 0
      %3672 = vmatprep.subr.bf16.mxu0 0
      %3673 = vmatpush1.bf16.xpose.msra.mxu0 0
      %3674 = vmatprep.subr.bf16.mxu0 0
      %3675 = vmatpush1.bf16.xpose.msra.mxu0 0
      %3676 = vmatprep.subr.bf16.mxu0 0
      %3677 = vmatpush1.bf16.xpose.msra.mxu0 0
      %3678 = vmatprep.subr.bf16.mxu0 0
      %3679 = vmatpush1.bf16.xpose.msra.mxu0 0
      %3680 = vmatprep.subr.bf16.mxu0 0
      %3681 = vmatpush1.bf16.xpose.msra.mxu0 0
      %3682 = vmatprep.subr.bf16.mxu0 0
      %3683 = vmatpush1.bf16.xpose.msra.mxu0 0
      %3684 = vmatprep.subr.bf16.mxu0 0
      %3685 = vmatpush1.bf16.xpose.msra.mxu0 0
      %3686 = vmatprep.subr.bf16.mxu0 0
      %3687 = vmatpush1.bf16.xpose.msra.mxu0 0
      %3688 = vmatprep.subr.bf16.mxu0 0
      %3689 = vmatpush1.bf16.xpose.msra.mxu0 0
      %3690 = vmatprep.subr.bf16.mxu0 0
      %3691 = vmatpush1.bf16.xpose.msra.mxu0 0
      %3692 = vmatprep.subr.bf16.mxu0 0
      %3693 = vmatpush1.bf16.xpose.msra.mxu0 0
      %3694 = vmatprep.mubr.bf16.mxu0 0
      %3695 = vmatmul.mubr.bf16.gmra.mrb[0].mxu0 %v3657
      %v3696 = vpop.f32.mrb[0].mxu0
      %v3697 = vadd.f32 0.0, %v3696
      %v3698 = vpop.f32.mrb[0].mxu0
      %v3699 = vpop.f32.mrb[0].mxu0
      %v3700 = vpop.f32.mrb[0].mxu0
      %3701 = vdwg.mxu0
      %v3703 = vsel %vm2214, %v3604, 0
      %v3706 = vsel %vm2214, %v3608, 0
      %3708 = vmatprep.subr.bf16.mxu0 0
      %3709 = vmatpush1.bf16.xpose.msra.mxu0 %v3706
      %3710 = vmatprep.subr.bf16.mxu0 0
      %3711 = vmatpush1.bf16.xpose.msra.mxu0 0
      %3712 = vmatprep.subr.bf16.mxu0 0
      %3713 = vmatpush1.bf16.xpose.msra.mxu0 0
      %3714 = vmatprep.subr.bf16.mxu0 0
      %3715 = vmatpush1.bf16.xpose.msra.mxu0 0
      %3716 = vmatprep.subr.bf16.mxu0 0
      %3717 = vmatpush1.bf16.xpose.msra.mxu0 0
      %3718 = vmatprep.subr.bf16.mxu0 0
      %3719 = vmatpush1.bf16.xpose.msra.mxu0 0
      %3720 = vmatprep.subr.bf16.mxu0 0
      %3721 = vmatpush1.bf16.xpose.msra.mxu0 0
      %3722 = vmatprep.subr.bf16.mxu0 0
      %3723 = vmatpush1.bf16.xpose.msra.mxu0 0
      %3724 = vmatprep.subr.bf16.mxu0 0
      %3725 = vmatpush1.bf16.xpose.msra.mxu0 0
      %3726 = vmatprep.subr.bf16.mxu0 0
      %3727 = vmatpush1.bf16.xpose.msra.mxu0 0
      %3728 = vmatprep.subr.bf16.mxu0 0
      %3729 = vmatpush1.bf16.xpose.msra.mxu0 0
      %3730 = vmatprep.subr.bf16.mxu0 0
      %3731 = vmatpush1.bf16.xpose.msra.mxu0 0
      %3732 = vmatprep.subr.bf16.mxu0 0
      %3733 = vmatpush1.bf16.xpose.msra.mxu0 0
      %3734 = vmatprep.subr.bf16.mxu0 0
      %3735 = vmatpush1.bf16.xpose.msra.mxu0 0
      %3736 = vmatprep.subr.bf16.mxu0 0
      %3737 = vmatpush1.bf16.xpose.msra.mxu0 0
      %3738 = vmatprep.subr.bf16.mxu0 0
      %3739 = vmatpush1.bf16.xpose.msra.mxu0 0
      %3740 = vmatprep.mubr.bf16.mxu0 0
      %3741 = vmatmul.mubr.bf16.gmra.mrb[0].mxu0 %v3703
      %v3742 = vpop.f32.mrb[0].mxu0
      %v3743 = vadd.f32 0.0, %v3742
      %v3744 = vpop.f32.mrb[0].mxu0
      %v3745 = vpop.f32.mrb[0].mxu0
      %v3746 = vpop.f32.mrb[0].mxu0
      %3747 = vdwg.mxu0
      %v3749 = vsel %vm2214, %v3605, 0
      %v3752 = vsel %vm2214, %v3609, 0
      %3754 = vmatprep.subr.bf16.mxu0 0
      %3755 = vmatpush1.bf16.xpose.msra.mxu0 %v3752
      %3756 = vmatprep.subr.bf16.mxu0 0
      %3757 = vmatpush1.bf16.xpose.msra.mxu0 0
      %3758 = vmatprep.subr.bf16.mxu0 0
      %3759 = vmatpush1.bf16.xpose.msra.mxu0 0
      %3760 = vmatprep.subr.bf16.mxu0 0
      %3761 = vmatpush1.bf16.xpose.msra.mxu0 0
      %3762 = vmatprep.subr.bf16.mxu0 0
      %3763 = vmatpush1.bf16.xpose.msra.mxu0 0
      %3764 = vmatprep.subr.bf16.mxu0 0
      %3765 = vmatpush1.bf16.xpose.msra.mxu0 0
      %3766 = vmatprep.subr.bf16.mxu0 0
      %3767 = vmatpush1.bf16.xpose.msra.mxu0 0
      %3768 = vmatprep.subr.bf16.mxu0 0
      %3769 = vmatpush1.bf16.xpose.msra.mxu0 0
      %3770 = vmatprep.subr.bf16.mxu0 0
      %3771 = vmatpush1.bf16.xpose.msra.mxu0 0
      %3772 = vmatprep.subr.bf16.mxu0 0
      %3773 = vmatpush1.bf16.xpose.msra.mxu0 0
      %3774 = vmatprep.subr.bf16.mxu0 0
      %3775 = vmatpush1.bf16.xpose.msra.mxu0 0
      %3776 = vmatprep.subr.bf16.mxu0 0
      %3777 = vmatpush1.bf16.xpose.msra.mxu0 0
      %3778 = vmatprep.subr.bf16.mxu0 0
      %3779 = vmatpush1.bf16.xpose.msra.mxu0 0
      %3780 = vmatprep.subr.bf16.mxu0 0
      %3781 = vmatpush1.bf16.xpose.msra.mxu0 0
      %3782 = vmatprep.subr.bf16.mxu0 0
      %3783 = vmatpush1.bf16.xpose.msra.mxu0 0
      %3784 = vmatprep.subr.bf16.mxu0 0
      %3785 = vmatpush1.bf16.xpose.msra.mxu0 0
      %3786 = vmatprep.mubr.bf16.mxu0 0
      %3787 = vmatmul.mubr.bf16.gmra.mrb[0].mxu0 %v3749
      %v3788 = vpop.f32.mrb[0].mxu0
      %v3789 = vadd.f32 0.0, %v3788
      %v3790 = vpop.f32.mrb[0].mxu0
      %v3791 = vpop.f32.mrb[0].mxu0
      %v3792 = vpop.f32.mrb[0].mxu0
      %3793 = vdwg.mxu0
      %v3794 = vmul.f32 %v3651, 0.25
      %v3795 = vmul.f32 %v3697, 0.25
      %v3796 = vmul.f32 %v3743, 0.25
      %v3797 = vmul.f32 %v3789, 0.25
      %vm3798 = vcmask 39936
      %v3799 = vsel %vm3798, %v3794, -inf
      %3800 = vmax.xlane.f32.xlu0 %v3799
      %v3801 = vpop.xlane.xlu0 %3800
      %v3802 = vsel %vm3798, %v3795, -inf
      %3803 = vmax.xlane.f32.xlu0 %v3802
      %v3804 = vpop.xlane.xlu0 %3803
      %v3805 = vsel %vm3798, %v3796, -inf
      %3806 = vmax.xlane.f32.xlu0 %v3805
      %v3807 = vpop.xlane.xlu0 %3806
      %v3808 = vsel %vm3798, %v3797, -inf
      %3809 = vmax.xlane.f32.xlu0 %v3808
      %v3810 = vpop.xlane.xlu0 %3809
      %v3811 = vsub.f32 %v3794, %v3801
      %v3812 = vsub.f32 %v3795, %v3804
      %v3813 = vsub.f32 %v3796, %v3807
      %v3814 = vsub.f32 %v3797, %v3810
      %v3815 = vmul.f32 %v3811, 1.442695
      %v3816 = vpow.pop %v3815
      %v3817 = vmul.f32 %v3812, 1.442695
      %v3818 = vpow.pop %v3817
      %v3819 = vmul.f32 %v3813, 1.442695
      %v3820 = vpow.pop %v3819
      %v3821 = vmul.f32 %v3814, 1.442695
      %v3822 = vpow.pop %v3821
      %v3823 = vsel %vm3798, %v3816, 0.0
      %3824 = vadd.xlane.f32.xlu0 %v3823
      %v3825 = vpop.xlane.xlu0 %3824
      %v3826 = vsel %vm3798, %v3818, 0.0
      %3827 = vadd.xlane.f32.xlu0 %v3826
      %v3828 = vpop.xlane.xlu0 %3827
      %v3829 = vsel %vm3798, %v3820, 0.0
      %3830 = vadd.xlane.f32.xlu0 %v3829
      %v3831 = vpop.xlane.xlu0 %3830
      %v3832 = vsel %vm3798, %v3822, 0.0
      %3833 = vadd.xlane.f32.xlu0 %v3832
      %v3834 = vpop.xlane.xlu0 %3833
      %v3835 = vrcp.pop %v3825
      %v3836 = vrcp.pop %v3828
      %v3837 = vrcp.pop %v3831
      %v3838 = vrcp.pop %v3834
      %v3839 = vmul.f32 %v3816, %v3835
      %v3840 = vmul.f32 %v3818, %v3836
      %v3841 = vmul.f32 %v3820, %v3837
      %v3842 = vmul.f32 %v3822, %v3838
      %v3843 = vpack.c.bf16 %v3839, %v3839
      %v3844 = vpack.c.bf16 %v3840, %v3840
      %v3845 = vpack.c.bf16 %v3841, %v3841
      %v3846 = vpack.c.bf16 %v3842, %v3842
      %v3847 = vpack.c.bf16 %v3477, %v3477
      %v3848 = vpack.c.bf16 %v3517, %v3517
      %v3849 = vpack.c.bf16 %v3557, %v3557
      %v3850 = vpack.c.bf16 %v3597, %v3597
      %v3852 = vsel %vm3798, %v3843, 0
      %vm3854 = vcmask 1041408
      %vm3855 = vcmask 1042432
      %v3856 = vsel %vm3854, 4294967295, 65535
      %v3857 = vsel %vm3855, %v3856, 0
      %v3859 = vand.u32 %v3847, %v3857
      %3861 = vmatprep.subr.bf16.mxu0 0
      %3862 = vmatpush1.bf16.msra.mxu0 %v3859
      %3863 = vmatprep.subr.bf16.mxu0 0
      %3864 = vmatpush1.bf16.msra.mxu0 0
      %3865 = vmatprep.subr.bf16.mxu0 0
      %3866 = vmatpush1.bf16.msra.mxu0 0
      %3867 = vmatprep.subr.bf16.mxu0 0
      %3868 = vmatpush1.bf16.msra.mxu0 0
      %3869 = vmatprep.subr.bf16.mxu0 0
      %3870 = vmatpush1.bf16.msra.mxu0 0
      %3871 = vmatprep.subr.bf16.mxu0 0
      %3872 = vmatpush1.bf16.msra.mxu0 0
      %3873 = vmatprep.subr.bf16.mxu0 0
      %3874 = vmatpush1.bf16.msra.mxu0 0
      %3875 = vmatprep.subr.bf16.mxu0 0
      %3876 = vmatpush1.bf16.msra.mxu0 0
      %3877 = vmatprep.subr.bf16.mxu0 0
      %3878 = vmatpush1.bf16.msra.mxu0 0
      %3879 = vmatprep.subr.bf16.mxu0 0
      %3880 = vmatpush1.bf16.msra.mxu0 0
      %3881 = vmatprep.subr.bf16.mxu0 0
      %3882 = vmatpush1.bf16.msra.mxu0 0
      %3883 = vmatprep.subr.bf16.mxu0 0
      %3884 = vmatpush1.bf16.msra.mxu0 0
      %3885 = vmatprep.subr.bf16.mxu0 0
      %3886 = vmatpush1.bf16.msra.mxu0 0
      %3887 = vmatprep.subr.bf16.mxu0 0
      %3888 = vmatpush1.bf16.msra.mxu0 0
      %3889 = vmatprep.subr.bf16.mxu0 0
      %3890 = vmatpush1.bf16.msra.mxu0 0
      %3891 = vmatprep.subr.bf16.mxu0 0
      %3892 = vmatpush1.bf16.msra.mxu0 0
      %3893 = vmatprep.mubr.bf16.mxu0 0
      %3894 = vmatmul.mubr.bf16.gmra.mrb[0].mxu0 %v3852
      %v3895 = vpop.f32.mrb[0].mxu0
      %v3896 = vadd.f32 0.0, %v3895
      %v3897 = vpop.f32.mrb[0].mxu0
      %v3898 = vpop.f32.mrb[0].mxu0
      %v3899 = vpop.f32.mrb[0].mxu0
      %3900 = vdwg.mxu0
      %v3902 = vsel %vm3798, %v3844, 0
      %v3905 = vand.u32 %v3848, %v3857
      %3907 = vmatprep.subr.bf16.mxu0 0
      %3908 = vmatpush1.bf16.msra.mxu0 %v3905
      %3909 = vmatprep.subr.bf16.mxu0 0
      %3910 = vmatpush1.bf16.msra.mxu0 0
      %3911 = vmatprep.subr.bf16.mxu0 0
      %3912 = vmatpush1.bf16.msra.mxu0 0
      %3913 = vmatprep.subr.bf16.mxu0 0
      %3914 = vmatpush1.bf16.msra.mxu0 0
      %3915 = vmatprep.subr.bf16.mxu0 0
      %3916 = vmatpush1.bf16.msra.mxu0 0
      %3917 = vmatprep.subr.bf16.mxu0 0
      %3918 = vmatpush1.bf16.msra.mxu0 0
      %3919 = vmatprep.subr.bf16.mxu0 0
      %3920 = vmatpush1.bf16.msra.mxu0 0
      %3921 = vmatprep.subr.bf16.mxu0 0
      %3922 = vmatpush1.bf16.msra.mxu0 0
      %3923 = vmatprep.subr.bf16.mxu0 0
      %3924 = vmatpush1.bf16.msra.mxu0 0
      %3925 = vmatprep.subr.bf16.mxu0 0
      %3926 = vmatpush1.bf16.msra.mxu0 0
      %3927 = vmatprep.subr.bf16.mxu0 0
      %3928 = vmatpush1.bf16.msra.mxu0 0
      %3929 = vmatprep.subr.bf16.mxu0 0
      %3930 = vmatpush1.bf16.msra.mxu0 0
      %3931 = vmatprep.subr.bf16.mxu0 0
      %3932 = vmatpush1.bf16.msra.mxu0 0
      %3933 = vmatprep.subr.bf16.mxu0 0
      %3934 = vmatpush1.bf16.msra.mxu0 0
      %3935 = vmatprep.subr.bf16.mxu0 0
      %3936 = vmatpush1.bf16.msra.mxu0 0
      %3937 = vmatprep.subr.bf16.mxu0 0
      %3938 = vmatpush1.bf16.msra.mxu0 0
      %3939 = vmatprep.mubr.bf16.mxu0 0
      %3940 = vmatmul.mubr.bf16.gmra.mrb[0].mxu0 %v3902
      %v3941 = vpop.f32.mrb[0].mxu0
      %v3942 = vadd.f32 0.0, %v3941
      %v3943 = vpop.f32.mrb[0].mxu0
      %v3944 = vpop.f32.mrb[0].mxu0
      %v3945 = vpop.f32.mrb[0].mxu0
      %3946 = vdwg.mxu0
      %v3948 = vsel %vm3798, %v3845, 0
      %v3951 = vand.u32 %v3849, %v3857
      %3953 = vmatprep.subr.bf16.mxu0 0
      %3954 = vmatpush1.bf16.msra.mxu0 %v3951
      %3955 = vmatprep.subr.bf16.mxu0 0
      %3956 = vmatpush1.bf16.msra.mxu0 0
      %3957 = vmatprep.subr.bf16.mxu0 0
      %3958 = vmatpush1.bf16.msra.mxu0 0
      %3959 = vmatprep.subr.bf16.mxu0 0
      %3960 = vmatpush1.bf16.msra.mxu0 0
      %3961 = vmatprep.subr.bf16.mxu0 0
      %3962 = vmatpush1.bf16.msra.mxu0 0
      %3963 = vmatprep.subr.bf16.mxu0 0
      %3964 = vmatpush1.bf16.msra.mxu0 0
      %3965 = vmatprep.subr.bf16.mxu0 0
      %3966 = vmatpush1.bf16.msra.mxu0 0
      %3967 = vmatprep.subr.bf16.mxu0 0
      %3968 = vmatpush1.bf16.msra.mxu0 0
      %3969 = vmatprep.subr.bf16.mxu0 0
      %3970 = vmatpush1.bf16.msra.mxu0 0
      %3971 = vmatprep.subr.bf16.mxu0 0
      %3972 = vmatpush1.bf16.msra.mxu0 0
      %3973 = vmatprep.subr.bf16.mxu0 0
      %3974 = vmatpush1.bf16.msra.mxu0 0
      %3975 = vmatprep.subr.bf16.mxu0 0
      %3976 = vmatpush1.bf16.msra.mxu0 0
      %3977 = vmatprep.subr.bf16.mxu0 0
      %3978 = vmatpush1.bf16.msra.mxu0 0
      %3979 = vmatprep.subr.bf16.mxu0 0
      %3980 = vmatpush1.bf16.msra.mxu0 0
      %3981 = vmatprep.subr.bf16.mxu0 0
      %3982 = vmatpush1.bf16.msra.mxu0 0
      %3983 = vmatprep.subr.bf16.mxu0 0
      %3984 = vmatpush1.bf16.msra.mxu0 0
      %3985 = vmatprep.mubr.bf16.mxu0 0
      %3986 = vmatmul.mubr.bf16.gmra.mrb[0].mxu0 %v3948
      %v3987 = vpop.f32.mrb[0].mxu0
      %v3988 = vadd.f32 0.0, %v3987
      %v3989 = vpop.f32.mrb[0].mxu0
      %v3990 = vpop.f32.mrb[0].mxu0
      %v3991 = vpop.f32.mrb[0].mxu0
      %3992 = vdwg.mxu0
      %v3994 = vsel %vm3798, %v3846, 0
      %v3997 = vand.u32 %v3850, %v3857
      %3999 = vmatprep.subr.bf16.mxu0 0
      %4000 = vmatpush1.bf16.msra.mxu0 %v3997
      %4001 = vmatprep.subr.bf16.mxu0 0
      %4002 = vmatpush1.bf16.msra.mxu0 0
      %4003 = vmatprep.subr.bf16.mxu0 0
      %4004 = vmatpush1.bf16.msra.mxu0 0
      %4005 = vmatprep.subr.bf16.mxu0 0
      %4006 = vmatpush1.bf16.msra.mxu0 0
      %4007 = vmatprep.subr.bf16.mxu0 0
      %4008 = vmatpush1.bf16.msra.mxu0 0
      %4009 = vmatprep.subr.bf16.mxu0 0
      %4010 = vmatpush1.bf16.msra.mxu0 0
      %4011 = vmatprep.subr.bf16.mxu0 0
      %4012 = vmatpush1.bf16.msra.mxu0 0
      %4013 = vmatprep.subr.bf16.mxu0 0
      %4014 = vmatpush1.bf16.msra.mxu0 0
      %4015 = vmatprep.subr.bf16.mxu0 0
      %4016 = vmatpush1.bf16.msra.mxu0 0
      %4017 = vmatprep.subr.bf16.mxu0 0
      %4018 = vmatpush1.bf16.msra.mxu0 0
      %4019 = vmatprep.subr.bf16.mxu0 0
      %4020 = vmatpush1.bf16.msra.mxu0 0
      %4021 = vmatprep.subr.bf16.mxu0 0
      %4022 = vmatpush1.bf16.msra.mxu0 0
      %4023 = vmatprep.subr.bf16.mxu0 0
      %4024 = vmatpush1.bf16.msra.mxu0 0
      %4025 = vmatprep.subr.bf16.mxu0 0
      %4026 = vmatpush1.bf16.msra.mxu0 0
      %4027 = vmatprep.subr.bf16.mxu0 0
      %4028 = vmatpush1.bf16.msra.mxu0 0
      %4029 = vmatprep.subr.bf16.mxu0 0
      %4030 = vmatpush1.bf16.msra.mxu0 0
      %4031 = vmatprep.mubr.bf16.mxu0 0
      %4032 = vmatmul.mubr.bf16.gmra.mrb[0].mxu0 %v3994
      %v4033 = vpop.f32.mrb[0].mxu0
      %v4034 = vadd.f32 0.0, %v4033
      %v4035 = vpop.f32.mrb[0].mxu0
      %v4036 = vpop.f32.mrb[0].mxu0
      %v4037 = vpop.f32.mrb[0].mxu0
      %4038 = vdwg.mxu0
      %v4039 = vpack.c.bf16 %v3896, %v3896
      %v4040 = vpack.c.bf16 %v3942, %v3942
      %v4041 = vpack.c.bf16 %v3988, %v3988
      %v4042 = vpack.c.bf16 %v4034, %v4034
      %v4043 = vpack.c.bf16 %v2986, %v2985
      %v4044 = vpack.c.bf16 %v2988, %v2987
      %v4045 = vpack.c.bf16 %v2990, %v2989
      %v4046 = vpack.c.bf16 %v2992, %v2991
      %v4048 = vsel %vm2214, %v4039, 0
      %4050 = vmatprep.subr.bf16.mxu0 0
      %4051 = vmatpush1.bf16.msra.mxu0 %v4043
      %4052 = vmatprep.subr.bf16.mxu0 0
      %4053 = vmatpush1.bf16.msra.mxu0 0
      %4054 = vmatprep.subr.bf16.mxu0 0
      %4055 = vmatpush1.bf16.msra.mxu0 0
      %4056 = vmatprep.subr.bf16.mxu0 0
      %4057 = vmatpush1.bf16.msra.mxu0 0
      %4058 = vmatprep.subr.bf16.mxu0 0
      %4059 = vmatpush1.bf16.msra.mxu0 0
      %4060 = vmatprep.subr.bf16.mxu0 0
      %4061 = vmatpush1.bf16.msra.mxu0 0
      %4062 = vmatprep.subr.bf16.mxu0 0
      %4063 = vmatpush1.bf16.msra.mxu0 0
      %4064 = vmatprep.subr.bf16.mxu0 0
      %4065 = vmatpush1.bf16.msra.mxu0 0
      %4066 = vmatprep.subr.bf16.mxu0 0
      %4067 = vmatpush1.bf16.msra.mxu0 0
      %4068 = vmatprep.subr.bf16.mxu0 0
      %4069 = vmatpush1.bf16.msra.mxu0 0
      %4070 = vmatprep.subr.bf16.mxu0 0
      %4071 = vmatpush1.bf16.msra.mxu0 0
      %4072 = vmatprep.subr.bf16.mxu0 0
      %4073 = vmatpush1.bf16.msra.mxu0 0
      %4074 = vmatprep.subr.bf16.mxu0 0
      %4075 = vmatpush1.bf16.msra.mxu0 0
      %4076 = vmatprep.subr.bf16.mxu0 0
      %4077 = vmatpush1.bf16.msra.mxu0 0
      %4078 = vmatprep.subr.bf16.mxu0 0
      %4079 = vmatpush1.bf16.msra.mxu0 0
      %4080 = vmatprep.subr.bf16.mxu0 0
      %4081 = vmatpush1.bf16.msra.mxu0 0
      %4082 = vmatprep.mubr.bf16.mxu0 0
      %4083 = vmatmul.mubr.bf16.gmra.mrb[0].mxu0 %v4048
      %v4084 = vpop.f32.mrb[0].mxu0
      %v4085 = vadd.f32 0.0, %v4084
      %v4086 = vpop.f32.mrb[0].mxu0
      %v4087 = vpop.f32.mrb[0].mxu0
      %v4088 = vpop.f32.mrb[0].mxu0
      %4089 = vdwg.mxu0
      %v4091 = vsel %vm2214, %v4040, 0
      %4093 = vmatprep.subr.bf16.mxu0 0
      %4094 = vmatpush1.bf16.msra.mxu0 %v4044
      %4095 = vmatprep.subr.bf16.mxu0 0
      %4096 = vmatpush1.bf16.msra.mxu0 0
      %4097 = vmatprep.subr.bf16.mxu0 0
      %4098 = vmatpush1.bf16.msra.mxu0 0
      %4099 = vmatprep.subr.bf16.mxu0 0
      %4100 = vmatpush1.bf16.msra.mxu0 0
      %4101 = vmatprep.subr.bf16.mxu0 0
      %4102 = vmatpush1.bf16.msra.mxu0 0
      %4103 = vmatprep.subr.bf16.mxu0 0
      %4104 = vmatpush1.bf16.msra.mxu0 0
      %4105 = vmatprep.subr.bf16.mxu0 0
      %4106 = vmatpush1.bf16.msra.mxu0 0
      %4107 = vmatprep.subr.bf16.mxu0 0
      %4108 = vmatpush1.bf16.msra.mxu0 0
      %4109 = vmatprep.subr.bf16.mxu0 0
      %4110 = vmatpush1.bf16.msra.mxu0 0
      %4111 = vmatprep.subr.bf16.mxu0 0
      %4112 = vmatpush1.bf16.msra.mxu0 0
      %4113 = vmatprep.subr.bf16.mxu0 0
      %4114 = vmatpush1.bf16.msra.mxu0 0
      %4115 = vmatprep.subr.bf16.mxu0 0
      %4116 = vmatpush1.bf16.msra.mxu0 0
      %4117 = vmatprep.subr.bf16.mxu0 0
      %4118 = vmatpush1.bf16.msra.mxu0 0
      %4119 = vmatprep.subr.bf16.mxu0 0
      %4120 = vmatpush1.bf16.msra.mxu0 0
      %4121 = vmatprep.subr.bf16.mxu0 0
      %4122 = vmatpush1.bf16.msra.mxu0 0
      %4123 = vmatprep.subr.bf16.mxu0 0
      %4124 = vmatpush1.bf16.msra.mxu0 0
      %4125 = vmatprep.mubr.bf16.mxu0 0
      %4126 = vmatmul.mubr.bf16.gmra.mrb[0].mxu0 %v4091
      %v4127 = vpop.f32.mrb[0].mxu0
      %v4128 = vadd.f32 0.0, %v4127
      %v4129 = vpop.f32.mrb[0].mxu0
      %v4130 = vpop.f32.mrb[0].mxu0
      %v4131 = vpop.f32.mrb[0].mxu0
      %4132 = vdwg.mxu0
      %v4134 = vsel %vm2214, %v4041, 0
      %4136 = vmatprep.subr.bf16.mxu0 0
      %4137 = vmatpush1.bf16.msra.mxu0 %v4045
      %4138 = vmatprep.subr.bf16.mxu0 0
      %4139 = vmatpush1.bf16.msra.mxu0 0
      %4140 = vmatprep.subr.bf16.mxu0 0
      %4141 = vmatpush1.bf16.msra.mxu0 0
      %4142 = vmatprep.subr.bf16.mxu0 0
      %4143 = vmatpush1.bf16.msra.mxu0 0
      %4144 = vmatprep.subr.bf16.mxu0 0
      %4145 = vmatpush1.bf16.msra.mxu0 0
      %4146 = vmatprep.subr.bf16.mxu0 0
      %4147 = vmatpush1.bf16.msra.mxu0 0
      %4148 = vmatprep.subr.bf16.mxu0 0
      %4149 = vmatpush1.bf16.msra.mxu0 0
      %4150 = vmatprep.subr.bf16.mxu0 0
      %4151 = vmatpush1.bf16.msra.mxu0 0
      %4152 = vmatprep.subr.bf16.mxu0 0
      %4153 = vmatpush1.bf16.msra.mxu0 0
      %4154 = vmatprep.subr.bf16.mxu0 0
      %4155 = vmatpush1.bf16.msra.mxu0 0
      %4156 = vmatprep.subr.bf16.mxu0 0
      %4157 = vmatpush1.bf16.msra.mxu0 0
      %4158 = vmatprep.subr.bf16.mxu0 0
      %4159 = vmatpush1.bf16.msra.mxu0 0
      %4160 = vmatprep.subr.bf16.mxu0 0
      %4161 = vmatpush1.bf16.msra.mxu0 0
      %4162 = vmatprep.subr.bf16.mxu0 0
      %4163 = vmatpush1.bf16.msra.mxu0 0
      %4164 = vmatprep.subr.bf16.mxu0 0
      %4165 = vmatpush1.bf16.msra.mxu0 0
      %4166 = vmatprep.subr.bf16.mxu0 0
      %4167 = vmatpush1.bf16.msra.mxu0 0
      %4168 = vmatprep.mubr.bf16.mxu0 0
      %4169 = vmatmul.mubr.bf16.gmra.mrb[0].mxu0 %v4134
      %v4170 = vpop.f32.mrb[0].mxu0
      %v4171 = vadd.f32 0.0, %v4170
      %v4172 = vpop.f32.mrb[0].mxu0
      %v4173 = vpop.f32.mrb[0].mxu0
      %v4174 = vpop.f32.mrb[0].mxu0
      %4175 = vdwg.mxu0
      %v4177 = vsel %vm2214, %v4042, 0
      %4179 = vmatprep.subr.bf16.mxu0 0
      %4180 = vmatpush1.bf16.msra.mxu0 %v4046
      %4181 = vmatprep.subr.bf16.mxu0 0
      %4182 = vmatpush1.bf16.msra.mxu0 0
      %4183 = vmatprep.subr.bf16.mxu0 0
      %4184 = vmatpush1.bf16.msra.mxu0 0
      %4185 = vmatprep.subr.bf16.mxu0 0
      %4186 = vmatpush1.bf16.msra.mxu0 0
      %4187 = vmatprep.subr.bf16.mxu0 0
      %4188 = vmatpush1.bf16.msra.mxu0 0
      %4189 = vmatprep.subr.bf16.mxu0 0
      %4190 = vmatpush1.bf16.msra.mxu0 0
      %4191 = vmatprep.subr.bf16.mxu0 0
      %4192 = vmatpush1.bf16.msra.mxu0 0
      %4193 = vmatprep.subr.bf16.mxu0 0
      %4194 = vmatpush1.bf16.msra.mxu0 0
      %4195 = vmatprep.subr.bf16.mxu0 0
      %4196 = vmatpush1.bf16.msra.mxu0 0
      %4197 = vmatprep.subr.bf16.mxu0 0
      %4198 = vmatpush1.bf16.msra.mxu0 0
      %4199 = vmatprep.subr.bf16.mxu0 0
      %4200 = vmatpush1.bf16.msra.mxu0 0
      %4201 = vmatprep.subr.bf16.mxu0 0
      %4202 = vmatpush1.bf16.msra.mxu0 0
      %4203 = vmatprep.subr.bf16.mxu0 0
      %4204 = vmatpush1.bf16.msra.mxu0 0
      %4205 = vmatprep.subr.bf16.mxu0 0
      %4206 = vmatpush1.bf16.msra.mxu0 0
      %4207 = vmatprep.subr.bf16.mxu0 0
      %4208 = vmatpush1.bf16.msra.mxu0 0
      %4209 = vmatprep.subr.bf16.mxu0 0
      %4210 = vmatpush1.bf16.msra.mxu0 0
      %4211 = vmatprep.mubr.bf16.mxu0 0
      %4212 = vmatmul.mubr.bf16.gmra.mrb[0].mxu0 %v4177
      %v4213 = vpop.f32.mrb[0].mxu0
      %v4214 = vadd.f32 0.0, %v4213
      %v4215 = vpop.f32.mrb[0].mxu0
      %v4216 = vpop.f32.mrb[0].mxu0
      %v4217 = vpop.f32.mrb[0].mxu0
      %4218 = vdwg.mxu0
      %v4219 = vsel %vm1642, %v4085, 0.0
      %v4220 = vsel %vm1642, %v4128, 0.0
      %v4221 = vadd.f32 %v4219, %v4220
      %v4222 = vsel %vm1642, %v4171, 0.0
      %v4223 = vadd.f32 %v4221, %v4222
      %v4224 = vsel %vm1642, %v4214, 0.0
      %v4225 = vadd.f32 %v4223, %v4224
      %v4227 = vlaneseq
      %v4228 = vshrl.u32 %v4227, 7
      %v4229 = vsub.s32 0, %v4228
      %v4230 = vrot.slane %v2993, %v4229
      %v4232 = vadd.f32 %v4225, %v4230
      %v4233 = vadd.f32 %v2875, %v4232
      %v4234 = vld [vmem:[%s1411] sm:$0x1]
      %v4235 = vld [vmem:[%s1414] sm:$0x1]
      %v4236 = vsel %vm1642, %v4233, 0.0
      %4237 = vadd.xlane.f32.xlu0 %v4236
      %v4238 = vpop.xlane.xlu0 %4237
      %v4239 = vmul.f32 %v4238, %v2851
      %v4240 = vsub.f32 %v4233, %v4239
      %v4241 = vmul.f32 %v4240, %v4240
      %v4242 = vsel %vm1642, %v4241, 0.0
      %4243 = vadd.xlane.f32.xlu0 %v4242
      %v4244 = vpop.xlane.xlu0 %4243
      %v4245 = vmul.f32 %v4244, %v2851
      %v4246 = vadd.f32 %v4245, 1e-12
      %v4247 = vrsqrt.pop %v4246
      %v4248 = vmul.f32 %v4240, %v4247
      %v4250 = vlaneseq
      %v4251 = vshrl.u32 %v4250, 7
      %v4252 = vsub.s32 0, %v4251
      %v4253 = vrot.slane %v4234, %v4252
      %v4255 = vmul.f32 %v4248, %v4253
      %v4257 = vlaneseq
      %v4258 = vshrl.u32 %v4257, 7
      %v4259 = vsub.s32 0, %v4258
      %v4260 = vrot.slane %v4235, %v4259
      %v4262 = vadd.f32 %v4255, %v4260
      %v4263 = vld [vmem:[%s1419] sm:$0xff]
      %v4264 = vld [vmem:[%s1419 + $0x8] sm:$0xff]
      %v4265 = vld [vmem:[%s1419 + $0x10] sm:$0xff]
      %v4266 = vld [vmem:[%s1419 + $0x18] sm:$0xff]
      %v4267 = vld [vmem:[%s1419 + $0x20] sm:$0xff]
      %v4268 = vld [vmem:[%s1419 + $0x28] sm:$0xff]
      %v4269 = vld [vmem:[%s1419 + $0x30] sm:$0xff]
      %v4270 = vld [vmem:[%s1419 + $0x38] sm:$0xff]
      %v4271 = vld [vmem:[%s1419 + $0x40] sm:$0xff]
      %v4272 = vld [vmem:[%s1419 + $0x48] sm:$0xff]
      %v4273 = vld [vmem:[%s1419 + $0x50] sm:$0xff]
      %v4274 = vld [vmem:[%s1419 + $0x58] sm:$0xff]
      %v4275 = vld [vmem:[%s1419 + $0x60] sm:$0xff]
      %v4276 = vld [vmem:[%s1419 + $0x68] sm:$0xff]
      %v4277 = vld [vmem:[%s1419 + $0x70] sm:$0xff]
      %v4278 = vld [vmem:[%s1419 + $0x78] sm:$0xff]
      %v4279 = vpack.c.bf16 %v4262, %v4262
      %v4280 = vpack.c.bf16 %v4265, %v4263
      %v4281 = vpack.c.bf16 %v4266, %v4264
      %v4282 = vpack.c.bf16 %v4269, %v4267
      %v4283 = vpack.c.bf16 %v4270, %v4268
      %v4284 = vpack.c.bf16 %v4273, %v4271
      %v4285 = vpack.c.bf16 %v4274, %v4272
      %v4286 = vpack.c.bf16 %v4277, %v4275
      %v4287 = vpack.c.bf16 %v4278, %v4276
      %v4288 = vld [vmem:[%s1423] sm:$0x3]
      %v4290 = vlaneseq
      %v4291 = vshrl.u32 %v4290, 7
      %v4292 = vsub.s32 0, %v4291
      %v4293 = vrot.slane %v4288, %v4292
      %v4294 = vlaneseq
      %v4295 = vshrl.u32 %v4294, 7
      %v4296 = vsub.s32 1, %v4295
      %v4297 = vrot.slane %v4288, %v4296
      %v4301 = vsel %vm1642, %v4279, 0
      %4303 = vmatprep.subr.bf16.mxu0 %v4281
      %4304 = vmatpush1.bf16.msra.mxu0 %v4280
      %4305 = vmatprep.subr.bf16.mxu0 %v4283
      %4306 = vmatpush1.bf16.msra.mxu0 %v4282
      %4307 = vmatprep.subr.bf16.mxu0 %v4285
      %4308 = vmatpush1.bf16.msra.mxu0 %v4284
      %4309 = vmatprep.subr.bf16.mxu0 %v4287
      %4310 = vmatpush1.bf16.msra.mxu0 %v4286
      %4311 = vmatprep.subr.bf16.mxu0 0
      %4312 = vmatpush1.bf16.msra.mxu0 0
      %4313 = vmatprep.subr.bf16.mxu0 0
      %4314 = vmatpush1.bf16.msra.mxu0 0
      %4315 = vmatprep.subr.bf16.mxu0 0
      %4316 = vmatpush1.bf16.msra.mxu0 0
      %4317 = vmatprep.subr.bf16.mxu0 0
      %4318 = vmatpush1.bf16.msra.mxu0 0
      %4319 = vmatprep.subr.bf16.mxu0 0
      %4320 = vmatpush1.bf16.msra.mxu0 0
      %4321 = vmatprep.subr.bf16.mxu0 0
      %4322 = vmatpush1.bf16.msra.mxu0 0
      %4323 = vmatprep.subr.bf16.mxu0 0
      %4324 = vmatpush1.bf16.msra.mxu0 0
      %4325 = vmatprep.subr.bf16.mxu0 0
      %4326 = vmatpush1.bf16.msra.mxu0 0
      %4327 = vmatprep.subr.bf16.mxu0 0
      %4328 = vmatpush1.bf16.msra.mxu0 0
      %4329 = vmatprep.subr.bf16.mxu0 0
      %4330 = vmatpush1.bf16.msra.mxu0 0
      %4331 = vmatprep.subr.bf16.mxu0 0
      %4332 = vmatpush1.bf16.msra.mxu0 0
      %4333 = vmatprep.subr.bf16.mxu0 0
      %4334 = vmatpush1.bf16.msra.mxu0 0
      %4335 = vmatprep.mubr.bf16.mxu0 0
      %4336 = vmatmul.mubr.bf16.gmra.mrb[0].mxu0 %v4301
      %v4337 = vpop.f32.mrb[0].mxu0
      %v4338 = vadd.f32 %v4293, %v4337
      %v4339 = vpop.f32.mrb[0].mxu0
      %v4340 = vadd.f32 %v4297, %v4339
      %v4341 = vpop.f32.mrb[0].mxu0
      %v4342 = vpop.f32.mrb[0].mxu0
      %4343 = vdwg.mxu0
      %v4344 = vmul.f32 %v4338, 0.5
      %v4345 = vmul.f32 %v4340, 0.5
      %v4346 = vmul.f32 %v4338, 0.70710677
      %v4347 = vmul.f32 %v4340, 0.70710677
      %v4348 = vand.u32 2147483647, %v4346
      %v4349 = vand.u32 2147483647, %v4347
      %v4350 = vmul.f32 %v4348, 0.3275911
      %v4351 = vmul.f32 %v4349, 0.3275911
      %v4352 = vadd.f32 %v4350, 1.0
      %v4353 = vadd.f32 %v4351, 1.0
      %v4354 = vrcp.pop %v4352
      %v4355 = vmul.f32 1.0, %v4354
      %v4356 = vrcp.pop %v4353
      %v4357 = vmul.f32 1.0, %v4356
      %v4358 = vmul.f32 %v4355, 1.0614054
      %v4359 = vmul.f32 %v4357, 1.0614054
      %v4360 = vsub.f32 %v4358, 1.4531521
      %v4361 = vsub.f32 %v4359, 1.4531521
      %v4362 = vmul.f32 %v4360, %v4355
      %v4363 = vmul.f32 %v4361, %v4357
      %v4364 = vadd.f32 %v4362, 1.4214138
      %v4365 = vadd.f32 %v4363, 1.4214138
      %v4366 = vmul.f32 %v4364, %v4355
      %v4367 = vmul.f32 %v4365, %v4357
      %v4368 = vsub.f32 %v4366, 0.28449672
      %v4369 = vsub.f32 %v4367, 0.28449672
      %v4370 = vmul.f32 %v4368, %v4355
      %v4371 = vmul.f32 %v4369, %v4357
      %v4372 = vadd.f32 %v4370, 0.2548296
      %v4373 = vadd.f32 %v4371, 0.2548296
      %v4374 = vmul.f32 %v4372, %v4355
      %v4375 = vmul.f32 %v4373, %v4357
      %v4376 = vsub.f32 0.0, %v4346
      %v4377 = vsub.f32 0.0, %v4347
      %v4378 = vmul.f32 %v4376, %v4346
      %v4379 = vmul.f32 %v4377, %v4347
      %v4380 = vmul.f32 %v4378, 1.442695
      %v4381 = vpow.pop %v4380
      %v4382 = vmul.f32 %v4379, 1.442695
      %v4383 = vpow.pop %v4382
      %v4384 = vmul.f32 %v4374, %v4381
      %v4385 = vmul.f32 %v4375, %v4383
      %v4386 = vsub.f32 1.0, %v4384
      %v4387 = vsub.f32 1.0, %v4385
      %vm4388 = vcmp.ge.f32.partialorder %v4346, 0.0
      %vm4389 = vcmp.ge.f32.partialorder %v4347, 0.0
      %v4390 = vsub.f32 0.0, %v4386
      %v4391 = vsub.f32 0.0, %v4387
      %v4392 = vsel %vm4388, %v4386, %v4390
      %v4393 = vsel %vm4389, %v4387, %v4391
      %v4394 = vadd.f32 %v4392, 1.0
      %v4395 = vadd.f32 %v4393, 1.0
      %v4396 = vmul.f32 %v4344, %v4394
      %v4397 = vmul.f32 %v4345, %v4395
      %v4398 = vld [vmem:[%s1428] sm:$0xff]
      %v4399 = vld [vmem:[%s1428 + $0x8] sm:$0xff]
      %v4400 = vld [vmem:[%s1428 + $0x10] sm:$0xff]
      %v4401 = vld [vmem:[%s1428 + $0x18] sm:$0xff]
      %v4402 = vld [vmem:[%s1428 + $0x20] sm:$0xff]
      %v4403 = vld [vmem:[%s1428 + $0x28] sm:$0xff]
      %v4404 = vld [vmem:[%s1428 + $0x30] sm:$0xff]
      %v4405 = vld [vmem:[%s1428 + $0x38] sm:$0xff]
      %v4406 = vld [vmem:[%s1428 + $0x40] sm:$0xff]
      %v4407 = vld [vmem:[%s1428 + $0x48] sm:$0xff]
      %v4408 = vld [vmem:[%s1428 + $0x50] sm:$0xff]
      %v4409 = vld [vmem:[%s1428 + $0x58] sm:$0xff]
      %v4410 = vld [vmem:[%s1428 + $0x60] sm:$0xff]
      %v4411 = vld [vmem:[%s1428 + $0x68] sm:$0xff]
      %v4412 = vld [vmem:[%s1428 + $0x70] sm:$0xff]
      %v4413 = vld [vmem:[%s1428 + $0x78] sm:$0xff]
      %v4414 = vld [vmem:[%s1428 + $0x80] sm:$0xff]
      %v4415 = vld [vmem:[%s1428 + $0x88] sm:$0xff]
      %v4416 = vld [vmem:[%s1428 + $0x90] sm:$0xff]
      %v4417 = vld [vmem:[%s1428 + $0x98] sm:$0xff]
      %v4418 = vld [vmem:[%s1428 + $0xa0] sm:$0xff]
      %v4419 = vld [vmem:[%s1428 + $0xa8] sm:$0xff]
      %v4420 = vld [vmem:[%s1428 + $0xb0] sm:$0xff]
      %v4421 = vld [vmem:[%s1428 + $0xb8] sm:$0xff]
      %v4422 = vld [vmem:[%s1428 + $0xc0] sm:$0xff]
      %v4423 = vld [vmem:[%s1428 + $0xc8] sm:$0xff]
      %v4424 = vld [vmem:[%s1428 + $0xd0] sm:$0xff]
      %v4425 = vld [vmem:[%s1428 + $0xd8] sm:$0xff]
      %v4426 = vld [vmem:[%s1428 + $0xe0] sm:$0xff]
      %v4427 = vld [vmem:[%s1428 + $0xe8] sm:$0xff]
      %v4428 = vld [vmem:[%s1428 + $0xf0] sm:$0xff]
      %v4429 = vld [vmem:[%s1428 + $0xf8] sm:$0xff]
      %v4430 = vpack.c.bf16 %v4396, %v4396
      %v4431 = vpack.c.bf16 %v4397, %v4397
      %v4432 = vpack.c.bf16 %v4399, %v4398
      %v4433 = vpack.c.bf16 %v4401, %v4400
      %v4434 = vpack.c.bf16 %v4403, %v4402
      %v4435 = vpack.c.bf16 %v4405, %v4404
      %v4436 = vpack.c.bf16 %v4407, %v4406
      %v4437 = vpack.c.bf16 %v4409, %v4408
      %v4438 = vpack.c.bf16 %v4411, %v4410
      %v4439 = vpack.c.bf16 %v4413, %v4412
      %v4440 = vpack.c.bf16 %v4415, %v4414
      %v4441 = vpack.c.bf16 %v4417, %v4416
      %v4442 = vpack.c.bf16 %v4419, %v4418
      %v4443 = vpack.c.bf16 %v4421, %v4420
      %v4444 = vpack.c.bf16 %v4423, %v4422
      %v4445 = vpack.c.bf16 %v4425, %v4424
      %v4446 = vpack.c.bf16 %v4427, %v4426
      %v4447 = vpack.c.bf16 %v4429, %v4428
      %v4448 = vld [vmem:[%s1431] sm:$0x1]
      %v4450 = vlaneseq
      %v4451 = vshrl.u32 %v4450, 7
      %v4452 = vsub.s32 0, %v4451
      %v4453 = vrot.slane %v4448, %v4452
      %4455 = vmatprep.subr.bf16.mxu0 0
      %4456 = vmatpush1.bf16.msra.mxu0 %v4432
      %4457 = vmatprep.subr.bf16.mxu0 0
      %4458 = vmatpush1.bf16.msra.mxu0 %v4433
      %4459 = vmatprep.subr.bf16.mxu0 0
      %4460 = vmatpush1.bf16.msra.mxu0 %v4434
      %4461 = vmatprep.subr.bf16.mxu0 0
      %4462 = vmatpush1.bf16.msra.mxu0 %v4435
      %4463 = vmatprep.subr.bf16.mxu0 0
      %4464 = vmatpush1.bf16.msra.mxu0 %v4436
      %4465 = vmatprep.subr.bf16.mxu0 0
      %4466 = vmatpush1.bf16.msra.mxu0 %v4437
      %4467 = vmatprep.subr.bf16.mxu0 0
      %4468 = vmatpush1.bf16.msra.mxu0 %v4438
      %4469 = vmatprep.subr.bf16.mxu0 0
      %4470 = vmatpush1.bf16.msra.mxu0 %v4439
      %4471 = vmatprep.subr.bf16.mxu0 0
      %4472 = vmatpush1.bf16.msra.mxu0 %v4440
      %4473 = vmatprep.subr.bf16.mxu0 0
      %4474 = vmatpush1.bf16.msra.mxu0 %v4441
      %4475 = vmatprep.subr.bf16.mxu0 0
      %4476 = vmatpush1.bf16.msra.mxu0 %v4442
      %4477 = vmatprep.subr.bf16.mxu0 0
      %4478 = vmatpush1.bf16.msra.mxu0 %v4443
      %4479 = vmatprep.subr.bf16.mxu0 0
      %4480 = vmatpush1.bf16.msra.mxu0 %v4444
      %4481 = vmatprep.subr.bf16.mxu0 0
      %4482 = vmatpush1.bf16.msra.mxu0 %v4445
      %4483 = vmatprep.subr.bf16.mxu0 0
      %4484 = vmatpush1.bf16.msra.mxu0 %v4446
      %4485 = vmatprep.subr.bf16.mxu0 0
      %4486 = vmatpush1.bf16.msra.mxu0 %v4447
      %4487 = vmatprep.mubr.bf16.mxu0 %v4431
      %4488 = vmatmul.mubr.bf16.gmra.mrb[0].mxu0 %v4430
      %v4489 = vpop.f32.mrb[0].mxu0
      %v4490 = vadd.f32 %v4453, %v4489
      %v4491 = vpop.f32.mrb[0].mxu0
      %v4492 = vpop.f32.mrb[0].mxu0
      %v4493 = vpop.f32.mrb[0].mxu0
      %4494 = vdwg.mxu0
      %v4495 = vadd.f32 %v4262, %v4490
      %v4496 = vld [vmem:[%s1434] sm:$0x1]
      %v4497 = vld [vmem:[%s1437] sm:$0x1]
      %v4498 = vsel %vm1642, %v4495, 0.0
      %4499 = vadd.xlane.f32.xlu0 %v4498
      %v4500 = vpop.xlane.xlu0 %4499
      %v4501 = vmul.f32 %v4500, %v2851
      %v4502 = vsub.f32 %v4495, %v4501
      %v4503 = vmul.f32 %v4502, %v4502
      %v4504 = vsel %vm1642, %v4503, 0.0
      %4505 = vadd.xlane.f32.xlu0 %v4504
      %v4506 = vpop.xlane.xlu0 %4505
      %v4507 = vmul.f32 %v4506, %v2851
      %v4508 = vadd.f32 %v4507, 1e-12
      %v4509 = vrsqrt.pop %v4508
      %v4510 = vmul.f32 %v4502, %v4509
      %v4512 = vlaneseq
      %v4513 = vshrl.u32 %v4512, 7
      %v4514 = vsub.s32 0, %v4513
      %v4515 = vrot.slane %v4496, %v4514
      %v4517 = vmul.f32 %v4510, %v4515
      %v4519 = vlaneseq
      %v4520 = vshrl.u32 %v4519, 7
      %v4521 = vsub.s32 0, %v4520
      %v4522 = vrot.slane %v4497, %v4521
      %v4524 = vadd.f32 %v4517, %v4522
      %4525 = vst.msk [vmem:[#allocation2] sm:$0xff] %vm1642, %v4524
      %p4526 = scmp.eq.s32.totalorder %s79, 1
      // Predicated region
      $region149: #{vl_transformer_itm_forward.5} parent=143 // pred_check
        %p4527 = pneg %p4526
      $region150: #{vl_transformer_itm_forward.5} parent=143 // pred_check_branch
        %4529 = sbr.rel (%p4527) target = $region152
      $region151: #{vl_transformer_itm_forward.5} parent=143 // pred_region
        %4530 = vst.msk [vmem:[%s1441] sm:$0xff] %vm1642, %v4524
      $region152: #{vl_transformer_itm_forward.5} parent=143 // pred_fallthru
        _
      %p4531 = scmp.lt.s32.totalorder %s78, 1
      %s4532 = scalar_select %p4531, %s78, 1
      %s4533 = smul.addr %s4532, 8
      %s4534 = scalar_lea.vmem %s63, %s4533
      // Predicated region
      $region153: #{vl_transformer_itm_forward.5} parent=143 // pred_check
        %p4535 = pneg %p900
      $region154: #{vl_transformer_itm_forward.5} parent=143 // pred_check_branch
        %4537 = sbr.rel (%p4535) target = $region156
      $region155: #{vl_transformer_itm_forward.5} parent=143 // pred_region
        _
      $region156: #{vl_transformer_itm_forward.5} parent=143 // pred_fallthru
        _
    $region144: #{vl_transformer_itm_forward.5} parent=5 // pred_fallthru
      _
    %p4538 = scmp.le.s32.totalorder 2, %s69
    // Predicated region
    $region157: #{vl_transformer_itm_forward.5} parent=5 // pred_check
      %p4539 = pneg %p4538
    $region158: #{vl_transformer_itm_forward.5} parent=5 // pred_check_branch
      %4541 = sbr.rel (%p4539) target = $region160
    $region159: #{vl_transformer_itm_forward.5} parent=5 // pred_region
      %s4542 = ssub.s32 %s69, 2
      // Predicated region
      $region161: #{vl_transformer_itm_forward.5} parent=159 // pred_check
        %p4543 = pneg %p906
      $region162: #{vl_transformer_itm_forward.5} parent=159 // pred_check_branch
        %4545 = sbr.rel (%p4543) target = $region164
      $region163: #{vl_transformer_itm_forward.5} parent=159 // pred_region
        %p4546 = scmp.lt.s32.totalorder %s80, 1
        %s4547 = scalar_select %p4546, %s80, 1
        %s4548 = smul.addr %s4547, 8
        %s4549 = scalar_lea.vmem %s63, %s4548
      $region164: #{vl_transformer_itm_forward.5} parent=159 // pred_fallthru
        _
    $region160: #{vl_transformer_itm_forward.5} parent=5 // pred_fallthru
      _
  $region6: #{vl_transformer_itm_forward.5} parent=0 // loop_footer
    %s73 = sadd.s32 1, %s69
  $region7: #{vl_transformer_itm_forward.5} parent=0 // loop_footer_branch
    %68 = sbr.rel target = $region3
  $region8: #{vl_transformer_itm_forward.5} parent=0 // loop_exit
    _

</llo_original>
